<compile_context>
chip_gen: v6e
topology: v6e:2x2x1
jax: 0.10.0
libtpu: 0.0.40
codegen_flags: <defaults>
</compile_context>

<pallas_src>
import jax
import jax.numpy as jnp
from jax import lax
from jax.experimental import pallas as pl
from jax.experimental.pallas import tpu as pltpu

BN_EPS = 1e-5

# model dims from OutputLayer(256, 1536, 256, 6024)
D_IN = 256        # linear1 input dim (= FTDNN output dim = linear3 input dim)
D_HID1 = 1536     # linear1 output / bn1 channels / linear2 input
D_HID2 = 256      # linear2 output / bn2 channels
D_OUT = 6024      # classifier output dim (full-dim block -> no pad needed)

_TM12 = 1024      # row tile for passes 1/2 (HBM-bound; bigger amortizes step overhead)
_TM3 = 512        # row tile for pass 3 (VMEM-limited by the (tm, 6024) f32 out tile)


def _pick_tm(n, tmax):
    # Full-dim block when n is small (bypasses the 8-divisibility requirement);
    # otherwise a fixed, 8-divisible tile with a partial final block.
    return tmax if n >= tmax else n


# --------------------------------------------------------------------------
# pass 1: h1 = relu(x @ w1 + b1)  (bf16 store)  +  per-tile BN1 partial stats
# --------------------------------------------------------------------------
def _make_pass1_kernel(n, tm, g):
    need_mask = (n % tm) != 0
    last = g - 1

    def kernel(x_ref, w1_ref, b1_ref, h1_ref, sum1_ref, sumsq1_ref):
        h1 = jnp.dot(x_ref[...].astype(jnp.bfloat16), w1_ref[...],
                     preferred_element_type=jnp.float32)            # (tm, 1536)
        h1 = jnp.maximum(h1 + b1_ref[...], 0.0)
        h1_ref[...] = h1.astype(jnp.bfloat16)

        def write_stats(h):
            sum1_ref[...] = jnp.sum(h, axis=0, keepdims=True)
            sumsq1_ref[...] = jnp.sum(h * h, axis=0, keepdims=True)

        if need_mask:
            i = pl.program_id(0)

            @pl.when(i != last)
            def _():
                write_stats(h1)

            @pl.when(i == last)
            def _():
                rows_valid = n - last * tm                          # static int
                row = lax.broadcasted_iota(jnp.int32, (tm, 1), 0)
                write_stats(jnp.where(row < rows_valid, h1, 0.0))
        else:
            write_stats(h1)

    return kernel


# --------------------------------------------------------------------------
# pass 2: h2 = h1 @ (inv_std1 . w2) - c   (bf16 store) + per-tile BN2 stats
#         (BN1 is folded into w2p / c in the wrapper)
# --------------------------------------------------------------------------
def _make_pass2_kernel(n, tm, g):
    need_mask = (n % tm) != 0
    last = g - 1

    def kernel(h1_ref, w2_ref, c_ref, h2_ref, sum2_ref, sumsq2_ref):
        h2 = jnp.dot(h1_ref[...], w2_ref[...],
                     preferred_element_type=jnp.float32)            # (tm, 256)
        h2 = h2 - c_ref[...]                   # rank-1 BN1 mean correction (f32)
        h2_ref[...] = h2.astype(jnp.bfloat16)

        def write_stats(h):
            sum2_ref[...] = jnp.sum(h, axis=0, keepdims=True)
            sumsq2_ref[...] = jnp.sum(h * h, axis=0, keepdims=True)

        if need_mask:
            i = pl.program_id(0)

            @pl.when(i != last)
            def _():
                write_stats(h2)

            @pl.when(i == last)
            def _():
                rows_valid = n - last * tm
                row = lax.broadcasted_iota(jnp.int32, (tm, 1), 0)
                write_stats(jnp.where(row < rows_valid, h2, 0.0))
        else:
            write_stats(h2)

    return kernel


# --------------------------------------------------------------------------
# pass 3: out = h2 @ (inv_std2 . w3) + b3'     (BN2 folded into w3p / b3p)
# --------------------------------------------------------------------------
def _pass3_kernel(h2_ref, w3_ref, b3_ref, o_ref):
    out = jnp.dot(h2_ref[...], w3_ref[...],
                  preferred_element_type=jnp.float32)               # (tm, 6024)
    o_ref[...] = out + b3_ref[...]


# --------------------------------------------------------------------------
# wrapper
# --------------------------------------------------------------------------
@jax.jit
def ftdnn_acoustic_forward(x, packed_params):
    """x: (B, T, 256) f32 -> (B, T, 6024) f32.

    packed_params = (w1t_bf16, b1, w2t, w3t, b3) with weights pre-transposed
    to (in, out) layout; w2t/w3t stay f32 so the per-call BN fold is applied
    in f32 before the bf16 cast.
    """
    w1bf, b1, w2t, w3t, b3 = packed_params
    B, T, D = x.shape
    assert D == D_IN
    n = B * T
    f32, bf16 = jnp.float32, jnp.bfloat16

    x2d = x.reshape(n, D_IN)                    # no padding; partial blocks handled

    tm1 = _pick_tm(n, _TM12)
    g1 = (n + tm1 - 1) // tm1

    # ------------- pass 1: linear1 + ReLU, BN1 partial stats -------------
    h1, sum1_p, sumsq1_p = pl.pallas_call(
        _make_pass1_kernel(n, tm1, g1),
        grid=(g1,),
        in_specs=[
            pl.BlockSpec((tm1, D_IN), lambda i: (i, 0)),        # x tile (streams)
            pl.BlockSpec((D_IN, D_HID1), lambda i: (0, 0)),     # w1 (pinned, bf16)
            pl.BlockSpec((1, D_HID1), lambda i: (0, 0)),        # b1 (pinned)
        ],
        out_specs=[
            pl.BlockSpec((tm1, D_HID1), lambda i: (i, 0)),              # h1 tile
            pl.BlockSpec((None, 1, D_HID1), lambda i: (i, 0, 0)),       # per-tile sum
            pl.BlockSpec((None, 1, D_HID1), lambda i: (i, 0, 0)),       # per-tile sumsq
        ],
        out_shape=(
            jax.ShapeDtypeStruct((n, D_HID1), bf16),
            jax.ShapeDtypeStruct((g1, 1, D_HID1), f32),
            jax.ShapeDtypeStruct((g1, 1, D_HID1), f32),
        ),
        compiler_params=pltpu.CompilerParams(
            dimension_semantics=("parallel",),
            vmem_limit_bytes=48 * 1024 * 1024),
        cost_estimate=pl.CostEstimate(
            flops=2 * n * D_IN * D_HID1,
            transcendentals=0,
            bytes_accessed=n * D_IN * 4 + D_IN * D_HID1 * 2 + n * D_HID1 * 2),
    )(x2d, w1bf, b1)

    inv_n = 1.0 / n
    sum1 = jnp.sum(sum1_p, axis=0)                       # (1, 1536)
    sumsq1 = jnp.sum(sumsq1_p, axis=0)
    mean1 = sum1 * inv_n
    var1 = jnp.maximum(sumsq1 * inv_n - mean1 * mean1, 0.0)   # biased batch variance
    inv1 = lax.rsqrt(var1 + BN_EPS)

    # Fold BN1 into linear2:  (h1 - mean1)*inv1 @ w2  ==  h1 @ w2p - c
    w2p = (inv1.reshape(D_HID1, 1) * w2t).astype(bf16)   # scale in f32, then bf16
    c = (mean1 * inv1) @ w2t                             # (1, 256) f32

    # ------------- pass 2: folded-BN1 + linear2, BN2 partial stats -------------
    h2, sum2_p, sumsq2_p = pl.pallas_call(
        _make_pass2_kernel(n, tm1, g1),
        grid=(g1,),
        in_specs=[
            pl.BlockSpec((tm1, D_HID1), lambda i: (i, 0)),      # h1 tile (bf16)
            pl.BlockSpec((D_HID1, D_HID2), lambda i: (0, 0)),   # w2p (pinned, bf16)
            pl.BlockSpec((1, D_HID2), lambda i: (0, 0)),        # c (pinned, f32)
        ],
        out_specs=[
            pl.BlockSpec((tm1, D_HID2), lambda i: (i, 0)),              # h2 tile (bf16)
            pl.BlockSpec((None, 1, D_HID2), lambda i: (i, 0, 0)),       # per-tile sum
            pl.BlockSpec((None, 1, D_HID2), lambda i: (i, 0, 0)),       # per-tile sumsq
        ],
        out_shape=(
            jax.ShapeDtypeStruct((n, D_HID2), bf16),
            jax.ShapeDtypeStruct((g1, 1, D_HID2), f32),
            jax.ShapeDtypeStruct((g1, 1, D_HID2), f32),
        ),
        compiler_params=pltpu.CompilerParams(
            dimension_semantics=("parallel",),
            vmem_limit_bytes=48 * 1024 * 1024),
        cost_estimate=pl.CostEstimate(
            flops=2 * n * D_HID1 * D_HID2,
            transcendentals=0,
            bytes_accessed=n * D_HID1 * 2 + D_HID1 * D_HID2 * 2 + n * D_HID2 * 2),
    )(h1, w2p, c)

    sum2 = jnp.sum(sum2_p, axis=0)                       # (1, 256)
    sumsq2 = jnp.sum(sumsq2_p, axis=0)
    mean2 = sum2 * inv_n
    var2 = jnp.maximum(sumsq2 * inv_n - mean2 * mean2, 0.0)
    inv2 = lax.rsqrt(var2 + BN_EPS)

    # Fold BN2 into linear3:  (h2 - mean2)*inv2 @ w3 + b3  ==  h2 @ w3p + b3p
    w3p = (inv2.reshape(D_HID2, 1) * w3t).astype(bf16)
    b3p = b3 - (mean2 * inv2) @ w3t                      # (1, 6024) f32

    tm3 = _pick_tm(n, _TM3)
    g3 = (n + tm3 - 1) // tm3

    # ------------- pass 3: folded-BN2 + classifier, direct (n, 6024) output -------------
    out = pl.pallas_call(
        _pass3_kernel,
        grid=(g3,),
        in_specs=[
            pl.BlockSpec((tm3, D_HID2), lambda i: (i, 0)),      # h2 tile (bf16)
            pl.BlockSpec((D_HID2, D_OUT), lambda i: (0, 0)),    # w3p (pinned, bf16)
            pl.BlockSpec((1, D_OUT), lambda i: (0, 0)),         # b3p (pinned, f32)
        ],
        out_specs=pl.BlockSpec((tm3, D_OUT), lambda i: (i, 0)),
        out_shape=jax.ShapeDtypeStruct((n, D_OUT), f32),
        compiler_params=pltpu.CompilerParams(
            dimension_semantics=("parallel",),
            vmem_limit_bytes=48 * 1024 * 1024),
        cost_estimate=pl.CostEstimate(
            flops=2 * n * D_HID2 * D_OUT,
            transcendentals=0,
            bytes_accessed=n * D_HID2 * 2 + D_HID2 * D_OUT * 2 + n * D_OUT * 4),
    )(h2, w3p, b3p)

    return out.reshape(B, T, D_OUT)          # leading-dim split only -> no copy


# --------------------------------------------------------------------------
# params & references
# --------------------------------------------------------------------------
def init_params(key):
    """Deterministic PyTorch-style init: U(-1/sqrt(fan_in), 1/sqrt(fan_in)).
    Weights stored pre-transposed to (in, out), in f32."""
    k1, k2, k3, k4, k5 = jax.random.split(key, 5)

    def uniform(k, shape, fan_in):
        bound = 1.0 / jnp.sqrt(jnp.float32(fan_in))
        return jax.random.uniform(k, shape, jnp.float32, -bound, bound)

    w1t = uniform(k1, (D_IN, D_HID1), D_IN)
    b1 = uniform(k2, (1, D_HID1), D_IN)
    w2t = uniform(k3, (D_HID1, D_HID2), D_HID1)
    w3t = uniform(k4, (D_HID2, D_OUT), D_HID2)      # linear3: in=256, out=6024
    b3 = uniform(k5, (1, D_OUT), D_HID2)
    return (w1t, b1, w2t, w3t, b3)


def pack_params_for_kernel(params):
    """One-time weight prep: w1 pre-cast to bf16 for the MXU; w2/w3 kept in f32
    so the per-call BN fold is applied in f32 before the bf16 cast."""
    w1t, b1, w2t, w3t, b3 = params
    return (w1t.astype(jnp.bfloat16), b1.astype(jnp.float32),
            w2t.astype(jnp.float32), w3t.astype(jnp.float32),
            b3.astype(jnp.float32))


def _bn_train_f32(h, eps=BN_EPS):
    mean = jnp.mean(h, axis=0, keepdims=True)
    var = jnp.mean(jnp.square(h - mean), axis=0, keepdims=True)
    return (h - mean) * lax.rsqrt(var + eps)


def reference_forward_f32(x, params):
    """Pure-JAX f32 reference with the exact PyTorch OutputLayer semantics
    (training-mode BatchNorm1d, affine=False, biased batch variance)."""
    w1t, b1, w2t, w3t, b3 = params
    B, T, _ = x.shape
    h = x.reshape(B * T, D_IN)
    h = jnp.maximum(h @ w1t + b1, 0.0)
    h = _bn_train_f32(h)
    h = h @ w2t
    h = _bn_train_f32(h)
    h = h @ w3t + b3
    return h.reshape(B, T, D_OUT)


def reference_forward_mixed(x, packed_params):
    """Pure-JAX reference mirroring the kernels' precision policy exactly
    (bf16 MXU inputs, f32 accumulation, f32 BN stats, bf16 h1/h2 round trips,
    BN scales folded into w2/w3 in f32 before the bf16 cast)."""
    w1bf, b1, w2t, w3t, b3 = packed_params
    bf16, f32 = jnp.bfloat16, jnp.float32
    B, T, _ = x.shape
    h = x.reshape(B * T, D_IN)

    h1 = jnp.dot(h.astype(bf16), w1bf, preferred_element_type=f32)
    h1 = jnp.maximum(h1 + b1, 0.0)
    mean1 = jnp.mean(h1, axis=0, keepdims=True)
    var1 = jnp.maximum(jnp.mean(h1 * h1, axis=0, keepdims=True) - mean1 * mean1, 0.0)
    inv1 = lax.rsqrt(var1 + BN_EPS)
    w2p = (inv1.reshape(D_HID1, 1) * w2t).astype(bf16)
    c = (mean1 * inv1) @ w2t

    h1b = h1.astype(bf16)                                 # HBM round trip in bf16
    h2 = jnp.dot(h1b, w2p, preferred_element_type=f32) - c
    mean2 = jnp.mean(h2, axis=0, keepdims=True)
    var2 = jnp.maximum(jnp.mean(h2 * h2, axis=0, keepdims=True) - mean2 * mean2, 0.0)
    inv2 = lax.rsqrt(var2 + BN_EPS)
    w3p = (inv2.reshape(D_HID2, 1) * w3t).astype(bf16)
    b3p = b3 - (mean2 * inv2) @ w3t

    h2b = h2.astype(bf16)                                 # HBM round trip in bf16
    out = jnp.dot(h2b, w3p, preferred_element_type=f32) + b3p
    return out.reshape(B, T, D_OUT)


if __name__ == "__main__":
    key = jax.random.PRNGKey(0)
    kx, kp = jax.random.split(key)

    B, T = 2, 8
    x = jax.random.normal(kx, (B, T, D_IN), jnp.float32)
    params = init_params(kp)
    packed = pack_params_for_kernel(params)

    out = jax.block_until_ready(ftdnn_acoustic_forward(x, packed))
    assert out.shape == (B, T, D_OUT), out.shape
    assert bool(jnp.all(jnp.isfinite(out)))

    # Tight check vs a reference that mirrors the kernel's mixed precision.
    ref_mixed = jax.block_until_ready(reference_forward_mixed(x, packed))
    err_mixed = float(jnp.max(jnp.abs(out - ref_mixed)))
    assert jnp.allclose(out, ref_mixed, atol=5e-3, rtol=5e-3), err_mixed

    # Looser check vs the exact f32 PyTorch-semantics reference (bf16 MXU
    # inputs / intermediates are the only deviation from pure f32 math).
    ref_f32 = jax.block_until_ready(reference_forward_f32(x, params))
    err_f32 = float(jnp.max(jnp.abs(out - ref_f32)))
    assert jnp.allclose(out, ref_f32, atol=5e-2, rtol=5e-2), err_f32

    print("KERNEL_OK")
</pallas_src>

<mosaic_0001>
module attributes {stable_mosaic.version = 11 : i64} {
  func.func @kernel(%arg0: i32, %arg1: memref<16x256xf32, #tpu.memory_space<vmem>>, %arg2: memref<256x1536xbf16, #tpu.memory_space<vmem>>, %arg3: memref<1x1536xf32, #tpu.memory_space<vmem>>, %arg4: memref<16x1536xbf16, #tpu.memory_space<vmem>>, %arg5: memref<1x1x1536xf32, #tpu.memory_space<vmem>>, %arg6: memref<1x1x1536xf32, #tpu.memory_space<vmem>>) attributes {dimension_semantics = [#tpu.dimension_semantics<parallel>], iteration_bounds = array<i64: 1>, scalar_prefetch = 0 : i64, scratch_operands = 0 : i64, tpu.core_type = #tpu.core_type<tc>, window_params = [{transform_indices = @transform_0, window_bounds = array<i64: 16, 256>}, {pipeline_mode = #tpu.pipeline_mode<synchronous>, transform_indices = @transform_1, window_bounds = array<i64: 256, 1536>}, {pipeline_mode = #tpu.pipeline_mode<synchronous>, transform_indices = @transform_2, window_bounds = array<i64: 1, 1536>}, {transform_indices = @transform_3, window_bounds = array<i64: 16, 1536>}, {transform_indices = @transform_4, window_bounds = array<i64: 1, 1, 1536>}, {transform_indices = @transform_5, window_bounds = array<i64: 1, 1, 1536>}]} {
    %c0 = arith.constant 0 : index
    %c0_0 = arith.constant 0 : index
    %0 = vector.load %arg1[%c0, %c0_0] : memref<16x256xf32, #tpu.memory_space<vmem>>, vector<16x256xf32>
    %1 = arith.truncf %0 : vector<16x256xf32> to vector<16x256xbf16>
    %c0_1 = arith.constant 0 : index
    %c0_2 = arith.constant 0 : index
    %2 = vector.load %arg2[%c0_1, %c0_2] : memref<256x1536xbf16, #tpu.memory_space<vmem>>, vector<256x1536xbf16>
    %cst = arith.constant dense<0.000000e+00> : vector<16x1536xf32>
    %3 = tpu.matmul %1, %2, %cst {dimension_numbers = #tpu.dot_dimension_numbers<[1], [0], [0], [1], [0, 0, 1, 1], [], []>} : vector<16x256xbf16>, vector<256x1536xbf16>, vector<16x1536xf32> -> vector<16x1536xf32>
    %c0_3 = arith.constant 0 : index
    %c0_4 = arith.constant 0 : index
    %4 = vector.load %arg3[%c0_3, %c0_4] : memref<1x1536xf32, #tpu.memory_space<vmem>>, vector<1x1536xf32>
    %5 = vector.broadcast %4 : vector<1x1536xf32> to vector<16x1536xf32>
    %6 = arith.addf %3, %5 : vector<16x1536xf32>
    %cst_5 = arith.constant 0.000000e+00 : f32
    %7 = vector.broadcast %cst_5 : f32 to vector<16x1536xf32>
    %8 = arith.maximumf %6, %7 : vector<16x1536xf32>
    %9 = arith.truncf %8 : vector<16x1536xf32> to vector<16x1536xbf16>
    %c0_6 = arith.constant 0 : index
    %c0_7 = arith.constant 0 : index
    %10 = vector.load %arg4[%c0_6, %c0_7] : memref<16x1536xbf16, #tpu.memory_space<vmem>>, vector<16x1536xbf16>
    tpu.vector_store %arg4[%c0_6, %c0_7], %9 {strides = array<i32>} : memref<16x1536xbf16, #tpu.memory_space<vmem>>, vector<16x1536xbf16>,
    %cst_8 = arith.constant dense<0.000000e+00> : vector<1536xf32>
    %11 = vector.multi_reduction <add>, %8, %cst_8 [0] : vector<16x1536xf32> to vector<1536xf32>
    %12 = vector.shape_cast %11 : vector<1536xf32> to vector<1x1536xf32>
    %c0_9 = arith.constant 0 : index
    %c0_10 = arith.constant 0 : index
    %c0_11 = arith.constant 0 : index
    %13 = vector.load %arg5[%c0_9, %c0_10, %c0_11] : memref<1x1x1536xf32, #tpu.memory_space<vmem>>, vector<1x1x1536xf32>
    %14 = vector.shape_cast %13 : vector<1x1x1536xf32> to vector<1x1536xf32>
    %15 = vector.shape_cast %12 : vector<1x1536xf32> to vector<1x1x1536xf32>
    tpu.vector_store %arg5[%c0_9, %c0_10, %c0_11], %15 {strides = array<i32>} : memref<1x1x1536xf32, #tpu.memory_space<vmem>>, vector<1x1x1536xf32>,
    %16 = arith.mulf %8, %8 : vector<16x1536xf32>
    %cst_12 = arith.constant dense<0.000000e+00> : vector<1536xf32>
    %17 = vector.multi_reduction <add>, %16, %cst_12 [0] : vector<16x1536xf32> to vector<1536xf32>
    %18 = vector.shape_cast %17 : vector<1536xf32> to vector<1x1536xf32>
    %c0_13 = arith.constant 0 : index
    %c0_14 = arith.constant 0 : index
    %c0_15 = arith.constant 0 : index
    %19 = vector.load %arg6[%c0_13, %c0_14, %c0_15] : memref<1x1x1536xf32, #tpu.memory_space<vmem>>, vector<1x1x1536xf32>
    %20 = vector.shape_cast %19 : vector<1x1x1536xf32> to vector<1x1536xf32>
    %21 = vector.shape_cast %18 : vector<1x1536xf32> to vector<1x1x1536xf32>
    tpu.vector_store %arg6[%c0_13, %c0_14, %c0_15], %21 {strides = array<i32>} : memref<1x1x1536xf32, #tpu.memory_space<vmem>>, vector<1x1x1536xf32>,
    return
  }
  func.func @transform_0(%arg0: i32) -> (i32, i32) {
    %c0_i32 = arith.constant 0 : i32
    %c0_i32_0 = arith.constant 0 : i32
    return %arg0, %c0_i32 : i32, i32
  }
  func.func @transform_1(%arg0: i32) -> (i32, i32) {
    %c0_i32 = arith.constant 0 : i32
    %c0_i32_0 = arith.constant 0 : i32
    %c0_i32_1 = arith.constant 0 : i32
    return %c0_i32, %c0_i32_0 : i32, i32
  }
  func.func @transform_2(%arg0: i32) -> (i32, i32) {
    %c0_i32 = arith.constant 0 : i32
    %c0_i32_0 = arith.constant 0 : i32
    %c0_i32_1 = arith.constant 0 : i32
    return %c0_i32, %c0_i32_0 : i32, i32
  }
  func.func @transform_3(%arg0: i32) -> (i32, i32) {
    %c0_i32 = arith.constant 0 : i32
    %c0_i32_0 = arith.constant 0 : i32
    return %arg0, %c0_i32 : i32, i32
  }
  func.func @transform_4(%arg0: i32) -> (i32, i32, i32) {
    %c0_i32 = arith.constant 0 : i32
    %c0_i32_0 = arith.constant 0 : i32
    %c0_i32_1 = arith.constant 0 : i32
    return %arg0, %c0_i32, %c0_i32_0 : i32, i32, i32
  }
  func.func @transform_5(%arg0: i32) -> (i32, i32, i32) {
    %c0_i32 = arith.constant 0 : i32
    %c0_i32_0 = arith.constant 0 : i32
    %c0_i32_1 = arith.constant 0 : i32
    return %arg0, %c0_i32, %c0_i32_0 : i32, i32, i32
  }
}

module attributes {stable_mosaic.version = 11 : i64} {
  func.func @kernel(%arg0: i32, %arg1: memref<16x1536xbf16, #tpu.memory_space<vmem>>, %arg2: memref<1536x256xbf16, #tpu.memory_space<vmem>>, %arg3: memref<1x256xf32, #tpu.memory_space<vmem>>, %arg4: memref<16x256xbf16, #tpu.memory_space<vmem>>, %arg5: memref<1x1x256xf32, #tpu.memory_space<vmem>>, %arg6: memref<1x1x256xf32, #tpu.memory_space<vmem>>) attributes {dimension_semantics = [#tpu.dimension_semantics<parallel>], iteration_bounds = array<i64: 1>, scalar_prefetch = 0 : i64, scratch_operands = 0 : i64, tpu.core_type = #tpu.core_type<tc>, window_params = [{transform_indices = @transform_0, window_bounds = array<i64: 16, 1536>}, {pipeline_mode = #tpu.pipeline_mode<synchronous>, transform_indices = @transform_1, window_bounds = array<i64: 1536, 256>}, {pipeline_mode = #tpu.pipeline_mode<synchronous>, transform_indices = @transform_2, window_bounds = array<i64: 1, 256>}, {transform_indices = @transform_3, window_bounds = array<i64: 16, 256>}, {transform_indices = @transform_4, window_bounds = array<i64: 1, 1, 256>}, {transform_indices = @transform_5, window_bounds = array<i64: 1, 1, 256>}]} {
    %c0 = arith.constant 0 : index
    %c0_0 = arith.constant 0 : index
    %0 = vector.load %arg1[%c0, %c0_0] : memref<16x1536xbf16, #tpu.memory_space<vmem>>, vector<16x1536xbf16>
    %c0_1 = arith.constant 0 : index
    %c0_2 = arith.constant 0 : index
    %1 = vector.load %arg2[%c0_1, %c0_2] : memref<1536x256xbf16, #tpu.memory_space<vmem>>, vector<1536x256xbf16>
    %cst = arith.constant dense<0.000000e+00> : vector<16x256xf32>
    %2 = tpu.matmul %0, %1, %cst {dimension_numbers = #tpu.dot_dimension_numbers<[1], [0], [0], [1], [0, 0, 1, 1], [], []>} : vector<16x1536xbf16>, vector<1536x256xbf16>, vector<16x256xf32> -> vector<16x256xf32>
    %c0_3 = arith.constant 0 : index
    %c0_4 = arith.constant 0 : index
    %3 = vector.load %arg3[%c0_3, %c0_4] : memref<1x256xf32, #tpu.memory_space<vmem>>, vector<1x256xf32>
    %4 = vector.broadcast %3 : vector<1x256xf32> to vector<16x256xf32>
    %5 = arith.subf %2, %4 : vector<16x256xf32>
    %6 = arith.truncf %5 : vector<16x256xf32> to vector<16x256xbf16>
    %c0_5 = arith.constant 0 : index
    %c0_6 = arith.constant 0 : index
    %7 = vector.load %arg4[%c0_5, %c0_6] : memref<16x256xbf16, #tpu.memory_space<vmem>>, vector<16x256xbf16>
    tpu.vector_store %arg4[%c0_5, %c0_6], %6 {strides = array<i32>} : memref<16x256xbf16, #tpu.memory_space<vmem>>, vector<16x256xbf16>,
    %cst_7 = arith.constant dense<0.000000e+00> : vector<256xf32>
    %8 = vector.multi_reduction <add>, %5, %cst_7 [0] : vector<16x256xf32> to vector<256xf32>
    %9 = vector.shape_cast %8 : vector<256xf32> to vector<1x256xf32>
    %c0_8 = arith.constant 0 : index
    %c0_9 = arith.constant 0 : index
    %c0_10 = arith.constant 0 : index
    %10 = vector.load %arg5[%c0_8, %c0_9, %c0_10] : memref<1x1x256xf32, #tpu.memory_space<vmem>>, vector<1x1x256xf32>
    %11 = vector.shape_cast %10 : vector<1x1x256xf32> to vector<1x256xf32>
    %12 = vector.shape_cast %9 : vector<1x256xf32> to vector<1x1x256xf32>
    tpu.vector_store %arg5[%c0_8, %c0_9, %c0_10], %12 {strides = array<i32>} : memref<1x1x256xf32, #tpu.memory_space<vmem>>, vector<1x1x256xf32>,
    %13 = arith.mulf %5, %5 : vector<16x256xf32>
    %cst_11 = arith.constant dense<0.000000e+00> : vector<256xf32>
    %14 = vector.multi_reduction <add>, %13, %cst_11 [0] : vector<16x256xf32> to vector<256xf32>
    %15 = vector.shape_cast %14 : vector<256xf32> to vector<1x256xf32>
    %c0_12 = arith.constant 0 : index
    %c0_13 = arith.constant 0 : index
    %c0_14 = arith.constant 0 : index
    %16 = vector.load %arg6[%c0_12, %c0_13, %c0_14] : memref<1x1x256xf32, #tpu.memory_space<vmem>>, vector<1x1x256xf32>
    %17 = vector.shape_cast %16 : vector<1x1x256xf32> to vector<1x256xf32>
    %18 = vector.shape_cast %15 : vector<1x256xf32> to vector<1x1x256xf32>
    tpu.vector_store %arg6[%c0_12, %c0_13, %c0_14], %18 {strides = array<i32>} : memref<1x1x256xf32, #tpu.memory_space<vmem>>, vector<1x1x256xf32>,
    return
  }
  func.func @transform_0(%arg0: i32) -> (i32, i32) {
    %c0_i32 = arith.constant 0 : i32
    %c0_i32_0 = arith.constant 0 : i32
    return %arg0, %c0_i32 : i32, i32
  }
  func.func @transform_1(%arg0: i32) -> (i32, i32) {
    %c0_i32 = arith.constant 0 : i32
    %c0_i32_0 = arith.constant 0 : i32
    %c0_i32_1 = arith.constant 0 : i32
    return %c0_i32, %c0_i32_0 : i32, i32
  }
  func.func @transform_2(%arg0: i32) -> (i32, i32) {
    %c0_i32 = arith.constant 0 : i32
    %c0_i32_0 = arith.constant 0 : i32
    %c0_i32_1 = arith.constant 0 : i32
    return %c0_i32, %c0_i32_0 : i32, i32
  }
  func.func @transform_3(%arg0: i32) -> (i32, i32) {
    %c0_i32 = arith.constant 0 : i32
    %c0_i32_0 = arith.constant 0 : i32
    return %arg0, %c0_i32 : i32, i32
  }
  func.func @transform_4(%arg0: i32) -> (i32, i32, i32) {
    %c0_i32 = arith.constant 0 : i32
    %c0_i32_0 = arith.constant 0 : i32
    %c0_i32_1 = arith.constant 0 : i32
    return %arg0, %c0_i32, %c0_i32_0 : i32, i32, i32
  }
  func.func @transform_5(%arg0: i32) -> (i32, i32, i32) {
    %c0_i32 = arith.constant 0 : i32
    %c0_i32_0 = arith.constant 0 : i32
    %c0_i32_1 = arith.constant 0 : i32
    return %arg0, %c0_i32, %c0_i32_0 : i32, i32, i32
  }
}

module attributes {stable_mosaic.version = 11 : i64} {
  func.func @_pass3_kernel(%arg0: i32, %arg1: memref<16x256xbf16, #tpu.memory_space<vmem>>, %arg2: memref<256x6024xbf16, #tpu.memory_space<vmem>>, %arg3: memref<1x6024xf32, #tpu.memory_space<vmem>>, %arg4: memref<16x6024xf32, #tpu.memory_space<vmem>>) attributes {dimension_semantics = [#tpu.dimension_semantics<parallel>], iteration_bounds = array<i64: 1>, scalar_prefetch = 0 : i64, scratch_operands = 0 : i64, tpu.core_type = #tpu.core_type<tc>, window_params = [{transform_indices = @transform_0, window_bounds = array<i64: 16, 256>}, {pipeline_mode = #tpu.pipeline_mode<synchronous>, transform_indices = @transform_1, window_bounds = array<i64: 256, 6024>}, {pipeline_mode = #tpu.pipeline_mode<synchronous>, transform_indices = @transform_2, window_bounds = array<i64: 1, 6024>}, {transform_indices = @transform_3, window_bounds = array<i64: 16, 6024>}]} {
    %c0 = arith.constant 0 : index
    %c0_0 = arith.constant 0 : index
    %0 = vector.load %arg1[%c0, %c0_0] : memref<16x256xbf16, #tpu.memory_space<vmem>>, vector<16x256xbf16>
    %c0_1 = arith.constant 0 : index
    %c0_2 = arith.constant 0 : index
    %1 = vector.load %arg2[%c0_1, %c0_2] : memref<256x6024xbf16, #tpu.memory_space<vmem>>, vector<256x6024xbf16>
    %cst = arith.constant dense<0.000000e+00> : vector<16x6024xf32>
    %2 = tpu.matmul %0, %1, %cst {dimension_numbers = #tpu.dot_dimension_numbers<[1], [0], [0], [1], [0, 0, 1, 1], [], []>} : vector<16x256xbf16>, vector<256x6024xbf16>, vector<16x6024xf32> -> vector<16x6024xf32>
    %c0_3 = arith.constant 0 : index
    %c0_4 = arith.constant 0 : index
    %3 = vector.load %arg3[%c0_3, %c0_4] : memref<1x6024xf32, #tpu.memory_space<vmem>>, vector<1x6024xf32>
    %4 = vector.broadcast %3 : vector<1x6024xf32> to vector<16x6024xf32>
    %5 = arith.addf %2, %4 : vector<16x6024xf32>
    %c0_5 = arith.constant 0 : index
    %c0_6 = arith.constant 0 : index
    %6 = vector.load %arg4[%c0_5, %c0_6] : memref<16x6024xf32, #tpu.memory_space<vmem>>, vector<16x6024xf32>
    tpu.vector_store %arg4[%c0_5, %c0_6], %5 {strides = array<i32>} : memref<16x6024xf32, #tpu.memory_space<vmem>>, vector<16x6024xf32>,
    return
  }
  func.func @transform_0(%arg0: i32) -> (i32, i32) {
    %c0_i32 = arith.constant 0 : i32
    %c0_i32_0 = arith.constant 0 : i32
    return %arg0, %c0_i32 : i32, i32
  }
  func.func @transform_1(%arg0: i32) -> (i32, i32) {
    %c0_i32 = arith.constant 0 : i32
    %c0_i32_0 = arith.constant 0 : i32
    %c0_i32_1 = arith.constant 0 : i32
    return %c0_i32, %c0_i32_0 : i32, i32
  }
  func.func @transform_2(%arg0: i32) -> (i32, i32) {
    %c0_i32 = arith.constant 0 : i32
    %c0_i32_0 = arith.constant 0 : i32
    %c0_i32_1 = arith.constant 0 : i32
    return %c0_i32, %c0_i32_0 : i32, i32
  }
  func.func @transform_3(%arg0: i32) -> (i32, i32) {
    %c0_i32 = arith.constant 0 : i32
    %c0_i32_0 = arith.constant 0 : i32
    return %arg0, %c0_i32 : i32, i32
  }
}

</mosaic_0001>

<llo_original>
// kernel: ftdnn_acoustic_forward.4
$region0: #{ftdnn_acoustic_forward.4}
  #allocation0 [shape = 'u32[]', space=smem, size = 0x4, offset = 0x4, fixed_abs, tag = 'smem constant byte address 0x4 - core index']
  #allocation1 [shape = 'u32[144,128]{1,0:T(1,128)}', space=vmem, size = 0x12000, scoped, tag = 'internal scratch']
  %s0 = inlined_call_operand.vmem [shape: bf16[16,1536], index: 0, kind: input, shape index: {}]
  %s1 = inlined_call_operand.vmem [shape: bf16[1536,256], index: 1, kind: input, shape index: {}]
  %s2 = inlined_call_operand.vmem [shape: f32[1,256], index: 2, kind: input, shape index: {}]
  %s3 = inlined_call_operand.vmem [shape: bf16[16,256], index: 3, kind: output, shape index: {0}]
  %s4 = inlined_call_operand.vmem [shape: f32[1,1,256], index: 4, kind: output, shape index: {1}]
  %s5 = inlined_call_operand.vmem [shape: f32[1,1,256], index: 5, kind: output, shape index: {2}]
  %6 = xla_tuple %s3, %s4, %s5
  %s7 = sld [smem:[#allocation0]]
  $region38: #{ftdnn_acoustic_forward.4} parent=0
    _
  %s9 = ssub.s32 1, %s7
  %s10 = scalar_select 0, %s9, %s7
  // Predicated region
  $region2: #{ftdnn_acoustic_forward.4} parent=0 // pred_check
    _
  $region3: #{ftdnn_acoustic_forward.4} parent=0 // pred_check_branch
    %12 = sbr.rel (0) target = $region5
  $region4: #{ftdnn_acoustic_forward.4} parent=0 // pred_region
    _
  $region5: #{ftdnn_acoustic_forward.4} parent=0 // pred_fallthru
    _
  // Predicated region
  $region6: #{ftdnn_acoustic_forward.4} parent=0 // pred_check
    _
  $region7: #{ftdnn_acoustic_forward.4} parent=0 // pred_check_branch
    %14 = sbr.rel (0) target = $region9
  $region8: #{ftdnn_acoustic_forward.4} parent=0 // pred_region
    _
  $region9: #{ftdnn_acoustic_forward.4} parent=0 // pred_fallthru
    _
  // Predicated region
  $region10: #{ftdnn_acoustic_forward.4} parent=0 // pred_check
    _
  $region11: #{ftdnn_acoustic_forward.4} parent=0 // pred_check_branch
    %16 = sbr.rel (0) target = $region13
  $region12: #{ftdnn_acoustic_forward.4} parent=0 // pred_region
    _
  $region13: #{ftdnn_acoustic_forward.4} parent=0 // pred_fallthru
    _
  %v17 = vld [vmem:[%s0] sm:$0xff]
  %v18 = vld [vmem:[%s0 + $0x8] sm:$0xff]
  %v19 = vld [vmem:[%s0 + $0x10] sm:$0xff]
  %v20 = vld [vmem:[%s0 + $0x18] sm:$0xff]
  %v21 = vld [vmem:[%s0 + $0x20] sm:$0xff]
  %v22 = vld [vmem:[%s0 + $0x28] sm:$0xff]
  %v23 = vld [vmem:[%s0 + $0x30] sm:$0xff]
  %v24 = vld [vmem:[%s0 + $0x38] sm:$0xff]
  %v25 = vld [vmem:[%s0 + $0x40] sm:$0xff]
  %v26 = vld [vmem:[%s0 + $0x48] sm:$0xff]
  %v27 = vld [vmem:[%s0 + $0x50] sm:$0xff]
  %v28 = vld [vmem:[%s0 + $0x58] sm:$0xff]
  %v29 = vld [vmem:[%s1] sm:$0xff]
  %v30 = vld [vmem:[%s1 + $0x8] sm:$0xff]
  %v31 = vld [vmem:[%s1 + $0x10] sm:$0xff]
  %v32 = vld [vmem:[%s1 + $0x18] sm:$0xff]
  %v33 = vld [vmem:[%s1 + $0x20] sm:$0xff]
  %v34 = vld [vmem:[%s1 + $0x28] sm:$0xff]
  %v35 = vld [vmem:[%s1 + $0x30] sm:$0xff]
  %v36 = vld [vmem:[%s1 + $0x38] sm:$0xff]
  %v37 = vld [vmem:[%s1 + $0x40] sm:$0xff]
  %v38 = vld [vmem:[%s1 + $0x48] sm:$0xff]
  %v39 = vld [vmem:[%s1 + $0x50] sm:$0xff]
  %v40 = vld [vmem:[%s1 + $0x58] sm:$0xff]
  %v41 = vld [vmem:[%s1 + $0x60] sm:$0xff]
  %v42 = vld [vmem:[%s1 + $0x68] sm:$0xff]
  %v43 = vld [vmem:[%s1 + $0x70] sm:$0xff]
  %v44 = vld [vmem:[%s1 + $0x78] sm:$0xff]
  %v45 = vld [vmem:[%s1 + $0x80] sm:$0xff]
  %v46 = vld [vmem:[%s1 + $0x88] sm:$0xff]
  %v47 = vld [vmem:[%s1 + $0x90] sm:$0xff]
  %v48 = vld [vmem:[%s1 + $0x98] sm:$0xff]
  %v49 = vld [vmem:[%s1 + $0xa0] sm:$0xff]
  %v50 = vld [vmem:[%s1 + $0xa8] sm:$0xff]
  %v51 = vld [vmem:[%s1 + $0xb0] sm:$0xff]
  %v52 = vld [vmem:[%s1 + $0xb8] sm:$0xff]
  %v53 = vld [vmem:[%s1 + $0xc0] sm:$0xff]
  %v54 = vld [vmem:[%s1 + $0xc8] sm:$0xff]
  %v55 = vld [vmem:[%s1 + $0xd0] sm:$0xff]
  %v56 = vld [vmem:[%s1 + $0xd8] sm:$0xff]
  %v57 = vld [vmem:[%s1 + $0xe0] sm:$0xff]
  %v58 = vld [vmem:[%s1 + $0xe8] sm:$0xff]
  %v59 = vld [vmem:[%s1 + $0xf0] sm:$0xff]
  %v60 = vld [vmem:[%s1 + $0xf8] sm:$0xff]
  %v61 = vld [vmem:[%s1 + $0x100] sm:$0xff]
  %v62 = vld [vmem:[%s1 + $0x108] sm:$0xff]
  %v63 = vld [vmem:[%s1 + $0x110] sm:$0xff]
  %v64 = vld [vmem:[%s1 + $0x118] sm:$0xff]
  %v65 = vld [vmem:[%s1 + $0x120] sm:$0xff]
  %v66 = vld [vmem:[%s1 + $0x128] sm:$0xff]
  %v67 = vld [vmem:[%s1 + $0x130] sm:$0xff]
  %v68 = vld [vmem:[%s1 + $0x138] sm:$0xff]
  %v69 = vld [vmem:[%s1 + $0x140] sm:$0xff]
  %v70 = vld [vmem:[%s1 + $0x148] sm:$0xff]
  %v71 = vld [vmem:[%s1 + $0x150] sm:$0xff]
  %v72 = vld [vmem:[%s1 + $0x158] sm:$0xff]
  %v73 = vld [vmem:[%s1 + $0x160] sm:$0xff]
  %v74 = vld [vmem:[%s1 + $0x168] sm:$0xff]
  %v75 = vld [vmem:[%s1 + $0x170] sm:$0xff]
  %v76 = vld [vmem:[%s1 + $0x178] sm:$0xff]
  %v77 = vld [vmem:[%s1 + $0x180] sm:$0xff]
  %v78 = vld [vmem:[%s1 + $0x188] sm:$0xff]
  %v79 = vld [vmem:[%s1 + $0x190] sm:$0xff]
  %v80 = vld [vmem:[%s1 + $0x198] sm:$0xff]
  %v81 = vld [vmem:[%s1 + $0x1a0] sm:$0xff]
  %v82 = vld [vmem:[%s1 + $0x1a8] sm:$0xff]
  %v83 = vld [vmem:[%s1 + $0x1b0] sm:$0xff]
  %v84 = vld [vmem:[%s1 + $0x1b8] sm:$0xff]
  %v85 = vld [vmem:[%s1 + $0x1c0] sm:$0xff]
  %v86 = vld [vmem:[%s1 + $0x1c8] sm:$0xff]
  %v87 = vld [vmem:[%s1 + $0x1d0] sm:$0xff]
  %v88 = vld [vmem:[%s1 + $0x1d8] sm:$0xff]
  %v89 = vld [vmem:[%s1 + $0x1e0] sm:$0xff]
  %v90 = vld [vmem:[%s1 + $0x1e8] sm:$0xff]
  %v91 = vld [vmem:[%s1 + $0x1f0] sm:$0xff]
  %v92 = vld [vmem:[%s1 + $0x1f8] sm:$0xff]
  %v93 = vld [vmem:[%s1 + $0x200] sm:$0xff]
  %v94 = vld [vmem:[%s1 + $0x208] sm:$0xff]
  %v95 = vld [vmem:[%s1 + $0x210] sm:$0xff]
  %v96 = vld [vmem:[%s1 + $0x218] sm:$0xff]
  %v97 = vld [vmem:[%s1 + $0x220] sm:$0xff]
  %v98 = vld [vmem:[%s1 + $0x228] sm:$0xff]
  %v99 = vld [vmem:[%s1 + $0x230] sm:$0xff]
  %v100 = vld [vmem:[%s1 + $0x238] sm:$0xff]
  %v101 = vld [vmem:[%s1 + $0x240] sm:$0xff]
  %v102 = vld [vmem:[%s1 + $0x248] sm:$0xff]
  %v103 = vld [vmem:[%s1 + $0x250] sm:$0xff]
  %v104 = vld [vmem:[%s1 + $0x258] sm:$0xff]
  %v105 = vld [vmem:[%s1 + $0x260] sm:$0xff]
  %v106 = vld [vmem:[%s1 + $0x268] sm:$0xff]
  %v107 = vld [vmem:[%s1 + $0x270] sm:$0xff]
  %v108 = vld [vmem:[%s1 + $0x278] sm:$0xff]
  %v109 = vld [vmem:[%s1 + $0x280] sm:$0xff]
  %v110 = vld [vmem:[%s1 + $0x288] sm:$0xff]
  %v111 = vld [vmem:[%s1 + $0x290] sm:$0xff]
  %v112 = vld [vmem:[%s1 + $0x298] sm:$0xff]
  %v113 = vld [vmem:[%s1 + $0x2a0] sm:$0xff]
  %v114 = vld [vmem:[%s1 + $0x2a8] sm:$0xff]
  %v115 = vld [vmem:[%s1 + $0x2b0] sm:$0xff]
  %v116 = vld [vmem:[%s1 + $0x2b8] sm:$0xff]
  %v117 = vld [vmem:[%s1 + $0x2c0] sm:$0xff]
  %v118 = vld [vmem:[%s1 + $0x2c8] sm:$0xff]
  %v119 = vld [vmem:[%s1 + $0x2d0] sm:$0xff]
  %v120 = vld [vmem:[%s1 + $0x2d8] sm:$0xff]
  %v121 = vld [vmem:[%s1 + $0x2e0] sm:$0xff]
  %v122 = vld [vmem:[%s1 + $0x2e8] sm:$0xff]
  %v123 = vld [vmem:[%s1 + $0x2f0] sm:$0xff]
  %v124 = vld [vmem:[%s1 + $0x2f8] sm:$0xff]
  %v125 = vld [vmem:[%s1 + $0x300] sm:$0xff]
  %v126 = vld [vmem:[%s1 + $0x308] sm:$0xff]
  %v127 = vld [vmem:[%s1 + $0x310] sm:$0xff]
  %v128 = vld [vmem:[%s1 + $0x318] sm:$0xff]
  %v129 = vld [vmem:[%s1 + $0x320] sm:$0xff]
  %v130 = vld [vmem:[%s1 + $0x328] sm:$0xff]
  %v131 = vld [vmem:[%s1 + $0x330] sm:$0xff]
  %v132 = vld [vmem:[%s1 + $0x338] sm:$0xff]
  %v133 = vld [vmem:[%s1 + $0x340] sm:$0xff]
  %v134 = vld [vmem:[%s1 + $0x348] sm:$0xff]
  %v135 = vld [vmem:[%s1 + $0x350] sm:$0xff]
  %v136 = vld [vmem:[%s1 + $0x358] sm:$0xff]
  %v137 = vld [vmem:[%s1 + $0x360] sm:$0xff]
  %v138 = vld [vmem:[%s1 + $0x368] sm:$0xff]
  %v139 = vld [vmem:[%s1 + $0x370] sm:$0xff]
  %v140 = vld [vmem:[%s1 + $0x378] sm:$0xff]
  %v141 = vld [vmem:[%s1 + $0x380] sm:$0xff]
  %v142 = vld [vmem:[%s1 + $0x388] sm:$0xff]
  %v143 = vld [vmem:[%s1 + $0x390] sm:$0xff]
  %v144 = vld [vmem:[%s1 + $0x398] sm:$0xff]
  %v145 = vld [vmem:[%s1 + $0x3a0] sm:$0xff]
  %v146 = vld [vmem:[%s1 + $0x3a8] sm:$0xff]
  %v147 = vld [vmem:[%s1 + $0x3b0] sm:$0xff]
  %v148 = vld [vmem:[%s1 + $0x3b8] sm:$0xff]
  %v149 = vld [vmem:[%s1 + $0x3c0] sm:$0xff]
  %v150 = vld [vmem:[%s1 + $0x3c8] sm:$0xff]
  %v151 = vld [vmem:[%s1 + $0x3d0] sm:$0xff]
  %v152 = vld [vmem:[%s1 + $0x3d8] sm:$0xff]
  %v153 = vld [vmem:[%s1 + $0x3e0] sm:$0xff]
  %v154 = vld [vmem:[%s1 + $0x3e8] sm:$0xff]
  %v155 = vld [vmem:[%s1 + $0x3f0] sm:$0xff]
  %v156 = vld [vmem:[%s1 + $0x3f8] sm:$0xff]
  %v157 = vld [vmem:[%s1 + $0x400] sm:$0xff]
  %v158 = vld [vmem:[%s1 + $0x408] sm:$0xff]
  %v159 = vld [vmem:[%s1 + $0x410] sm:$0xff]
  %v160 = vld [vmem:[%s1 + $0x418] sm:$0xff]
  %v161 = vld [vmem:[%s1 + $0x420] sm:$0xff]
  %v162 = vld [vmem:[%s1 + $0x428] sm:$0xff]
  %v163 = vld [vmem:[%s1 + $0x430] sm:$0xff]
  %v164 = vld [vmem:[%s1 + $0x438] sm:$0xff]
  %v165 = vld [vmem:[%s1 + $0x440] sm:$0xff]
  %v166 = vld [vmem:[%s1 + $0x448] sm:$0xff]
  %v167 = vld [vmem:[%s1 + $0x450] sm:$0xff]
  %v168 = vld [vmem:[%s1 + $0x458] sm:$0xff]
  %v169 = vld [vmem:[%s1 + $0x460] sm:$0xff]
  %v170 = vld [vmem:[%s1 + $0x468] sm:$0xff]
  %v171 = vld [vmem:[%s1 + $0x470] sm:$0xff]
  %v172 = vld [vmem:[%s1 + $0x478] sm:$0xff]
  %v173 = vld [vmem:[%s1 + $0x480] sm:$0xff]
  %v174 = vld [vmem:[%s1 + $0x488] sm:$0xff]
  %v175 = vld [vmem:[%s1 + $0x490] sm:$0xff]
  %v176 = vld [vmem:[%s1 + $0x498] sm:$0xff]
  %v177 = vld [vmem:[%s1 + $0x4a0] sm:$0xff]
  %v178 = vld [vmem:[%s1 + $0x4a8] sm:$0xff]
  %v179 = vld [vmem:[%s1 + $0x4b0] sm:$0xff]
  %v180 = vld [vmem:[%s1 + $0x4b8] sm:$0xff]
  %v181 = vld [vmem:[%s1 + $0x4c0] sm:$0xff]
  %v182 = vld [vmem:[%s1 + $0x4c8] sm:$0xff]
  %v183 = vld [vmem:[%s1 + $0x4d0] sm:$0xff]
  %v184 = vld [vmem:[%s1 + $0x4d8] sm:$0xff]
  %v185 = vld [vmem:[%s1 + $0x4e0] sm:$0xff]
  %v186 = vld [vmem:[%s1 + $0x4e8] sm:$0xff]
  %v187 = vld [vmem:[%s1 + $0x4f0] sm:$0xff]
  %v188 = vld [vmem:[%s1 + $0x4f8] sm:$0xff]
  %v189 = vld [vmem:[%s1 + $0x500] sm:$0xff]
  %v190 = vld [vmem:[%s1 + $0x508] sm:$0xff]
  %v191 = vld [vmem:[%s1 + $0x510] sm:$0xff]
  %v192 = vld [vmem:[%s1 + $0x518] sm:$0xff]
  %v193 = vld [vmem:[%s1 + $0x520] sm:$0xff]
  %v194 = vld [vmem:[%s1 + $0x528] sm:$0xff]
  %v195 = vld [vmem:[%s1 + $0x530] sm:$0xff]
  %v196 = vld [vmem:[%s1 + $0x538] sm:$0xff]
  %v197 = vld [vmem:[%s1 + $0x540] sm:$0xff]
  %v198 = vld [vmem:[%s1 + $0x548] sm:$0xff]
  %v199 = vld [vmem:[%s1 + $0x550] sm:$0xff]
  %v200 = vld [vmem:[%s1 + $0x558] sm:$0xff]
  %v201 = vld [vmem:[%s1 + $0x560] sm:$0xff]
  %v202 = vld [vmem:[%s1 + $0x568] sm:$0xff]
  %v203 = vld [vmem:[%s1 + $0x570] sm:$0xff]
  %v204 = vld [vmem:[%s1 + $0x578] sm:$0xff]
  %v205 = vld [vmem:[%s1 + $0x580] sm:$0xff]
  %v206 = vld [vmem:[%s1 + $0x588] sm:$0xff]
  %v207 = vld [vmem:[%s1 + $0x590] sm:$0xff]
  %v208 = vld [vmem:[%s1 + $0x598] sm:$0xff]
  %v209 = vld [vmem:[%s1 + $0x5a0] sm:$0xff]
  %v210 = vld [vmem:[%s1 + $0x5a8] sm:$0xff]
  %v211 = vld [vmem:[%s1 + $0x5b0] sm:$0xff]
  %v212 = vld [vmem:[%s1 + $0x5b8] sm:$0xff]
  %v213 = vld [vmem:[%s1 + $0x5c0] sm:$0xff]
  %v214 = vld [vmem:[%s1 + $0x5c8] sm:$0xff]
  %v215 = vld [vmem:[%s1 + $0x5d0] sm:$0xff]
  %v216 = vld [vmem:[%s1 + $0x5d8] sm:$0xff]
  %v217 = vld [vmem:[%s1 + $0x5e0] sm:$0xff]
  %v218 = vld [vmem:[%s1 + $0x5e8] sm:$0xff]
  %v219 = vld [vmem:[%s1 + $0x5f0] sm:$0xff]
  %v220 = vld [vmem:[%s1 + $0x5f8] sm:$0xff]
  %v233 = vunpack.c.l.b16 %v17
  %v234 = vunpack.c.h.b16 %v17
  %v235 = vunpack.c.l.b16 %v18
  %v236 = vunpack.c.h.b16 %v18
  %v237 = vunpack.c.l.b16 %v19
  %v238 = vunpack.c.h.b16 %v19
  %v239 = vunpack.c.l.b16 %v20
  %v240 = vunpack.c.h.b16 %v20
  %v241 = vunpack.c.l.b16 %v21
  %v242 = vunpack.c.h.b16 %v21
  %v243 = vunpack.c.l.b16 %v22
  %v244 = vunpack.c.h.b16 %v22
  %v245 = vunpack.c.l.b16 %v23
  %v246 = vunpack.c.h.b16 %v23
  %v247 = vunpack.c.l.b16 %v24
  %v248 = vunpack.c.h.b16 %v24
  %v249 = vunpack.c.l.b16 %v25
  %v250 = vunpack.c.h.b16 %v25
  %v251 = vunpack.c.l.b16 %v26
  %v252 = vunpack.c.h.b16 %v26
  %v253 = vunpack.c.l.b16 %v27
  %v254 = vunpack.c.h.b16 %v27
  %v255 = vunpack.c.l.b16 %v28
  %v256 = vunpack.c.h.b16 %v28
  %v257 = vpack.c.b16 %v245, %v233
  %v258 = vpack.c.b16 %v246, %v234
  %v259 = vpack.c.b16 %v247, %v235
  %v260 = vpack.c.b16 %v248, %v236
  %v261 = vpack.c.b16 %v249, %v237
  %v262 = vpack.c.b16 %v250, %v238
  %v263 = vpack.c.b16 %v251, %v239
  %v264 = vpack.c.b16 %v252, %v240
  %v265 = vpack.c.b16 %v253, %v241
  %v266 = vpack.c.b16 %v254, %v242
  %v267 = vpack.c.b16 %v255, %v243
  %v268 = vpack.c.b16 %v256, %v244
  %v473 = vunpack.c.l.b16 %v29
  %v474 = vunpack.c.h.b16 %v29
  %v475 = vunpack.c.l.b16 %v30
  %v476 = vunpack.c.h.b16 %v30
  %v477 = vunpack.c.l.b16 %v31
  %v478 = vunpack.c.h.b16 %v31
  %v479 = vunpack.c.l.b16 %v32
  %v480 = vunpack.c.h.b16 %v32
  %v481 = vunpack.c.l.b16 %v33
  %v482 = vunpack.c.h.b16 %v33
  %v483 = vunpack.c.l.b16 %v34
  %v484 = vunpack.c.h.b16 %v34
  %v485 = vunpack.c.l.b16 %v35
  %v486 = vunpack.c.h.b16 %v35
  %v487 = vunpack.c.l.b16 %v36
  %v488 = vunpack.c.h.b16 %v36
  %v489 = vunpack.c.l.b16 %v37
  %v490 = vunpack.c.h.b16 %v37
  %v491 = vunpack.c.l.b16 %v38
  %v492 = vunpack.c.h.b16 %v38
  %v493 = vunpack.c.l.b16 %v39
  %v494 = vunpack.c.h.b16 %v39
  %v495 = vunpack.c.l.b16 %v40
  %v496 = vunpack.c.h.b16 %v40
  %v497 = vunpack.c.l.b16 %v41
  %v498 = vunpack.c.h.b16 %v41
  %v499 = vunpack.c.l.b16 %v42
  %v500 = vunpack.c.h.b16 %v42
  %v501 = vunpack.c.l.b16 %v43
  %v502 = vunpack.c.h.b16 %v43
  %v503 = vunpack.c.l.b16 %v44
  %v504 = vunpack.c.h.b16 %v44
  %v505 = vunpack.c.l.b16 %v45
  %v506 = vunpack.c.h.b16 %v45
  %v507 = vunpack.c.l.b16 %v46
  %v508 = vunpack.c.h.b16 %v46
  %v509 = vunpack.c.l.b16 %v47
  %v510 = vunpack.c.h.b16 %v47
  %v511 = vunpack.c.l.b16 %v48
  %v512 = vunpack.c.h.b16 %v48
  %v513 = vunpack.c.l.b16 %v49
  %v514 = vunpack.c.h.b16 %v49
  %v515 = vunpack.c.l.b16 %v50
  %v516 = vunpack.c.h.b16 %v50
  %v517 = vunpack.c.l.b16 %v51
  %v518 = vunpack.c.h.b16 %v51
  %v519 = vunpack.c.l.b16 %v52
  %v520 = vunpack.c.h.b16 %v52
  %v521 = vunpack.c.l.b16 %v53
  %v522 = vunpack.c.h.b16 %v53
  %v523 = vunpack.c.l.b16 %v54
  %v524 = vunpack.c.h.b16 %v54
  %v525 = vunpack.c.l.b16 %v55
  %v526 = vunpack.c.h.b16 %v55
  %v527 = vunpack.c.l.b16 %v56
  %v528 = vunpack.c.h.b16 %v56
  %v529 = vunpack.c.l.b16 %v57
  %v530 = vunpack.c.h.b16 %v57
  %v531 = vunpack.c.l.b16 %v58
  %v532 = vunpack.c.h.b16 %v58
  %v533 = vunpack.c.l.b16 %v59
  %v534 = vunpack.c.h.b16 %v59
  %v535 = vunpack.c.l.b16 %v60
  %v536 = vunpack.c.h.b16 %v60
  %v537 = vunpack.c.l.b16 %v61
  %v538 = vunpack.c.h.b16 %v61
  %v539 = vunpack.c.l.b16 %v62
  %v540 = vunpack.c.h.b16 %v62
  %v541 = vunpack.c.l.b16 %v63
  %v542 = vunpack.c.h.b16 %v63
  %v543 = vunpack.c.l.b16 %v64
  %v544 = vunpack.c.h.b16 %v64
  %v545 = vunpack.c.l.b16 %v65
  %v546 = vunpack.c.h.b16 %v65
  %v547 = vunpack.c.l.b16 %v66
  %v548 = vunpack.c.h.b16 %v66
  %v549 = vunpack.c.l.b16 %v67
  %v550 = vunpack.c.h.b16 %v67
  %v551 = vunpack.c.l.b16 %v68
  %v552 = vunpack.c.h.b16 %v68
  %v553 = vunpack.c.l.b16 %v69
  %v554 = vunpack.c.h.b16 %v69
  %v555 = vunpack.c.l.b16 %v70
  %v556 = vunpack.c.h.b16 %v70
  %v557 = vunpack.c.l.b16 %v71
  %v558 = vunpack.c.h.b16 %v71
  %v559 = vunpack.c.l.b16 %v72
  %v560 = vunpack.c.h.b16 %v72
  %v561 = vunpack.c.l.b16 %v73
  %v562 = vunpack.c.h.b16 %v73
  %v563 = vunpack.c.l.b16 %v74
  %v564 = vunpack.c.h.b16 %v74
  %v565 = vunpack.c.l.b16 %v75
  %v566 = vunpack.c.h.b16 %v75
  %v567 = vunpack.c.l.b16 %v76
  %v568 = vunpack.c.h.b16 %v76
  %v569 = vunpack.c.l.b16 %v77
  %v570 = vunpack.c.h.b16 %v77
  %v571 = vunpack.c.l.b16 %v78
  %v572 = vunpack.c.h.b16 %v78
  %v573 = vunpack.c.l.b16 %v79
  %v574 = vunpack.c.h.b16 %v79
  %v575 = vunpack.c.l.b16 %v80
  %v576 = vunpack.c.h.b16 %v80
  %v577 = vunpack.c.l.b16 %v81
  %v578 = vunpack.c.h.b16 %v81
  %v579 = vunpack.c.l.b16 %v82
  %v580 = vunpack.c.h.b16 %v82
  %v581 = vunpack.c.l.b16 %v83
  %v582 = vunpack.c.h.b16 %v83
  %v583 = vunpack.c.l.b16 %v84
  %v584 = vunpack.c.h.b16 %v84
  %v585 = vunpack.c.l.b16 %v85
  %v586 = vunpack.c.h.b16 %v85
  %v587 = vunpack.c.l.b16 %v86
  %v588 = vunpack.c.h.b16 %v86
  %v589 = vunpack.c.l.b16 %v87
  %v590 = vunpack.c.h.b16 %v87
  %v591 = vunpack.c.l.b16 %v88
  %v592 = vunpack.c.h.b16 %v88
  %v593 = vunpack.c.l.b16 %v89
  %v594 = vunpack.c.h.b16 %v89
  %v595 = vunpack.c.l.b16 %v90
  %v596 = vunpack.c.h.b16 %v90
  %v597 = vunpack.c.l.b16 %v91
  %v598 = vunpack.c.h.b16 %v91
  %v599 = vunpack.c.l.b16 %v92
  %v600 = vunpack.c.h.b16 %v92
  %v601 = vunpack.c.l.b16 %v93
  %v602 = vunpack.c.h.b16 %v93
  %v603 = vunpack.c.l.b16 %v94
  %v604 = vunpack.c.h.b16 %v94
  %v605 = vunpack.c.l.b16 %v95
  %v606 = vunpack.c.h.b16 %v95
  %v607 = vunpack.c.l.b16 %v96
  %v608 = vunpack.c.h.b16 %v96
  %v609 = vunpack.c.l.b16 %v97
  %v610 = vunpack.c.h.b16 %v97
  %v611 = vunpack.c.l.b16 %v98
  %v612 = vunpack.c.h.b16 %v98
  %v613 = vunpack.c.l.b16 %v99
  %v614 = vunpack.c.h.b16 %v99
  %v615 = vunpack.c.l.b16 %v100
  %v616 = vunpack.c.h.b16 %v100
  %v617 = vunpack.c.l.b16 %v101
  %v618 = vunpack.c.h.b16 %v101
  %v619 = vunpack.c.l.b16 %v102
  %v620 = vunpack.c.h.b16 %v102
  %v621 = vunpack.c.l.b16 %v103
  %v622 = vunpack.c.h.b16 %v103
  %v623 = vunpack.c.l.b16 %v104
  %v624 = vunpack.c.h.b16 %v104
  %v625 = vunpack.c.l.b16 %v105
  %v626 = vunpack.c.h.b16 %v105
  %v627 = vunpack.c.l.b16 %v106
  %v628 = vunpack.c.h.b16 %v106
  %v629 = vunpack.c.l.b16 %v107
  %v630 = vunpack.c.h.b16 %v107
  %v631 = vunpack.c.l.b16 %v108
  %v632 = vunpack.c.h.b16 %v108
  %v633 = vunpack.c.l.b16 %v109
  %v634 = vunpack.c.h.b16 %v109
  %v635 = vunpack.c.l.b16 %v110
  %v636 = vunpack.c.h.b16 %v110
  %v637 = vunpack.c.l.b16 %v111
  %v638 = vunpack.c.h.b16 %v111
  %v639 = vunpack.c.l.b16 %v112
  %v640 = vunpack.c.h.b16 %v112
  %v641 = vunpack.c.l.b16 %v113
  %v642 = vunpack.c.h.b16 %v113
  %v643 = vunpack.c.l.b16 %v114
  %v644 = vunpack.c.h.b16 %v114
  %v645 = vunpack.c.l.b16 %v115
  %v646 = vunpack.c.h.b16 %v115
  %v647 = vunpack.c.l.b16 %v116
  %v648 = vunpack.c.h.b16 %v116
  %v649 = vunpack.c.l.b16 %v117
  %v650 = vunpack.c.h.b16 %v117
  %v651 = vunpack.c.l.b16 %v118
  %v652 = vunpack.c.h.b16 %v118
  %v653 = vunpack.c.l.b16 %v119
  %v654 = vunpack.c.h.b16 %v119
  %v655 = vunpack.c.l.b16 %v120
  %v656 = vunpack.c.h.b16 %v120
  %v657 = vunpack.c.l.b16 %v121
  %v658 = vunpack.c.h.b16 %v121
  %v659 = vunpack.c.l.b16 %v122
  %v660 = vunpack.c.h.b16 %v122
  %v661 = vunpack.c.l.b16 %v123
  %v662 = vunpack.c.h.b16 %v123
  %v663 = vunpack.c.l.b16 %v124
  %v664 = vunpack.c.h.b16 %v124
  %v665 = vunpack.c.l.b16 %v125
  %v666 = vunpack.c.h.b16 %v125
  %v667 = vunpack.c.l.b16 %v126
  %v668 = vunpack.c.h.b16 %v126
  %v669 = vunpack.c.l.b16 %v127
  %v670 = vunpack.c.h.b16 %v127
  %v671 = vunpack.c.l.b16 %v128
  %v672 = vunpack.c.h.b16 %v128
  %v673 = vunpack.c.l.b16 %v129
  %v674 = vunpack.c.h.b16 %v129
  %v675 = vunpack.c.l.b16 %v130
  %v676 = vunpack.c.h.b16 %v130
  %v677 = vunpack.c.l.b16 %v131
  %v678 = vunpack.c.h.b16 %v131
  %v679 = vunpack.c.l.b16 %v132
  %v680 = vunpack.c.h.b16 %v132
  %v681 = vunpack.c.l.b16 %v133
  %v682 = vunpack.c.h.b16 %v133
  %v683 = vunpack.c.l.b16 %v134
  %v684 = vunpack.c.h.b16 %v134
  %v685 = vunpack.c.l.b16 %v135
  %v686 = vunpack.c.h.b16 %v135
  %v687 = vunpack.c.l.b16 %v136
  %v688 = vunpack.c.h.b16 %v136
  %v689 = vunpack.c.l.b16 %v137
  %v690 = vunpack.c.h.b16 %v137
  %v691 = vunpack.c.l.b16 %v138
  %v692 = vunpack.c.h.b16 %v138
  %v693 = vunpack.c.l.b16 %v139
  %v694 = vunpack.c.h.b16 %v139
  %v695 = vunpack.c.l.b16 %v140
  %v696 = vunpack.c.h.b16 %v140
  %v697 = vunpack.c.l.b16 %v141
  %v698 = vunpack.c.h.b16 %v141
  %v699 = vunpack.c.l.b16 %v142
  %v700 = vunpack.c.h.b16 %v142
  %v701 = vunpack.c.l.b16 %v143
  %v702 = vunpack.c.h.b16 %v143
  %v703 = vunpack.c.l.b16 %v144
  %v704 = vunpack.c.h.b16 %v144
  %v705 = vunpack.c.l.b16 %v145
  %v706 = vunpack.c.h.b16 %v145
  %v707 = vunpack.c.l.b16 %v146
  %v708 = vunpack.c.h.b16 %v146
  %v709 = vunpack.c.l.b16 %v147
  %v710 = vunpack.c.h.b16 %v147
  %v711 = vunpack.c.l.b16 %v148
  %v712 = vunpack.c.h.b16 %v148
  %v713 = vunpack.c.l.b16 %v149
  %v714 = vunpack.c.h.b16 %v149
  %v715 = vunpack.c.l.b16 %v150
  %v716 = vunpack.c.h.b16 %v150
  %v717 = vunpack.c.l.b16 %v151
  %v718 = vunpack.c.h.b16 %v151
  %v719 = vunpack.c.l.b16 %v152
  %v720 = vunpack.c.h.b16 %v152
  %v721 = vunpack.c.l.b16 %v153
  %v722 = vunpack.c.h.b16 %v153
  %v723 = vunpack.c.l.b16 %v154
  %v724 = vunpack.c.h.b16 %v154
  %v725 = vunpack.c.l.b16 %v155
  %v726 = vunpack.c.h.b16 %v155
  %v727 = vunpack.c.l.b16 %v156
  %v728 = vunpack.c.h.b16 %v156
  %v729 = vunpack.c.l.b16 %v157
  %v730 = vunpack.c.h.b16 %v157
  %v731 = vunpack.c.l.b16 %v158
  %v732 = vunpack.c.h.b16 %v158
  %v733 = vunpack.c.l.b16 %v159
  %v734 = vunpack.c.h.b16 %v159
  %v735 = vunpack.c.l.b16 %v160
  %v736 = vunpack.c.h.b16 %v160
  %v737 = vunpack.c.l.b16 %v161
  %v738 = vunpack.c.h.b16 %v161
  %v739 = vunpack.c.l.b16 %v162
  %v740 = vunpack.c.h.b16 %v162
  %v741 = vunpack.c.l.b16 %v163
  %v742 = vunpack.c.h.b16 %v163
  %v743 = vunpack.c.l.b16 %v164
  %v744 = vunpack.c.h.b16 %v164
  %v745 = vunpack.c.l.b16 %v165
  %v746 = vunpack.c.h.b16 %v165
  %v747 = vunpack.c.l.b16 %v166
  %v748 = vunpack.c.h.b16 %v166
  %v749 = vunpack.c.l.b16 %v167
  %v750 = vunpack.c.h.b16 %v167
  %v751 = vunpack.c.l.b16 %v168
  %v752 = vunpack.c.h.b16 %v168
  %v753 = vunpack.c.l.b16 %v169
  %v754 = vunpack.c.h.b16 %v169
  %v755 = vunpack.c.l.b16 %v170
  %v756 = vunpack.c.h.b16 %v170
  %v757 = vunpack.c.l.b16 %v171
  %v758 = vunpack.c.h.b16 %v171
  %v759 = vunpack.c.l.b16 %v172
  %v760 = vunpack.c.h.b16 %v172
  %v761 = vunpack.c.l.b16 %v173
  %v762 = vunpack.c.h.b16 %v173
  %v763 = vunpack.c.l.b16 %v174
  %v764 = vunpack.c.h.b16 %v174
  %v765 = vunpack.c.l.b16 %v175
  %v766 = vunpack.c.h.b16 %v175
  %v767 = vunpack.c.l.b16 %v176
  %v768 = vunpack.c.h.b16 %v176
  %v769 = vunpack.c.l.b16 %v177
  %v770 = vunpack.c.h.b16 %v177
  %v771 = vunpack.c.l.b16 %v178
  %v772 = vunpack.c.h.b16 %v178
  %v773 = vunpack.c.l.b16 %v179
  %v774 = vunpack.c.h.b16 %v179
  %v775 = vunpack.c.l.b16 %v180
  %v776 = vunpack.c.h.b16 %v180
  %v777 = vunpack.c.l.b16 %v181
  %v778 = vunpack.c.h.b16 %v181
  %v779 = vunpack.c.l.b16 %v182
  %v780 = vunpack.c.h.b16 %v182
  %v781 = vunpack.c.l.b16 %v183
  %v782 = vunpack.c.h.b16 %v183
  %v783 = vunpack.c.l.b16 %v184
  %v784 = vunpack.c.h.b16 %v184
  %v785 = vunpack.c.l.b16 %v185
  %v786 = vunpack.c.h.b16 %v185
  %v787 = vunpack.c.l.b16 %v186
  %v788 = vunpack.c.h.b16 %v186
  %v789 = vunpack.c.l.b16 %v187
  %v790 = vunpack.c.h.b16 %v187
  %v791 = vunpack.c.l.b16 %v188
  %v792 = vunpack.c.h.b16 %v188
  %v793 = vunpack.c.l.b16 %v189
  %v794 = vunpack.c.h.b16 %v189
  %v795 = vunpack.c.l.b16 %v190
  %v796 = vunpack.c.h.b16 %v190
  %v797 = vunpack.c.l.b16 %v191
  %v798 = vunpack.c.h.b16 %v191
  %v799 = vunpack.c.l.b16 %v192
  %v800 = vunpack.c.h.b16 %v192
  %v801 = vunpack.c.l.b16 %v193
  %v802 = vunpack.c.h.b16 %v193
  %v803 = vunpack.c.l.b16 %v194
  %v804 = vunpack.c.h.b16 %v194
  %v805 = vunpack.c.l.b16 %v195
  %v806 = vunpack.c.h.b16 %v195
  %v807 = vunpack.c.l.b16 %v196
  %v808 = vunpack.c.h.b16 %v196
  %v809 = vunpack.c.l.b16 %v197
  %v810 = vunpack.c.h.b16 %v197
  %v811 = vunpack.c.l.b16 %v198
  %v812 = vunpack.c.h.b16 %v198
  %v813 = vunpack.c.l.b16 %v199
  %v814 = vunpack.c.h.b16 %v199
  %v815 = vunpack.c.l.b16 %v200
  %v816 = vunpack.c.h.b16 %v200
  %v817 = vunpack.c.l.b16 %v201
  %v818 = vunpack.c.h.b16 %v201
  %v819 = vunpack.c.l.b16 %v202
  %v820 = vunpack.c.h.b16 %v202
  %v821 = vunpack.c.l.b16 %v203
  %v822 = vunpack.c.h.b16 %v203
  %v823 = vunpack.c.l.b16 %v204
  %v824 = vunpack.c.h.b16 %v204
  %v825 = vunpack.c.l.b16 %v205
  %v826 = vunpack.c.h.b16 %v205
  %v827 = vunpack.c.l.b16 %v206
  %v828 = vunpack.c.h.b16 %v206
  %v829 = vunpack.c.l.b16 %v207
  %v830 = vunpack.c.h.b16 %v207
  %v831 = vunpack.c.l.b16 %v208
  %v832 = vunpack.c.h.b16 %v208
  %v833 = vunpack.c.l.b16 %v209
  %v834 = vunpack.c.h.b16 %v209
  %v835 = vunpack.c.l.b16 %v210
  %v836 = vunpack.c.h.b16 %v210
  %v837 = vunpack.c.l.b16 %v211
  %v838 = vunpack.c.h.b16 %v211
  %v839 = vunpack.c.l.b16 %v212
  %v840 = vunpack.c.h.b16 %v212
  %v841 = vunpack.c.l.b16 %v213
  %v842 = vunpack.c.h.b16 %v213
  %v843 = vunpack.c.l.b16 %v214
  %v844 = vunpack.c.h.b16 %v214
  %v845 = vunpack.c.l.b16 %v215
  %v846 = vunpack.c.h.b16 %v215
  %v847 = vunpack.c.l.b16 %v216
  %v848 = vunpack.c.h.b16 %v216
  %v849 = vunpack.c.l.b16 %v217
  %v850 = vunpack.c.h.b16 %v217
  %v851 = vunpack.c.l.b16 %v218
  %v852 = vunpack.c.h.b16 %v218
  %v853 = vunpack.c.l.b16 %v219
  %v854 = vunpack.c.h.b16 %v219
  %v855 = vunpack.c.l.b16 %v220
  %v856 = vunpack.c.h.b16 %v220
  %v857 = vpack.c.b16 %v475, %v473
  %v858 = vpack.c.b16 %v476, %v474
  %v859 = vpack.c.b16 %v479, %v477
  %v860 = vpack.c.b16 %v480, %v478
  %v861 = vpack.c.b16 %v483, %v481
  %v862 = vpack.c.b16 %v484, %v482
  %v863 = vpack.c.b16 %v487, %v485
  %v864 = vpack.c.b16 %v488, %v486
  %v865 = vpack.c.b16 %v491, %v489
  %v866 = vpack.c.b16 %v492, %v490
  %v867 = vpack.c.b16 %v495, %v493
  %v868 = vpack.c.b16 %v496, %v494
  %v869 = vpack.c.b16 %v499, %v497
  %v870 = vpack.c.b16 %v500, %v498
  %v871 = vpack.c.b16 %v503, %v501
  %v872 = vpack.c.b16 %v504, %v502
  %v873 = vpack.c.b16 %v507, %v505
  %v874 = vpack.c.b16 %v508, %v506
  %v875 = vpack.c.b16 %v511, %v509
  %v876 = vpack.c.b16 %v512, %v510
  %v877 = vpack.c.b16 %v515, %v513
  %v878 = vpack.c.b16 %v516, %v514
  %v879 = vpack.c.b16 %v519, %v517
  %v880 = vpack.c.b16 %v520, %v518
  %v881 = vpack.c.b16 %v523, %v521
  %v882 = vpack.c.b16 %v524, %v522
  %v883 = vpack.c.b16 %v527, %v525
  %v884 = vpack.c.b16 %v528, %v526
  %v885 = vpack.c.b16 %v531, %v529
  %v886 = vpack.c.b16 %v532, %v530
  %v887 = vpack.c.b16 %v535, %v533
  %v888 = vpack.c.b16 %v536, %v534
  %v889 = vpack.c.b16 %v539, %v537
  %v890 = vpack.c.b16 %v540, %v538
  %v891 = vpack.c.b16 %v543, %v541
  %v892 = vpack.c.b16 %v544, %v542
  %v893 = vpack.c.b16 %v547, %v545
  %v894 = vpack.c.b16 %v548, %v546
  %v895 = vpack.c.b16 %v551, %v549
  %v896 = vpack.c.b16 %v552, %v550
  %v897 = vpack.c.b16 %v555, %v553
  %v898 = vpack.c.b16 %v556, %v554
  %v899 = vpack.c.b16 %v559, %v557
  %v900 = vpack.c.b16 %v560, %v558
  %v901 = vpack.c.b16 %v563, %v561
  %v902 = vpack.c.b16 %v564, %v562
  %v903 = vpack.c.b16 %v567, %v565
  %v904 = vpack.c.b16 %v568, %v566
  %v905 = vpack.c.b16 %v571, %v569
  %v906 = vpack.c.b16 %v572, %v570
  %v907 = vpack.c.b16 %v575, %v573
  %v908 = vpack.c.b16 %v576, %v574
  %v909 = vpack.c.b16 %v579, %v577
  %v910 = vpack.c.b16 %v580, %v578
  %v911 = vpack.c.b16 %v583, %v581
  %v912 = vpack.c.b16 %v584, %v582
  %v913 = vpack.c.b16 %v587, %v585
  %v914 = vpack.c.b16 %v588, %v586
  %v915 = vpack.c.b16 %v591, %v589
  %v916 = vpack.c.b16 %v592, %v590
  %v917 = vpack.c.b16 %v595, %v593
  %v918 = vpack.c.b16 %v596, %v594
  %v919 = vpack.c.b16 %v599, %v597
  %v920 = vpack.c.b16 %v600, %v598
  %v921 = vpack.c.b16 %v603, %v601
  %v922 = vpack.c.b16 %v604, %v602
  %v923 = vpack.c.b16 %v607, %v605
  %v924 = vpack.c.b16 %v608, %v606
  %v925 = vpack.c.b16 %v611, %v609
  %v926 = vpack.c.b16 %v612, %v610
  %v927 = vpack.c.b16 %v615, %v613
  %v928 = vpack.c.b16 %v616, %v614
  %v929 = vpack.c.b16 %v619, %v617
  %v930 = vpack.c.b16 %v620, %v618
  %v931 = vpack.c.b16 %v623, %v621
  %v932 = vpack.c.b16 %v624, %v622
  %v933 = vpack.c.b16 %v627, %v625
  %v934 = vpack.c.b16 %v628, %v626
  %v935 = vpack.c.b16 %v631, %v629
  %v936 = vpack.c.b16 %v632, %v630
  %v937 = vpack.c.b16 %v635, %v633
  %v938 = vpack.c.b16 %v636, %v634
  %v939 = vpack.c.b16 %v639, %v637
  %v940 = vpack.c.b16 %v640, %v638
  %v941 = vpack.c.b16 %v643, %v641
  %v942 = vpack.c.b16 %v644, %v642
  %v943 = vpack.c.b16 %v647, %v645
  %v944 = vpack.c.b16 %v648, %v646
  %v945 = vpack.c.b16 %v651, %v649
  %v946 = vpack.c.b16 %v652, %v650
  %v947 = vpack.c.b16 %v655, %v653
  %v948 = vpack.c.b16 %v656, %v654
  %v949 = vpack.c.b16 %v659, %v657
  %v950 = vpack.c.b16 %v660, %v658
  %v951 = vpack.c.b16 %v663, %v661
  %v952 = vpack.c.b16 %v664, %v662
  %v953 = vpack.c.b16 %v667, %v665
  %v954 = vpack.c.b16 %v668, %v666
  %v955 = vpack.c.b16 %v671, %v669
  %v956 = vpack.c.b16 %v672, %v670
  %v957 = vpack.c.b16 %v675, %v673
  %v958 = vpack.c.b16 %v676, %v674
  %v959 = vpack.c.b16 %v679, %v677
  %v960 = vpack.c.b16 %v680, %v678
  %v961 = vpack.c.b16 %v683, %v681
  %v962 = vpack.c.b16 %v684, %v682
  %v963 = vpack.c.b16 %v687, %v685
  %v964 = vpack.c.b16 %v688, %v686
  %v965 = vpack.c.b16 %v691, %v689
  %v966 = vpack.c.b16 %v692, %v690
  %v967 = vpack.c.b16 %v695, %v693
  %v968 = vpack.c.b16 %v696, %v694
  %v969 = vpack.c.b16 %v699, %v697
  %v970 = vpack.c.b16 %v700, %v698
  %v971 = vpack.c.b16 %v703, %v701
  %v972 = vpack.c.b16 %v704, %v702
  %v973 = vpack.c.b16 %v707, %v705
  %v974 = vpack.c.b16 %v708, %v706
  %v975 = vpack.c.b16 %v711, %v709
  %v976 = vpack.c.b16 %v712, %v710
  %v977 = vpack.c.b16 %v715, %v713
  %v978 = vpack.c.b16 %v716, %v714
  %v979 = vpack.c.b16 %v719, %v717
  %v980 = vpack.c.b16 %v720, %v718
  %v981 = vpack.c.b16 %v723, %v721
  %v982 = vpack.c.b16 %v724, %v722
  %v983 = vpack.c.b16 %v727, %v725
  %v984 = vpack.c.b16 %v728, %v726
  %v985 = vpack.c.b16 %v731, %v729
  %v986 = vpack.c.b16 %v732, %v730
  %v987 = vpack.c.b16 %v735, %v733
  %v988 = vpack.c.b16 %v736, %v734
  %v989 = vpack.c.b16 %v739, %v737
  %v990 = vpack.c.b16 %v740, %v738
  %v991 = vpack.c.b16 %v743, %v741
  %v992 = vpack.c.b16 %v744, %v742
  %v993 = vpack.c.b16 %v747, %v745
  %v994 = vpack.c.b16 %v748, %v746
  %v995 = vpack.c.b16 %v751, %v749
  %v996 = vpack.c.b16 %v752, %v750
  %v997 = vpack.c.b16 %v755, %v753
  %v998 = vpack.c.b16 %v756, %v754
  %v999 = vpack.c.b16 %v759, %v757
  %v1000 = vpack.c.b16 %v760, %v758
  %v1001 = vpack.c.b16 %v763, %v761
  %v1002 = vpack.c.b16 %v764, %v762
  %v1003 = vpack.c.b16 %v767, %v765
  %v1004 = vpack.c.b16 %v768, %v766
  %v1005 = vpack.c.b16 %v771, %v769
  %v1006 = vpack.c.b16 %v772, %v770
  %v1007 = vpack.c.b16 %v775, %v773
  %v1008 = vpack.c.b16 %v776, %v774
  %v1009 = vpack.c.b16 %v779, %v777
  %v1010 = vpack.c.b16 %v780, %v778
  %v1011 = vpack.c.b16 %v783, %v781
  %v1012 = vpack.c.b16 %v784, %v782
  %v1013 = vpack.c.b16 %v787, %v785
  %v1014 = vpack.c.b16 %v788, %v786
  %v1015 = vpack.c.b16 %v791, %v789
  %v1016 = vpack.c.b16 %v792, %v790
  %v1017 = vpack.c.b16 %v795, %v793
  %v1018 = vpack.c.b16 %v796, %v794
  %v1019 = vpack.c.b16 %v799, %v797
  %v1020 = vpack.c.b16 %v800, %v798
  %v1021 = vpack.c.b16 %v803, %v801
  %v1022 = vpack.c.b16 %v804, %v802
  %v1023 = vpack.c.b16 %v807, %v805
  %v1024 = vpack.c.b16 %v808, %v806
  %v1025 = vpack.c.b16 %v811, %v809
  %v1026 = vpack.c.b16 %v812, %v810
  %v1027 = vpack.c.b16 %v815, %v813
  %v1028 = vpack.c.b16 %v816, %v814
  %v1029 = vpack.c.b16 %v819, %v817
  %v1030 = vpack.c.b16 %v820, %v818
  %v1031 = vpack.c.b16 %v823, %v821
  %v1032 = vpack.c.b16 %v824, %v822
  %v1033 = vpack.c.b16 %v827, %v825
  %v1034 = vpack.c.b16 %v828, %v826
  %v1035 = vpack.c.b16 %v831, %v829
  %v1036 = vpack.c.b16 %v832, %v830
  %v1037 = vpack.c.b16 %v835, %v833
  %v1038 = vpack.c.b16 %v836, %v834
  %v1039 = vpack.c.b16 %v839, %v837
  %v1040 = vpack.c.b16 %v840, %v838
  %v1041 = vpack.c.b16 %v843, %v841
  %v1042 = vpack.c.b16 %v844, %v842
  %v1043 = vpack.c.b16 %v847, %v845
  %v1044 = vpack.c.b16 %v848, %v846
  %v1045 = vpack.c.b16 %v851, %v849
  %v1046 = vpack.c.b16 %v852, %v850
  %v1047 = vpack.c.b16 %v855, %v853
  %v1048 = vpack.c.b16 %v856, %v854
  %1241 = vmatprep.subr.bf16.mxu0 %v872
  %1242 = vmatpush1.bf16.msra.mxu0 %v871
  %1243 = vmatprep.subr.bf16.mxu0 %v870
  %1244 = vmatpush1.bf16.msra.mxu0 %v869
  %1245 = vmatprep.subr.bf16.mxu0 %v868
  %1246 = vmatpush1.bf16.msra.mxu0 %v867
  %1247 = vmatprep.subr.bf16.mxu0 %v866
  %1248 = vmatpush1.bf16.msra.mxu0 %v865
  %1249 = vmatprep.subr.bf16.mxu0 %v864
  %1250 = vmatpush1.bf16.msra.mxu0 %v863
  %1251 = vmatprep.subr.bf16.mxu0 %v862
  %1252 = vmatpush1.bf16.msra.mxu0 %v861
  %1253 = vmatprep.subr.bf16.mxu0 %v860
  %1254 = vmatpush1.bf16.msra.mxu0 %v859
  %1255 = vmatprep.subr.bf16.mxu0 %v858
  %1256 = vmatpush1.bf16.msra.mxu0 %v857
  %1257 = vmatprep.subr.bf16.mxu0 %v888
  %1258 = vmatpush2.bf16.msra.mxu0 %v887
  %1259 = vmatprep.subr.bf16.mxu0 %v886
  %1260 = vmatpush2.bf16.msra.mxu0 %v885
  %1261 = vmatprep.subr.bf16.mxu0 %v884
  %1262 = vmatpush2.bf16.msra.mxu0 %v883
  %1263 = vmatprep.subr.bf16.mxu0 %v882
  %1264 = vmatpush2.bf16.msra.mxu0 %v881
  %1265 = vmatprep.subr.bf16.mxu0 %v880
  %1266 = vmatpush2.bf16.msra.mxu0 %v879
  %1267 = vmatprep.subr.bf16.mxu0 %v878
  %1268 = vmatpush2.bf16.msra.mxu0 %v877
  %1269 = vmatprep.subr.bf16.mxu0 %v876
  %1270 = vmatpush2.bf16.msra.mxu0 %v875
  %1271 = vmatprep.subr.bf16.mxu0 %v874
  %1272 = vmatpush2.bf16.msra.mxu0 %v873
  %1273 = vmatprep.mubr.bf16.mxu0 %v258
  %1274 = vmatmul.mubr.bf16.gmra.mxu0 %v257
  %v1275 = vpop.f32.mrf.mxu0
  %v1276 = vadd.f32 0.0, %v1275
  %v1277 = vpop.f32.mrf.mxu0
  %v1278 = vadd.f32 0.0, %v1277
  %v1279 = vpop.f32.mrf.mxu0
  %v1280 = vadd.f32 0.0, %v1279
  %v1281 = vpop.f32.mrf.mxu0
  %v1282 = vadd.f32 0.0, %v1281
  %1283 = vdwg.mxu0
  %1284 = vmatprep.subr.bf16.mxu0 %v904
  %1285 = vmatpush1.bf16.msra.mxu0 %v903
  %1286 = vmatprep.subr.bf16.mxu0 %v902
  %1287 = vmatpush1.bf16.msra.mxu0 %v901
  %1288 = vmatprep.subr.bf16.mxu0 %v900
  %1289 = vmatpush1.bf16.msra.mxu0 %v899
  %1290 = vmatprep.subr.bf16.mxu0 %v898
  %1291 = vmatpush1.bf16.msra.mxu0 %v897
  %1292 = vmatprep.subr.bf16.mxu0 %v896
  %1293 = vmatpush1.bf16.msra.mxu0 %v895
  %1294 = vmatprep.subr.bf16.mxu0 %v894
  %1295 = vmatpush1.bf16.msra.mxu0 %v893
  %1296 = vmatprep.subr.bf16.mxu0 %v892
  %1297 = vmatpush1.bf16.msra.mxu0 %v891
  %1298 = vmatprep.subr.bf16.mxu0 %v890
  %1299 = vmatpush1.bf16.msra.mxu0 %v889
  %1300 = vmatprep.subr.bf16.mxu0 %v920
  %1301 = vmatpush2.bf16.msra.mxu0 %v919
  %1302 = vmatprep.subr.bf16.mxu0 %v918
  %1303 = vmatpush2.bf16.msra.mxu0 %v917
  %1304 = vmatprep.subr.bf16.mxu0 %v916
  %1305 = vmatpush2.bf16.msra.mxu0 %v915
  %1306 = vmatprep.subr.bf16.mxu0 %v914
  %1307 = vmatpush2.bf16.msra.mxu0 %v913
  %1308 = vmatprep.subr.bf16.mxu0 %v912
  %1309 = vmatpush2.bf16.msra.mxu0 %v911
  %1310 = vmatprep.subr.bf16.mxu0 %v910
  %1311 = vmatpush2.bf16.msra.mxu0 %v909
  %1312 = vmatprep.subr.bf16.mxu0 %v908
  %1313 = vmatpush2.bf16.msra.mxu0 %v907
  %1314 = vmatprep.subr.bf16.mxu0 %v906
  %1315 = vmatpush2.bf16.msra.mxu0 %v905
  %1316 = vmatprep.mubr.bf16.mxu0 %v260
  %1317 = vmatmul.mubr.bf16.gmra.mxu0 %v259
  %v1318 = vpop.f32.mrf.mxu0
  %v1319 = vadd.f32 %v1276, %v1318
  %v1320 = vpop.f32.mrf.mxu0
  %v1321 = vadd.f32 %v1278, %v1320
  %v1322 = vpop.f32.mrf.mxu0
  %v1323 = vadd.f32 %v1280, %v1322
  %v1324 = vpop.f32.mrf.mxu0
  %v1325 = vadd.f32 %v1282, %v1324
  %1326 = vdwg.mxu0
  %1327 = vmatprep.subr.bf16.mxu0 %v936
  %1328 = vmatpush1.bf16.msra.mxu0 %v935
  %1329 = vmatprep.subr.bf16.mxu0 %v934
  %1330 = vmatpush1.bf16.msra.mxu0 %v933
  %1331 = vmatprep.subr.bf16.mxu0 %v932
  %1332 = vmatpush1.bf16.msra.mxu0 %v931
  %1333 = vmatprep.subr.bf16.mxu0 %v930
  %1334 = vmatpush1.bf16.msra.mxu0 %v929
  %1335 = vmatprep.subr.bf16.mxu0 %v928
  %1336 = vmatpush1.bf16.msra.mxu0 %v927
  %1337 = vmatprep.subr.bf16.mxu0 %v926
  %1338 = vmatpush1.bf16.msra.mxu0 %v925
  %1339 = vmatprep.subr.bf16.mxu0 %v924
  %1340 = vmatpush1.bf16.msra.mxu0 %v923
  %1341 = vmatprep.subr.bf16.mxu0 %v922
  %1342 = vmatpush1.bf16.msra.mxu0 %v921
  %1343 = vmatprep.subr.bf16.mxu0 %v952
  %1344 = vmatpush2.bf16.msra.mxu0 %v951
  %1345 = vmatprep.subr.bf16.mxu0 %v950
  %1346 = vmatpush2.bf16.msra.mxu0 %v949
  %1347 = vmatprep.subr.bf16.mxu0 %v948
  %1348 = vmatpush2.bf16.msra.mxu0 %v947
  %1349 = vmatprep.subr.bf16.mxu0 %v946
  %1350 = vmatpush2.bf16.msra.mxu0 %v945
  %1351 = vmatprep.subr.bf16.mxu0 %v944
  %1352 = vmatpush2.bf16.msra.mxu0 %v943
  %1353 = vmatprep.subr.bf16.mxu0 %v942
  %1354 = vmatpush2.bf16.msra.mxu0 %v941
  %1355 = vmatprep.subr.bf16.mxu0 %v940
  %1356 = vmatpush2.bf16.msra.mxu0 %v939
  %1357 = vmatprep.subr.bf16.mxu0 %v938
  %1358 = vmatpush2.bf16.msra.mxu0 %v937
  %1359 = vmatprep.mubr.bf16.mxu0 %v262
  %1360 = vmatmul.mubr.bf16.gmra.mxu0 %v261
  %v1361 = vpop.f32.mrf.mxu0
  %v1362 = vadd.f32 %v1319, %v1361
  %v1363 = vpop.f32.mrf.mxu0
  %v1364 = vadd.f32 %v1321, %v1363
  %v1365 = vpop.f32.mrf.mxu0
  %v1366 = vadd.f32 %v1323, %v1365
  %v1367 = vpop.f32.mrf.mxu0
  %v1368 = vadd.f32 %v1325, %v1367
  %1369 = vdwg.mxu0
  %1370 = vmatprep.subr.bf16.mxu0 %v968
  %1371 = vmatpush1.bf16.msra.mxu0 %v967
  %1372 = vmatprep.subr.bf16.mxu0 %v966
  %1373 = vmatpush1.bf16.msra.mxu0 %v965
  %1374 = vmatprep.subr.bf16.mxu0 %v964
  %1375 = vmatpush1.bf16.msra.mxu0 %v963
  %1376 = vmatprep.subr.bf16.mxu0 %v962
  %1377 = vmatpush1.bf16.msra.mxu0 %v961
  %1378 = vmatprep.subr.bf16.mxu0 %v960
  %1379 = vmatpush1.bf16.msra.mxu0 %v959
  %1380 = vmatprep.subr.bf16.mxu0 %v958
  %1381 = vmatpush1.bf16.msra.mxu0 %v957
  %1382 = vmatprep.subr.bf16.mxu0 %v956
  %1383 = vmatpush1.bf16.msra.mxu0 %v955
  %1384 = vmatprep.subr.bf16.mxu0 %v954
  %1385 = vmatpush1.bf16.msra.mxu0 %v953
  %1386 = vmatprep.subr.bf16.mxu0 %v984
  %1387 = vmatpush2.bf16.msra.mxu0 %v983
  %1388 = vmatprep.subr.bf16.mxu0 %v982
  %1389 = vmatpush2.bf16.msra.mxu0 %v981
  %1390 = vmatprep.subr.bf16.mxu0 %v980
  %1391 = vmatpush2.bf16.msra.mxu0 %v979
  %1392 = vmatprep.subr.bf16.mxu0 %v978
  %1393 = vmatpush2.bf16.msra.mxu0 %v977
  %1394 = vmatprep.subr.bf16.mxu0 %v976
  %1395 = vmatpush2.bf16.msra.mxu0 %v975
  %1396 = vmatprep.subr.bf16.mxu0 %v974
  %1397 = vmatpush2.bf16.msra.mxu0 %v973
  %1398 = vmatprep.subr.bf16.mxu0 %v972
  %1399 = vmatpush2.bf16.msra.mxu0 %v971
  %1400 = vmatprep.subr.bf16.mxu0 %v970
  %1401 = vmatpush2.bf16.msra.mxu0 %v969
  %1402 = vmatprep.mubr.bf16.mxu0 %v264
  %1403 = vmatmul.mubr.bf16.gmra.mxu0 %v263
  %v1404 = vpop.f32.mrf.mxu0
  %v1405 = vadd.f32 %v1362, %v1404
  %v1406 = vpop.f32.mrf.mxu0
  %v1407 = vadd.f32 %v1364, %v1406
  %v1408 = vpop.f32.mrf.mxu0
  %v1409 = vadd.f32 %v1366, %v1408
  %v1410 = vpop.f32.mrf.mxu0
  %v1411 = vadd.f32 %v1368, %v1410
  %1412 = vdwg.mxu0
  %1413 = vmatprep.subr.bf16.mxu0 %v1000
  %1414 = vmatpush1.bf16.msra.mxu0 %v999
  %1415 = vmatprep.subr.bf16.mxu0 %v998
  %1416 = vmatpush1.bf16.msra.mxu0 %v997
  %1417 = vmatprep.subr.bf16.mxu0 %v996
  %1418 = vmatpush1.bf16.msra.mxu0 %v995
  %1419 = vmatprep.subr.bf16.mxu0 %v994
  %1420 = vmatpush1.bf16.msra.mxu0 %v993
  %1421 = vmatprep.subr.bf16.mxu0 %v992
  %1422 = vmatpush1.bf16.msra.mxu0 %v991
  %1423 = vmatprep.subr.bf16.mxu0 %v990
  %1424 = vmatpush1.bf16.msra.mxu0 %v989
  %1425 = vmatprep.subr.bf16.mxu0 %v988
  %1426 = vmatpush1.bf16.msra.mxu0 %v987
  %1427 = vmatprep.subr.bf16.mxu0 %v986
  %1428 = vmatpush1.bf16.msra.mxu0 %v985
  %1429 = vmatprep.subr.bf16.mxu0 %v1016
  %1430 = vmatpush2.bf16.msra.mxu0 %v1015
  %1431 = vmatprep.subr.bf16.mxu0 %v1014
  %1432 = vmatpush2.bf16.msra.mxu0 %v1013
  %1433 = vmatprep.subr.bf16.mxu0 %v1012
  %1434 = vmatpush2.bf16.msra.mxu0 %v1011
  %1435 = vmatprep.subr.bf16.mxu0 %v1010
  %1436 = vmatpush2.bf16.msra.mxu0 %v1009
  %1437 = vmatprep.subr.bf16.mxu0 %v1008
  %1438 = vmatpush2.bf16.msra.mxu0 %v1007
  %1439 = vmatprep.subr.bf16.mxu0 %v1006
  %1440 = vmatpush2.bf16.msra.mxu0 %v1005
  %1441 = vmatprep.subr.bf16.mxu0 %v1004
  %1442 = vmatpush2.bf16.msra.mxu0 %v1003
  %1443 = vmatprep.subr.bf16.mxu0 %v1002
  %1444 = vmatpush2.bf16.msra.mxu0 %v1001
  %1445 = vmatprep.mubr.bf16.mxu0 %v266
  %1446 = vmatmul.mubr.bf16.gmra.mxu0 %v265
  %v1447 = vpop.f32.mrf.mxu0
  %v1448 = vadd.f32 %v1405, %v1447
  %v1449 = vpop.f32.mrf.mxu0
  %v1450 = vadd.f32 %v1407, %v1449
  %v1451 = vpop.f32.mrf.mxu0
  %v1452 = vadd.f32 %v1409, %v1451
  %v1453 = vpop.f32.mrf.mxu0
  %v1454 = vadd.f32 %v1411, %v1453
  %1455 = vdwg.mxu0
  %1456 = vmatprep.subr.bf16.mxu0 %v1032
  %1457 = vmatpush1.bf16.msra.mxu0 %v1031
  %1458 = vmatprep.subr.bf16.mxu0 %v1030
  %1459 = vmatpush1.bf16.msra.mxu0 %v1029
  %1460 = vmatprep.subr.bf16.mxu0 %v1028
  %1461 = vmatpush1.bf16.msra.mxu0 %v1027
  %1462 = vmatprep.subr.bf16.mxu0 %v1026
  %1463 = vmatpush1.bf16.msra.mxu0 %v1025
  %1464 = vmatprep.subr.bf16.mxu0 %v1024
  %1465 = vmatpush1.bf16.msra.mxu0 %v1023
  %1466 = vmatprep.subr.bf16.mxu0 %v1022
  %1467 = vmatpush1.bf16.msra.mxu0 %v1021
  %1468 = vmatprep.subr.bf16.mxu0 %v1020
  %1469 = vmatpush1.bf16.msra.mxu0 %v1019
  %1470 = vmatprep.subr.bf16.mxu0 %v1018
  %1471 = vmatpush1.bf16.msra.mxu0 %v1017
  %1472 = vmatprep.subr.bf16.mxu0 %v1048
  %1473 = vmatpush2.bf16.msra.mxu0 %v1047
  %1474 = vmatprep.subr.bf16.mxu0 %v1046
  %1475 = vmatpush2.bf16.msra.mxu0 %v1045
  %1476 = vmatprep.subr.bf16.mxu0 %v1044
  %1477 = vmatpush2.bf16.msra.mxu0 %v1043
  %1478 = vmatprep.subr.bf16.mxu0 %v1042
  %1479 = vmatpush2.bf16.msra.mxu0 %v1041
  %1480 = vmatprep.subr.bf16.mxu0 %v1040
  %1481 = vmatpush2.bf16.msra.mxu0 %v1039
  %1482 = vmatprep.subr.bf16.mxu0 %v1038
  %1483 = vmatpush2.bf16.msra.mxu0 %v1037
  %1484 = vmatprep.subr.bf16.mxu0 %v1036
  %1485 = vmatpush2.bf16.msra.mxu0 %v1035
  %1486 = vmatprep.subr.bf16.mxu0 %v1034
  %1487 = vmatpush2.bf16.msra.mxu0 %v1033
  %1488 = vmatprep.mubr.bf16.mxu0 %v268
  %1489 = vmatmul.mubr.bf16.gmra.mxu0 %v267
  %v1490 = vpop.f32.mrf.mxu0
  %v1491 = vadd.f32 %v1448, %v1490
  %v1492 = vpop.f32.mrf.mxu0
  %v1493 = vadd.f32 %v1450, %v1492
  %v1494 = vpop.f32.mrf.mxu0
  %v1495 = vadd.f32 %v1452, %v1494
  %v1496 = vpop.f32.mrf.mxu0
  %v1497 = vadd.f32 %v1454, %v1496
  %1498 = vdwg.mxu0
  %v1499 = vld [vmem:[%s2] sm:$0x3]
  %v1501 = vlaneseq
  %v1502 = vshrl.u32 %v1501, 7
  %v1503 = vsub.s32 0, %v1502
  %v1504 = vrot.slane %v1499, %v1503
  %v1505 = vlaneseq
  %v1506 = vshrl.u32 %v1505, 7
  %v1507 = vsub.s32 1, %v1506
  %v1508 = vrot.slane %v1499, %v1507
  %v1511 = vsub.f32 %v1491, %v1504
  %v1512 = vsub.f32 %v1493, %v1508
  %v1513 = vsub.f32 %v1495, %v1504
  %v1514 = vsub.f32 %v1497, %v1508
  %v1515 = vpack.c.bf16 %v1513, %v1511
  %v1516 = vpack.c.bf16 %v1514, %v1512
  %v1519 = vunpack.c.l.b16 %v1515
  %v1520 = vunpack.c.l.b16 %v1516
  %v1521 = vunpack.c.h.b16 %v1515
  %v1522 = vunpack.c.h.b16 %v1516
  %v1523 = vpack.c.b16 %v1520, %v1519
  %v1524 = vpack.c.b16 %v1522, %v1521
  %1527 = vst [vmem:[%s3] sm:$0xff] %v1523
  %1528 = vst [vmem:[%s3 + $0x8] sm:$0xff] %v1524
  %v1529 = vadd.f32 %v1511, %v1513
  %v1530 = vrot.slane %v1529, 4
  %v1531 = vadd.f32 %v1529, %v1530
  %v1532 = vrot.slane %v1531, 2
  %v1533 = vadd.f32 %v1531, %v1532
  %v1534 = vrot.slane %v1533, 1
  %v1535 = vadd.f32 %v1533, %v1534
  %v1536 = vadd.f32 %v1512, %v1514
  %v1537 = vrot.slane %v1536, 4
  %v1538 = vadd.f32 %v1536, %v1537
  %v1539 = vrot.slane %v1538, 2
  %v1540 = vadd.f32 %v1538, %v1539
  %v1541 = vrot.slane %v1540, 1
  %v1542 = vadd.f32 %v1540, %v1541
  %v1545 = vcombine.low %v1535, %v1542
  %v1547 = vunpack.c.l.s4 1966171168
  %v1548 = vunpack.c.0.s8 %v1547
  %v1549 = vlaneseq
  %v1550 = vshrl.u32 %v1549, 7
  %v1551 = vsub.s32 %v1548, %v1550
  %v1552 = vrot.slane %v1545, %v1551
  %v1554 = vunpack.c.l.s4 1966171168
  %v1555 = vunpack.c.0.s8 %v1554
  %v1556 = vlaneseq
  %v1557 = vshrl.u32 %v1556, 7
  %v1558 = vsub.s32 %v1555, %v1557
  %v1559 = vrot.slane %v1552, %v1558
  %v1561 = vlaneseq
  %vm1562 = vcmp.ge.s32.totalorder %v1561, 0
  %vm1563 = vcmp.lt.s32.totalorder %v1561, 256
  %vm1564 = vmand %vm1562, %vm1563
  %1565 = vst.msk [vmem:[%s4] sm:$0x3] %vm1564, %v1559
  %v1566 = vmul.f32 %v1511, %v1511
  %v1567 = vmul.f32 %v1512, %v1512
  %v1568 = vmul.f32 %v1513, %v1513
  %v1569 = vmul.f32 %v1514, %v1514
  %v1570 = vadd.f32 %v1566, %v1568
  %v1571 = vrot.slane %v1570, 4
  %v1572 = vadd.f32 %v1570, %v1571
  %v1573 = vrot.slane %v1572, 2
  %v1574 = vadd.f32 %v1572, %v1573
  %v1575 = vrot.slane %v1574, 1
  %v1576 = vadd.f32 %v1574, %v1575
  %v1577 = vadd.f32 %v1567, %v1569
  %v1578 = vrot.slane %v1577, 4
  %v1579 = vadd.f32 %v1577, %v1578
  %v1580 = vrot.slane %v1579, 2
  %v1581 = vadd.f32 %v1579, %v1580
  %v1582 = vrot.slane %v1581, 1
  %v1583 = vadd.f32 %v1581, %v1582
  %v1586 = vcombine.low %v1576, %v1583
  %v1588 = vunpack.c.l.s4 1966171168
  %v1589 = vunpack.c.0.s8 %v1588
  %v1590 = vlaneseq
  %v1591 = vshrl.u32 %v1590, 7
  %v1592 = vsub.s32 %v1589, %v1591
  %v1593 = vrot.slane %v1586, %v1592
  %v1595 = vunpack.c.l.s4 1966171168
  %v1596 = vunpack.c.0.s8 %v1595
  %v1597 = vlaneseq
  %v1598 = vshrl.u32 %v1597, 7
  %v1599 = vsub.s32 %v1596, %v1598
  %v1600 = vrot.slane %v1593, %v1599
  %1602 = vst.msk [vmem:[%s5] sm:$0x3] %vm1564, %v1600
  // Predicated region
  $region14: #{ftdnn_acoustic_forward.4} parent=0 // pred_check
    _
  $region15: #{ftdnn_acoustic_forward.4} parent=0 // pred_check_branch
    %1604 = sbr.rel (0) target = $region17
  $region16: #{ftdnn_acoustic_forward.4} parent=0 // pred_region
    _
  $region17: #{ftdnn_acoustic_forward.4} parent=0 // pred_fallthru
    _
  // Predicated region
  $region18: #{ftdnn_acoustic_forward.4} parent=0 // pred_check
    _
  $region19: #{ftdnn_acoustic_forward.4} parent=0 // pred_check_branch
    %1606 = sbr.rel (0) target = $region21
  $region20: #{ftdnn_acoustic_forward.4} parent=0 // pred_region
    _
  $region21: #{ftdnn_acoustic_forward.4} parent=0 // pred_fallthru
    _
  // Predicated region
  $region22: #{ftdnn_acoustic_forward.4} parent=0 // pred_check
    _
  $region23: #{ftdnn_acoustic_forward.4} parent=0 // pred_check_branch
    %1608 = sbr.rel (0) target = $region25
  $region24: #{ftdnn_acoustic_forward.4} parent=0 // pred_region
    _
  $region25: #{ftdnn_acoustic_forward.4} parent=0 // pred_fallthru
    _
  // Predicated region
  $region26: #{ftdnn_acoustic_forward.4} parent=0 // pred_check
    _
  $region27: #{ftdnn_acoustic_forward.4} parent=0 // pred_check_branch
    %1610 = sbr.rel (0) target = $region29
  $region28: #{ftdnn_acoustic_forward.4} parent=0 // pred_region
    _
  $region29: #{ftdnn_acoustic_forward.4} parent=0 // pred_fallthru
    _
  // Predicated region
  $region30: #{ftdnn_acoustic_forward.4} parent=0 // pred_check
    _
  $region31: #{ftdnn_acoustic_forward.4} parent=0 // pred_check_branch
    %1612 = sbr.rel (0) target = $region33
  $region32: #{ftdnn_acoustic_forward.4} parent=0 // pred_region
    _
  $region33: #{ftdnn_acoustic_forward.4} parent=0 // pred_fallthru
    _
  // Predicated region
  $region34: #{ftdnn_acoustic_forward.4} parent=0 // pred_check
    _
  $region35: #{ftdnn_acoustic_forward.4} parent=0 // pred_check_branch
    %1614 = sbr.rel (0) target = $region37
  $region36: #{ftdnn_acoustic_forward.4} parent=0 // pred_region
    _
  $region37: #{ftdnn_acoustic_forward.4} parent=0 // pred_fallthru
    _

// kernel: ftdnn_acoustic_forward.3
$region0: #{ftdnn_acoustic_forward.3}
  #allocation0 [shape = 'u32[]', space=smem, size = 0x4, offset = 0x4, fixed_abs, tag = 'smem constant byte address 0x4 - core index']
  #allocation1 [shape = 'u32[144,128]{1,0:T(1,128)}', space=vmem, size = 0x12000, scoped, tag = 'internal scratch']
  %s0 = inlined_call_operand.hbm [shape: f32[16,256], index: 0, kind: input, shape index: {}]
  %s1 = inlined_call_operand.hbm [shape: bf16[256,1536], index: 1, kind: input, shape index: {}]
  %s2 = inlined_call_operand.hbm [shape: f32[1,1536], index: 2, kind: input, shape index: {}]
  %s3 = inlined_call_operand.vmem [shape: bf16[16,1536], index: 3, kind: output, shape index: {0}]
  %s4 = inlined_call_operand.vmem [shape: f32[1,1,1536], index: 4, kind: output, shape index: {1}]
  %s5 = inlined_call_operand.vmem [shape: f32[1,1,1536], index: 5, kind: output, shape index: {2}]
  %6 = xla_tuple %s3, %s4, %s5
  %s7 = sld [smem:[#allocation0]]
  $region50: #{ftdnn_acoustic_forward.3} parent=0
    _
  %s9 = ssub.s32 1, %s7
  %s10 = scalar_select 0, %s9, %s7
  $region1: #{ftdnn_acoustic_forward.3} parent=0
    #allocation2 [shape = 'u8[16384]{0}', space=vmem, size = 0x4000, scoped, tag = 'input window, operand 0, single buffered']
    #allocation3 [shape = 's32[1]{0}', space=sflag, size = 0x4, scoped, tag = 'scoped memory for ftdnn_acoustic_forward.3']
    #allocation4 [shape = 'u8[786432]{0}', space=vmem, size = 0xc0000, scoped, tag = 'input window, operand 1, single buffered']
    #allocation5 [shape = 's32[1]{0}', space=sflag, size = 0x4, scoped, tag = 'scoped memory for ftdnn_acoustic_forward.3']
    #allocation6 [shape = 'u8[6144]{0}', space=vmem, size = 0x1800, scoped, tag = 'input window, operand 2, single buffered']
    %11 = vsyncpa [#allocation3], 0
    %12 = vsyncpa [#allocation5], 0
    // Predicated region
    $region2: #{ftdnn_acoustic_forward.3} parent=1 // pred_check
      _
    $region3: #{ftdnn_acoustic_forward.3} parent=1 // pred_check_branch
      %14 = sbr.rel (0) target = $region5
    $region4: #{ftdnn_acoustic_forward.3} parent=1 // pred_region
      %s16 = ssub.s32 512, 512
      %17 = vsyncadd [#allocation3], %s16
      %s18 = sshll.u32 [#allocation2], 4
      %s19 = int_to_ptr.vmem [resolvable:$true] %s18
      %24 = dma.hbm_to_vmem [thread:$0]  %s0, 512, %s19, [#allocation3], 256, 256, 16
    $region5: #{ftdnn_acoustic_forward.3} parent=1 // pred_fallthru
      _
    // Predicated region
    $region6: #{ftdnn_acoustic_forward.3} parent=1 // pred_check
      _
    $region7: #{ftdnn_acoustic_forward.3} parent=1 // pred_check_branch
      %26 = sbr.rel (0) target = $region9
    $region8: #{ftdnn_acoustic_forward.3} parent=1 // pred_region
      %s28 = ssub.s32 24576, 24576
      %29 = vsyncadd [#allocation5], %s28
      %s30 = sshll.u32 [#allocation4], 4
      %s31 = int_to_ptr.vmem [resolvable:$true] %s30
      %36 = dma.hbm_to_vmem [thread:$0]  %s1, 24576, %s31, [#allocation5], 768, 768, 48
    $region9: #{ftdnn_acoustic_forward.3} parent=1 // pred_fallthru
      _
    // Predicated region
    $region10: #{ftdnn_acoustic_forward.3} parent=1 // pred_check
      _
    $region11: #{ftdnn_acoustic_forward.3} parent=1 // pred_check_branch
      %38 = sbr.rel (0) target = $region13
    $region12: #{ftdnn_acoustic_forward.3} parent=1 // pred_region
      %s40 = ssub.s32 192, 192
      %41 = vsyncadd [#allocation5], %s40
      %s43 = sshll.u32 [#allocation6], 4
      %s44 = int_to_ptr.vmem [resolvable:$true] %s43
      %46 = dma.hbm_to_vmem [thread:$0]  %s2, 192, %s44, [#allocation5]
    $region13: #{ftdnn_acoustic_forward.3} parent=1 // pred_fallthru
      _
    // Predicated region
    $region14: #{ftdnn_acoustic_forward.3} parent=1 // pred_check
      _
    $region15: #{ftdnn_acoustic_forward.3} parent=1 // pred_check_branch
      %48 = sbr.rel (0) target = $region17
    $region16: #{ftdnn_acoustic_forward.3} parent=1 // pred_region
      %49 = dma.done [#allocation3], 512
    $region17: #{ftdnn_acoustic_forward.3} parent=1 // pred_fallthru
      _
    // Predicated region
    $region18: #{ftdnn_acoustic_forward.3} parent=1 // pred_check
      _
    $region19: #{ftdnn_acoustic_forward.3} parent=1 // pred_check_branch
      %51 = sbr.rel (0) target = $region21
    $region20: #{ftdnn_acoustic_forward.3} parent=1 // pred_region
      %52 = dma.done [#allocation5], 24576
    $region21: #{ftdnn_acoustic_forward.3} parent=1 // pred_fallthru
      _
    // Predicated region
    $region22: #{ftdnn_acoustic_forward.3} parent=1 // pred_check
      _
    $region23: #{ftdnn_acoustic_forward.3} parent=1 // pred_check_branch
      %54 = sbr.rel (0) target = $region25
    $region24: #{ftdnn_acoustic_forward.3} parent=1 // pred_region
      %55 = dma.done [#allocation5], 192
    $region25: #{ftdnn_acoustic_forward.3} parent=1 // pred_fallthru
      _
    %v56 = vld [vmem:[#allocation2] sm:$0xff]
    %v57 = vld [vmem:[#allocation2 + $0x8] sm:$0xff]
    %v58 = vld [vmem:[#allocation2 + $0x10] sm:$0xff]
    %v59 = vld [vmem:[#allocation2 + $0x18] sm:$0xff]
    %v60 = vpack.c.bf16 %v58, %v56
    %v61 = vpack.c.bf16 %v59, %v57
    %v62 = vld [vmem:[#allocation4] sm:$0xff]
    %v63 = vld [vmem:[#allocation4 + $0x8] sm:$0xff]
    %v64 = vld [vmem:[#allocation4 + $0x10] sm:$0xff]
    %v65 = vld [vmem:[#allocation4 + $0x18] sm:$0xff]
    %v66 = vld [vmem:[#allocation4 + $0x20] sm:$0xff]
    %v67 = vld [vmem:[#allocation4 + $0x28] sm:$0xff]
    %v68 = vld [vmem:[#allocation4 + $0x30] sm:$0xff]
    %v69 = vld [vmem:[#allocation4 + $0x38] sm:$0xff]
    %v70 = vld [vmem:[#allocation4 + $0x40] sm:$0xff]
    %v71 = vld [vmem:[#allocation4 + $0x48] sm:$0xff]
    %v72 = vld [vmem:[#allocation4 + $0x50] sm:$0xff]
    %v73 = vld [vmem:[#allocation4 + $0x58] sm:$0xff]
    %v74 = vld [vmem:[#allocation4 + $0x60] sm:$0xff]
    %v75 = vld [vmem:[#allocation4 + $0x68] sm:$0xff]
    %v76 = vld [vmem:[#allocation4 + $0x70] sm:$0xff]
    %v77 = vld [vmem:[#allocation4 + $0x78] sm:$0xff]
    %v78 = vld [vmem:[#allocation4 + $0x80] sm:$0xff]
    %v79 = vld [vmem:[#allocation4 + $0x88] sm:$0xff]
    %v80 = vld [vmem:[#allocation4 + $0x90] sm:$0xff]
    %v81 = vld [vmem:[#allocation4 + $0x98] sm:$0xff]
    %v82 = vld [vmem:[#allocation4 + $0xa0] sm:$0xff]
    %v83 = vld [vmem:[#allocation4 + $0xa8] sm:$0xff]
    %v84 = vld [vmem:[#allocation4 + $0xb0] sm:$0xff]
    %v85 = vld [vmem:[#allocation4 + $0xb8] sm:$0xff]
    %v86 = vld [vmem:[#allocation4 + $0xc0] sm:$0xff]
    %v87 = vld [vmem:[#allocation4 + $0xc8] sm:$0xff]
    %v88 = vld [vmem:[#allocation4 + $0xd0] sm:$0xff]
    %v89 = vld [vmem:[#allocation4 + $0xd8] sm:$0xff]
    %v90 = vld [vmem:[#allocation4 + $0xe0] sm:$0xff]
    %v91 = vld [vmem:[#allocation4 + $0xe8] sm:$0xff]
    %v92 = vld [vmem:[#allocation4 + $0xf0] sm:$0xff]
    %v93 = vld [vmem:[#allocation4 + $0xf8] sm:$0xff]
    %v94 = vld [vmem:[#allocation4 + $0x100] sm:$0xff]
    %v95 = vld [vmem:[#allocation4 + $0x108] sm:$0xff]
    %v96 = vld [vmem:[#allocation4 + $0x110] sm:$0xff]
    %v97 = vld [vmem:[#allocation4 + $0x118] sm:$0xff]
    %v98 = vld [vmem:[#allocation4 + $0x120] sm:$0xff]
    %v99 = vld [vmem:[#allocation4 + $0x128] sm:$0xff]
    %v100 = vld [vmem:[#allocation4 + $0x130] sm:$0xff]
    %v101 = vld [vmem:[#allocation4 + $0x138] sm:$0xff]
    %v102 = vld [vmem:[#allocation4 + $0x140] sm:$0xff]
    %v103 = vld [vmem:[#allocation4 + $0x148] sm:$0xff]
    %v104 = vld [vmem:[#allocation4 + $0x150] sm:$0xff]
    %v105 = vld [vmem:[#allocation4 + $0x158] sm:$0xff]
    %v106 = vld [vmem:[#allocation4 + $0x160] sm:$0xff]
    %v107 = vld [vmem:[#allocation4 + $0x168] sm:$0xff]
    %v108 = vld [vmem:[#allocation4 + $0x170] sm:$0xff]
    %v109 = vld [vmem:[#allocation4 + $0x178] sm:$0xff]
    %v110 = vld [vmem:[#allocation4 + $0x180] sm:$0xff]
    %v111 = vld [vmem:[#allocation4 + $0x188] sm:$0xff]
    %v112 = vld [vmem:[#allocation4 + $0x190] sm:$0xff]
    %v113 = vld [vmem:[#allocation4 + $0x198] sm:$0xff]
    %v114 = vld [vmem:[#allocation4 + $0x1a0] sm:$0xff]
    %v115 = vld [vmem:[#allocation4 + $0x1a8] sm:$0xff]
    %v116 = vld [vmem:[#allocation4 + $0x1b0] sm:$0xff]
    %v117 = vld [vmem:[#allocation4 + $0x1b8] sm:$0xff]
    %v118 = vld [vmem:[#allocation4 + $0x1c0] sm:$0xff]
    %v119 = vld [vmem:[#allocation4 + $0x1c8] sm:$0xff]
    %v120 = vld [vmem:[#allocation4 + $0x1d0] sm:$0xff]
    %v121 = vld [vmem:[#allocation4 + $0x1d8] sm:$0xff]
    %v122 = vld [vmem:[#allocation4 + $0x1e0] sm:$0xff]
    %v123 = vld [vmem:[#allocation4 + $0x1e8] sm:$0xff]
    %v124 = vld [vmem:[#allocation4 + $0x1f0] sm:$0xff]
    %v125 = vld [vmem:[#allocation4 + $0x1f8] sm:$0xff]
    %v126 = vld [vmem:[#allocation4 + $0x200] sm:$0xff]
    %v127 = vld [vmem:[#allocation4 + $0x208] sm:$0xff]
    %v128 = vld [vmem:[#allocation4 + $0x210] sm:$0xff]
    %v129 = vld [vmem:[#allocation4 + $0x218] sm:$0xff]
    %v130 = vld [vmem:[#allocation4 + $0x220] sm:$0xff]
    %v131 = vld [vmem:[#allocation4 + $0x228] sm:$0xff]
    %v132 = vld [vmem:[#allocation4 + $0x230] sm:$0xff]
    %v133 = vld [vmem:[#allocation4 + $0x238] sm:$0xff]
    %v134 = vld [vmem:[#allocation4 + $0x240] sm:$0xff]
    %v135 = vld [vmem:[#allocation4 + $0x248] sm:$0xff]
    %v136 = vld [vmem:[#allocation4 + $0x250] sm:$0xff]
    %v137 = vld [vmem:[#allocation4 + $0x258] sm:$0xff]
    %v138 = vld [vmem:[#allocation4 + $0x260] sm:$0xff]
    %v139 = vld [vmem:[#allocation4 + $0x268] sm:$0xff]
    %v140 = vld [vmem:[#allocation4 + $0x270] sm:$0xff]
    %v141 = vld [vmem:[#allocation4 + $0x278] sm:$0xff]
    %v142 = vld [vmem:[#allocation4 + $0x280] sm:$0xff]
    %v143 = vld [vmem:[#allocation4 + $0x288] sm:$0xff]
    %v144 = vld [vmem:[#allocation4 + $0x290] sm:$0xff]
    %v145 = vld [vmem:[#allocation4 + $0x298] sm:$0xff]
    %v146 = vld [vmem:[#allocation4 + $0x2a0] sm:$0xff]
    %v147 = vld [vmem:[#allocation4 + $0x2a8] sm:$0xff]
    %v148 = vld [vmem:[#allocation4 + $0x2b0] sm:$0xff]
    %v149 = vld [vmem:[#allocation4 + $0x2b8] sm:$0xff]
    %v150 = vld [vmem:[#allocation4 + $0x2c0] sm:$0xff]
    %v151 = vld [vmem:[#allocation4 + $0x2c8] sm:$0xff]
    %v152 = vld [vmem:[#allocation4 + $0x2d0] sm:$0xff]
    %v153 = vld [vmem:[#allocation4 + $0x2d8] sm:$0xff]
    %v154 = vld [vmem:[#allocation4 + $0x2e0] sm:$0xff]
    %v155 = vld [vmem:[#allocation4 + $0x2e8] sm:$0xff]
    %v156 = vld [vmem:[#allocation4 + $0x2f0] sm:$0xff]
    %v157 = vld [vmem:[#allocation4 + $0x2f8] sm:$0xff]
    %v158 = vld [vmem:[#allocation4 + $0x300] sm:$0xff]
    %v159 = vld [vmem:[#allocation4 + $0x308] sm:$0xff]
    %v160 = vld [vmem:[#allocation4 + $0x310] sm:$0xff]
    %v161 = vld [vmem:[#allocation4 + $0x318] sm:$0xff]
    %v162 = vld [vmem:[#allocation4 + $0x320] sm:$0xff]
    %v163 = vld [vmem:[#allocation4 + $0x328] sm:$0xff]
    %v164 = vld [vmem:[#allocation4 + $0x330] sm:$0xff]
    %v165 = vld [vmem:[#allocation4 + $0x338] sm:$0xff]
    %v166 = vld [vmem:[#allocation4 + $0x340] sm:$0xff]
    %v167 = vld [vmem:[#allocation4 + $0x348] sm:$0xff]
    %v168 = vld [vmem:[#allocation4 + $0x350] sm:$0xff]
    %v169 = vld [vmem:[#allocation4 + $0x358] sm:$0xff]
    %v170 = vld [vmem:[#allocation4 + $0x360] sm:$0xff]
    %v171 = vld [vmem:[#allocation4 + $0x368] sm:$0xff]
    %v172 = vld [vmem:[#allocation4 + $0x370] sm:$0xff]
    %v173 = vld [vmem:[#allocation4 + $0x378] sm:$0xff]
    %v174 = vld [vmem:[#allocation4 + $0x380] sm:$0xff]
    %v175 = vld [vmem:[#allocation4 + $0x388] sm:$0xff]
    %v176 = vld [vmem:[#allocation4 + $0x390] sm:$0xff]
    %v177 = vld [vmem:[#allocation4 + $0x398] sm:$0xff]
    %v178 = vld [vmem:[#allocation4 + $0x3a0] sm:$0xff]
    %v179 = vld [vmem:[#allocation4 + $0x3a8] sm:$0xff]
    %v180 = vld [vmem:[#allocation4 + $0x3b0] sm:$0xff]
    %v181 = vld [vmem:[#allocation4 + $0x3b8] sm:$0xff]
    %v182 = vld [vmem:[#allocation4 + $0x3c0] sm:$0xff]
    %v183 = vld [vmem:[#allocation4 + $0x3c8] sm:$0xff]
    %v184 = vld [vmem:[#allocation4 + $0x3d0] sm:$0xff]
    %v185 = vld [vmem:[#allocation4 + $0x3d8] sm:$0xff]
    %v186 = vld [vmem:[#allocation4 + $0x3e0] sm:$0xff]
    %v187 = vld [vmem:[#allocation4 + $0x3e8] sm:$0xff]
    %v188 = vld [vmem:[#allocation4 + $0x3f0] sm:$0xff]
    %v189 = vld [vmem:[#allocation4 + $0x3f8] sm:$0xff]
    %v190 = vld [vmem:[#allocation4 + $0x400] sm:$0xff]
    %v191 = vld [vmem:[#allocation4 + $0x408] sm:$0xff]
    %v192 = vld [vmem:[#allocation4 + $0x410] sm:$0xff]
    %v193 = vld [vmem:[#allocation4 + $0x418] sm:$0xff]
    %v194 = vld [vmem:[#allocation4 + $0x420] sm:$0xff]
    %v195 = vld [vmem:[#allocation4 + $0x428] sm:$0xff]
    %v196 = vld [vmem:[#allocation4 + $0x430] sm:$0xff]
    %v197 = vld [vmem:[#allocation4 + $0x438] sm:$0xff]
    %v198 = vld [vmem:[#allocation4 + $0x440] sm:$0xff]
    %v199 = vld [vmem:[#allocation4 + $0x448] sm:$0xff]
    %v200 = vld [vmem:[#allocation4 + $0x450] sm:$0xff]
    %v201 = vld [vmem:[#allocation4 + $0x458] sm:$0xff]
    %v202 = vld [vmem:[#allocation4 + $0x460] sm:$0xff]
    %v203 = vld [vmem:[#allocation4 + $0x468] sm:$0xff]
    %v204 = vld [vmem:[#allocation4 + $0x470] sm:$0xff]
    %v205 = vld [vmem:[#allocation4 + $0x478] sm:$0xff]
    %v206 = vld [vmem:[#allocation4 + $0x480] sm:$0xff]
    %v207 = vld [vmem:[#allocation4 + $0x488] sm:$0xff]
    %v208 = vld [vmem:[#allocation4 + $0x490] sm:$0xff]
    %v209 = vld [vmem:[#allocation4 + $0x498] sm:$0xff]
    %v210 = vld [vmem:[#allocation4 + $0x4a0] sm:$0xff]
    %v211 = vld [vmem:[#allocation4 + $0x4a8] sm:$0xff]
    %v212 = vld [vmem:[#allocation4 + $0x4b0] sm:$0xff]
    %v213 = vld [vmem:[#allocation4 + $0x4b8] sm:$0xff]
    %v214 = vld [vmem:[#allocation4 + $0x4c0] sm:$0xff]
    %v215 = vld [vmem:[#allocation4 + $0x4c8] sm:$0xff]
    %v216 = vld [vmem:[#allocation4 + $0x4d0] sm:$0xff]
    %v217 = vld [vmem:[#allocation4 + $0x4d8] sm:$0xff]
    %v218 = vld [vmem:[#allocation4 + $0x4e0] sm:$0xff]
    %v219 = vld [vmem:[#allocation4 + $0x4e8] sm:$0xff]
    %v220 = vld [vmem:[#allocation4 + $0x4f0] sm:$0xff]
    %v221 = vld [vmem:[#allocation4 + $0x4f8] sm:$0xff]
    %v222 = vld [vmem:[#allocation4 + $0x500] sm:$0xff]
    %v223 = vld [vmem:[#allocation4 + $0x508] sm:$0xff]
    %v224 = vld [vmem:[#allocation4 + $0x510] sm:$0xff]
    %v225 = vld [vmem:[#allocation4 + $0x518] sm:$0xff]
    %v226 = vld [vmem:[#allocation4 + $0x520] sm:$0xff]
    %v227 = vld [vmem:[#allocation4 + $0x528] sm:$0xff]
    %v228 = vld [vmem:[#allocation4 + $0x530] sm:$0xff]
    %v229 = vld [vmem:[#allocation4 + $0x538] sm:$0xff]
    %v230 = vld [vmem:[#allocation4 + $0x540] sm:$0xff]
    %v231 = vld [vmem:[#allocation4 + $0x548] sm:$0xff]
    %v232 = vld [vmem:[#allocation4 + $0x550] sm:$0xff]
    %v233 = vld [vmem:[#allocation4 + $0x558] sm:$0xff]
    %v234 = vld [vmem:[#allocation4 + $0x560] sm:$0xff]
    %v235 = vld [vmem:[#allocation4 + $0x568] sm:$0xff]
    %v236 = vld [vmem:[#allocation4 + $0x570] sm:$0xff]
    %v237 = vld [vmem:[#allocation4 + $0x578] sm:$0xff]
    %v238 = vld [vmem:[#allocation4 + $0x580] sm:$0xff]
    %v239 = vld [vmem:[#allocation4 + $0x588] sm:$0xff]
    %v240 = vld [vmem:[#allocation4 + $0x590] sm:$0xff]
    %v241 = vld [vmem:[#allocation4 + $0x598] sm:$0xff]
    %v242 = vld [vmem:[#allocation4 + $0x5a0] sm:$0xff]
    %v243 = vld [vmem:[#allocation4 + $0x5a8] sm:$0xff]
    %v244 = vld [vmem:[#allocation4 + $0x5b0] sm:$0xff]
    %v245 = vld [vmem:[#allocation4 + $0x5b8] sm:$0xff]
    %v246 = vld [vmem:[#allocation4 + $0x5c0] sm:$0xff]
    %v247 = vld [vmem:[#allocation4 + $0x5c8] sm:$0xff]
    %v248 = vld [vmem:[#allocation4 + $0x5d0] sm:$0xff]
    %v249 = vld [vmem:[#allocation4 + $0x5d8] sm:$0xff]
    %v250 = vld [vmem:[#allocation4 + $0x5e0] sm:$0xff]
    %v251 = vld [vmem:[#allocation4 + $0x5e8] sm:$0xff]
    %v252 = vld [vmem:[#allocation4 + $0x5f0] sm:$0xff]
    %v253 = vld [vmem:[#allocation4 + $0x5f8] sm:$0xff]
    %v254 = vld [vmem:[#allocation6] sm:$0xff]
    %v255 = vld [vmem:[#allocation6 + $0x8] sm:$0xf]
    %v258 = vlaneseq
    %v259 = vshrl.u32 %v258, 7
    %v260 = vsub.s32 0, %v259
    %v261 = vrot.slane %v254, %v260
    %v262 = vlaneseq
    %v263 = vshrl.u32 %v262, 7
    %v264 = vsub.s32 1, %v263
    %v265 = vrot.slane %v254, %v264
    %v266 = vlaneseq
    %v267 = vshrl.u32 %v266, 7
    %v268 = vsub.s32 2, %v267
    %v269 = vrot.slane %v254, %v268
    %v270 = vlaneseq
    %v271 = vshrl.u32 %v270, 7
    %v272 = vsub.s32 3, %v271
    %v273 = vrot.slane %v254, %v272
    %v274 = vlaneseq
    %v275 = vshrl.u32 %v274, 7
    %v276 = vsub.s32 4, %v275
    %v277 = vrot.slane %v254, %v276
    %v278 = vlaneseq
    %v279 = vshrl.u32 %v278, 7
    %v280 = vsub.s32 5, %v279
    %v281 = vrot.slane %v254, %v280
    %v282 = vlaneseq
    %v283 = vshrl.u32 %v282, 7
    %v284 = vsub.s32 6, %v283
    %v285 = vrot.slane %v254, %v284
    %v286 = vlaneseq
    %v287 = vshrl.u32 %v286, 7
    %v288 = vsub.s32 7, %v287
    %v289 = vrot.slane %v254, %v288
    %v290 = vlaneseq
    %v291 = vshrl.u32 %v290, 7
    %v292 = vsub.s32 0, %v291
    %v293 = vrot.slane %v255, %v292
    %v294 = vlaneseq
    %v295 = vshrl.u32 %v294, 7
    %v296 = vsub.s32 1, %v295
    %v297 = vrot.slane %v255, %v296
    %v298 = vlaneseq
    %v299 = vshrl.u32 %v298, 7
    %v300 = vsub.s32 2, %v299
    %v301 = vrot.slane %v255, %v300
    %v302 = vlaneseq
    %v303 = vshrl.u32 %v302, 7
    %v304 = vsub.s32 3, %v303
    %v305 = vrot.slane %v255, %v304
    %v510 = vunpack.c.l.b16 %v62
    %v511 = vunpack.c.h.b16 %v62
    %v512 = vunpack.c.l.b16 %v63
    %v513 = vunpack.c.h.b16 %v63
    %v514 = vunpack.c.l.b16 %v64
    %v515 = vunpack.c.h.b16 %v64
    %v516 = vunpack.c.l.b16 %v65
    %v517 = vunpack.c.h.b16 %v65
    %v518 = vunpack.c.l.b16 %v66
    %v519 = vunpack.c.h.b16 %v66
    %v520 = vunpack.c.l.b16 %v67
    %v521 = vunpack.c.h.b16 %v67
    %v522 = vunpack.c.l.b16 %v68
    %v523 = vunpack.c.h.b16 %v68
    %v524 = vunpack.c.l.b16 %v69
    %v525 = vunpack.c.h.b16 %v69
    %v526 = vunpack.c.l.b16 %v70
    %v527 = vunpack.c.h.b16 %v70
    %v528 = vunpack.c.l.b16 %v71
    %v529 = vunpack.c.h.b16 %v71
    %v530 = vunpack.c.l.b16 %v72
    %v531 = vunpack.c.h.b16 %v72
    %v532 = vunpack.c.l.b16 %v73
    %v533 = vunpack.c.h.b16 %v73
    %v534 = vunpack.c.l.b16 %v74
    %v535 = vunpack.c.h.b16 %v74
    %v536 = vunpack.c.l.b16 %v75
    %v537 = vunpack.c.h.b16 %v75
    %v538 = vunpack.c.l.b16 %v76
    %v539 = vunpack.c.h.b16 %v76
    %v540 = vunpack.c.l.b16 %v77
    %v541 = vunpack.c.h.b16 %v77
    %v542 = vunpack.c.l.b16 %v78
    %v543 = vunpack.c.h.b16 %v78
    %v544 = vunpack.c.l.b16 %v79
    %v545 = vunpack.c.h.b16 %v79
    %v546 = vunpack.c.l.b16 %v80
    %v547 = vunpack.c.h.b16 %v80
    %v548 = vunpack.c.l.b16 %v81
    %v549 = vunpack.c.h.b16 %v81
    %v550 = vunpack.c.l.b16 %v82
    %v551 = vunpack.c.h.b16 %v82
    %v552 = vunpack.c.l.b16 %v83
    %v553 = vunpack.c.h.b16 %v83
    %v554 = vunpack.c.l.b16 %v84
    %v555 = vunpack.c.h.b16 %v84
    %v556 = vunpack.c.l.b16 %v85
    %v557 = vunpack.c.h.b16 %v85
    %v558 = vunpack.c.l.b16 %v86
    %v559 = vunpack.c.h.b16 %v86
    %v560 = vunpack.c.l.b16 %v87
    %v561 = vunpack.c.h.b16 %v87
    %v562 = vunpack.c.l.b16 %v88
    %v563 = vunpack.c.h.b16 %v88
    %v564 = vunpack.c.l.b16 %v89
    %v565 = vunpack.c.h.b16 %v89
    %v566 = vunpack.c.l.b16 %v90
    %v567 = vunpack.c.h.b16 %v90
    %v568 = vunpack.c.l.b16 %v91
    %v569 = vunpack.c.h.b16 %v91
    %v570 = vunpack.c.l.b16 %v92
    %v571 = vunpack.c.h.b16 %v92
    %v572 = vunpack.c.l.b16 %v93
    %v573 = vunpack.c.h.b16 %v93
    %v574 = vunpack.c.l.b16 %v94
    %v575 = vunpack.c.h.b16 %v94
    %v576 = vunpack.c.l.b16 %v95
    %v577 = vunpack.c.h.b16 %v95
    %v578 = vunpack.c.l.b16 %v96
    %v579 = vunpack.c.h.b16 %v96
    %v580 = vunpack.c.l.b16 %v97
    %v581 = vunpack.c.h.b16 %v97
    %v582 = vunpack.c.l.b16 %v98
    %v583 = vunpack.c.h.b16 %v98
    %v584 = vunpack.c.l.b16 %v99
    %v585 = vunpack.c.h.b16 %v99
    %v586 = vunpack.c.l.b16 %v100
    %v587 = vunpack.c.h.b16 %v100
    %v588 = vunpack.c.l.b16 %v101
    %v589 = vunpack.c.h.b16 %v101
    %v590 = vunpack.c.l.b16 %v102
    %v591 = vunpack.c.h.b16 %v102
    %v592 = vunpack.c.l.b16 %v103
    %v593 = vunpack.c.h.b16 %v103
    %v594 = vunpack.c.l.b16 %v104
    %v595 = vunpack.c.h.b16 %v104
    %v596 = vunpack.c.l.b16 %v105
    %v597 = vunpack.c.h.b16 %v105
    %v598 = vunpack.c.l.b16 %v106
    %v599 = vunpack.c.h.b16 %v106
    %v600 = vunpack.c.l.b16 %v107
    %v601 = vunpack.c.h.b16 %v107
    %v602 = vunpack.c.l.b16 %v108
    %v603 = vunpack.c.h.b16 %v108
    %v604 = vunpack.c.l.b16 %v109
    %v605 = vunpack.c.h.b16 %v109
    %v606 = vunpack.c.l.b16 %v110
    %v607 = vunpack.c.h.b16 %v110
    %v608 = vunpack.c.l.b16 %v111
    %v609 = vunpack.c.h.b16 %v111
    %v610 = vunpack.c.l.b16 %v112
    %v611 = vunpack.c.h.b16 %v112
    %v612 = vunpack.c.l.b16 %v113
    %v613 = vunpack.c.h.b16 %v113
    %v614 = vunpack.c.l.b16 %v114
    %v615 = vunpack.c.h.b16 %v114
    %v616 = vunpack.c.l.b16 %v115
    %v617 = vunpack.c.h.b16 %v115
    %v618 = vunpack.c.l.b16 %v116
    %v619 = vunpack.c.h.b16 %v116
    %v620 = vunpack.c.l.b16 %v117
    %v621 = vunpack.c.h.b16 %v117
    %v622 = vunpack.c.l.b16 %v118
    %v623 = vunpack.c.h.b16 %v118
    %v624 = vunpack.c.l.b16 %v119
    %v625 = vunpack.c.h.b16 %v119
    %v626 = vunpack.c.l.b16 %v120
    %v627 = vunpack.c.h.b16 %v120
    %v628 = vunpack.c.l.b16 %v121
    %v629 = vunpack.c.h.b16 %v121
    %v630 = vunpack.c.l.b16 %v122
    %v631 = vunpack.c.h.b16 %v122
    %v632 = vunpack.c.l.b16 %v123
    %v633 = vunpack.c.h.b16 %v123
    %v634 = vunpack.c.l.b16 %v124
    %v635 = vunpack.c.h.b16 %v124
    %v636 = vunpack.c.l.b16 %v125
    %v637 = vunpack.c.h.b16 %v125
    %v638 = vunpack.c.l.b16 %v126
    %v639 = vunpack.c.h.b16 %v126
    %v640 = vunpack.c.l.b16 %v127
    %v641 = vunpack.c.h.b16 %v127
    %v642 = vunpack.c.l.b16 %v128
    %v643 = vunpack.c.h.b16 %v128
    %v644 = vunpack.c.l.b16 %v129
    %v645 = vunpack.c.h.b16 %v129
    %v646 = vunpack.c.l.b16 %v130
    %v647 = vunpack.c.h.b16 %v130
    %v648 = vunpack.c.l.b16 %v131
    %v649 = vunpack.c.h.b16 %v131
    %v650 = vunpack.c.l.b16 %v132
    %v651 = vunpack.c.h.b16 %v132
    %v652 = vunpack.c.l.b16 %v133
    %v653 = vunpack.c.h.b16 %v133
    %v654 = vunpack.c.l.b16 %v134
    %v655 = vunpack.c.h.b16 %v134
    %v656 = vunpack.c.l.b16 %v135
    %v657 = vunpack.c.h.b16 %v135
    %v658 = vunpack.c.l.b16 %v136
    %v659 = vunpack.c.h.b16 %v136
    %v660 = vunpack.c.l.b16 %v137
    %v661 = vunpack.c.h.b16 %v137
    %v662 = vunpack.c.l.b16 %v138
    %v663 = vunpack.c.h.b16 %v138
    %v664 = vunpack.c.l.b16 %v139
    %v665 = vunpack.c.h.b16 %v139
    %v666 = vunpack.c.l.b16 %v140
    %v667 = vunpack.c.h.b16 %v140
    %v668 = vunpack.c.l.b16 %v141
    %v669 = vunpack.c.h.b16 %v141
    %v670 = vunpack.c.l.b16 %v142
    %v671 = vunpack.c.h.b16 %v142
    %v672 = vunpack.c.l.b16 %v143
    %v673 = vunpack.c.h.b16 %v143
    %v674 = vunpack.c.l.b16 %v144
    %v675 = vunpack.c.h.b16 %v144
    %v676 = vunpack.c.l.b16 %v145
    %v677 = vunpack.c.h.b16 %v145
    %v678 = vunpack.c.l.b16 %v146
    %v679 = vunpack.c.h.b16 %v146
    %v680 = vunpack.c.l.b16 %v147
    %v681 = vunpack.c.h.b16 %v147
    %v682 = vunpack.c.l.b16 %v148
    %v683 = vunpack.c.h.b16 %v148
    %v684 = vunpack.c.l.b16 %v149
    %v685 = vunpack.c.h.b16 %v149
    %v686 = vunpack.c.l.b16 %v150
    %v687 = vunpack.c.h.b16 %v150
    %v688 = vunpack.c.l.b16 %v151
    %v689 = vunpack.c.h.b16 %v151
    %v690 = vunpack.c.l.b16 %v152
    %v691 = vunpack.c.h.b16 %v152
    %v692 = vunpack.c.l.b16 %v153
    %v693 = vunpack.c.h.b16 %v153
    %v694 = vunpack.c.l.b16 %v154
    %v695 = vunpack.c.h.b16 %v154
    %v696 = vunpack.c.l.b16 %v155
    %v697 = vunpack.c.h.b16 %v155
    %v698 = vunpack.c.l.b16 %v156
    %v699 = vunpack.c.h.b16 %v156
    %v700 = vunpack.c.l.b16 %v157
    %v701 = vunpack.c.h.b16 %v157
    %v702 = vunpack.c.l.b16 %v158
    %v703 = vunpack.c.h.b16 %v158
    %v704 = vunpack.c.l.b16 %v159
    %v705 = vunpack.c.h.b16 %v159
    %v706 = vunpack.c.l.b16 %v160
    %v707 = vunpack.c.h.b16 %v160
    %v708 = vunpack.c.l.b16 %v161
    %v709 = vunpack.c.h.b16 %v161
    %v710 = vunpack.c.l.b16 %v162
    %v711 = vunpack.c.h.b16 %v162
    %v712 = vunpack.c.l.b16 %v163
    %v713 = vunpack.c.h.b16 %v163
    %v714 = vunpack.c.l.b16 %v164
    %v715 = vunpack.c.h.b16 %v164
    %v716 = vunpack.c.l.b16 %v165
    %v717 = vunpack.c.h.b16 %v165
    %v718 = vunpack.c.l.b16 %v166
    %v719 = vunpack.c.h.b16 %v166
    %v720 = vunpack.c.l.b16 %v167
    %v721 = vunpack.c.h.b16 %v167
    %v722 = vunpack.c.l.b16 %v168
    %v723 = vunpack.c.h.b16 %v168
    %v724 = vunpack.c.l.b16 %v169
    %v725 = vunpack.c.h.b16 %v169
    %v726 = vunpack.c.l.b16 %v170
    %v727 = vunpack.c.h.b16 %v170
    %v728 = vunpack.c.l.b16 %v171
    %v729 = vunpack.c.h.b16 %v171
    %v730 = vunpack.c.l.b16 %v172
    %v731 = vunpack.c.h.b16 %v172
    %v732 = vunpack.c.l.b16 %v173
    %v733 = vunpack.c.h.b16 %v173
    %v734 = vunpack.c.l.b16 %v174
    %v735 = vunpack.c.h.b16 %v174
    %v736 = vunpack.c.l.b16 %v175
    %v737 = vunpack.c.h.b16 %v175
    %v738 = vunpack.c.l.b16 %v176
    %v739 = vunpack.c.h.b16 %v176
    %v740 = vunpack.c.l.b16 %v177
    %v741 = vunpack.c.h.b16 %v177
    %v742 = vunpack.c.l.b16 %v178
    %v743 = vunpack.c.h.b16 %v178
    %v744 = vunpack.c.l.b16 %v179
    %v745 = vunpack.c.h.b16 %v179
    %v746 = vunpack.c.l.b16 %v180
    %v747 = vunpack.c.h.b16 %v180
    %v748 = vunpack.c.l.b16 %v181
    %v749 = vunpack.c.h.b16 %v181
    %v750 = vunpack.c.l.b16 %v182
    %v751 = vunpack.c.h.b16 %v182
    %v752 = vunpack.c.l.b16 %v183
    %v753 = vunpack.c.h.b16 %v183
    %v754 = vunpack.c.l.b16 %v184
    %v755 = vunpack.c.h.b16 %v184
    %v756 = vunpack.c.l.b16 %v185
    %v757 = vunpack.c.h.b16 %v185
    %v758 = vunpack.c.l.b16 %v186
    %v759 = vunpack.c.h.b16 %v186
    %v760 = vunpack.c.l.b16 %v187
    %v761 = vunpack.c.h.b16 %v187
    %v762 = vunpack.c.l.b16 %v188
    %v763 = vunpack.c.h.b16 %v188
    %v764 = vunpack.c.l.b16 %v189
    %v765 = vunpack.c.h.b16 %v189
    %v766 = vunpack.c.l.b16 %v190
    %v767 = vunpack.c.h.b16 %v190
    %v768 = vunpack.c.l.b16 %v191
    %v769 = vunpack.c.h.b16 %v191
    %v770 = vunpack.c.l.b16 %v192
    %v771 = vunpack.c.h.b16 %v192
    %v772 = vunpack.c.l.b16 %v193
    %v773 = vunpack.c.h.b16 %v193
    %v774 = vunpack.c.l.b16 %v194
    %v775 = vunpack.c.h.b16 %v194
    %v776 = vunpack.c.l.b16 %v195
    %v777 = vunpack.c.h.b16 %v195
    %v778 = vunpack.c.l.b16 %v196
    %v779 = vunpack.c.h.b16 %v196
    %v780 = vunpack.c.l.b16 %v197
    %v781 = vunpack.c.h.b16 %v197
    %v782 = vunpack.c.l.b16 %v198
    %v783 = vunpack.c.h.b16 %v198
    %v784 = vunpack.c.l.b16 %v199
    %v785 = vunpack.c.h.b16 %v199
    %v786 = vunpack.c.l.b16 %v200
    %v787 = vunpack.c.h.b16 %v200
    %v788 = vunpack.c.l.b16 %v201
    %v789 = vunpack.c.h.b16 %v201
    %v790 = vunpack.c.l.b16 %v202
    %v791 = vunpack.c.h.b16 %v202
    %v792 = vunpack.c.l.b16 %v203
    %v793 = vunpack.c.h.b16 %v203
    %v794 = vunpack.c.l.b16 %v204
    %v795 = vunpack.c.h.b16 %v204
    %v796 = vunpack.c.l.b16 %v205
    %v797 = vunpack.c.h.b16 %v205
    %v798 = vunpack.c.l.b16 %v206
    %v799 = vunpack.c.h.b16 %v206
    %v800 = vunpack.c.l.b16 %v207
    %v801 = vunpack.c.h.b16 %v207
    %v802 = vunpack.c.l.b16 %v208
    %v803 = vunpack.c.h.b16 %v208
    %v804 = vunpack.c.l.b16 %v209
    %v805 = vunpack.c.h.b16 %v209
    %v806 = vunpack.c.l.b16 %v210
    %v807 = vunpack.c.h.b16 %v210
    %v808 = vunpack.c.l.b16 %v211
    %v809 = vunpack.c.h.b16 %v211
    %v810 = vunpack.c.l.b16 %v212
    %v811 = vunpack.c.h.b16 %v212
    %v812 = vunpack.c.l.b16 %v213
    %v813 = vunpack.c.h.b16 %v213
    %v814 = vunpack.c.l.b16 %v214
    %v815 = vunpack.c.h.b16 %v214
    %v816 = vunpack.c.l.b16 %v215
    %v817 = vunpack.c.h.b16 %v215
    %v818 = vunpack.c.l.b16 %v216
    %v819 = vunpack.c.h.b16 %v216
    %v820 = vunpack.c.l.b16 %v217
    %v821 = vunpack.c.h.b16 %v217
    %v822 = vunpack.c.l.b16 %v218
    %v823 = vunpack.c.h.b16 %v218
    %v824 = vunpack.c.l.b16 %v219
    %v825 = vunpack.c.h.b16 %v219
    %v826 = vunpack.c.l.b16 %v220
    %v827 = vunpack.c.h.b16 %v220
    %v828 = vunpack.c.l.b16 %v221
    %v829 = vunpack.c.h.b16 %v221
    %v830 = vunpack.c.l.b16 %v222
    %v831 = vunpack.c.h.b16 %v222
    %v832 = vunpack.c.l.b16 %v223
    %v833 = vunpack.c.h.b16 %v223
    %v834 = vunpack.c.l.b16 %v224
    %v835 = vunpack.c.h.b16 %v224
    %v836 = vunpack.c.l.b16 %v225
    %v837 = vunpack.c.h.b16 %v225
    %v838 = vunpack.c.l.b16 %v226
    %v839 = vunpack.c.h.b16 %v226
    %v840 = vunpack.c.l.b16 %v227
    %v841 = vunpack.c.h.b16 %v227
    %v842 = vunpack.c.l.b16 %v228
    %v843 = vunpack.c.h.b16 %v228
    %v844 = vunpack.c.l.b16 %v229
    %v845 = vunpack.c.h.b16 %v229
    %v846 = vunpack.c.l.b16 %v230
    %v847 = vunpack.c.h.b16 %v230
    %v848 = vunpack.c.l.b16 %v231
    %v849 = vunpack.c.h.b16 %v231
    %v850 = vunpack.c.l.b16 %v232
    %v851 = vunpack.c.h.b16 %v232
    %v852 = vunpack.c.l.b16 %v233
    %v853 = vunpack.c.h.b16 %v233
    %v854 = vunpack.c.l.b16 %v234
    %v855 = vunpack.c.h.b16 %v234
    %v856 = vunpack.c.l.b16 %v235
    %v857 = vunpack.c.h.b16 %v235
    %v858 = vunpack.c.l.b16 %v236
    %v859 = vunpack.c.h.b16 %v236
    %v860 = vunpack.c.l.b16 %v237
    %v861 = vunpack.c.h.b16 %v237
    %v862 = vunpack.c.l.b16 %v238
    %v863 = vunpack.c.h.b16 %v238
    %v864 = vunpack.c.l.b16 %v239
    %v865 = vunpack.c.h.b16 %v239
    %v866 = vunpack.c.l.b16 %v240
    %v867 = vunpack.c.h.b16 %v240
    %v868 = vunpack.c.l.b16 %v241
    %v869 = vunpack.c.h.b16 %v241
    %v870 = vunpack.c.l.b16 %v242
    %v871 = vunpack.c.h.b16 %v242
    %v872 = vunpack.c.l.b16 %v243
    %v873 = vunpack.c.h.b16 %v243
    %v874 = vunpack.c.l.b16 %v244
    %v875 = vunpack.c.h.b16 %v244
    %v876 = vunpack.c.l.b16 %v245
    %v877 = vunpack.c.h.b16 %v245
    %v878 = vunpack.c.l.b16 %v246
    %v879 = vunpack.c.h.b16 %v246
    %v880 = vunpack.c.l.b16 %v247
    %v881 = vunpack.c.h.b16 %v247
    %v882 = vunpack.c.l.b16 %v248
    %v883 = vunpack.c.h.b16 %v248
    %v884 = vunpack.c.l.b16 %v249
    %v885 = vunpack.c.h.b16 %v249
    %v886 = vunpack.c.l.b16 %v250
    %v887 = vunpack.c.h.b16 %v250
    %v888 = vunpack.c.l.b16 %v251
    %v889 = vunpack.c.h.b16 %v251
    %v890 = vunpack.c.l.b16 %v252
    %v891 = vunpack.c.h.b16 %v252
    %v892 = vunpack.c.l.b16 %v253
    %v893 = vunpack.c.h.b16 %v253
    %v894 = vpack.c.b16 %v522, %v510
    %v895 = vpack.c.b16 %v523, %v511
    %v896 = vpack.c.b16 %v524, %v512
    %v897 = vpack.c.b16 %v525, %v513
    %v898 = vpack.c.b16 %v526, %v514
    %v899 = vpack.c.b16 %v527, %v515
    %v900 = vpack.c.b16 %v528, %v516
    %v901 = vpack.c.b16 %v529, %v517
    %v902 = vpack.c.b16 %v530, %v518
    %v903 = vpack.c.b16 %v531, %v519
    %v904 = vpack.c.b16 %v532, %v520
    %v905 = vpack.c.b16 %v533, %v521
    %v906 = vpack.c.b16 %v546, %v534
    %v907 = vpack.c.b16 %v547, %v535
    %v908 = vpack.c.b16 %v548, %v536
    %v909 = vpack.c.b16 %v549, %v537
    %v910 = vpack.c.b16 %v550, %v538
    %v911 = vpack.c.b16 %v551, %v539
    %v912 = vpack.c.b16 %v552, %v540
    %v913 = vpack.c.b16 %v553, %v541
    %v914 = vpack.c.b16 %v554, %v542
    %v915 = vpack.c.b16 %v555, %v543
    %v916 = vpack.c.b16 %v556, %v544
    %v917 = vpack.c.b16 %v557, %v545
    %v918 = vpack.c.b16 %v570, %v558
    %v919 = vpack.c.b16 %v571, %v559
    %v920 = vpack.c.b16 %v572, %v560
    %v921 = vpack.c.b16 %v573, %v561
    %v922 = vpack.c.b16 %v574, %v562
    %v923 = vpack.c.b16 %v575, %v563
    %v924 = vpack.c.b16 %v576, %v564
    %v925 = vpack.c.b16 %v577, %v565
    %v926 = vpack.c.b16 %v578, %v566
    %v927 = vpack.c.b16 %v579, %v567
    %v928 = vpack.c.b16 %v580, %v568
    %v929 = vpack.c.b16 %v581, %v569
    %v930 = vpack.c.b16 %v594, %v582
    %v931 = vpack.c.b16 %v595, %v583
    %v932 = vpack.c.b16 %v596, %v584
    %v933 = vpack.c.b16 %v597, %v585
    %v934 = vpack.c.b16 %v598, %v586
    %v935 = vpack.c.b16 %v599, %v587
    %v936 = vpack.c.b16 %v600, %v588
    %v937 = vpack.c.b16 %v601, %v589
    %v938 = vpack.c.b16 %v602, %v590
    %v939 = vpack.c.b16 %v603, %v591
    %v940 = vpack.c.b16 %v604, %v592
    %v941 = vpack.c.b16 %v605, %v593
    %v942 = vpack.c.b16 %v618, %v606
    %v943 = vpack.c.b16 %v619, %v607
    %v944 = vpack.c.b16 %v620, %v608
    %v945 = vpack.c.b16 %v621, %v609
    %v946 = vpack.c.b16 %v622, %v610
    %v947 = vpack.c.b16 %v623, %v611
    %v948 = vpack.c.b16 %v624, %v612
    %v949 = vpack.c.b16 %v625, %v613
    %v950 = vpack.c.b16 %v626, %v614
    %v951 = vpack.c.b16 %v627, %v615
    %v952 = vpack.c.b16 %v628, %v616
    %v953 = vpack.c.b16 %v629, %v617
    %v954 = vpack.c.b16 %v642, %v630
    %v955 = vpack.c.b16 %v643, %v631
    %v956 = vpack.c.b16 %v644, %v632
    %v957 = vpack.c.b16 %v645, %v633
    %v958 = vpack.c.b16 %v646, %v634
    %v959 = vpack.c.b16 %v647, %v635
    %v960 = vpack.c.b16 %v648, %v636
    %v961 = vpack.c.b16 %v649, %v637
    %v962 = vpack.c.b16 %v650, %v638
    %v963 = vpack.c.b16 %v651, %v639
    %v964 = vpack.c.b16 %v652, %v640
    %v965 = vpack.c.b16 %v653, %v641
    %v966 = vpack.c.b16 %v666, %v654
    %v967 = vpack.c.b16 %v667, %v655
    %v968 = vpack.c.b16 %v668, %v656
    %v969 = vpack.c.b16 %v669, %v657
    %v970 = vpack.c.b16 %v670, %v658
    %v971 = vpack.c.b16 %v671, %v659
    %v972 = vpack.c.b16 %v672, %v660
    %v973 = vpack.c.b16 %v673, %v661
    %v974 = vpack.c.b16 %v674, %v662
    %v975 = vpack.c.b16 %v675, %v663
    %v976 = vpack.c.b16 %v676, %v664
    %v977 = vpack.c.b16 %v677, %v665
    %v978 = vpack.c.b16 %v690, %v678
    %v979 = vpack.c.b16 %v691, %v679
    %v980 = vpack.c.b16 %v692, %v680
    %v981 = vpack.c.b16 %v693, %v681
    %v982 = vpack.c.b16 %v694, %v682
    %v983 = vpack.c.b16 %v695, %v683
    %v984 = vpack.c.b16 %v696, %v684
    %v985 = vpack.c.b16 %v697, %v685
    %v986 = vpack.c.b16 %v698, %v686
    %v987 = vpack.c.b16 %v699, %v687
    %v988 = vpack.c.b16 %v700, %v688
    %v989 = vpack.c.b16 %v701, %v689
    %v990 = vpack.c.b16 %v714, %v702
    %v991 = vpack.c.b16 %v715, %v703
    %v992 = vpack.c.b16 %v716, %v704
    %v993 = vpack.c.b16 %v717, %v705
    %v994 = vpack.c.b16 %v718, %v706
    %v995 = vpack.c.b16 %v719, %v707
    %v996 = vpack.c.b16 %v720, %v708
    %v997 = vpack.c.b16 %v721, %v709
    %v998 = vpack.c.b16 %v722, %v710
    %v999 = vpack.c.b16 %v723, %v711
    %v1000 = vpack.c.b16 %v724, %v712
    %v1001 = vpack.c.b16 %v725, %v713
    %v1002 = vpack.c.b16 %v738, %v726
    %v1003 = vpack.c.b16 %v739, %v727
    %v1004 = vpack.c.b16 %v740, %v728
    %v1005 = vpack.c.b16 %v741, %v729
    %v1006 = vpack.c.b16 %v742, %v730
    %v1007 = vpack.c.b16 %v743, %v731
    %v1008 = vpack.c.b16 %v744, %v732
    %v1009 = vpack.c.b16 %v745, %v733
    %v1010 = vpack.c.b16 %v746, %v734
    %v1011 = vpack.c.b16 %v747, %v735
    %v1012 = vpack.c.b16 %v748, %v736
    %v1013 = vpack.c.b16 %v749, %v737
    %v1014 = vpack.c.b16 %v762, %v750
    %v1015 = vpack.c.b16 %v763, %v751
    %v1016 = vpack.c.b16 %v764, %v752
    %v1017 = vpack.c.b16 %v765, %v753
    %v1018 = vpack.c.b16 %v766, %v754
    %v1019 = vpack.c.b16 %v767, %v755
    %v1020 = vpack.c.b16 %v768, %v756
    %v1021 = vpack.c.b16 %v769, %v757
    %v1022 = vpack.c.b16 %v770, %v758
    %v1023 = vpack.c.b16 %v771, %v759
    %v1024 = vpack.c.b16 %v772, %v760
    %v1025 = vpack.c.b16 %v773, %v761
    %v1026 = vpack.c.b16 %v786, %v774
    %v1027 = vpack.c.b16 %v787, %v775
    %v1028 = vpack.c.b16 %v788, %v776
    %v1029 = vpack.c.b16 %v789, %v777
    %v1030 = vpack.c.b16 %v790, %v778
    %v1031 = vpack.c.b16 %v791, %v779
    %v1032 = vpack.c.b16 %v792, %v780
    %v1033 = vpack.c.b16 %v793, %v781
    %v1034 = vpack.c.b16 %v794, %v782
    %v1035 = vpack.c.b16 %v795, %v783
    %v1036 = vpack.c.b16 %v796, %v784
    %v1037 = vpack.c.b16 %v797, %v785
    %v1038 = vpack.c.b16 %v810, %v798
    %v1039 = vpack.c.b16 %v811, %v799
    %v1040 = vpack.c.b16 %v812, %v800
    %v1041 = vpack.c.b16 %v813, %v801
    %v1042 = vpack.c.b16 %v814, %v802
    %v1043 = vpack.c.b16 %v815, %v803
    %v1044 = vpack.c.b16 %v816, %v804
    %v1045 = vpack.c.b16 %v817, %v805
    %v1046 = vpack.c.b16 %v818, %v806
    %v1047 = vpack.c.b16 %v819, %v807
    %v1048 = vpack.c.b16 %v820, %v808
    %v1049 = vpack.c.b16 %v821, %v809
    %v1050 = vpack.c.b16 %v834, %v822
    %v1051 = vpack.c.b16 %v835, %v823
    %v1052 = vpack.c.b16 %v836, %v824
    %v1053 = vpack.c.b16 %v837, %v825
    %v1054 = vpack.c.b16 %v838, %v826
    %v1055 = vpack.c.b16 %v839, %v827
    %v1056 = vpack.c.b16 %v840, %v828
    %v1057 = vpack.c.b16 %v841, %v829
    %v1058 = vpack.c.b16 %v842, %v830
    %v1059 = vpack.c.b16 %v843, %v831
    %v1060 = vpack.c.b16 %v844, %v832
    %v1061 = vpack.c.b16 %v845, %v833
    %v1062 = vpack.c.b16 %v858, %v846
    %v1063 = vpack.c.b16 %v859, %v847
    %v1064 = vpack.c.b16 %v860, %v848
    %v1065 = vpack.c.b16 %v861, %v849
    %v1066 = vpack.c.b16 %v862, %v850
    %v1067 = vpack.c.b16 %v863, %v851
    %v1068 = vpack.c.b16 %v864, %v852
    %v1069 = vpack.c.b16 %v865, %v853
    %v1070 = vpack.c.b16 %v866, %v854
    %v1071 = vpack.c.b16 %v867, %v855
    %v1072 = vpack.c.b16 %v868, %v856
    %v1073 = vpack.c.b16 %v869, %v857
    %v1074 = vpack.c.b16 %v882, %v870
    %v1075 = vpack.c.b16 %v883, %v871
    %v1076 = vpack.c.b16 %v884, %v872
    %v1077 = vpack.c.b16 %v885, %v873
    %v1078 = vpack.c.b16 %v886, %v874
    %v1079 = vpack.c.b16 %v887, %v875
    %v1080 = vpack.c.b16 %v888, %v876
    %v1081 = vpack.c.b16 %v889, %v877
    %v1082 = vpack.c.b16 %v890, %v878
    %v1083 = vpack.c.b16 %v891, %v879
    %v1084 = vpack.c.b16 %v892, %v880
    %v1085 = vpack.c.b16 %v893, %v881
    %1278 = vmatprep.subr.bf16.mxu0 %v979
    %1279 = vmatpush1.bf16.msra.mxu0 %v978
    %1280 = vmatprep.subr.bf16.mxu0 %v967
    %1281 = vmatpush1.bf16.msra.mxu0 %v966
    %1282 = vmatprep.subr.bf16.mxu0 %v955
    %1283 = vmatpush1.bf16.msra.mxu0 %v954
    %1284 = vmatprep.subr.bf16.mxu0 %v943
    %1285 = vmatpush1.bf16.msra.mxu0 %v942
    %1286 = vmatprep.subr.bf16.mxu0 %v931
    %1287 = vmatpush1.bf16.msra.mxu0 %v930
    %1288 = vmatprep.subr.bf16.mxu0 %v919
    %1289 = vmatpush1.bf16.msra.mxu0 %v918
    %1290 = vmatprep.subr.bf16.mxu0 %v907
    %1291 = vmatpush1.bf16.msra.mxu0 %v906
    %1292 = vmatprep.subr.bf16.mxu0 %v895
    %1293 = vmatpush1.bf16.msra.mxu0 %v894
    %1294 = vmatprep.subr.bf16.mxu0 %v1075
    %1295 = vmatpush2.bf16.msra.mxu0 %v1074
    %1296 = vmatprep.subr.bf16.mxu0 %v1063
    %1297 = vmatpush2.bf16.msra.mxu0 %v1062
    %1298 = vmatprep.subr.bf16.mxu0 %v1051
    %1299 = vmatpush2.bf16.msra.mxu0 %v1050
    %1300 = vmatprep.subr.bf16.mxu0 %v1039
    %1301 = vmatpush2.bf16.msra.mxu0 %v1038
    %1302 = vmatprep.subr.bf16.mxu0 %v1027
    %1303 = vmatpush2.bf16.msra.mxu0 %v1026
    %1304 = vmatprep.subr.bf16.mxu0 %v1015
    %1305 = vmatpush2.bf16.msra.mxu0 %v1014
    %1306 = vmatprep.subr.bf16.mxu0 %v1003
    %1307 = vmatpush2.bf16.msra.mxu0 %v1002
    %1308 = vmatprep.subr.bf16.mxu0 %v991
    %1309 = vmatpush2.bf16.msra.mxu0 %v990
    %1310 = vmatprep.mubr.bf16.mxu0 %v61
    %1311 = vmatmul.mubr.bf16.gmra.mxu0 %v60
    %v1312 = vpop.f32.mrf.mxu0
    %v1313 = vadd.f32 %v261, %v1312
    %v1314 = vpop.f32.mrf.mxu0
    %v1315 = vadd.f32 %v265, %v1314
    %v1316 = vpop.f32.mrf.mxu0
    %v1317 = vadd.f32 %v261, %v1316
    %v1318 = vpop.f32.mrf.mxu0
    %v1319 = vadd.f32 %v265, %v1318
    %1320 = vdwg.mxu0
    %1321 = vmatprep.subr.bf16.mxu0 %v981
    %1322 = vmatpush1.bf16.msra.mxu0 %v980
    %1323 = vmatprep.subr.bf16.mxu0 %v969
    %1324 = vmatpush1.bf16.msra.mxu0 %v968
    %1325 = vmatprep.subr.bf16.mxu0 %v957
    %1326 = vmatpush1.bf16.msra.mxu0 %v956
    %1327 = vmatprep.subr.bf16.mxu0 %v945
    %1328 = vmatpush1.bf16.msra.mxu0 %v944
    %1329 = vmatprep.subr.bf16.mxu0 %v933
    %1330 = vmatpush1.bf16.msra.mxu0 %v932
    %1331 = vmatprep.subr.bf16.mxu0 %v921
    %1332 = vmatpush1.bf16.msra.mxu0 %v920
    %1333 = vmatprep.subr.bf16.mxu0 %v909
    %1334 = vmatpush1.bf16.msra.mxu0 %v908
    %1335 = vmatprep.subr.bf16.mxu0 %v897
    %1336 = vmatpush1.bf16.msra.mxu0 %v896
    %1337 = vmatprep.subr.bf16.mxu0 %v1077
    %1338 = vmatpush2.bf16.msra.mxu0 %v1076
    %1339 = vmatprep.subr.bf16.mxu0 %v1065
    %1340 = vmatpush2.bf16.msra.mxu0 %v1064
    %1341 = vmatprep.subr.bf16.mxu0 %v1053
    %1342 = vmatpush2.bf16.msra.mxu0 %v1052
    %1343 = vmatprep.subr.bf16.mxu0 %v1041
    %1344 = vmatpush2.bf16.msra.mxu0 %v1040
    %1345 = vmatprep.subr.bf16.mxu0 %v1029
    %1346 = vmatpush2.bf16.msra.mxu0 %v1028
    %1347 = vmatprep.subr.bf16.mxu0 %v1017
    %1348 = vmatpush2.bf16.msra.mxu0 %v1016
    %1349 = vmatprep.subr.bf16.mxu0 %v1005
    %1350 = vmatpush2.bf16.msra.mxu0 %v1004
    %1351 = vmatprep.subr.bf16.mxu0 %v993
    %1352 = vmatpush2.bf16.msra.mxu0 %v992
    %1353 = vmatprep.mubr.bf16.mxu0 %v61
    %1354 = vmatmul.mubr.bf16.gmra.mxu0 %v60
    %v1355 = vpop.f32.mrf.mxu0
    %v1356 = vadd.f32 %v269, %v1355
    %v1357 = vpop.f32.mrf.mxu0
    %v1358 = vadd.f32 %v273, %v1357
    %v1359 = vpop.f32.mrf.mxu0
    %v1360 = vadd.f32 %v269, %v1359
    %v1361 = vpop.f32.mrf.mxu0
    %v1362 = vadd.f32 %v273, %v1361
    %1363 = vdwg.mxu0
    %1364 = vmatprep.subr.bf16.mxu0 %v983
    %1365 = vmatpush1.bf16.msra.mxu0 %v982
    %1366 = vmatprep.subr.bf16.mxu0 %v971
    %1367 = vmatpush1.bf16.msra.mxu0 %v970
    %1368 = vmatprep.subr.bf16.mxu0 %v959
    %1369 = vmatpush1.bf16.msra.mxu0 %v958
    %1370 = vmatprep.subr.bf16.mxu0 %v947
    %1371 = vmatpush1.bf16.msra.mxu0 %v946
    %1372 = vmatprep.subr.bf16.mxu0 %v935
    %1373 = vmatpush1.bf16.msra.mxu0 %v934
    %1374 = vmatprep.subr.bf16.mxu0 %v923
    %1375 = vmatpush1.bf16.msra.mxu0 %v922
    %1376 = vmatprep.subr.bf16.mxu0 %v911
    %1377 = vmatpush1.bf16.msra.mxu0 %v910
    %1378 = vmatprep.subr.bf16.mxu0 %v899
    %1379 = vmatpush1.bf16.msra.mxu0 %v898
    %1380 = vmatprep.subr.bf16.mxu0 %v1079
    %1381 = vmatpush2.bf16.msra.mxu0 %v1078
    %1382 = vmatprep.subr.bf16.mxu0 %v1067
    %1383 = vmatpush2.bf16.msra.mxu0 %v1066
    %1384 = vmatprep.subr.bf16.mxu0 %v1055
    %1385 = vmatpush2.bf16.msra.mxu0 %v1054
    %1386 = vmatprep.subr.bf16.mxu0 %v1043
    %1387 = vmatpush2.bf16.msra.mxu0 %v1042
    %1388 = vmatprep.subr.bf16.mxu0 %v1031
    %1389 = vmatpush2.bf16.msra.mxu0 %v1030
    %1390 = vmatprep.subr.bf16.mxu0 %v1019
    %1391 = vmatpush2.bf16.msra.mxu0 %v1018
    %1392 = vmatprep.subr.bf16.mxu0 %v1007
    %1393 = vmatpush2.bf16.msra.mxu0 %v1006
    %1394 = vmatprep.subr.bf16.mxu0 %v995
    %1395 = vmatpush2.bf16.msra.mxu0 %v994
    %1396 = vmatprep.mubr.bf16.mxu0 %v61
    %1397 = vmatmul.mubr.bf16.gmra.mxu0 %v60
    %v1398 = vpop.f32.mrf.mxu0
    %v1399 = vadd.f32 %v277, %v1398
    %v1400 = vpop.f32.mrf.mxu0
    %v1401 = vadd.f32 %v281, %v1400
    %v1402 = vpop.f32.mrf.mxu0
    %v1403 = vadd.f32 %v277, %v1402
    %v1404 = vpop.f32.mrf.mxu0
    %v1405 = vadd.f32 %v281, %v1404
    %1406 = vdwg.mxu0
    %1407 = vmatprep.subr.bf16.mxu0 %v985
    %1408 = vmatpush1.bf16.msra.mxu0 %v984
    %1409 = vmatprep.subr.bf16.mxu0 %v973
    %1410 = vmatpush1.bf16.msra.mxu0 %v972
    %1411 = vmatprep.subr.bf16.mxu0 %v961
    %1412 = vmatpush1.bf16.msra.mxu0 %v960
    %1413 = vmatprep.subr.bf16.mxu0 %v949
    %1414 = vmatpush1.bf16.msra.mxu0 %v948
    %1415 = vmatprep.subr.bf16.mxu0 %v937
    %1416 = vmatpush1.bf16.msra.mxu0 %v936
    %1417 = vmatprep.subr.bf16.mxu0 %v925
    %1418 = vmatpush1.bf16.msra.mxu0 %v924
    %1419 = vmatprep.subr.bf16.mxu0 %v913
    %1420 = vmatpush1.bf16.msra.mxu0 %v912
    %1421 = vmatprep.subr.bf16.mxu0 %v901
    %1422 = vmatpush1.bf16.msra.mxu0 %v900
    %1423 = vmatprep.subr.bf16.mxu0 %v1081
    %1424 = vmatpush2.bf16.msra.mxu0 %v1080
    %1425 = vmatprep.subr.bf16.mxu0 %v1069
    %1426 = vmatpush2.bf16.msra.mxu0 %v1068
    %1427 = vmatprep.subr.bf16.mxu0 %v1057
    %1428 = vmatpush2.bf16.msra.mxu0 %v1056
    %1429 = vmatprep.subr.bf16.mxu0 %v1045
    %1430 = vmatpush2.bf16.msra.mxu0 %v1044
    %1431 = vmatprep.subr.bf16.mxu0 %v1033
    %1432 = vmatpush2.bf16.msra.mxu0 %v1032
    %1433 = vmatprep.subr.bf16.mxu0 %v1021
    %1434 = vmatpush2.bf16.msra.mxu0 %v1020
    %1435 = vmatprep.subr.bf16.mxu0 %v1009
    %1436 = vmatpush2.bf16.msra.mxu0 %v1008
    %1437 = vmatprep.subr.bf16.mxu0 %v997
    %1438 = vmatpush2.bf16.msra.mxu0 %v996
    %1439 = vmatprep.mubr.bf16.mxu0 %v61
    %1440 = vmatmul.mubr.bf16.gmra.mxu0 %v60
    %v1441 = vpop.f32.mrf.mxu0
    %v1442 = vadd.f32 %v285, %v1441
    %v1443 = vpop.f32.mrf.mxu0
    %v1444 = vadd.f32 %v289, %v1443
    %v1445 = vpop.f32.mrf.mxu0
    %v1446 = vadd.f32 %v285, %v1445
    %v1447 = vpop.f32.mrf.mxu0
    %v1448 = vadd.f32 %v289, %v1447
    %1449 = vdwg.mxu0
    %1450 = vmatprep.subr.bf16.mxu0 %v987
    %1451 = vmatpush1.bf16.msra.mxu0 %v986
    %1452 = vmatprep.subr.bf16.mxu0 %v975
    %1453 = vmatpush1.bf16.msra.mxu0 %v974
    %1454 = vmatprep.subr.bf16.mxu0 %v963
    %1455 = vmatpush1.bf16.msra.mxu0 %v962
    %1456 = vmatprep.subr.bf16.mxu0 %v951
    %1457 = vmatpush1.bf16.msra.mxu0 %v950
    %1458 = vmatprep.subr.bf16.mxu0 %v939
    %1459 = vmatpush1.bf16.msra.mxu0 %v938
    %1460 = vmatprep.subr.bf16.mxu0 %v927
    %1461 = vmatpush1.bf16.msra.mxu0 %v926
    %1462 = vmatprep.subr.bf16.mxu0 %v915
    %1463 = vmatpush1.bf16.msra.mxu0 %v914
    %1464 = vmatprep.subr.bf16.mxu0 %v903
    %1465 = vmatpush1.bf16.msra.mxu0 %v902
    %1466 = vmatprep.subr.bf16.mxu0 %v1083
    %1467 = vmatpush2.bf16.msra.mxu0 %v1082
    %1468 = vmatprep.subr.bf16.mxu0 %v1071
    %1469 = vmatpush2.bf16.msra.mxu0 %v1070
    %1470 = vmatprep.subr.bf16.mxu0 %v1059
    %1471 = vmatpush2.bf16.msra.mxu0 %v1058
    %1472 = vmatprep.subr.bf16.mxu0 %v1047
    %1473 = vmatpush2.bf16.msra.mxu0 %v1046
    %1474 = vmatprep.subr.bf16.mxu0 %v1035
    %1475 = vmatpush2.bf16.msra.mxu0 %v1034
    %1476 = vmatprep.subr.bf16.mxu0 %v1023
    %1477 = vmatpush2.bf16.msra.mxu0 %v1022
    %1478 = vmatprep.subr.bf16.mxu0 %v1011
    %1479 = vmatpush2.bf16.msra.mxu0 %v1010
    %1480 = vmatprep.subr.bf16.mxu0 %v999
    %1481 = vmatpush2.bf16.msra.mxu0 %v998
    %1482 = vmatprep.mubr.bf16.mxu0 %v61
    %1483 = vmatmul.mubr.bf16.gmra.mxu0 %v60
    %v1484 = vpop.f32.mrf.mxu0
    %v1485 = vadd.f32 %v293, %v1484
    %v1486 = vpop.f32.mrf.mxu0
    %v1487 = vadd.f32 %v297, %v1486
    %v1488 = vpop.f32.mrf.mxu0
    %v1489 = vadd.f32 %v293, %v1488
    %v1490 = vpop.f32.mrf.mxu0
    %v1491 = vadd.f32 %v297, %v1490
    %1492 = vdwg.mxu0
    %1493 = vmatprep.subr.bf16.mxu0 %v989
    %1494 = vmatpush1.bf16.msra.mxu0 %v988
    %1495 = vmatprep.subr.bf16.mxu0 %v977
    %1496 = vmatpush1.bf16.msra.mxu0 %v976
    %1497 = vmatprep.subr.bf16.mxu0 %v965
    %1498 = vmatpush1.bf16.msra.mxu0 %v964
    %1499 = vmatprep.subr.bf16.mxu0 %v953
    %1500 = vmatpush1.bf16.msra.mxu0 %v952
    %1501 = vmatprep.subr.bf16.mxu0 %v941
    %1502 = vmatpush1.bf16.msra.mxu0 %v940
    %1503 = vmatprep.subr.bf16.mxu0 %v929
    %1504 = vmatpush1.bf16.msra.mxu0 %v928
    %1505 = vmatprep.subr.bf16.mxu0 %v917
    %1506 = vmatpush1.bf16.msra.mxu0 %v916
    %1507 = vmatprep.subr.bf16.mxu0 %v905
    %1508 = vmatpush1.bf16.msra.mxu0 %v904
    %1509 = vmatprep.subr.bf16.mxu0 %v1085
    %1510 = vmatpush2.bf16.msra.mxu0 %v1084
    %1511 = vmatprep.subr.bf16.mxu0 %v1073
    %1512 = vmatpush2.bf16.msra.mxu0 %v1072
    %1513 = vmatprep.subr.bf16.mxu0 %v1061
    %1514 = vmatpush2.bf16.msra.mxu0 %v1060
    %1515 = vmatprep.subr.bf16.mxu0 %v1049
    %1516 = vmatpush2.bf16.msra.mxu0 %v1048
    %1517 = vmatprep.subr.bf16.mxu0 %v1037
    %1518 = vmatpush2.bf16.msra.mxu0 %v1036
    %1519 = vmatprep.subr.bf16.mxu0 %v1025
    %1520 = vmatpush2.bf16.msra.mxu0 %v1024
    %1521 = vmatprep.subr.bf16.mxu0 %v1013
    %1522 = vmatpush2.bf16.msra.mxu0 %v1012
    %1523 = vmatprep.subr.bf16.mxu0 %v1001
    %1524 = vmatpush2.bf16.msra.mxu0 %v1000
    %1525 = vmatprep.mubr.bf16.mxu0 %v61
    %1526 = vmatmul.mubr.bf16.gmra.mxu0 %v60
    %v1527 = vpop.f32.mrf.mxu0
    %v1528 = vadd.f32 %v301, %v1527
    %v1529 = vpop.f32.mrf.mxu0
    %v1530 = vadd.f32 %v305, %v1529
    %v1531 = vpop.f32.mrf.mxu0
    %v1532 = vadd.f32 %v301, %v1531
    %v1533 = vpop.f32.mrf.mxu0
    %v1534 = vadd.f32 %v305, %v1533
    %1535 = vdwg.mxu0
    %v1536 = vmax.f32 %v1313, 0.0
    %v1537 = vmax.f32 %v1315, 0.0
    %v1538 = vmax.f32 %v1356, 0.0
    %v1539 = vmax.f32 %v1358, 0.0
    %v1540 = vmax.f32 %v1399, 0.0
    %v1541 = vmax.f32 %v1401, 0.0
    %v1542 = vmax.f32 %v1442, 0.0
    %v1543 = vmax.f32 %v1444, 0.0
    %v1544 = vmax.f32 %v1485, 0.0
    %v1545 = vmax.f32 %v1487, 0.0
    %v1546 = vmax.f32 %v1528, 0.0
    %v1547 = vmax.f32 %v1530, 0.0
    %v1548 = vmax.f32 %v1317, 0.0
    %v1549 = vmax.f32 %v1319, 0.0
    %v1550 = vmax.f32 %v1360, 0.0
    %v1551 = vmax.f32 %v1362, 0.0
    %v1552 = vmax.f32 %v1403, 0.0
    %v1553 = vmax.f32 %v1405, 0.0
    %v1554 = vmax.f32 %v1446, 0.0
    %v1555 = vmax.f32 %v1448, 0.0
    %v1556 = vmax.f32 %v1489, 0.0
    %v1557 = vmax.f32 %v1491, 0.0
    %v1558 = vmax.f32 %v1532, 0.0
    %v1559 = vmax.f32 %v1534, 0.0
    %v1560 = vpack.c.bf16 %v1548, %v1536
    %v1561 = vpack.c.bf16 %v1549, %v1537
    %v1562 = vpack.c.bf16 %v1550, %v1538
    %v1563 = vpack.c.bf16 %v1551, %v1539
    %v1564 = vpack.c.bf16 %v1552, %v1540
    %v1565 = vpack.c.bf16 %v1553, %v1541
    %v1566 = vpack.c.bf16 %v1554, %v1542
    %v1567 = vpack.c.bf16 %v1555, %v1543
    %v1568 = vpack.c.bf16 %v1556, %v1544
    %v1569 = vpack.c.bf16 %v1557, %v1545
    %v1570 = vpack.c.bf16 %v1558, %v1546
    %v1571 = vpack.c.bf16 %v1559, %v1547
    %v1584 = vunpack.c.l.b16 %v1560
    %v1585 = vunpack.c.l.b16 %v1561
    %v1586 = vunpack.c.l.b16 %v1562
    %v1587 = vunpack.c.l.b16 %v1563
    %v1588 = vunpack.c.l.b16 %v1564
    %v1589 = vunpack.c.l.b16 %v1565
    %v1590 = vunpack.c.l.b16 %v1566
    %v1591 = vunpack.c.l.b16 %v1567
    %v1592 = vunpack.c.l.b16 %v1568
    %v1593 = vunpack.c.l.b16 %v1569
    %v1594 = vunpack.c.l.b16 %v1570
    %v1595 = vunpack.c.l.b16 %v1571
    %v1596 = vunpack.c.h.b16 %v1560
    %v1597 = vunpack.c.h.b16 %v1561
    %v1598 = vunpack.c.h.b16 %v1562
    %v1599 = vunpack.c.h.b16 %v1563
    %v1600 = vunpack.c.h.b16 %v1564
    %v1601 = vunpack.c.h.b16 %v1565
    %v1602 = vunpack.c.h.b16 %v1566
    %v1603 = vunpack.c.h.b16 %v1567
    %v1604 = vunpack.c.h.b16 %v1568
    %v1605 = vunpack.c.h.b16 %v1569
    %v1606 = vunpack.c.h.b16 %v1570
    %v1607 = vunpack.c.h.b16 %v1571
    %v1608 = vpack.c.b16 %v1585, %v1584
    %v1609 = vpack.c.b16 %v1587, %v1586
    %v1610 = vpack.c.b16 %v1589, %v1588
    %v1611 = vpack.c.b16 %v1591, %v1590
    %v1612 = vpack.c.b16 %v1593, %v1592
    %v1613 = vpack.c.b16 %v1595, %v1594
    %v1614 = vpack.c.b16 %v1597, %v1596
    %v1615 = vpack.c.b16 %v1599, %v1598
    %v1616 = vpack.c.b16 %v1601, %v1600
    %v1617 = vpack.c.b16 %v1603, %v1602
    %v1618 = vpack.c.b16 %v1605, %v1604
    %v1619 = vpack.c.b16 %v1607, %v1606
    %1632 = vst [vmem:[%s3] sm:$0xff] %v1608
    %1633 = vst [vmem:[%s3 + $0x8] sm:$0xff] %v1609
    %1634 = vst [vmem:[%s3 + $0x10] sm:$0xff] %v1610
    %1635 = vst [vmem:[%s3 + $0x18] sm:$0xff] %v1611
    %1636 = vst [vmem:[%s3 + $0x20] sm:$0xff] %v1612
    %1637 = vst [vmem:[%s3 + $0x28] sm:$0xff] %v1613
    %1638 = vst [vmem:[%s3 + $0x30] sm:$0xff] %v1614
    %1639 = vst [vmem:[%s3 + $0x38] sm:$0xff] %v1615
    %1640 = vst [vmem:[%s3 + $0x40] sm:$0xff] %v1616
    %1641 = vst [vmem:[%s3 + $0x48] sm:$0xff] %v1617
    %1642 = vst [vmem:[%s3 + $0x50] sm:$0xff] %v1618
    %1643 = vst [vmem:[%s3 + $0x58] sm:$0xff] %v1619
    %v1644 = vadd.f32 %v1536, %v1548
    %v1645 = vrot.slane %v1644, 4
    %v1646 = vadd.f32 %v1644, %v1645
    %v1647 = vrot.slane %v1646, 2
    %v1648 = vadd.f32 %v1646, %v1647
    %v1649 = vrot.slane %v1648, 1
    %v1650 = vadd.f32 %v1648, %v1649
    %v1651 = vadd.f32 %v1537, %v1549
    %v1652 = vrot.slane %v1651, 4
    %v1653 = vadd.f32 %v1651, %v1652
    %v1654 = vrot.slane %v1653, 2
    %v1655 = vadd.f32 %v1653, %v1654
    %v1656 = vrot.slane %v1655, 1
    %v1657 = vadd.f32 %v1655, %v1656
    %v1658 = vadd.f32 %v1538, %v1550
    %v1659 = vrot.slane %v1658, 4
    %v1660 = vadd.f32 %v1658, %v1659
    %v1661 = vrot.slane %v1660, 2
    %v1662 = vadd.f32 %v1660, %v1661
    %v1663 = vrot.slane %v1662, 1
    %v1664 = vadd.f32 %v1662, %v1663
    %v1665 = vadd.f32 %v1539, %v1551
    %v1666 = vrot.slane %v1665, 4
    %v1667 = vadd.f32 %v1665, %v1666
    %v1668 = vrot.slane %v1667, 2
    %v1669 = vadd.f32 %v1667, %v1668
    %v1670 = vrot.slane %v1669, 1
    %v1671 = vadd.f32 %v1669, %v1670
    %v1672 = vadd.f32 %v1540, %v1552
    %v1673 = vrot.slane %v1672, 4
    %v1674 = vadd.f32 %v1672, %v1673
    %v1675 = vrot.slane %v1674, 2
    %v1676 = vadd.f32 %v1674, %v1675
    %v1677 = vrot.slane %v1676, 1
    %v1678 = vadd.f32 %v1676, %v1677
    %v1679 = vadd.f32 %v1541, %v1553
    %v1680 = vrot.slane %v1679, 4
    %v1681 = vadd.f32 %v1679, %v1680
    %v1682 = vrot.slane %v1681, 2
    %v1683 = vadd.f32 %v1681, %v1682
    %v1684 = vrot.slane %v1683, 1
    %v1685 = vadd.f32 %v1683, %v1684
    %v1686 = vadd.f32 %v1542, %v1554
    %v1687 = vrot.slane %v1686, 4
    %v1688 = vadd.f32 %v1686, %v1687
    %v1689 = vrot.slane %v1688, 2
    %v1690 = vadd.f32 %v1688, %v1689
    %v1691 = vrot.slane %v1690, 1
    %v1692 = vadd.f32 %v1690, %v1691
    %v1693 = vadd.f32 %v1543, %v1555
    %v1694 = vrot.slane %v1693, 4
    %v1695 = vadd.f32 %v1693, %v1694
    %v1696 = vrot.slane %v1695, 2
    %v1697 = vadd.f32 %v1695, %v1696
    %v1698 = vrot.slane %v1697, 1
    %v1699 = vadd.f32 %v1697, %v1698
    %v1700 = vadd.f32 %v1544, %v1556
    %v1701 = vrot.slane %v1700, 4
    %v1702 = vadd.f32 %v1700, %v1701
    %v1703 = vrot.slane %v1702, 2
    %v1704 = vadd.f32 %v1702, %v1703
    %v1705 = vrot.slane %v1704, 1
    %v1706 = vadd.f32 %v1704, %v1705
    %v1707 = vadd.f32 %v1545, %v1557
    %v1708 = vrot.slane %v1707, 4
    %v1709 = vadd.f32 %v1707, %v1708
    %v1710 = vrot.slane %v1709, 2
    %v1711 = vadd.f32 %v1709, %v1710
    %v1712 = vrot.slane %v1711, 1
    %v1713 = vadd.f32 %v1711, %v1712
    %v1714 = vadd.f32 %v1546, %v1558
    %v1715 = vrot.slane %v1714, 4
    %v1716 = vadd.f32 %v1714, %v1715
    %v1717 = vrot.slane %v1716, 2
    %v1718 = vadd.f32 %v1716, %v1717
    %v1719 = vrot.slane %v1718, 1
    %v1720 = vadd.f32 %v1718, %v1719
    %v1721 = vadd.f32 %v1547, %v1559
    %v1722 = vrot.slane %v1721, 4
    %v1723 = vadd.f32 %v1721, %v1722
    %v1724 = vrot.slane %v1723, 2
    %v1725 = vadd.f32 %v1723, %v1724
    %v1726 = vrot.slane %v1725, 1
    %v1727 = vadd.f32 %v1725, %v1726
    %v1740 = vcombine.low %v1650, %v1657
    %v1741 = vcombine.low %v1664, %v1671
    %v1742 = vcombine.low %v1678, %v1685
    %v1743 = vcombine.low %v1692, %v1699
    %v1745 = vunpack.c.l.s4 1966171168
    %v1746 = vunpack.c.0.s8 %v1745
    %v1747 = vlaneseq
    %v1748 = vshrl.u32 %v1747, 7
    %v1749 = vsub.s32 %v1746, %v1748
    %v1750 = vrot.slane %v1740, %v1749
    %v1752 = vunpack.c.l.s4 1966171168
    %v1753 = vunpack.c.0.s8 %v1752
    %v1754 = vlaneseq
    %v1755 = vshrl.u32 %v1754, 7
    %v1756 = vsub.s32 %v1753, %v1755
    %v1757 = vrot.slane %v1741, %v1756
    %v1759 = vunpack.c.l.s4 1966171168
    %v1760 = vunpack.c.0.s8 %v1759
    %v1761 = vlaneseq
    %v1762 = vshrl.u32 %v1761, 7
    %v1763 = vsub.s32 %v1760, %v1762
    %v1764 = vrot.slane %v1742, %v1763
    %v1766 = vunpack.c.l.s4 1966171168
    %v1767 = vunpack.c.0.s8 %v1766
    %v1768 = vlaneseq
    %v1769 = vshrl.u32 %v1768, 7
    %v1770 = vsub.s32 %v1767, %v1769
    %v1771 = vrot.slane %v1743, %v1770
    %v1772 = vcombine.low %v1750, %v1757
    %v1773 = vcombine.low %v1764, %v1771
    %v1775 = vunpack.c.l.s4 1966171168
    %v1776 = vunpack.c.0.s8 %v1775
    %v1777 = vlaneseq
    %v1778 = vshrl.u32 %v1777, 7
    %v1779 = vsub.s32 %v1776, %v1778
    %v1780 = vrot.slane %v1772, %v1779
    %v1782 = vunpack.c.l.s4 1966171168
    %v1783 = vunpack.c.0.s8 %v1782
    %v1784 = vlaneseq
    %v1785 = vshrl.u32 %v1784, 7
    %v1786 = vsub.s32 %v1783, %v1785
    %v1787 = vrot.slane %v1773, %v1786
    %v1788 = vcombine.low %v1780, %v1787
    %v1789 = vcombine.low %v1706, %v1713
    %v1790 = vcombine.low %v1720, %v1727
    %v1792 = vunpack.c.l.s4 1966171168
    %v1793 = vunpack.c.0.s8 %v1792
    %v1794 = vlaneseq
    %v1795 = vshrl.u32 %v1794, 7
    %v1796 = vsub.s32 %v1793, %v1795
    %v1797 = vrot.slane %v1789, %v1796
    %v1799 = vunpack.c.l.s4 1966171168
    %v1800 = vunpack.c.0.s8 %v1799
    %v1801 = vlaneseq
    %v1802 = vshrl.u32 %v1801, 7
    %v1803 = vsub.s32 %v1800, %v1802
    %v1804 = vrot.slane %v1790, %v1803
    %v1805 = vcombine.low %v1797, %v1804
    %v1807 = vunpack.c.l.s4 1966171168
    %v1808 = vunpack.c.0.s8 %v1807
    %v1809 = vlaneseq
    %v1810 = vshrl.u32 %v1809, 7
    %v1811 = vsub.s32 %v1808, %v1810
    %v1812 = vrot.slane %v1805, %v1811
    %1815 = vst [vmem:[%s4] sm:$0xff] %v1788
    %v1816 = vlaneseq
    %vm1817 = vcmp.ge.s32.totalorder %v1816, 0
    %vm1818 = vcmp.lt.s32.totalorder %v1816, 512
    %vm1819 = vmand %vm1817, %vm1818
    %1820 = vst.msk [vmem:[%s4 + $0x8] sm:$0xf] %vm1819, %v1812
    %v1821 = vmul.f32 %v1536, %v1536
    %v1822 = vmul.f32 %v1537, %v1537
    %v1823 = vmul.f32 %v1538, %v1538
    %v1824 = vmul.f32 %v1539, %v1539
    %v1825 = vmul.f32 %v1540, %v1540
    %v1826 = vmul.f32 %v1541, %v1541
    %v1827 = vmul.f32 %v1542, %v1542
    %v1828 = vmul.f32 %v1543, %v1543
    %v1829 = vmul.f32 %v1544, %v1544
    %v1830 = vmul.f32 %v1545, %v1545
    %v1831 = vmul.f32 %v1546, %v1546
    %v1832 = vmul.f32 %v1547, %v1547
    %v1833 = vmul.f32 %v1548, %v1548
    %v1834 = vmul.f32 %v1549, %v1549
    %v1835 = vmul.f32 %v1550, %v1550
    %v1836 = vmul.f32 %v1551, %v1551
    %v1837 = vmul.f32 %v1552, %v1552
    %v1838 = vmul.f32 %v1553, %v1553
    %v1839 = vmul.f32 %v1554, %v1554
    %v1840 = vmul.f32 %v1555, %v1555
    %v1841 = vmul.f32 %v1556, %v1556
    %v1842 = vmul.f32 %v1557, %v1557
    %v1843 = vmul.f32 %v1558, %v1558
    %v1844 = vmul.f32 %v1559, %v1559
    %v1845 = vadd.f32 %v1821, %v1833
    %v1846 = vrot.slane %v1845, 4
    %v1847 = vadd.f32 %v1845, %v1846
    %v1848 = vrot.slane %v1847, 2
    %v1849 = vadd.f32 %v1847, %v1848
    %v1850 = vrot.slane %v1849, 1
    %v1851 = vadd.f32 %v1849, %v1850
    %v1852 = vadd.f32 %v1822, %v1834
    %v1853 = vrot.slane %v1852, 4
    %v1854 = vadd.f32 %v1852, %v1853
    %v1855 = vrot.slane %v1854, 2
    %v1856 = vadd.f32 %v1854, %v1855
    %v1857 = vrot.slane %v1856, 1
    %v1858 = vadd.f32 %v1856, %v1857
    %v1859 = vadd.f32 %v1823, %v1835
    %v1860 = vrot.slane %v1859, 4
    %v1861 = vadd.f32 %v1859, %v1860
    %v1862 = vrot.slane %v1861, 2
    %v1863 = vadd.f32 %v1861, %v1862
    %v1864 = vrot.slane %v1863, 1
    %v1865 = vadd.f32 %v1863, %v1864
    %v1866 = vadd.f32 %v1824, %v1836
    %v1867 = vrot.slane %v1866, 4
    %v1868 = vadd.f32 %v1866, %v1867
    %v1869 = vrot.slane %v1868, 2
    %v1870 = vadd.f32 %v1868, %v1869
    %v1871 = vrot.slane %v1870, 1
    %v1872 = vadd.f32 %v1870, %v1871
    %v1873 = vadd.f32 %v1825, %v1837
    %v1874 = vrot.slane %v1873, 4
    %v1875 = vadd.f32 %v1873, %v1874
    %v1876 = vrot.slane %v1875, 2
    %v1877 = vadd.f32 %v1875, %v1876
    %v1878 = vrot.slane %v1877, 1
    %v1879 = vadd.f32 %v1877, %v1878
    %v1880 = vadd.f32 %v1826, %v1838
    %v1881 = vrot.slane %v1880, 4
    %v1882 = vadd.f32 %v1880, %v1881
    %v1883 = vrot.slane %v1882, 2
    %v1884 = vadd.f32 %v1882, %v1883
    %v1885 = vrot.slane %v1884, 1
    %v1886 = vadd.f32 %v1884, %v1885
    %v1887 = vadd.f32 %v1827, %v1839
    %v1888 = vrot.slane %v1887, 4
    %v1889 = vadd.f32 %v1887, %v1888
    %v1890 = vrot.slane %v1889, 2
    %v1891 = vadd.f32 %v1889, %v1890
    %v1892 = vrot.slane %v1891, 1
    %v1893 = vadd.f32 %v1891, %v1892
    %v1894 = vadd.f32 %v1828, %v1840
    %v1895 = vrot.slane %v1894, 4
    %v1896 = vadd.f32 %v1894, %v1895
    %v1897 = vrot.slane %v1896, 2
    %v1898 = vadd.f32 %v1896, %v1897
    %v1899 = vrot.slane %v1898, 1
    %v1900 = vadd.f32 %v1898, %v1899
    %v1901 = vadd.f32 %v1829, %v1841
    %v1902 = vrot.slane %v1901, 4
    %v1903 = vadd.f32 %v1901, %v1902
    %v1904 = vrot.slane %v1903, 2
    %v1905 = vadd.f32 %v1903, %v1904
    %v1906 = vrot.slane %v1905, 1
    %v1907 = vadd.f32 %v1905, %v1906
    %v1908 = vadd.f32 %v1830, %v1842
    %v1909 = vrot.slane %v1908, 4
    %v1910 = vadd.f32 %v1908, %v1909
    %v1911 = vrot.slane %v1910, 2
    %v1912 = vadd.f32 %v1910, %v1911
    %v1913 = vrot.slane %v1912, 1
    %v1914 = vadd.f32 %v1912, %v1913
    %v1915 = vadd.f32 %v1831, %v1843
    %v1916 = vrot.slane %v1915, 4
    %v1917 = vadd.f32 %v1915, %v1916
    %v1918 = vrot.slane %v1917, 2
    %v1919 = vadd.f32 %v1917, %v1918
    %v1920 = vrot.slane %v1919, 1
    %v1921 = vadd.f32 %v1919, %v1920
    %v1922 = vadd.f32 %v1832, %v1844
    %v1923 = vrot.slane %v1922, 4
    %v1924 = vadd.f32 %v1922, %v1923
    %v1925 = vrot.slane %v1924, 2
    %v1926 = vadd.f32 %v1924, %v1925
    %v1927 = vrot.slane %v1926, 1
    %v1928 = vadd.f32 %v1926, %v1927
    %v1941 = vcombine.low %v1851, %v1858
    %v1942 = vcombine.low %v1865, %v1872
    %v1943 = vcombine.low %v1879, %v1886
    %v1944 = vcombine.low %v1893, %v1900
    %v1946 = vunpack.c.l.s4 1966171168
    %v1947 = vunpack.c.0.s8 %v1946
    %v1948 = vlaneseq
    %v1949 = vshrl.u32 %v1948, 7
    %v1950 = vsub.s32 %v1947, %v1949
    %v1951 = vrot.slane %v1941, %v1950
    %v1953 = vunpack.c.l.s4 1966171168
    %v1954 = vunpack.c.0.s8 %v1953
    %v1955 = vlaneseq
    %v1956 = vshrl.u32 %v1955, 7
    %v1957 = vsub.s32 %v1954, %v1956
    %v1958 = vrot.slane %v1942, %v1957
    %v1960 = vunpack.c.l.s4 1966171168
    %v1961 = vunpack.c.0.s8 %v1960
    %v1962 = vlaneseq
    %v1963 = vshrl.u32 %v1962, 7
    %v1964 = vsub.s32 %v1961, %v1963
    %v1965 = vrot.slane %v1943, %v1964
    %v1967 = vunpack.c.l.s4 1966171168
    %v1968 = vunpack.c.0.s8 %v1967
    %v1969 = vlaneseq
    %v1970 = vshrl.u32 %v1969, 7
    %v1971 = vsub.s32 %v1968, %v1970
    %v1972 = vrot.slane %v1944, %v1971
    %v1973 = vcombine.low %v1951, %v1958
    %v1974 = vcombine.low %v1965, %v1972
    %v1976 = vunpack.c.l.s4 1966171168
    %v1977 = vunpack.c.0.s8 %v1976
    %v1978 = vlaneseq
    %v1979 = vshrl.u32 %v1978, 7
    %v1980 = vsub.s32 %v1977, %v1979
    %v1981 = vrot.slane %v1973, %v1980
    %v1983 = vunpack.c.l.s4 1966171168
    %v1984 = vunpack.c.0.s8 %v1983
    %v1985 = vlaneseq
    %v1986 = vshrl.u32 %v1985, 7
    %v1987 = vsub.s32 %v1984, %v1986
    %v1988 = vrot.slane %v1974, %v1987
    %v1989 = vcombine.low %v1981, %v1988
    %v1990 = vcombine.low %v1907, %v1914
    %v1991 = vcombine.low %v1921, %v1928
    %v1993 = vunpack.c.l.s4 1966171168
    %v1994 = vunpack.c.0.s8 %v1993
    %v1995 = vlaneseq
    %v1996 = vshrl.u32 %v1995, 7
    %v1997 = vsub.s32 %v1994, %v1996
    %v1998 = vrot.slane %v1990, %v1997
    %v2000 = vunpack.c.l.s4 1966171168
    %v2001 = vunpack.c.0.s8 %v2000
    %v2002 = vlaneseq
    %v2003 = vshrl.u32 %v2002, 7
    %v2004 = vsub.s32 %v2001, %v2003
    %v2005 = vrot.slane %v1991, %v2004
    %v2006 = vcombine.low %v1998, %v2005
    %v2008 = vunpack.c.l.s4 1966171168
    %v2009 = vunpack.c.0.s8 %v2008
    %v2010 = vlaneseq
    %v2011 = vshrl.u32 %v2010, 7
    %v2012 = vsub.s32 %v2009, %v2011
    %v2013 = vrot.slane %v2006, %v2012
    %2016 = vst [vmem:[%s5] sm:$0xff] %v1989
    %2017 = vst.msk [vmem:[%s5 + $0x8] sm:$0xf] %vm1819, %v2013
    // Predicated region
    $region26: #{ftdnn_acoustic_forward.3} parent=1 // pred_check
      _
    $region27: #{ftdnn_acoustic_forward.3} parent=1 // pred_check_branch
      %2019 = sbr.rel (0) target = $region29
    $region28: #{ftdnn_acoustic_forward.3} parent=1 // pred_region
      _
    $region29: #{ftdnn_acoustic_forward.3} parent=1 // pred_fallthru
      _
    // Predicated region
    $region30: #{ftdnn_acoustic_forward.3} parent=1 // pred_check
      _
    $region31: #{ftdnn_acoustic_forward.3} parent=1 // pred_check_branch
      %2021 = sbr.rel (0) target = $region33
    $region32: #{ftdnn_acoustic_forward.3} parent=1 // pred_region
      _
    $region33: #{ftdnn_acoustic_forward.3} parent=1 // pred_fallthru
      _
    // Predicated region
    $region34: #{ftdnn_acoustic_forward.3} parent=1 // pred_check
      _
    $region35: #{ftdnn_acoustic_forward.3} parent=1 // pred_check_branch
      %2023 = sbr.rel (0) target = $region37
    $region36: #{ftdnn_acoustic_forward.3} parent=1 // pred_region
      _
    $region37: #{ftdnn_acoustic_forward.3} parent=1 // pred_fallthru
      _
    // Predicated region
    $region38: #{ftdnn_acoustic_forward.3} parent=1 // pred_check
      _
    $region39: #{ftdnn_acoustic_forward.3} parent=1 // pred_check_branch
      %2025 = sbr.rel (0) target = $region41
    $region40: #{ftdnn_acoustic_forward.3} parent=1 // pred_region
      _
    $region41: #{ftdnn_acoustic_forward.3} parent=1 // pred_fallthru
      _
    // Predicated region
    $region42: #{ftdnn_acoustic_forward.3} parent=1 // pred_check
      _
    $region43: #{ftdnn_acoustic_forward.3} parent=1 // pred_check_branch
      %2027 = sbr.rel (0) target = $region45
    $region44: #{ftdnn_acoustic_forward.3} parent=1 // pred_region
      _
    $region45: #{ftdnn_acoustic_forward.3} parent=1 // pred_fallthru
      _
    // Predicated region
    $region46: #{ftdnn_acoustic_forward.3} parent=1 // pred_check
      _
    $region47: #{ftdnn_acoustic_forward.3} parent=1 // pred_check_branch
      %2029 = sbr.rel (0) target = $region49
    $region48: #{ftdnn_acoustic_forward.3} parent=1 // pred_region
      _
    $region49: #{ftdnn_acoustic_forward.3} parent=1 // pred_fallthru
      _
    %2030 = vsyncpa [#allocation3], 1
    %2031 = vsyncpa [#allocation5], 1

// kernel: sub.5
$region0: #{sub.5}
  #allocation0 [shape = 's32[1]{0}', space=sflag, size = 0x4, scoped, tag = 'scoped memory for sub.5']
  %s0 = inlined_call_operand.vmem [shape: f32[1,6024], index: 0, kind: input, shape index: {}]
  %s1 = inlined_call_operand.vmem [shape: f32[1,6024], index: 1, kind: input, shape index: {}]
  %s2 = inlined_call_operand.vmem [shape: f32[1,6024], index: 2, kind: output, shape index: {}]
  %v3 = vld [vmem:[%s0] sm:$0x1]
  %v4 = vld [vmem:[%s1] sm:$0x1]
  %5 = xla_tuple %v3, %v4
  %6 = xla_tuple %5
  %v7 = vsub.f32 %v3, %v4
  %8 = xla_tuple %v7
  %9 = vst [vmem:[%s2] sm:$0x1] %v7
  %s10 = scalar_lea.vmem %s0, 1
  %v11 = vld [vmem:[%s10] sm:$0x1]
  %s12 = scalar_lea.vmem %s1, 1
  %v13 = vld [vmem:[%s12] sm:$0x1]
  %14 = xla_tuple %v11, %v13
  %15 = xla_tuple %14
  %v16 = vsub.f32 %v11, %v13
  %17 = xla_tuple %v16
  %s18 = scalar_lea.vmem %s2, 1
  %19 = vst [vmem:[%s18] sm:$0x1] %v16
  %s20 = scalar_lea.vmem %s0, 2
  %v21 = vld [vmem:[%s20] sm:$0x1]
  %s22 = scalar_lea.vmem %s1, 2
  %v23 = vld [vmem:[%s22] sm:$0x1]
  %24 = xla_tuple %v21, %v23
  %25 = xla_tuple %24
  %v26 = vsub.f32 %v21, %v23
  %27 = xla_tuple %v26
  %s28 = scalar_lea.vmem %s2, 2
  %29 = vst [vmem:[%s28] sm:$0x1] %v26
  %s30 = scalar_lea.vmem %s0, 3
  %v31 = vld [vmem:[%s30] sm:$0x1]
  %s32 = scalar_lea.vmem %s1, 3
  %v33 = vld [vmem:[%s32] sm:$0x1]
  %34 = xla_tuple %v31, %v33
  %35 = xla_tuple %34
  %v36 = vsub.f32 %v31, %v33
  %37 = xla_tuple %v36
  %s38 = scalar_lea.vmem %s2, 3
  %39 = vst [vmem:[%s38] sm:$0x1] %v36
  %s40 = scalar_lea.vmem %s0, 4
  %v41 = vld [vmem:[%s40] sm:$0x1]
  %s42 = scalar_lea.vmem %s1, 4
  %v43 = vld [vmem:[%s42] sm:$0x1]
  %44 = xla_tuple %v41, %v43
  %45 = xla_tuple %44
  %v46 = vsub.f32 %v41, %v43
  %47 = xla_tuple %v46
  %s48 = scalar_lea.vmem %s2, 4
  %49 = vst [vmem:[%s48] sm:$0x1] %v46
  %s50 = scalar_lea.vmem %s0, 5
  %v51 = vld [vmem:[%s50] sm:$0x1]
  %s52 = scalar_lea.vmem %s1, 5
  %v53 = vld [vmem:[%s52] sm:$0x1]
  %54 = xla_tuple %v51, %v53
  %55 = xla_tuple %54
  %v56 = vsub.f32 %v51, %v53
  %57 = xla_tuple %v56
  %s58 = scalar_lea.vmem %s2, 5
  %59 = vst [vmem:[%s58] sm:$0x1] %v56
  %s60 = scalar_lea.vmem %s0, 6
  %v61 = vld [vmem:[%s60] sm:$0x1]
  %s62 = scalar_lea.vmem %s1, 6
  %v63 = vld [vmem:[%s62] sm:$0x1]
  %64 = xla_tuple %v61, %v63
  %65 = xla_tuple %64
  %v66 = vsub.f32 %v61, %v63
  %67 = xla_tuple %v66
  %s68 = scalar_lea.vmem %s2, 6
  %69 = vst [vmem:[%s68] sm:$0x1] %v66
  %s70 = scalar_lea.vmem %s0, 7
  %v71 = vld [vmem:[%s70] sm:$0x1]
  %s72 = scalar_lea.vmem %s1, 7
  %v73 = vld [vmem:[%s72] sm:$0x1]
  %74 = xla_tuple %v71, %v73
  %75 = xla_tuple %74
  %v76 = vsub.f32 %v71, %v73
  %77 = xla_tuple %v76
  %s78 = scalar_lea.vmem %s2, 7
  %79 = vst [vmem:[%s78] sm:$0x1] %v76
  %s80 = scalar_lea.vmem %s0, 8
  %v81 = vld [vmem:[%s80] sm:$0x1]
  %s82 = scalar_lea.vmem %s1, 8
  %v83 = vld [vmem:[%s82] sm:$0x1]
  %84 = xla_tuple %v81, %v83
  %85 = xla_tuple %84
  %v86 = vsub.f32 %v81, %v83
  %87 = xla_tuple %v86
  %s88 = scalar_lea.vmem %s2, 8
  %89 = vst [vmem:[%s88] sm:$0x1] %v86
  %s90 = scalar_lea.vmem %s0, 9
  %v91 = vld [vmem:[%s90] sm:$0x1]
  %s92 = scalar_lea.vmem %s1, 9
  %v93 = vld [vmem:[%s92] sm:$0x1]
  %94 = xla_tuple %v91, %v93
  %95 = xla_tuple %94
  %v96 = vsub.f32 %v91, %v93
  %97 = xla_tuple %v96
  %s98 = scalar_lea.vmem %s2, 9
  %99 = vst [vmem:[%s98] sm:$0x1] %v96
  %s100 = scalar_lea.vmem %s0, 10
  %v101 = vld [vmem:[%s100] sm:$0x1]
  %s102 = scalar_lea.vmem %s1, 10
  %v103 = vld [vmem:[%s102] sm:$0x1]
  %104 = xla_tuple %v101, %v103
  %105 = xla_tuple %104
  %v106 = vsub.f32 %v101, %v103
  %107 = xla_tuple %v106
  %s108 = scalar_lea.vmem %s2, 10
  %109 = vst [vmem:[%s108] sm:$0x1] %v106
  %s110 = scalar_lea.vmem %s0, 11
  %v111 = vld [vmem:[%s110] sm:$0x1]
  %s112 = scalar_lea.vmem %s1, 11
  %v113 = vld [vmem:[%s112] sm:$0x1]
  %114 = xla_tuple %v111, %v113
  %115 = xla_tuple %114
  %v116 = vsub.f32 %v111, %v113
  %117 = xla_tuple %v116
  %s118 = scalar_lea.vmem %s2, 11
  %119 = vst [vmem:[%s118] sm:$0x1] %v116
  %s120 = scalar_lea.vmem %s0, 12
  %v121 = vld [vmem:[%s120] sm:$0x1]
  %s122 = scalar_lea.vmem %s1, 12
  %v123 = vld [vmem:[%s122] sm:$0x1]
  %124 = xla_tuple %v121, %v123
  %125 = xla_tuple %124
  %v126 = vsub.f32 %v121, %v123
  %127 = xla_tuple %v126
  %s128 = scalar_lea.vmem %s2, 12
  %129 = vst [vmem:[%s128] sm:$0x1] %v126
  %s130 = scalar_lea.vmem %s0, 13
  %v131 = vld [vmem:[%s130] sm:$0x1]
  %s132 = scalar_lea.vmem %s1, 13
  %v133 = vld [vmem:[%s132] sm:$0x1]
  %134 = xla_tuple %v131, %v133
  %135 = xla_tuple %134
  %v136 = vsub.f32 %v131, %v133
  %137 = xla_tuple %v136
  %s138 = scalar_lea.vmem %s2, 13
  %139 = vst [vmem:[%s138] sm:$0x1] %v136
  %s140 = scalar_lea.vmem %s0, 14
  %v141 = vld [vmem:[%s140] sm:$0x1]
  %s142 = scalar_lea.vmem %s1, 14
  %v143 = vld [vmem:[%s142] sm:$0x1]
  %144 = xla_tuple %v141, %v143
  %145 = xla_tuple %144
  %v146 = vsub.f32 %v141, %v143
  %147 = xla_tuple %v146
  %s148 = scalar_lea.vmem %s2, 14
  %149 = vst [vmem:[%s148] sm:$0x1] %v146
  %s150 = scalar_lea.vmem %s0, 15
  %v151 = vld [vmem:[%s150] sm:$0x1]
  %s152 = scalar_lea.vmem %s1, 15
  %v153 = vld [vmem:[%s152] sm:$0x1]
  %154 = xla_tuple %v151, %v153
  %155 = xla_tuple %154
  %v156 = vsub.f32 %v151, %v153
  %157 = xla_tuple %v156
  %s158 = scalar_lea.vmem %s2, 15
  %159 = vst [vmem:[%s158] sm:$0x1] %v156
  %s160 = scalar_lea.vmem %s0, 16
  %v161 = vld [vmem:[%s160] sm:$0x1]
  %s162 = scalar_lea.vmem %s1, 16
  %v163 = vld [vmem:[%s162] sm:$0x1]
  %164 = xla_tuple %v161, %v163
  %165 = xla_tuple %164
  %v166 = vsub.f32 %v161, %v163
  %167 = xla_tuple %v166
  %s168 = scalar_lea.vmem %s2, 16
  %169 = vst [vmem:[%s168] sm:$0x1] %v166
  %s170 = scalar_lea.vmem %s0, 17
  %v171 = vld [vmem:[%s170] sm:$0x1]
  %s172 = scalar_lea.vmem %s1, 17
  %v173 = vld [vmem:[%s172] sm:$0x1]
  %174 = xla_tuple %v171, %v173
  %175 = xla_tuple %174
  %v176 = vsub.f32 %v171, %v173
  %177 = xla_tuple %v176
  %s178 = scalar_lea.vmem %s2, 17
  %179 = vst [vmem:[%s178] sm:$0x1] %v176
  %s180 = scalar_lea.vmem %s0, 18
  %v181 = vld [vmem:[%s180] sm:$0x1]
  %s182 = scalar_lea.vmem %s1, 18
  %v183 = vld [vmem:[%s182] sm:$0x1]
  %184 = xla_tuple %v181, %v183
  %185 = xla_tuple %184
  %v186 = vsub.f32 %v181, %v183
  %187 = xla_tuple %v186
  %s188 = scalar_lea.vmem %s2, 18
  %189 = vst [vmem:[%s188] sm:$0x1] %v186
  %s190 = scalar_lea.vmem %s0, 19
  %v191 = vld [vmem:[%s190] sm:$0x1]
  %s192 = scalar_lea.vmem %s1, 19
  %v193 = vld [vmem:[%s192] sm:$0x1]
  %194 = xla_tuple %v191, %v193
  %195 = xla_tuple %194
  %v196 = vsub.f32 %v191, %v193
  %197 = xla_tuple %v196
  %s198 = scalar_lea.vmem %s2, 19
  %199 = vst [vmem:[%s198] sm:$0x1] %v196
  %s200 = scalar_lea.vmem %s0, 20
  %v201 = vld [vmem:[%s200] sm:$0x1]
  %s202 = scalar_lea.vmem %s1, 20
  %v203 = vld [vmem:[%s202] sm:$0x1]
  %204 = xla_tuple %v201, %v203
  %205 = xla_tuple %204
  %v206 = vsub.f32 %v201, %v203
  %207 = xla_tuple %v206
  %s208 = scalar_lea.vmem %s2, 20
  %209 = vst [vmem:[%s208] sm:$0x1] %v206
  %s210 = scalar_lea.vmem %s0, 21
  %v211 = vld [vmem:[%s210] sm:$0x1]
  %s212 = scalar_lea.vmem %s1, 21
  %v213 = vld [vmem:[%s212] sm:$0x1]
  %214 = xla_tuple %v211, %v213
  %215 = xla_tuple %214
  %v216 = vsub.f32 %v211, %v213
  %217 = xla_tuple %v216
  %s218 = scalar_lea.vmem %s2, 21
  %219 = vst [vmem:[%s218] sm:$0x1] %v216
  %s220 = scalar_lea.vmem %s0, 22
  %v221 = vld [vmem:[%s220] sm:$0x1]
  %s222 = scalar_lea.vmem %s1, 22
  %v223 = vld [vmem:[%s222] sm:$0x1]
  %224 = xla_tuple %v221, %v223
  %225 = xla_tuple %224
  %v226 = vsub.f32 %v221, %v223
  %227 = xla_tuple %v226
  %s228 = scalar_lea.vmem %s2, 22
  %229 = vst [vmem:[%s228] sm:$0x1] %v226
  %s230 = scalar_lea.vmem %s0, 23
  %v231 = vld [vmem:[%s230] sm:$0x1]
  %s232 = scalar_lea.vmem %s1, 23
  %v233 = vld [vmem:[%s232] sm:$0x1]
  %234 = xla_tuple %v231, %v233
  %235 = xla_tuple %234
  %v236 = vsub.f32 %v231, %v233
  %237 = xla_tuple %v236
  %s238 = scalar_lea.vmem %s2, 23
  %239 = vst [vmem:[%s238] sm:$0x1] %v236
  %s240 = scalar_lea.vmem %s0, 24
  %v241 = vld [vmem:[%s240] sm:$0x1]
  %s242 = scalar_lea.vmem %s1, 24
  %v243 = vld [vmem:[%s242] sm:$0x1]
  %244 = xla_tuple %v241, %v243
  %245 = xla_tuple %244
  %v246 = vsub.f32 %v241, %v243
  %247 = xla_tuple %v246
  %s248 = scalar_lea.vmem %s2, 24
  %249 = vst [vmem:[%s248] sm:$0x1] %v246
  %s250 = scalar_lea.vmem %s0, 25
  %v251 = vld [vmem:[%s250] sm:$0x1]
  %s252 = scalar_lea.vmem %s1, 25
  %v253 = vld [vmem:[%s252] sm:$0x1]
  %254 = xla_tuple %v251, %v253
  %255 = xla_tuple %254
  %v256 = vsub.f32 %v251, %v253
  %257 = xla_tuple %v256
  %s258 = scalar_lea.vmem %s2, 25
  %259 = vst [vmem:[%s258] sm:$0x1] %v256
  %s260 = scalar_lea.vmem %s0, 26
  %v261 = vld [vmem:[%s260] sm:$0x1]
  %s262 = scalar_lea.vmem %s1, 26
  %v263 = vld [vmem:[%s262] sm:$0x1]
  %264 = xla_tuple %v261, %v263
  %265 = xla_tuple %264
  %v266 = vsub.f32 %v261, %v263
  %267 = xla_tuple %v266
  %s268 = scalar_lea.vmem %s2, 26
  %269 = vst [vmem:[%s268] sm:$0x1] %v266
  %s270 = scalar_lea.vmem %s0, 27
  %v271 = vld [vmem:[%s270] sm:$0x1]
  %s272 = scalar_lea.vmem %s1, 27
  %v273 = vld [vmem:[%s272] sm:$0x1]
  %274 = xla_tuple %v271, %v273
  %275 = xla_tuple %274
  %v276 = vsub.f32 %v271, %v273
  %277 = xla_tuple %v276
  %s278 = scalar_lea.vmem %s2, 27
  %279 = vst [vmem:[%s278] sm:$0x1] %v276
  %s280 = scalar_lea.vmem %s0, 28
  %v281 = vld [vmem:[%s280] sm:$0x1]
  %s282 = scalar_lea.vmem %s1, 28
  %v283 = vld [vmem:[%s282] sm:$0x1]
  %284 = xla_tuple %v281, %v283
  %285 = xla_tuple %284
  %v286 = vsub.f32 %v281, %v283
  %287 = xla_tuple %v286
  %s288 = scalar_lea.vmem %s2, 28
  %289 = vst [vmem:[%s288] sm:$0x1] %v286
  %s290 = scalar_lea.vmem %s0, 29
  %v291 = vld [vmem:[%s290] sm:$0x1]
  %s292 = scalar_lea.vmem %s1, 29
  %v293 = vld [vmem:[%s292] sm:$0x1]
  %294 = xla_tuple %v291, %v293
  %295 = xla_tuple %294
  %v296 = vsub.f32 %v291, %v293
  %297 = xla_tuple %v296
  %s298 = scalar_lea.vmem %s2, 29
  %299 = vst [vmem:[%s298] sm:$0x1] %v296
  %s300 = scalar_lea.vmem %s0, 30
  %v301 = vld [vmem:[%s300] sm:$0x1]
  %s302 = scalar_lea.vmem %s1, 30
  %v303 = vld [vmem:[%s302] sm:$0x1]
  %304 = xla_tuple %v301, %v303
  %305 = xla_tuple %304
  %v306 = vsub.f32 %v301, %v303
  %307 = xla_tuple %v306
  %s308 = scalar_lea.vmem %s2, 30
  %309 = vst [vmem:[%s308] sm:$0x1] %v306
  %s310 = scalar_lea.vmem %s0, 31
  %v311 = vld [vmem:[%s310] sm:$0x1]
  %s312 = scalar_lea.vmem %s1, 31
  %v313 = vld [vmem:[%s312] sm:$0x1]
  %314 = xla_tuple %v311, %v313
  %315 = xla_tuple %314
  %v316 = vsub.f32 %v311, %v313
  %317 = xla_tuple %v316
  %s318 = scalar_lea.vmem %s2, 31
  %319 = vst [vmem:[%s318] sm:$0x1] %v316
  %s320 = scalar_lea.vmem %s0, 32
  %v321 = vld [vmem:[%s320] sm:$0x1]
  %s322 = scalar_lea.vmem %s1, 32
  %v323 = vld [vmem:[%s322] sm:$0x1]
  %324 = xla_tuple %v321, %v323
  %325 = xla_tuple %324
  %v326 = vsub.f32 %v321, %v323
  %327 = xla_tuple %v326
  %s328 = scalar_lea.vmem %s2, 32
  %329 = vst [vmem:[%s328] sm:$0x1] %v326
  %s330 = scalar_lea.vmem %s0, 33
  %v331 = vld [vmem:[%s330] sm:$0x1]
  %s332 = scalar_lea.vmem %s1, 33
  %v333 = vld [vmem:[%s332] sm:$0x1]
  %334 = xla_tuple %v331, %v333
  %335 = xla_tuple %334
  %v336 = vsub.f32 %v331, %v333
  %337 = xla_tuple %v336
  %s338 = scalar_lea.vmem %s2, 33
  %339 = vst [vmem:[%s338] sm:$0x1] %v336
  %s340 = scalar_lea.vmem %s0, 34
  %v341 = vld [vmem:[%s340] sm:$0x1]
  %s342 = scalar_lea.vmem %s1, 34
  %v343 = vld [vmem:[%s342] sm:$0x1]
  %344 = xla_tuple %v341, %v343
  %345 = xla_tuple %344
  %v346 = vsub.f32 %v341, %v343
  %347 = xla_tuple %v346
  %s348 = scalar_lea.vmem %s2, 34
  %349 = vst [vmem:[%s348] sm:$0x1] %v346
  %s350 = scalar_lea.vmem %s0, 35
  %v351 = vld [vmem:[%s350] sm:$0x1]
  %s352 = scalar_lea.vmem %s1, 35
  %v353 = vld [vmem:[%s352] sm:$0x1]
  %354 = xla_tuple %v351, %v353
  %355 = xla_tuple %354
  %v356 = vsub.f32 %v351, %v353
  %357 = xla_tuple %v356
  %s358 = scalar_lea.vmem %s2, 35
  %359 = vst [vmem:[%s358] sm:$0x1] %v356
  %s360 = scalar_lea.vmem %s0, 36
  %v361 = vld [vmem:[%s360] sm:$0x1]
  %s362 = scalar_lea.vmem %s1, 36
  %v363 = vld [vmem:[%s362] sm:$0x1]
  %364 = xla_tuple %v361, %v363
  %365 = xla_tuple %364
  %v366 = vsub.f32 %v361, %v363
  %367 = xla_tuple %v366
  %s368 = scalar_lea.vmem %s2, 36
  %369 = vst [vmem:[%s368] sm:$0x1] %v366
  %s370 = scalar_lea.vmem %s0, 37
  %v371 = vld [vmem:[%s370] sm:$0x1]
  %s372 = scalar_lea.vmem %s1, 37
  %v373 = vld [vmem:[%s372] sm:$0x1]
  %374 = xla_tuple %v371, %v373
  %375 = xla_tuple %374
  %v376 = vsub.f32 %v371, %v373
  %377 = xla_tuple %v376
  %s378 = scalar_lea.vmem %s2, 37
  %379 = vst [vmem:[%s378] sm:$0x1] %v376
  %s380 = scalar_lea.vmem %s0, 38
  %v381 = vld [vmem:[%s380] sm:$0x1]
  %s382 = scalar_lea.vmem %s1, 38
  %v383 = vld [vmem:[%s382] sm:$0x1]
  %384 = xla_tuple %v381, %v383
  %385 = xla_tuple %384
  %v386 = vsub.f32 %v381, %v383
  %387 = xla_tuple %v386
  %s388 = scalar_lea.vmem %s2, 38
  %389 = vst [vmem:[%s388] sm:$0x1] %v386
  %s390 = scalar_lea.vmem %s0, 39
  %v391 = vld [vmem:[%s390] sm:$0x1]
  %s392 = scalar_lea.vmem %s1, 39
  %v393 = vld [vmem:[%s392] sm:$0x1]
  %394 = xla_tuple %v391, %v393
  %395 = xla_tuple %394
  %v396 = vsub.f32 %v391, %v393
  %397 = xla_tuple %v396
  %s398 = scalar_lea.vmem %s2, 39
  %399 = vst [vmem:[%s398] sm:$0x1] %v396
  %s400 = scalar_lea.vmem %s0, 40
  %v401 = vld [vmem:[%s400] sm:$0x1]
  %s402 = scalar_lea.vmem %s1, 40
  %v403 = vld [vmem:[%s402] sm:$0x1]
  %404 = xla_tuple %v401, %v403
  %405 = xla_tuple %404
  %v406 = vsub.f32 %v401, %v403
  %407 = xla_tuple %v406
  %s408 = scalar_lea.vmem %s2, 40
  %409 = vst [vmem:[%s408] sm:$0x1] %v406
  %s410 = scalar_lea.vmem %s0, 41
  %v411 = vld [vmem:[%s410] sm:$0x1]
  %s412 = scalar_lea.vmem %s1, 41
  %v413 = vld [vmem:[%s412] sm:$0x1]
  %414 = xla_tuple %v411, %v413
  %415 = xla_tuple %414
  %v416 = vsub.f32 %v411, %v413
  %417 = xla_tuple %v416
  %s418 = scalar_lea.vmem %s2, 41
  %419 = vst [vmem:[%s418] sm:$0x1] %v416
  %s420 = scalar_lea.vmem %s0, 42
  %v421 = vld [vmem:[%s420] sm:$0x1]
  %s422 = scalar_lea.vmem %s1, 42
  %v423 = vld [vmem:[%s422] sm:$0x1]
  %424 = xla_tuple %v421, %v423
  %425 = xla_tuple %424
  %v426 = vsub.f32 %v421, %v423
  %427 = xla_tuple %v426
  %s428 = scalar_lea.vmem %s2, 42
  %429 = vst [vmem:[%s428] sm:$0x1] %v426
  %s430 = scalar_lea.vmem %s0, 43
  %v431 = vld [vmem:[%s430] sm:$0x1]
  %s432 = scalar_lea.vmem %s1, 43
  %v433 = vld [vmem:[%s432] sm:$0x1]
  %434 = xla_tuple %v431, %v433
  %435 = xla_tuple %434
  %v436 = vsub.f32 %v431, %v433
  %437 = xla_tuple %v436
  %s438 = scalar_lea.vmem %s2, 43
  %439 = vst [vmem:[%s438] sm:$0x1] %v436
  %s440 = scalar_lea.vmem %s0, 44
  %v441 = vld [vmem:[%s440] sm:$0x1]
  %s442 = scalar_lea.vmem %s1, 44
  %v443 = vld [vmem:[%s442] sm:$0x1]
  %444 = xla_tuple %v441, %v443
  %445 = xla_tuple %444
  %v446 = vsub.f32 %v441, %v443
  %447 = xla_tuple %v446
  %s448 = scalar_lea.vmem %s2, 44
  %449 = vst [vmem:[%s448] sm:$0x1] %v446
  %s450 = scalar_lea.vmem %s0, 45
  %v451 = vld [vmem:[%s450] sm:$0x1]
  %s452 = scalar_lea.vmem %s1, 45
  %v453 = vld [vmem:[%s452] sm:$0x1]
  %454 = xla_tuple %v451, %v453
  %455 = xla_tuple %454
  %v456 = vsub.f32 %v451, %v453
  %457 = xla_tuple %v456
  %s458 = scalar_lea.vmem %s2, 45
  %459 = vst [vmem:[%s458] sm:$0x1] %v456
  %s460 = scalar_lea.vmem %s0, 46
  %v461 = vld [vmem:[%s460] sm:$0x1]
  %s462 = scalar_lea.vmem %s1, 46
  %v463 = vld [vmem:[%s462] sm:$0x1]
  %464 = xla_tuple %v461, %v463
  %465 = xla_tuple %464
  %v466 = vsub.f32 %v461, %v463
  %467 = xla_tuple %v466
  %s468 = scalar_lea.vmem %s2, 46
  %469 = vst [vmem:[%s468] sm:$0x1] %v466
  %s470 = scalar_lea.vmem %s0, 47
  %v471 = vld [vmem:[%s470] sm:$0x1]
  %s472 = scalar_lea.vmem %s1, 47
  %v473 = vld [vmem:[%s472] sm:$0x1]
  %474 = xla_tuple %v471, %v473
  %475 = xla_tuple %474
  %v476 = vsub.f32 %v471, %v473
  %477 = xla_tuple %v476
  %s478 = scalar_lea.vmem %s2, 47
  %479 = vst [vmem:[%s478] sm:$0x1] %v476

// kernel: ftdnn_acoustic_forward.5
$region0: #{ftdnn_acoustic_forward.5}
  #allocation0 [shape = 'u32[]', space=smem, size = 0x4, offset = 0x4, fixed_abs, tag = 'smem constant byte address 0x4 - core index']
  #allocation1 [shape = 'u32[144,128]{1,0:T(1,128)}', space=vmem, size = 0x12000, scoped, tag = 'internal scratch']
  %s0 = inlined_call_operand.vmem [shape: bf16[16,256], index: 0, kind: input, shape index: {}]
  %s1 = inlined_call_operand.vmem [shape: bf16[256,6024], index: 1, kind: input, shape index: {}]
  %s2 = inlined_call_operand.vmem [shape: f32[1,6024], index: 2, kind: input, shape index: {}]
  %s3 = inlined_call_operand.hbm [shape: f32[16,6024], index: 3, kind: output, shape index: {}]
  %s4 = sld [smem:[#allocation0]]
  $region22: #{ftdnn_acoustic_forward.5} parent=0
    _
  %s6 = ssub.s32 1, %s4
  %s7 = scalar_select 0, %s6, %s4
  $region1: #{ftdnn_acoustic_forward.5} parent=0
    #allocation2 [shape = 'u8[393216]{0}', space=vmem, size = 0x60000, scoped, tag = 'output window, operand 0, single buffered']
    #allocation3 [shape = 's32[1]{0}', space=sflag, size = 0x4, scoped, tag = 'scoped memory for ftdnn_acoustic_forward.5']
    %8 = vsyncpa [#allocation3], 0
    // Predicated region
    $region2: #{ftdnn_acoustic_forward.5} parent=1 // pred_check
      _
    $region3: #{ftdnn_acoustic_forward.5} parent=1 // pred_check_branch
      %10 = sbr.rel (0) target = $region5
    $region4: #{ftdnn_acoustic_forward.5} parent=1 // pred_region
      _
    $region5: #{ftdnn_acoustic_forward.5} parent=1 // pred_fallthru
      _
    // Predicated region
    $region6: #{ftdnn_acoustic_forward.5} parent=1 // pred_check
      _
    $region7: #{ftdnn_acoustic_forward.5} parent=1 // pred_check_branch
      %12 = sbr.rel (0) target = $region9
    $region8: #{ftdnn_acoustic_forward.5} parent=1 // pred_region
      _
    $region9: #{ftdnn_acoustic_forward.5} parent=1 // pred_fallthru
      _
    // Predicated region
    $region10: #{ftdnn_acoustic_forward.5} parent=1 // pred_check
      _
    $region11: #{ftdnn_acoustic_forward.5} parent=1 // pred_check_branch
      %14 = sbr.rel (0) target = $region13
    $region12: #{ftdnn_acoustic_forward.5} parent=1 // pred_region
      _
    $region13: #{ftdnn_acoustic_forward.5} parent=1 // pred_fallthru
      _
    %v15 = vld [vmem:[%s0] sm:$0xff]
    %v16 = vld [vmem:[%s0 + $0x8] sm:$0xff]
    %v17 = vld [vmem:[%s1] sm:$0xff]
    %v18 = vld [vmem:[%s1 + $0x8] sm:$0xff]
    %v19 = vld [vmem:[%s1 + $0x10] sm:$0xff]
    %v20 = vld [vmem:[%s1 + $0x18] sm:$0xff]
    %v21 = vld [vmem:[%s1 + $0x20] sm:$0xff]
    %v22 = vld [vmem:[%s1 + $0x28] sm:$0xff]
    %v23 = vld [vmem:[%s1 + $0x30] sm:$0xff]
    %v24 = vld [vmem:[%s1 + $0x38] sm:$0xff]
    %v25 = vld [vmem:[%s1 + $0x40] sm:$0xff]
    %v26 = vld [vmem:[%s1 + $0x48] sm:$0xff]
    %v27 = vld [vmem:[%s1 + $0x50] sm:$0xff]
    %v28 = vld [vmem:[%s1 + $0x58] sm:$0xff]
    %v29 = vld [vmem:[%s1 + $0x60] sm:$0xff]
    %v30 = vld [vmem:[%s1 + $0x68] sm:$0xff]
    %v31 = vld [vmem:[%s1 + $0x70] sm:$0xff]
    %v32 = vld [vmem:[%s1 + $0x78] sm:$0xff]
    %v33 = vld [vmem:[%s1 + $0x80] sm:$0xff]
    %v34 = vld [vmem:[%s1 + $0x88] sm:$0xff]
    %v35 = vld [vmem:[%s1 + $0x90] sm:$0xff]
    %v36 = vld [vmem:[%s1 + $0x98] sm:$0xff]
    %v37 = vld [vmem:[%s1 + $0xa0] sm:$0xff]
    %v38 = vld [vmem:[%s1 + $0xa8] sm:$0xff]
    %v39 = vld [vmem:[%s1 + $0xb0] sm:$0xff]
    %v40 = vld [vmem:[%s1 + $0xb8] sm:$0xff]
    %v41 = vld [vmem:[%s1 + $0xc0] sm:$0xff]
    %v42 = vld [vmem:[%s1 + $0xc8] sm:$0xff]
    %v43 = vld [vmem:[%s1 + $0xd0] sm:$0xff]
    %v44 = vld [vmem:[%s1 + $0xd8] sm:$0xff]
    %v45 = vld [vmem:[%s1 + $0xe0] sm:$0xff]
    %v46 = vld [vmem:[%s1 + $0xe8] sm:$0xff]
    %v47 = vld [vmem:[%s1 + $0xf0] sm:$0xff]
    %v48 = vld [vmem:[%s1 + $0xf8] sm:$0xff]
    %v49 = vld [vmem:[%s1 + $0x100] sm:$0xff]
    %v50 = vld [vmem:[%s1 + $0x108] sm:$0xff]
    %v51 = vld [vmem:[%s1 + $0x110] sm:$0xff]
    %v52 = vld [vmem:[%s1 + $0x118] sm:$0xff]
    %v53 = vld [vmem:[%s1 + $0x120] sm:$0xff]
    %v54 = vld [vmem:[%s1 + $0x128] sm:$0xff]
    %v55 = vld [vmem:[%s1 + $0x130] sm:$0xff]
    %v56 = vld [vmem:[%s1 + $0x138] sm:$0xff]
    %v57 = vld [vmem:[%s1 + $0x140] sm:$0xff]
    %v58 = vld [vmem:[%s1 + $0x148] sm:$0xff]
    %v59 = vld [vmem:[%s1 + $0x150] sm:$0xff]
    %v60 = vld [vmem:[%s1 + $0x158] sm:$0xff]
    %v61 = vld [vmem:[%s1 + $0x160] sm:$0xff]
    %v62 = vld [vmem:[%s1 + $0x168] sm:$0xff]
    %v63 = vld [vmem:[%s1 + $0x170] sm:$0xff]
    %v64 = vld [vmem:[%s1 + $0x178] sm:$0xff]
    %v65 = vld [vmem:[%s1 + $0x180] sm:$0xff]
    %v66 = vld [vmem:[%s1 + $0x188] sm:$0xff]
    %v67 = vld [vmem:[%s1 + $0x190] sm:$0xff]
    %v68 = vld [vmem:[%s1 + $0x198] sm:$0xff]
    %v69 = vld [vmem:[%s1 + $0x1a0] sm:$0xff]
    %v70 = vld [vmem:[%s1 + $0x1a8] sm:$0xff]
    %v71 = vld [vmem:[%s1 + $0x1b0] sm:$0xff]
    %v72 = vld [vmem:[%s1 + $0x1b8] sm:$0xff]
    %v73 = vld [vmem:[%s1 + $0x1c0] sm:$0xff]
    %v74 = vld [vmem:[%s1 + $0x1c8] sm:$0xff]
    %v75 = vld [vmem:[%s1 + $0x1d0] sm:$0xff]
    %v76 = vld [vmem:[%s1 + $0x1d8] sm:$0xff]
    %v77 = vld [vmem:[%s1 + $0x1e0] sm:$0xff]
    %v78 = vld [vmem:[%s1 + $0x1e8] sm:$0xff]
    %v79 = vld [vmem:[%s1 + $0x1f0] sm:$0xff]
    %v80 = vld [vmem:[%s1 + $0x1f8] sm:$0xff]
    %v81 = vld [vmem:[%s1 + $0x200] sm:$0xff]
    %v82 = vld [vmem:[%s1 + $0x208] sm:$0xff]
    %v83 = vld [vmem:[%s1 + $0x210] sm:$0xff]
    %v84 = vld [vmem:[%s1 + $0x218] sm:$0xff]
    %v85 = vld [vmem:[%s1 + $0x220] sm:$0xff]
    %v86 = vld [vmem:[%s1 + $0x228] sm:$0xff]
    %v87 = vld [vmem:[%s1 + $0x230] sm:$0xff]
    %v88 = vld [vmem:[%s1 + $0x238] sm:$0xff]
    %v89 = vld [vmem:[%s1 + $0x240] sm:$0xff]
    %v90 = vld [vmem:[%s1 + $0x248] sm:$0xff]
    %v91 = vld [vmem:[%s1 + $0x250] sm:$0xff]
    %v92 = vld [vmem:[%s1 + $0x258] sm:$0xff]
    %v93 = vld [vmem:[%s1 + $0x260] sm:$0xff]
    %v94 = vld [vmem:[%s1 + $0x268] sm:$0xff]
    %v95 = vld [vmem:[%s1 + $0x270] sm:$0xff]
    %v96 = vld [vmem:[%s1 + $0x278] sm:$0xff]
    %v97 = vld [vmem:[%s1 + $0x280] sm:$0xff]
    %v98 = vld [vmem:[%s1 + $0x288] sm:$0xff]
    %v99 = vld [vmem:[%s1 + $0x290] sm:$0xff]
    %v100 = vld [vmem:[%s1 + $0x298] sm:$0xff]
    %v101 = vld [vmem:[%s1 + $0x2a0] sm:$0xff]
    %v102 = vld [vmem:[%s1 + $0x2a8] sm:$0xff]
    %v103 = vld [vmem:[%s1 + $0x2b0] sm:$0xff]
    %v104 = vld [vmem:[%s1 + $0x2b8] sm:$0xff]
    %v105 = vld [vmem:[%s1 + $0x2c0] sm:$0xff]
    %v106 = vld [vmem:[%s1 + $0x2c8] sm:$0xff]
    %v107 = vld [vmem:[%s1 + $0x2d0] sm:$0xff]
    %v108 = vld [vmem:[%s1 + $0x2d8] sm:$0xff]
    %v109 = vld [vmem:[%s1 + $0x2e0] sm:$0xff]
    %v110 = vld [vmem:[%s1 + $0x2e8] sm:$0xff]
    %v111 = vld [vmem:[%s1 + $0x2f0] sm:$0xff]
    %v112 = vld [vmem:[%s1 + $0x2f8] sm:$0xff]
    %v113 = vld [vmem:[%s1 + $0x300] sm:$0xff]
    %v114 = vld [vmem:[%s1 + $0x308] sm:$0xff]
    %v115 = vld [vmem:[%s1 + $0x310] sm:$0xff]
    %v116 = vld [vmem:[%s1 + $0x318] sm:$0xff]
    %v117 = vld [vmem:[%s1 + $0x320] sm:$0xff]
    %v118 = vld [vmem:[%s1 + $0x328] sm:$0xff]
    %v119 = vld [vmem:[%s1 + $0x330] sm:$0xff]
    %v120 = vld [vmem:[%s1 + $0x338] sm:$0xff]
    %v121 = vld [vmem:[%s1 + $0x340] sm:$0xff]
    %v122 = vld [vmem:[%s1 + $0x348] sm:$0xff]
    %v123 = vld [vmem:[%s1 + $0x350] sm:$0xff]
    %v124 = vld [vmem:[%s1 + $0x358] sm:$0xff]
    %v125 = vld [vmem:[%s1 + $0x360] sm:$0xff]
    %v126 = vld [vmem:[%s1 + $0x368] sm:$0xff]
    %v127 = vld [vmem:[%s1 + $0x370] sm:$0xff]
    %v128 = vld [vmem:[%s1 + $0x378] sm:$0xff]
    %v129 = vld [vmem:[%s1 + $0x380] sm:$0xff]
    %v130 = vld [vmem:[%s1 + $0x388] sm:$0xff]
    %v131 = vld [vmem:[%s1 + $0x390] sm:$0xff]
    %v132 = vld [vmem:[%s1 + $0x398] sm:$0xff]
    %v133 = vld [vmem:[%s1 + $0x3a0] sm:$0xff]
    %v134 = vld [vmem:[%s1 + $0x3a8] sm:$0xff]
    %v135 = vld [vmem:[%s1 + $0x3b0] sm:$0xff]
    %v136 = vld [vmem:[%s1 + $0x3b8] sm:$0xff]
    %v137 = vld [vmem:[%s1 + $0x3c0] sm:$0xff]
    %v138 = vld [vmem:[%s1 + $0x3c8] sm:$0xff]
    %v139 = vld [vmem:[%s1 + $0x3d0] sm:$0xff]
    %v140 = vld [vmem:[%s1 + $0x3d8] sm:$0xff]
    %v141 = vld [vmem:[%s1 + $0x3e0] sm:$0xff]
    %v142 = vld [vmem:[%s1 + $0x3e8] sm:$0xff]
    %v143 = vld [vmem:[%s1 + $0x3f0] sm:$0xff]
    %v144 = vld [vmem:[%s1 + $0x3f8] sm:$0xff]
    %v145 = vld [vmem:[%s1 + $0x400] sm:$0xff]
    %v146 = vld [vmem:[%s1 + $0x408] sm:$0xff]
    %v147 = vld [vmem:[%s1 + $0x410] sm:$0xff]
    %v148 = vld [vmem:[%s1 + $0x418] sm:$0xff]
    %v149 = vld [vmem:[%s1 + $0x420] sm:$0xff]
    %v150 = vld [vmem:[%s1 + $0x428] sm:$0xff]
    %v151 = vld [vmem:[%s1 + $0x430] sm:$0xff]
    %v152 = vld [vmem:[%s1 + $0x438] sm:$0xff]
    %v153 = vld [vmem:[%s1 + $0x440] sm:$0xff]
    %v154 = vld [vmem:[%s1 + $0x448] sm:$0xff]
    %v155 = vld [vmem:[%s1 + $0x450] sm:$0xff]
    %v156 = vld [vmem:[%s1 + $0x458] sm:$0xff]
    %v157 = vld [vmem:[%s1 + $0x460] sm:$0xff]
    %v158 = vld [vmem:[%s1 + $0x468] sm:$0xff]
    %v159 = vld [vmem:[%s1 + $0x470] sm:$0xff]
    %v160 = vld [vmem:[%s1 + $0x478] sm:$0xff]
    %v161 = vld [vmem:[%s1 + $0x480] sm:$0xff]
    %v162 = vld [vmem:[%s1 + $0x488] sm:$0xff]
    %v163 = vld [vmem:[%s1 + $0x490] sm:$0xff]
    %v164 = vld [vmem:[%s1 + $0x498] sm:$0xff]
    %v165 = vld [vmem:[%s1 + $0x4a0] sm:$0xff]
    %v166 = vld [vmem:[%s1 + $0x4a8] sm:$0xff]
    %v167 = vld [vmem:[%s1 + $0x4b0] sm:$0xff]
    %v168 = vld [vmem:[%s1 + $0x4b8] sm:$0xff]
    %v169 = vld [vmem:[%s1 + $0x4c0] sm:$0xff]
    %v170 = vld [vmem:[%s1 + $0x4c8] sm:$0xff]
    %v171 = vld [vmem:[%s1 + $0x4d0] sm:$0xff]
    %v172 = vld [vmem:[%s1 + $0x4d8] sm:$0xff]
    %v173 = vld [vmem:[%s1 + $0x4e0] sm:$0xff]
    %v174 = vld [vmem:[%s1 + $0x4e8] sm:$0xff]
    %v175 = vld [vmem:[%s1 + $0x4f0] sm:$0xff]
    %v176 = vld [vmem:[%s1 + $0x4f8] sm:$0xff]
    %v177 = vld [vmem:[%s1 + $0x500] sm:$0xff]
    %v178 = vld [vmem:[%s1 + $0x508] sm:$0xff]
    %v179 = vld [vmem:[%s1 + $0x510] sm:$0xff]
    %v180 = vld [vmem:[%s1 + $0x518] sm:$0xff]
    %v181 = vld [vmem:[%s1 + $0x520] sm:$0xff]
    %v182 = vld [vmem:[%s1 + $0x528] sm:$0xff]
    %v183 = vld [vmem:[%s1 + $0x530] sm:$0xff]
    %v184 = vld [vmem:[%s1 + $0x538] sm:$0xff]
    %v185 = vld [vmem:[%s1 + $0x540] sm:$0xff]
    %v186 = vld [vmem:[%s1 + $0x548] sm:$0xff]
    %v187 = vld [vmem:[%s1 + $0x550] sm:$0xff]
    %v188 = vld [vmem:[%s1 + $0x558] sm:$0xff]
    %v189 = vld [vmem:[%s1 + $0x560] sm:$0xff]
    %v190 = vld [vmem:[%s1 + $0x568] sm:$0xff]
    %v191 = vld [vmem:[%s1 + $0x570] sm:$0xff]
    %v192 = vld [vmem:[%s1 + $0x578] sm:$0xff]
    %v193 = vld [vmem:[%s1 + $0x580] sm:$0xff]
    %v194 = vld [vmem:[%s1 + $0x588] sm:$0xff]
    %v195 = vld [vmem:[%s1 + $0x590] sm:$0xff]
    %v196 = vld [vmem:[%s1 + $0x598] sm:$0xff]
    %v197 = vld [vmem:[%s1 + $0x5a0] sm:$0xff]
    %v198 = vld [vmem:[%s1 + $0x5a8] sm:$0xff]
    %v199 = vld [vmem:[%s1 + $0x5b0] sm:$0xff]
    %v200 = vld [vmem:[%s1 + $0x5b8] sm:$0xff]
    %v201 = vld [vmem:[%s1 + $0x5c0] sm:$0xff]
    %v202 = vld [vmem:[%s1 + $0x5c8] sm:$0xff]
    %v203 = vld [vmem:[%s1 + $0x5d0] sm:$0xff]
    %v204 = vld [vmem:[%s1 + $0x5d8] sm:$0xff]
    %v205 = vld [vmem:[%s1 + $0x5e0] sm:$0xff]
    %v206 = vld [vmem:[%s1 + $0x5e8] sm:$0xff]
    %v207 = vld [vmem:[%s1 + $0x5f0] sm:$0xff]
    %v208 = vld [vmem:[%s1 + $0x5f8] sm:$0xff]
    %v209 = vld [vmem:[%s1 + $0x600] sm:$0xff]
    %v210 = vld [vmem:[%s1 + $0x608] sm:$0xff]
    %v211 = vld [vmem:[%s1 + $0x610] sm:$0xff]
    %v212 = vld [vmem:[%s1 + $0x618] sm:$0xff]
    %v213 = vld [vmem:[%s1 + $0x620] sm:$0xff]
    %v214 = vld [vmem:[%s1 + $0x628] sm:$0xff]
    %v215 = vld [vmem:[%s1 + $0x630] sm:$0xff]
    %v216 = vld [vmem:[%s1 + $0x638] sm:$0xff]
    %v217 = vld [vmem:[%s1 + $0x640] sm:$0xff]
    %v218 = vld [vmem:[%s1 + $0x648] sm:$0xff]
    %v219 = vld [vmem:[%s1 + $0x650] sm:$0xff]
    %v220 = vld [vmem:[%s1 + $0x658] sm:$0xff]
    %v221 = vld [vmem:[%s1 + $0x660] sm:$0xff]
    %v222 = vld [vmem:[%s1 + $0x668] sm:$0xff]
    %v223 = vld [vmem:[%s1 + $0x670] sm:$0xff]
    %v224 = vld [vmem:[%s1 + $0x678] sm:$0xff]
    %v225 = vld [vmem:[%s1 + $0x680] sm:$0xff]
    %v226 = vld [vmem:[%s1 + $0x688] sm:$0xff]
    %v227 = vld [vmem:[%s1 + $0x690] sm:$0xff]
    %v228 = vld [vmem:[%s1 + $0x698] sm:$0xff]
    %v229 = vld [vmem:[%s1 + $0x6a0] sm:$0xff]
    %v230 = vld [vmem:[%s1 + $0x6a8] sm:$0xff]
    %v231 = vld [vmem:[%s1 + $0x6b0] sm:$0xff]
    %v232 = vld [vmem:[%s1 + $0x6b8] sm:$0xff]
    %v233 = vld [vmem:[%s1 + $0x6c0] sm:$0xff]
    %v234 = vld [vmem:[%s1 + $0x6c8] sm:$0xff]
    %v235 = vld [vmem:[%s1 + $0x6d0] sm:$0xff]
    %v236 = vld [vmem:[%s1 + $0x6d8] sm:$0xff]
    %v237 = vld [vmem:[%s1 + $0x6e0] sm:$0xff]
    %v238 = vld [vmem:[%s1 + $0x6e8] sm:$0xff]
    %v239 = vld [vmem:[%s1 + $0x6f0] sm:$0xff]
    %v240 = vld [vmem:[%s1 + $0x6f8] sm:$0xff]
    %v241 = vld [vmem:[%s1 + $0x700] sm:$0xff]
    %v242 = vld [vmem:[%s1 + $0x708] sm:$0xff]
    %v243 = vld [vmem:[%s1 + $0x710] sm:$0xff]
    %v244 = vld [vmem:[%s1 + $0x718] sm:$0xff]
    %v245 = vld [vmem:[%s1 + $0x720] sm:$0xff]
    %v246 = vld [vmem:[%s1 + $0x728] sm:$0xff]
    %v247 = vld [vmem:[%s1 + $0x730] sm:$0xff]
    %v248 = vld [vmem:[%s1 + $0x738] sm:$0xff]
    %v249 = vld [vmem:[%s1 + $0x740] sm:$0xff]
    %v250 = vld [vmem:[%s1 + $0x748] sm:$0xff]
    %v251 = vld [vmem:[%s1 + $0x750] sm:$0xff]
    %v252 = vld [vmem:[%s1 + $0x758] sm:$0xff]
    %v253 = vld [vmem:[%s1 + $0x760] sm:$0xff]
    %v254 = vld [vmem:[%s1 + $0x768] sm:$0xff]
    %v255 = vld [vmem:[%s1 + $0x770] sm:$0xff]
    %v256 = vld [vmem:[%s1 + $0x778] sm:$0xff]
    %v257 = vld [vmem:[%s1 + $0x780] sm:$0xff]
    %v258 = vld [vmem:[%s1 + $0x788] sm:$0xff]
    %v259 = vld [vmem:[%s1 + $0x790] sm:$0xff]
    %v260 = vld [vmem:[%s1 + $0x798] sm:$0xff]
    %v261 = vld [vmem:[%s1 + $0x7a0] sm:$0xff]
    %v262 = vld [vmem:[%s1 + $0x7a8] sm:$0xff]
    %v263 = vld [vmem:[%s1 + $0x7b0] sm:$0xff]
    %v264 = vld [vmem:[%s1 + $0x7b8] sm:$0xff]
    %v265 = vld [vmem:[%s1 + $0x7c0] sm:$0xff]
    %v266 = vld [vmem:[%s1 + $0x7c8] sm:$0xff]
    %v267 = vld [vmem:[%s1 + $0x7d0] sm:$0xff]
    %v268 = vld [vmem:[%s1 + $0x7d8] sm:$0xff]
    %v269 = vld [vmem:[%s1 + $0x7e0] sm:$0xff]
    %v270 = vld [vmem:[%s1 + $0x7e8] sm:$0xff]
    %v271 = vld [vmem:[%s1 + $0x7f0] sm:$0xff]
    %v272 = vld [vmem:[%s1 + $0x7f8] sm:$0xff]
    %v273 = vld [vmem:[%s1 + $0x800] sm:$0xff]
    %v274 = vld [vmem:[%s1 + $0x808] sm:$0xff]
    %v275 = vld [vmem:[%s1 + $0x810] sm:$0xff]
    %v276 = vld [vmem:[%s1 + $0x818] sm:$0xff]
    %v277 = vld [vmem:[%s1 + $0x820] sm:$0xff]
    %v278 = vld [vmem:[%s1 + $0x828] sm:$0xff]
    %v279 = vld [vmem:[%s1 + $0x830] sm:$0xff]
    %v280 = vld [vmem:[%s1 + $0x838] sm:$0xff]
    %v281 = vld [vmem:[%s1 + $0x840] sm:$0xff]
    %v282 = vld [vmem:[%s1 + $0x848] sm:$0xff]
    %v283 = vld [vmem:[%s1 + $0x850] sm:$0xff]
    %v284 = vld [vmem:[%s1 + $0x858] sm:$0xff]
    %v285 = vld [vmem:[%s1 + $0x860] sm:$0xff]
    %v286 = vld [vmem:[%s1 + $0x868] sm:$0xff]
    %v287 = vld [vmem:[%s1 + $0x870] sm:$0xff]
    %v288 = vld [vmem:[%s1 + $0x878] sm:$0xff]
    %v289 = vld [vmem:[%s1 + $0x880] sm:$0xff]
    %v290 = vld [vmem:[%s1 + $0x888] sm:$0xff]
    %v291 = vld [vmem:[%s1 + $0x890] sm:$0xff]
    %v292 = vld [vmem:[%s1 + $0x898] sm:$0xff]
    %v293 = vld [vmem:[%s1 + $0x8a0] sm:$0xff]
    %v294 = vld [vmem:[%s1 + $0x8a8] sm:$0xff]
    %v295 = vld [vmem:[%s1 + $0x8b0] sm:$0xff]
    %v296 = vld [vmem:[%s1 + $0x8b8] sm:$0xff]
    %v297 = vld [vmem:[%s1 + $0x8c0] sm:$0xff]
    %v298 = vld [vmem:[%s1 + $0x8c8] sm:$0xff]
    %v299 = vld [vmem:[%s1 + $0x8d0] sm:$0xff]
    %v300 = vld [vmem:[%s1 + $0x8d8] sm:$0xff]
    %v301 = vld [vmem:[%s1 + $0x8e0] sm:$0xff]
    %v302 = vld [vmem:[%s1 + $0x8e8] sm:$0xff]
    %v303 = vld [vmem:[%s1 + $0x8f0] sm:$0xff]
    %v304 = vld [vmem:[%s1 + $0x8f8] sm:$0xff]
    %v305 = vld [vmem:[%s1 + $0x900] sm:$0xff]
    %v306 = vld [vmem:[%s1 + $0x908] sm:$0xff]
    %v307 = vld [vmem:[%s1 + $0x910] sm:$0xff]
    %v308 = vld [vmem:[%s1 + $0x918] sm:$0xff]
    %v309 = vld [vmem:[%s1 + $0x920] sm:$0xff]
    %v310 = vld [vmem:[%s1 + $0x928] sm:$0xff]
    %v311 = vld [vmem:[%s1 + $0x930] sm:$0xff]
    %v312 = vld [vmem:[%s1 + $0x938] sm:$0xff]
    %v313 = vld [vmem:[%s1 + $0x940] sm:$0xff]
    %v314 = vld [vmem:[%s1 + $0x948] sm:$0xff]
    %v315 = vld [vmem:[%s1 + $0x950] sm:$0xff]
    %v316 = vld [vmem:[%s1 + $0x958] sm:$0xff]
    %v317 = vld [vmem:[%s1 + $0x960] sm:$0xff]
    %v318 = vld [vmem:[%s1 + $0x968] sm:$0xff]
    %v319 = vld [vmem:[%s1 + $0x970] sm:$0xff]
    %v320 = vld [vmem:[%s1 + $0x978] sm:$0xff]
    %v321 = vld [vmem:[%s1 + $0x980] sm:$0xff]
    %v322 = vld [vmem:[%s1 + $0x988] sm:$0xff]
    %v323 = vld [vmem:[%s1 + $0x990] sm:$0xff]
    %v324 = vld [vmem:[%s1 + $0x998] sm:$0xff]
    %v325 = vld [vmem:[%s1 + $0x9a0] sm:$0xff]
    %v326 = vld [vmem:[%s1 + $0x9a8] sm:$0xff]
    %v327 = vld [vmem:[%s1 + $0x9b0] sm:$0xff]
    %v328 = vld [vmem:[%s1 + $0x9b8] sm:$0xff]
    %v329 = vld [vmem:[%s1 + $0x9c0] sm:$0xff]
    %v330 = vld [vmem:[%s1 + $0x9c8] sm:$0xff]
    %v331 = vld [vmem:[%s1 + $0x9d0] sm:$0xff]
    %v332 = vld [vmem:[%s1 + $0x9d8] sm:$0xff]
    %v333 = vld [vmem:[%s1 + $0x9e0] sm:$0xff]
    %v334 = vld [vmem:[%s1 + $0x9e8] sm:$0xff]
    %v335 = vld [vmem:[%s1 + $0x9f0] sm:$0xff]
    %v336 = vld [vmem:[%s1 + $0x9f8] sm:$0xff]
    %v337 = vld [vmem:[%s1 + $0xa00] sm:$0xff]
    %v338 = vld [vmem:[%s1 + $0xa08] sm:$0xff]
    %v339 = vld [vmem:[%s1 + $0xa10] sm:$0xff]
    %v340 = vld [vmem:[%s1 + $0xa18] sm:$0xff]
    %v341 = vld [vmem:[%s1 + $0xa20] sm:$0xff]
    %v342 = vld [vmem:[%s1 + $0xa28] sm:$0xff]
    %v343 = vld [vmem:[%s1 + $0xa30] sm:$0xff]
    %v344 = vld [vmem:[%s1 + $0xa38] sm:$0xff]
    %v345 = vld [vmem:[%s1 + $0xa40] sm:$0xff]
    %v346 = vld [vmem:[%s1 + $0xa48] sm:$0xff]
    %v347 = vld [vmem:[%s1 + $0xa50] sm:$0xff]
    %v348 = vld [vmem:[%s1 + $0xa58] sm:$0xff]
    %v349 = vld [vmem:[%s1 + $0xa60] sm:$0xff]
    %v350 = vld [vmem:[%s1 + $0xa68] sm:$0xff]
    %v351 = vld [vmem:[%s1 + $0xa70] sm:$0xff]
    %v352 = vld [vmem:[%s1 + $0xa78] sm:$0xff]
    %v353 = vld [vmem:[%s1 + $0xa80] sm:$0xff]
    %v354 = vld [vmem:[%s1 + $0xa88] sm:$0xff]
    %v355 = vld [vmem:[%s1 + $0xa90] sm:$0xff]
    %v356 = vld [vmem:[%s1 + $0xa98] sm:$0xff]
    %v357 = vld [vmem:[%s1 + $0xaa0] sm:$0xff]
    %v358 = vld [vmem:[%s1 + $0xaa8] sm:$0xff]
    %v359 = vld [vmem:[%s1 + $0xab0] sm:$0xff]
    %v360 = vld [vmem:[%s1 + $0xab8] sm:$0xff]
    %v361 = vld [vmem:[%s1 + $0xac0] sm:$0xff]
    %v362 = vld [vmem:[%s1 + $0xac8] sm:$0xff]
    %v363 = vld [vmem:[%s1 + $0xad0] sm:$0xff]
    %v364 = vld [vmem:[%s1 + $0xad8] sm:$0xff]
    %v365 = vld [vmem:[%s1 + $0xae0] sm:$0xff]
    %v366 = vld [vmem:[%s1 + $0xae8] sm:$0xff]
    %v367 = vld [vmem:[%s1 + $0xaf0] sm:$0xff]
    %v368 = vld [vmem:[%s1 + $0xaf8] sm:$0xff]
    %v369 = vld [vmem:[%s1 + $0xb00] sm:$0xff]
    %v370 = vld [vmem:[%s1 + $0xb08] sm:$0xff]
    %v371 = vld [vmem:[%s1 + $0xb10] sm:$0xff]
    %v372 = vld [vmem:[%s1 + $0xb18] sm:$0xff]
    %v373 = vld [vmem:[%s1 + $0xb20] sm:$0xff]
    %v374 = vld [vmem:[%s1 + $0xb28] sm:$0xff]
    %v375 = vld [vmem:[%s1 + $0xb30] sm:$0xff]
    %v376 = vld [vmem:[%s1 + $0xb38] sm:$0xff]
    %v377 = vld [vmem:[%s1 + $0xb40] sm:$0xff]
    %v378 = vld [vmem:[%s1 + $0xb48] sm:$0xff]
    %v379 = vld [vmem:[%s1 + $0xb50] sm:$0xff]
    %v380 = vld [vmem:[%s1 + $0xb58] sm:$0xff]
    %v381 = vld [vmem:[%s1 + $0xb60] sm:$0xff]
    %v382 = vld [vmem:[%s1 + $0xb68] sm:$0xff]
    %v383 = vld [vmem:[%s1 + $0xb70] sm:$0xff]
    %v384 = vld [vmem:[%s1 + $0xb78] sm:$0xff]
    %v385 = vld [vmem:[%s1 + $0xb80] sm:$0xff]
    %v386 = vld [vmem:[%s1 + $0xb88] sm:$0xff]
    %v387 = vld [vmem:[%s1 + $0xb90] sm:$0xff]
    %v388 = vld [vmem:[%s1 + $0xb98] sm:$0xff]
    %v389 = vld [vmem:[%s1 + $0xba0] sm:$0xff]
    %v390 = vld [vmem:[%s1 + $0xba8] sm:$0xff]
    %v391 = vld [vmem:[%s1 + $0xbb0] sm:$0xff]
    %v392 = vld [vmem:[%s1 + $0xbb8] sm:$0xff]
    %v393 = vld [vmem:[%s1 + $0xbc0] sm:$0xff]
    %v394 = vld [vmem:[%s1 + $0xbc8] sm:$0xff]
    %v395 = vld [vmem:[%s1 + $0xbd0] sm:$0xff]
    %v396 = vld [vmem:[%s1 + $0xbd8] sm:$0xff]
    %v397 = vld [vmem:[%s1 + $0xbe0] sm:$0xff]
    %v398 = vld [vmem:[%s1 + $0xbe8] sm:$0xff]
    %v399 = vld [vmem:[%s1 + $0xbf0] sm:$0xff]
    %v400 = vld [vmem:[%s1 + $0xbf8] sm:$0xff]
    %v401 = vld [vmem:[%s1 + $0xc00] sm:$0xff]
    %v402 = vld [vmem:[%s1 + $0xc08] sm:$0xff]
    %v403 = vld [vmem:[%s1 + $0xc10] sm:$0xff]
    %v404 = vld [vmem:[%s1 + $0xc18] sm:$0xff]
    %v405 = vld [vmem:[%s1 + $0xc20] sm:$0xff]
    %v406 = vld [vmem:[%s1 + $0xc28] sm:$0xff]
    %v407 = vld [vmem:[%s1 + $0xc30] sm:$0xff]
    %v408 = vld [vmem:[%s1 + $0xc38] sm:$0xff]
    %v409 = vld [vmem:[%s1 + $0xc40] sm:$0xff]
    %v410 = vld [vmem:[%s1 + $0xc48] sm:$0xff]
    %v411 = vld [vmem:[%s1 + $0xc50] sm:$0xff]
    %v412 = vld [vmem:[%s1 + $0xc58] sm:$0xff]
    %v413 = vld [vmem:[%s1 + $0xc60] sm:$0xff]
    %v414 = vld [vmem:[%s1 + $0xc68] sm:$0xff]
    %v415 = vld [vmem:[%s1 + $0xc70] sm:$0xff]
    %v416 = vld [vmem:[%s1 + $0xc78] sm:$0xff]
    %v417 = vld [vmem:[%s1 + $0xc80] sm:$0xff]
    %v418 = vld [vmem:[%s1 + $0xc88] sm:$0xff]
    %v419 = vld [vmem:[%s1 + $0xc90] sm:$0xff]
    %v420 = vld [vmem:[%s1 + $0xc98] sm:$0xff]
    %v421 = vld [vmem:[%s1 + $0xca0] sm:$0xff]
    %v422 = vld [vmem:[%s1 + $0xca8] sm:$0xff]
    %v423 = vld [vmem:[%s1 + $0xcb0] sm:$0xff]
    %v424 = vld [vmem:[%s1 + $0xcb8] sm:$0xff]
    %v425 = vld [vmem:[%s1 + $0xcc0] sm:$0xff]
    %v426 = vld [vmem:[%s1 + $0xcc8] sm:$0xff]
    %v427 = vld [vmem:[%s1 + $0xcd0] sm:$0xff]
    %v428 = vld [vmem:[%s1 + $0xcd8] sm:$0xff]
    %v429 = vld [vmem:[%s1 + $0xce0] sm:$0xff]
    %v430 = vld [vmem:[%s1 + $0xce8] sm:$0xff]
    %v431 = vld [vmem:[%s1 + $0xcf0] sm:$0xff]
    %v432 = vld [vmem:[%s1 + $0xcf8] sm:$0xff]
    %v433 = vld [vmem:[%s1 + $0xd00] sm:$0xff]
    %v434 = vld [vmem:[%s1 + $0xd08] sm:$0xff]
    %v435 = vld [vmem:[%s1 + $0xd10] sm:$0xff]
    %v436 = vld [vmem:[%s1 + $0xd18] sm:$0xff]
    %v437 = vld [vmem:[%s1 + $0xd20] sm:$0xff]
    %v438 = vld [vmem:[%s1 + $0xd28] sm:$0xff]
    %v439 = vld [vmem:[%s1 + $0xd30] sm:$0xff]
    %v440 = vld [vmem:[%s1 + $0xd38] sm:$0xff]
    %v441 = vld [vmem:[%s1 + $0xd40] sm:$0xff]
    %v442 = vld [vmem:[%s1 + $0xd48] sm:$0xff]
    %v443 = vld [vmem:[%s1 + $0xd50] sm:$0xff]
    %v444 = vld [vmem:[%s1 + $0xd58] sm:$0xff]
    %v445 = vld [vmem:[%s1 + $0xd60] sm:$0xff]
    %v446 = vld [vmem:[%s1 + $0xd68] sm:$0xff]
    %v447 = vld [vmem:[%s1 + $0xd70] sm:$0xff]
    %v448 = vld [vmem:[%s1 + $0xd78] sm:$0xff]
    %v449 = vld [vmem:[%s1 + $0xd80] sm:$0xff]
    %v450 = vld [vmem:[%s1 + $0xd88] sm:$0xff]
    %v451 = vld [vmem:[%s1 + $0xd90] sm:$0xff]
    %v452 = vld [vmem:[%s1 + $0xd98] sm:$0xff]
    %v453 = vld [vmem:[%s1 + $0xda0] sm:$0xff]
    %v454 = vld [vmem:[%s1 + $0xda8] sm:$0xff]
    %v455 = vld [vmem:[%s1 + $0xdb0] sm:$0xff]
    %v456 = vld [vmem:[%s1 + $0xdb8] sm:$0xff]
    %v457 = vld [vmem:[%s1 + $0xdc0] sm:$0xff]
    %v458 = vld [vmem:[%s1 + $0xdc8] sm:$0xff]
    %v459 = vld [vmem:[%s1 + $0xdd0] sm:$0xff]
    %v460 = vld [vmem:[%s1 + $0xdd8] sm:$0xff]
    %v461 = vld [vmem:[%s1 + $0xde0] sm:$0xff]
    %v462 = vld [vmem:[%s1 + $0xde8] sm:$0xff]
    %v463 = vld [vmem:[%s1 + $0xdf0] sm:$0xff]
    %v464 = vld [vmem:[%s1 + $0xdf8] sm:$0xff]
    %v465 = vld [vmem:[%s1 + $0xe00] sm:$0xff]
    %v466 = vld [vmem:[%s1 + $0xe08] sm:$0xff]
    %v467 = vld [vmem:[%s1 + $0xe10] sm:$0xff]
    %v468 = vld [vmem:[%s1 + $0xe18] sm:$0xff]
    %v469 = vld [vmem:[%s1 + $0xe20] sm:$0xff]
    %v470 = vld [vmem:[%s1 + $0xe28] sm:$0xff]
    %v471 = vld [vmem:[%s1 + $0xe30] sm:$0xff]
    %v472 = vld [vmem:[%s1 + $0xe38] sm:$0xff]
    %v473 = vld [vmem:[%s1 + $0xe40] sm:$0xff]
    %v474 = vld [vmem:[%s1 + $0xe48] sm:$0xff]
    %v475 = vld [vmem:[%s1 + $0xe50] sm:$0xff]
    %v476 = vld [vmem:[%s1 + $0xe58] sm:$0xff]
    %v477 = vld [vmem:[%s1 + $0xe60] sm:$0xff]
    %v478 = vld [vmem:[%s1 + $0xe68] sm:$0xff]
    %v479 = vld [vmem:[%s1 + $0xe70] sm:$0xff]
    %v480 = vld [vmem:[%s1 + $0xe78] sm:$0xff]
    %v481 = vld [vmem:[%s1 + $0xe80] sm:$0xff]
    %v482 = vld [vmem:[%s1 + $0xe88] sm:$0xff]
    %v483 = vld [vmem:[%s1 + $0xe90] sm:$0xff]
    %v484 = vld [vmem:[%s1 + $0xe98] sm:$0xff]
    %v485 = vld [vmem:[%s1 + $0xea0] sm:$0xff]
    %v486 = vld [vmem:[%s1 + $0xea8] sm:$0xff]
    %v487 = vld [vmem:[%s1 + $0xeb0] sm:$0xff]
    %v488 = vld [vmem:[%s1 + $0xeb8] sm:$0xff]
    %v489 = vld [vmem:[%s1 + $0xec0] sm:$0xff]
    %v490 = vld [vmem:[%s1 + $0xec8] sm:$0xff]
    %v491 = vld [vmem:[%s1 + $0xed0] sm:$0xff]
    %v492 = vld [vmem:[%s1 + $0xed8] sm:$0xff]
    %v493 = vld [vmem:[%s1 + $0xee0] sm:$0xff]
    %v494 = vld [vmem:[%s1 + $0xee8] sm:$0xff]
    %v495 = vld [vmem:[%s1 + $0xef0] sm:$0xff]
    %v496 = vld [vmem:[%s1 + $0xef8] sm:$0xff]
    %v497 = vld [vmem:[%s1 + $0xf00] sm:$0xff]
    %v498 = vld [vmem:[%s1 + $0xf08] sm:$0xff]
    %v499 = vld [vmem:[%s1 + $0xf10] sm:$0xff]
    %v500 = vld [vmem:[%s1 + $0xf18] sm:$0xff]
    %v501 = vld [vmem:[%s1 + $0xf20] sm:$0xff]
    %v502 = vld [vmem:[%s1 + $0xf28] sm:$0xff]
    %v503 = vld [vmem:[%s1 + $0xf30] sm:$0xff]
    %v504 = vld [vmem:[%s1 + $0xf38] sm:$0xff]
    %v505 = vld [vmem:[%s1 + $0xf40] sm:$0xff]
    %v506 = vld [vmem:[%s1 + $0xf48] sm:$0xff]
    %v507 = vld [vmem:[%s1 + $0xf50] sm:$0xff]
    %v508 = vld [vmem:[%s1 + $0xf58] sm:$0xff]
    %v509 = vld [vmem:[%s1 + $0xf60] sm:$0xff]
    %v510 = vld [vmem:[%s1 + $0xf68] sm:$0xff]
    %v511 = vld [vmem:[%s1 + $0xf70] sm:$0xff]
    %v512 = vld [vmem:[%s1 + $0xf78] sm:$0xff]
    %v513 = vld [vmem:[%s1 + $0xf80] sm:$0xff]
    %v514 = vld [vmem:[%s1 + $0xf88] sm:$0xff]
    %v515 = vld [vmem:[%s1 + $0xf90] sm:$0xff]
    %v516 = vld [vmem:[%s1 + $0xf98] sm:$0xff]
    %v517 = vld [vmem:[%s1 + $0xfa0] sm:$0xff]
    %v518 = vld [vmem:[%s1 + $0xfa8] sm:$0xff]
    %v519 = vld [vmem:[%s1 + $0xfb0] sm:$0xff]
    %v520 = vld [vmem:[%s1 + $0xfb8] sm:$0xff]
    %v521 = vld [vmem:[%s1 + $0xfc0] sm:$0xff]
    %v522 = vld [vmem:[%s1 + $0xfc8] sm:$0xff]
    %v523 = vld [vmem:[%s1 + $0xfd0] sm:$0xff]
    %v524 = vld [vmem:[%s1 + $0xfd8] sm:$0xff]
    %v525 = vld [vmem:[%s1 + $0xfe0] sm:$0xff]
    %v526 = vld [vmem:[%s1 + $0xfe8] sm:$0xff]
    %v527 = vld [vmem:[%s1 + $0xff0] sm:$0xff]
    %v528 = vld [vmem:[%s1 + $0xff8] sm:$0xff]
    %v529 = vld [vmem:[%s1 + $0x1000] sm:$0xff]
    %v530 = vld [vmem:[%s1 + $0x1008] sm:$0xff]
    %v531 = vld [vmem:[%s1 + $0x1010] sm:$0xff]
    %v532 = vld [vmem:[%s1 + $0x1018] sm:$0xff]
    %v533 = vld [vmem:[%s1 + $0x1020] sm:$0xff]
    %v534 = vld [vmem:[%s1 + $0x1028] sm:$0xff]
    %v535 = vld [vmem:[%s1 + $0x1030] sm:$0xff]
    %v536 = vld [vmem:[%s1 + $0x1038] sm:$0xff]
    %v537 = vld [vmem:[%s1 + $0x1040] sm:$0xff]
    %v538 = vld [vmem:[%s1 + $0x1048] sm:$0xff]
    %v539 = vld [vmem:[%s1 + $0x1050] sm:$0xff]
    %v540 = vld [vmem:[%s1 + $0x1058] sm:$0xff]
    %v541 = vld [vmem:[%s1 + $0x1060] sm:$0xff]
    %v542 = vld [vmem:[%s1 + $0x1068] sm:$0xff]
    %v543 = vld [vmem:[%s1 + $0x1070] sm:$0xff]
    %v544 = vld [vmem:[%s1 + $0x1078] sm:$0xff]
    %v545 = vld [vmem:[%s1 + $0x1080] sm:$0xff]
    %v546 = vld [vmem:[%s1 + $0x1088] sm:$0xff]
    %v547 = vld [vmem:[%s1 + $0x1090] sm:$0xff]
    %v548 = vld [vmem:[%s1 + $0x1098] sm:$0xff]
    %v549 = vld [vmem:[%s1 + $0x10a0] sm:$0xff]
    %v550 = vld [vmem:[%s1 + $0x10a8] sm:$0xff]
    %v551 = vld [vmem:[%s1 + $0x10b0] sm:$0xff]
    %v552 = vld [vmem:[%s1 + $0x10b8] sm:$0xff]
    %v553 = vld [vmem:[%s1 + $0x10c0] sm:$0xff]
    %v554 = vld [vmem:[%s1 + $0x10c8] sm:$0xff]
    %v555 = vld [vmem:[%s1 + $0x10d0] sm:$0xff]
    %v556 = vld [vmem:[%s1 + $0x10d8] sm:$0xff]
    %v557 = vld [vmem:[%s1 + $0x10e0] sm:$0xff]
    %v558 = vld [vmem:[%s1 + $0x10e8] sm:$0xff]
    %v559 = vld [vmem:[%s1 + $0x10f0] sm:$0xff]
    %v560 = vld [vmem:[%s1 + $0x10f8] sm:$0xff]
    %v561 = vld [vmem:[%s1 + $0x1100] sm:$0xff]
    %v562 = vld [vmem:[%s1 + $0x1108] sm:$0xff]
    %v563 = vld [vmem:[%s1 + $0x1110] sm:$0xff]
    %v564 = vld [vmem:[%s1 + $0x1118] sm:$0xff]
    %v565 = vld [vmem:[%s1 + $0x1120] sm:$0xff]
    %v566 = vld [vmem:[%s1 + $0x1128] sm:$0xff]
    %v567 = vld [vmem:[%s1 + $0x1130] sm:$0xff]
    %v568 = vld [vmem:[%s1 + $0x1138] sm:$0xff]
    %v569 = vld [vmem:[%s1 + $0x1140] sm:$0xff]
    %v570 = vld [vmem:[%s1 + $0x1148] sm:$0xff]
    %v571 = vld [vmem:[%s1 + $0x1150] sm:$0xff]
    %v572 = vld [vmem:[%s1 + $0x1158] sm:$0xff]
    %v573 = vld [vmem:[%s1 + $0x1160] sm:$0xff]
    %v574 = vld [vmem:[%s1 + $0x1168] sm:$0xff]
    %v575 = vld [vmem:[%s1 + $0x1170] sm:$0xff]
    %v576 = vld [vmem:[%s1 + $0x1178] sm:$0xff]
    %v577 = vld [vmem:[%s1 + $0x1180] sm:$0xff]
    %v578 = vld [vmem:[%s1 + $0x1188] sm:$0xff]
    %v579 = vld [vmem:[%s1 + $0x1190] sm:$0xff]
    %v580 = vld [vmem:[%s1 + $0x1198] sm:$0xff]
    %v581 = vld [vmem:[%s1 + $0x11a0] sm:$0xff]
    %v582 = vld [vmem:[%s1 + $0x11a8] sm:$0xff]
    %v583 = vld [vmem:[%s1 + $0x11b0] sm:$0xff]
    %v584 = vld [vmem:[%s1 + $0x11b8] sm:$0xff]
    %v585 = vld [vmem:[%s1 + $0x11c0] sm:$0xff]
    %v586 = vld [vmem:[%s1 + $0x11c8] sm:$0xff]
    %v587 = vld [vmem:[%s1 + $0x11d0] sm:$0xff]
    %v588 = vld [vmem:[%s1 + $0x11d8] sm:$0xff]
    %v589 = vld [vmem:[%s1 + $0x11e0] sm:$0xff]
    %v590 = vld [vmem:[%s1 + $0x11e8] sm:$0xff]
    %v591 = vld [vmem:[%s1 + $0x11f0] sm:$0xff]
    %v592 = vld [vmem:[%s1 + $0x11f8] sm:$0xff]
    %v593 = vld [vmem:[%s1 + $0x1200] sm:$0xff]
    %v594 = vld [vmem:[%s1 + $0x1208] sm:$0xff]
    %v595 = vld [vmem:[%s1 + $0x1210] sm:$0xff]
    %v596 = vld [vmem:[%s1 + $0x1218] sm:$0xff]
    %v597 = vld [vmem:[%s1 + $0x1220] sm:$0xff]
    %v598 = vld [vmem:[%s1 + $0x1228] sm:$0xff]
    %v599 = vld [vmem:[%s1 + $0x1230] sm:$0xff]
    %v600 = vld [vmem:[%s1 + $0x1238] sm:$0xff]
    %v601 = vld [vmem:[%s1 + $0x1240] sm:$0xff]
    %v602 = vld [vmem:[%s1 + $0x1248] sm:$0xff]
    %v603 = vld [vmem:[%s1 + $0x1250] sm:$0xff]
    %v604 = vld [vmem:[%s1 + $0x1258] sm:$0xff]
    %v605 = vld [vmem:[%s1 + $0x1260] sm:$0xff]
    %v606 = vld [vmem:[%s1 + $0x1268] sm:$0xff]
    %v607 = vld [vmem:[%s1 + $0x1270] sm:$0xff]
    %v608 = vld [vmem:[%s1 + $0x1278] sm:$0xff]
    %v609 = vld [vmem:[%s1 + $0x1280] sm:$0xff]
    %v610 = vld [vmem:[%s1 + $0x1288] sm:$0xff]
    %v611 = vld [vmem:[%s1 + $0x1290] sm:$0xff]
    %v612 = vld [vmem:[%s1 + $0x1298] sm:$0xff]
    %v613 = vld [vmem:[%s1 + $0x12a0] sm:$0xff]
    %v614 = vld [vmem:[%s1 + $0x12a8] sm:$0xff]
    %v615 = vld [vmem:[%s1 + $0x12b0] sm:$0xff]
    %v616 = vld [vmem:[%s1 + $0x12b8] sm:$0xff]
    %v617 = vld [vmem:[%s1 + $0x12c0] sm:$0xff]
    %v618 = vld [vmem:[%s1 + $0x12c8] sm:$0xff]
    %v619 = vld [vmem:[%s1 + $0x12d0] sm:$0xff]
    %v620 = vld [vmem:[%s1 + $0x12d8] sm:$0xff]
    %v621 = vld [vmem:[%s1 + $0x12e0] sm:$0xff]
    %v622 = vld [vmem:[%s1 + $0x12e8] sm:$0xff]
    %v623 = vld [vmem:[%s1 + $0x12f0] sm:$0xff]
    %v624 = vld [vmem:[%s1 + $0x12f8] sm:$0xff]
    %v625 = vld [vmem:[%s1 + $0x1300] sm:$0xff]
    %v626 = vld [vmem:[%s1 + $0x1308] sm:$0xff]
    %v627 = vld [vmem:[%s1 + $0x1310] sm:$0xff]
    %v628 = vld [vmem:[%s1 + $0x1318] sm:$0xff]
    %v629 = vld [vmem:[%s1 + $0x1320] sm:$0xff]
    %v630 = vld [vmem:[%s1 + $0x1328] sm:$0xff]
    %v631 = vld [vmem:[%s1 + $0x1330] sm:$0xff]
    %v632 = vld [vmem:[%s1 + $0x1338] sm:$0xff]
    %v633 = vld [vmem:[%s1 + $0x1340] sm:$0xff]
    %v634 = vld [vmem:[%s1 + $0x1348] sm:$0xff]
    %v635 = vld [vmem:[%s1 + $0x1350] sm:$0xff]
    %v636 = vld [vmem:[%s1 + $0x1358] sm:$0xff]
    %v637 = vld [vmem:[%s1 + $0x1360] sm:$0xff]
    %v638 = vld [vmem:[%s1 + $0x1368] sm:$0xff]
    %v639 = vld [vmem:[%s1 + $0x1370] sm:$0xff]
    %v640 = vld [vmem:[%s1 + $0x1378] sm:$0xff]
    %v641 = vld [vmem:[%s1 + $0x1380] sm:$0xff]
    %v642 = vld [vmem:[%s1 + $0x1388] sm:$0xff]
    %v643 = vld [vmem:[%s1 + $0x1390] sm:$0xff]
    %v644 = vld [vmem:[%s1 + $0x1398] sm:$0xff]
    %v645 = vld [vmem:[%s1 + $0x13a0] sm:$0xff]
    %v646 = vld [vmem:[%s1 + $0x13a8] sm:$0xff]
    %v647 = vld [vmem:[%s1 + $0x13b0] sm:$0xff]
    %v648 = vld [vmem:[%s1 + $0x13b8] sm:$0xff]
    %v649 = vld [vmem:[%s1 + $0x13c0] sm:$0xff]
    %v650 = vld [vmem:[%s1 + $0x13c8] sm:$0xff]
    %v651 = vld [vmem:[%s1 + $0x13d0] sm:$0xff]
    %v652 = vld [vmem:[%s1 + $0x13d8] sm:$0xff]
    %v653 = vld [vmem:[%s1 + $0x13e0] sm:$0xff]
    %v654 = vld [vmem:[%s1 + $0x13e8] sm:$0xff]
    %v655 = vld [vmem:[%s1 + $0x13f0] sm:$0xff]
    %v656 = vld [vmem:[%s1 + $0x13f8] sm:$0xff]
    %v657 = vld [vmem:[%s1 + $0x1400] sm:$0xff]
    %v658 = vld [vmem:[%s1 + $0x1408] sm:$0xff]
    %v659 = vld [vmem:[%s1 + $0x1410] sm:$0xff]
    %v660 = vld [vmem:[%s1 + $0x1418] sm:$0xff]
    %v661 = vld [vmem:[%s1 + $0x1420] sm:$0xff]
    %v662 = vld [vmem:[%s1 + $0x1428] sm:$0xff]
    %v663 = vld [vmem:[%s1 + $0x1430] sm:$0xff]
    %v664 = vld [vmem:[%s1 + $0x1438] sm:$0xff]
    %v665 = vld [vmem:[%s1 + $0x1440] sm:$0xff]
    %v666 = vld [vmem:[%s1 + $0x1448] sm:$0xff]
    %v667 = vld [vmem:[%s1 + $0x1450] sm:$0xff]
    %v668 = vld [vmem:[%s1 + $0x1458] sm:$0xff]
    %v669 = vld [vmem:[%s1 + $0x1460] sm:$0xff]
    %v670 = vld [vmem:[%s1 + $0x1468] sm:$0xff]
    %v671 = vld [vmem:[%s1 + $0x1470] sm:$0xff]
    %v672 = vld [vmem:[%s1 + $0x1478] sm:$0xff]
    %v673 = vld [vmem:[%s1 + $0x1480] sm:$0xff]
    %v674 = vld [vmem:[%s1 + $0x1488] sm:$0xff]
    %v675 = vld [vmem:[%s1 + $0x1490] sm:$0xff]
    %v676 = vld [vmem:[%s1 + $0x1498] sm:$0xff]
    %v677 = vld [vmem:[%s1 + $0x14a0] sm:$0xff]
    %v678 = vld [vmem:[%s1 + $0x14a8] sm:$0xff]
    %v679 = vld [vmem:[%s1 + $0x14b0] sm:$0xff]
    %v680 = vld [vmem:[%s1 + $0x14b8] sm:$0xff]
    %v681 = vld [vmem:[%s1 + $0x14c0] sm:$0xff]
    %v682 = vld [vmem:[%s1 + $0x14c8] sm:$0xff]
    %v683 = vld [vmem:[%s1 + $0x14d0] sm:$0xff]
    %v684 = vld [vmem:[%s1 + $0x14d8] sm:$0xff]
    %v685 = vld [vmem:[%s1 + $0x14e0] sm:$0xff]
    %v686 = vld [vmem:[%s1 + $0x14e8] sm:$0xff]
    %v687 = vld [vmem:[%s1 + $0x14f0] sm:$0xff]
    %v688 = vld [vmem:[%s1 + $0x14f8] sm:$0xff]
    %v689 = vld [vmem:[%s1 + $0x1500] sm:$0xff]
    %v690 = vld [vmem:[%s1 + $0x1508] sm:$0xff]
    %v691 = vld [vmem:[%s1 + $0x1510] sm:$0xff]
    %v692 = vld [vmem:[%s1 + $0x1518] sm:$0xff]
    %v693 = vld [vmem:[%s1 + $0x1520] sm:$0xff]
    %v694 = vld [vmem:[%s1 + $0x1528] sm:$0xff]
    %v695 = vld [vmem:[%s1 + $0x1530] sm:$0xff]
    %v696 = vld [vmem:[%s1 + $0x1538] sm:$0xff]
    %v697 = vld [vmem:[%s1 + $0x1540] sm:$0xff]
    %v698 = vld [vmem:[%s1 + $0x1548] sm:$0xff]
    %v699 = vld [vmem:[%s1 + $0x1550] sm:$0xff]
    %v700 = vld [vmem:[%s1 + $0x1558] sm:$0xff]
    %v701 = vld [vmem:[%s1 + $0x1560] sm:$0xff]
    %v702 = vld [vmem:[%s1 + $0x1568] sm:$0xff]
    %v703 = vld [vmem:[%s1 + $0x1570] sm:$0xff]
    %v704 = vld [vmem:[%s1 + $0x1578] sm:$0xff]
    %v705 = vld [vmem:[%s1 + $0x1580] sm:$0xff]
    %v706 = vld [vmem:[%s1 + $0x1588] sm:$0xff]
    %v707 = vld [vmem:[%s1 + $0x1590] sm:$0xff]
    %v708 = vld [vmem:[%s1 + $0x1598] sm:$0xff]
    %v709 = vld [vmem:[%s1 + $0x15a0] sm:$0xff]
    %v710 = vld [vmem:[%s1 + $0x15a8] sm:$0xff]
    %v711 = vld [vmem:[%s1 + $0x15b0] sm:$0xff]
    %v712 = vld [vmem:[%s1 + $0x15b8] sm:$0xff]
    %v713 = vld [vmem:[%s1 + $0x15c0] sm:$0xff]
    %v714 = vld [vmem:[%s1 + $0x15c8] sm:$0xff]
    %v715 = vld [vmem:[%s1 + $0x15d0] sm:$0xff]
    %v716 = vld [vmem:[%s1 + $0x15d8] sm:$0xff]
    %v717 = vld [vmem:[%s1 + $0x15e0] sm:$0xff]
    %v718 = vld [vmem:[%s1 + $0x15e8] sm:$0xff]
    %v719 = vld [vmem:[%s1 + $0x15f0] sm:$0xff]
    %v720 = vld [vmem:[%s1 + $0x15f8] sm:$0xff]
    %v721 = vld [vmem:[%s1 + $0x1600] sm:$0xff]
    %v722 = vld [vmem:[%s1 + $0x1608] sm:$0xff]
    %v723 = vld [vmem:[%s1 + $0x1610] sm:$0xff]
    %v724 = vld [vmem:[%s1 + $0x1618] sm:$0xff]
    %v725 = vld [vmem:[%s1 + $0x1620] sm:$0xff]
    %v726 = vld [vmem:[%s1 + $0x1628] sm:$0xff]
    %v727 = vld [vmem:[%s1 + $0x1630] sm:$0xff]
    %v728 = vld [vmem:[%s1 + $0x1638] sm:$0xff]
    %v729 = vld [vmem:[%s1 + $0x1640] sm:$0xff]
    %v730 = vld [vmem:[%s1 + $0x1648] sm:$0xff]
    %v731 = vld [vmem:[%s1 + $0x1650] sm:$0xff]
    %v732 = vld [vmem:[%s1 + $0x1658] sm:$0xff]
    %v733 = vld [vmem:[%s1 + $0x1660] sm:$0xff]
    %v734 = vld [vmem:[%s1 + $0x1668] sm:$0xff]
    %v735 = vld [vmem:[%s1 + $0x1670] sm:$0xff]
    %v736 = vld [vmem:[%s1 + $0x1678] sm:$0xff]
    %v737 = vld [vmem:[%s1 + $0x1680] sm:$0xff]
    %v738 = vld [vmem:[%s1 + $0x1688] sm:$0xff]
    %v739 = vld [vmem:[%s1 + $0x1690] sm:$0xff]
    %v740 = vld [vmem:[%s1 + $0x1698] sm:$0xff]
    %v741 = vld [vmem:[%s1 + $0x16a0] sm:$0xff]
    %v742 = vld [vmem:[%s1 + $0x16a8] sm:$0xff]
    %v743 = vld [vmem:[%s1 + $0x16b0] sm:$0xff]
    %v744 = vld [vmem:[%s1 + $0x16b8] sm:$0xff]
    %v745 = vld [vmem:[%s1 + $0x16c0] sm:$0xff]
    %v746 = vld [vmem:[%s1 + $0x16c8] sm:$0xff]
    %v747 = vld [vmem:[%s1 + $0x16d0] sm:$0xff]
    %v748 = vld [vmem:[%s1 + $0x16d8] sm:$0xff]
    %v749 = vld [vmem:[%s1 + $0x16e0] sm:$0xff]
    %v750 = vld [vmem:[%s1 + $0x16e8] sm:$0xff]
    %v751 = vld [vmem:[%s1 + $0x16f0] sm:$0xff]
    %v752 = vld [vmem:[%s1 + $0x16f8] sm:$0xff]
    %v753 = vld [vmem:[%s1 + $0x1700] sm:$0xff]
    %v754 = vld [vmem:[%s1 + $0x1708] sm:$0xff]
    %v755 = vld [vmem:[%s1 + $0x1710] sm:$0xff]
    %v756 = vld [vmem:[%s1 + $0x1718] sm:$0xff]
    %v757 = vld [vmem:[%s1 + $0x1720] sm:$0xff]
    %v758 = vld [vmem:[%s1 + $0x1728] sm:$0xff]
    %v759 = vld [vmem:[%s1 + $0x1730] sm:$0xff]
    %v760 = vld [vmem:[%s1 + $0x1738] sm:$0xff]
    %v761 = vld [vmem:[%s1 + $0x1740] sm:$0xff]
    %v762 = vld [vmem:[%s1 + $0x1748] sm:$0xff]
    %v763 = vld [vmem:[%s1 + $0x1750] sm:$0xff]
    %v764 = vld [vmem:[%s1 + $0x1758] sm:$0xff]
    %v765 = vld [vmem:[%s1 + $0x1760] sm:$0xff]
    %v766 = vld [vmem:[%s1 + $0x1768] sm:$0xff]
    %v767 = vld [vmem:[%s1 + $0x1770] sm:$0xff]
    %v768 = vld [vmem:[%s1 + $0x1778] sm:$0xff]
    %v769 = vld [vmem:[%s1 + $0x1780] sm:$0xff]
    %v770 = vld [vmem:[%s1 + $0x1788] sm:$0xff]
    %v771 = vld [vmem:[%s1 + $0x1790] sm:$0xff]
    %v772 = vld [vmem:[%s1 + $0x1798] sm:$0xff]
    %v773 = vld [vmem:[%s1 + $0x17a0] sm:$0xff]
    %v774 = vld [vmem:[%s1 + $0x17a8] sm:$0xff]
    %v775 = vld [vmem:[%s1 + $0x17b0] sm:$0xff]
    %v776 = vld [vmem:[%s1 + $0x17b8] sm:$0xff]
    %v777 = vld [vmem:[%s1 + $0x17c0] sm:$0xff]
    %v778 = vld [vmem:[%s1 + $0x17c8] sm:$0xff]
    %v779 = vld [vmem:[%s1 + $0x17d0] sm:$0xff]
    %v780 = vld [vmem:[%s1 + $0x17d8] sm:$0xff]
    %v781 = vld [vmem:[%s1 + $0x17e0] sm:$0xff]
    %v782 = vld [vmem:[%s1 + $0x17e8] sm:$0xff]
    %v783 = vld [vmem:[%s1 + $0x17f0] sm:$0xff]
    %v784 = vld [vmem:[%s1 + $0x17f8] sm:$0xff]
    %v785 = vld [vmem:[%s2] sm:$0xff]
    %v786 = vld [vmem:[%s2 + $0x8] sm:$0xff]
    %v787 = vld [vmem:[%s2 + $0x10] sm:$0xff]
    %v788 = vld [vmem:[%s2 + $0x18] sm:$0xff]
    %v789 = vld [vmem:[%s2 + $0x20] sm:$0xff]
    %v790 = vld [vmem:[%s2 + $0x28] sm:$0xff]
    %v797 = vlaneseq
    %v798 = vshrl.u32 %v797, 7
    %v799 = vsub.s32 0, %v798
    %v800 = vrot.slane %v785, %v799
    %v801 = vlaneseq
    %v802 = vshrl.u32 %v801, 7
    %v803 = vsub.s32 1, %v802
    %v804 = vrot.slane %v785, %v803
    %v805 = vlaneseq
    %v806 = vshrl.u32 %v805, 7
    %v807 = vsub.s32 2, %v806
    %v808 = vrot.slane %v785, %v807
    %v809 = vlaneseq
    %v810 = vshrl.u32 %v809, 7
    %v811 = vsub.s32 3, %v810
    %v812 = vrot.slane %v785, %v811
    %v813 = vlaneseq
    %v814 = vshrl.u32 %v813, 7
    %v815 = vsub.s32 4, %v814
    %v816 = vrot.slane %v785, %v815
    %v817 = vlaneseq
    %v818 = vshrl.u32 %v817, 7
    %v819 = vsub.s32 5, %v818
    %v820 = vrot.slane %v785, %v819
    %v821 = vlaneseq
    %v822 = vshrl.u32 %v821, 7
    %v823 = vsub.s32 6, %v822
    %v824 = vrot.slane %v785, %v823
    %v825 = vlaneseq
    %v826 = vshrl.u32 %v825, 7
    %v827 = vsub.s32 7, %v826
    %v828 = vrot.slane %v785, %v827
    %v829 = vlaneseq
    %v830 = vshrl.u32 %v829, 7
    %v831 = vsub.s32 0, %v830
    %v832 = vrot.slane %v786, %v831
    %v833 = vlaneseq
    %v834 = vshrl.u32 %v833, 7
    %v835 = vsub.s32 1, %v834
    %v836 = vrot.slane %v786, %v835
    %v837 = vlaneseq
    %v838 = vshrl.u32 %v837, 7
    %v839 = vsub.s32 2, %v838
    %v840 = vrot.slane %v786, %v839
    %v841 = vlaneseq
    %v842 = vshrl.u32 %v841, 7
    %v843 = vsub.s32 3, %v842
    %v844 = vrot.slane %v786, %v843
    %v845 = vlaneseq
    %v846 = vshrl.u32 %v845, 7
    %v847 = vsub.s32 4, %v846
    %v848 = vrot.slane %v786, %v847
    %v849 = vlaneseq
    %v850 = vshrl.u32 %v849, 7
    %v851 = vsub.s32 5, %v850
    %v852 = vrot.slane %v786, %v851
    %v853 = vlaneseq
    %v854 = vshrl.u32 %v853, 7
    %v855 = vsub.s32 6, %v854
    %v856 = vrot.slane %v786, %v855
    %v857 = vlaneseq
    %v858 = vshrl.u32 %v857, 7
    %v859 = vsub.s32 7, %v858
    %v860 = vrot.slane %v786, %v859
    %v861 = vlaneseq
    %v862 = vshrl.u32 %v861, 7
    %v863 = vsub.s32 0, %v862
    %v864 = vrot.slane %v787, %v863
    %v865 = vlaneseq
    %v866 = vshrl.u32 %v865, 7
    %v867 = vsub.s32 1, %v866
    %v868 = vrot.slane %v787, %v867
    %v869 = vlaneseq
    %v870 = vshrl.u32 %v869, 7
    %v871 = vsub.s32 2, %v870
    %v872 = vrot.slane %v787, %v871
    %v873 = vlaneseq
    %v874 = vshrl.u32 %v873, 7
    %v875 = vsub.s32 3, %v874
    %v876 = vrot.slane %v787, %v875
    %v877 = vlaneseq
    %v878 = vshrl.u32 %v877, 7
    %v879 = vsub.s32 4, %v878
    %v880 = vrot.slane %v787, %v879
    %v881 = vlaneseq
    %v882 = vshrl.u32 %v881, 7
    %v883 = vsub.s32 5, %v882
    %v884 = vrot.slane %v787, %v883
    %v885 = vlaneseq
    %v886 = vshrl.u32 %v885, 7
    %v887 = vsub.s32 6, %v886
    %v888 = vrot.slane %v787, %v887
    %v889 = vlaneseq
    %v890 = vshrl.u32 %v889, 7
    %v891 = vsub.s32 7, %v890
    %v892 = vrot.slane %v787, %v891
    %v893 = vlaneseq
    %v894 = vshrl.u32 %v893, 7
    %v895 = vsub.s32 0, %v894
    %v896 = vrot.slane %v788, %v895
    %v897 = vlaneseq
    %v898 = vshrl.u32 %v897, 7
    %v899 = vsub.s32 1, %v898
    %v900 = vrot.slane %v788, %v899
    %v901 = vlaneseq
    %v902 = vshrl.u32 %v901, 7
    %v903 = vsub.s32 2, %v902
    %v904 = vrot.slane %v788, %v903
    %v905 = vlaneseq
    %v906 = vshrl.u32 %v905, 7
    %v907 = vsub.s32 3, %v906
    %v908 = vrot.slane %v788, %v907
    %v909 = vlaneseq
    %v910 = vshrl.u32 %v909, 7
    %v911 = vsub.s32 4, %v910
    %v912 = vrot.slane %v788, %v911
    %v913 = vlaneseq
    %v914 = vshrl.u32 %v913, 7
    %v915 = vsub.s32 5, %v914
    %v916 = vrot.slane %v788, %v915
    %v917 = vlaneseq
    %v918 = vshrl.u32 %v917, 7
    %v919 = vsub.s32 6, %v918
    %v920 = vrot.slane %v788, %v919
    %v921 = vlaneseq
    %v922 = vshrl.u32 %v921, 7
    %v923 = vsub.s32 7, %v922
    %v924 = vrot.slane %v788, %v923
    %v925 = vlaneseq
    %v926 = vshrl.u32 %v925, 7
    %v927 = vsub.s32 0, %v926
    %v928 = vrot.slane %v789, %v927
    %v929 = vlaneseq
    %v930 = vshrl.u32 %v929, 7
    %v931 = vsub.s32 1, %v930
    %v932 = vrot.slane %v789, %v931
    %v933 = vlaneseq
    %v934 = vshrl.u32 %v933, 7
    %v935 = vsub.s32 2, %v934
    %v936 = vrot.slane %v789, %v935
    %v937 = vlaneseq
    %v938 = vshrl.u32 %v937, 7
    %v939 = vsub.s32 3, %v938
    %v940 = vrot.slane %v789, %v939
    %v941 = vlaneseq
    %v942 = vshrl.u32 %v941, 7
    %v943 = vsub.s32 4, %v942
    %v944 = vrot.slane %v789, %v943
    %v945 = vlaneseq
    %v946 = vshrl.u32 %v945, 7
    %v947 = vsub.s32 5, %v946
    %v948 = vrot.slane %v789, %v947
    %v949 = vlaneseq
    %v950 = vshrl.u32 %v949, 7
    %v951 = vsub.s32 6, %v950
    %v952 = vrot.slane %v789, %v951
    %v953 = vlaneseq
    %v954 = vshrl.u32 %v953, 7
    %v955 = vsub.s32 7, %v954
    %v956 = vrot.slane %v789, %v955
    %v957 = vlaneseq
    %v958 = vshrl.u32 %v957, 7
    %v959 = vsub.s32 0, %v958
    %v960 = vrot.slane %v790, %v959
    %v961 = vlaneseq
    %v962 = vshrl.u32 %v961, 7
    %v963 = vsub.s32 1, %v962
    %v964 = vrot.slane %v790, %v963
    %v965 = vlaneseq
    %v966 = vshrl.u32 %v965, 7
    %v967 = vsub.s32 2, %v966
    %v968 = vrot.slane %v790, %v967
    %v969 = vlaneseq
    %v970 = vshrl.u32 %v969, 7
    %v971 = vsub.s32 3, %v970
    %v972 = vrot.slane %v790, %v971
    %v973 = vlaneseq
    %v974 = vshrl.u32 %v973, 7
    %v975 = vsub.s32 4, %v974
    %v976 = vrot.slane %v790, %v975
    %v977 = vlaneseq
    %v978 = vshrl.u32 %v977, 7
    %v979 = vsub.s32 5, %v978
    %v980 = vrot.slane %v790, %v979
    %v981 = vlaneseq
    %v982 = vshrl.u32 %v981, 7
    %v983 = vsub.s32 6, %v982
    %v984 = vrot.slane %v790, %v983
    %v985 = vlaneseq
    %v986 = vshrl.u32 %v985, 7
    %v987 = vsub.s32 7, %v986
    %v988 = vrot.slane %v790, %v987
    %v1039 = vunpack.c.l.b16 %v15
    %v1040 = vunpack.c.h.b16 %v15
    %v1041 = vunpack.c.l.b16 %v16
    %v1042 = vunpack.c.h.b16 %v16
    %v1043 = vpack.c.b16 %v1041, %v1039
    %v1044 = vpack.c.b16 %v1042, %v1040
    %v1815 = vunpack.c.l.b16 %v17
    %v1816 = vunpack.c.h.b16 %v17
    %v1817 = vunpack.c.l.b16 %v18
    %v1818 = vunpack.c.h.b16 %v18
    %v1819 = vunpack.c.l.b16 %v19
    %v1820 = vunpack.c.h.b16 %v19
    %v1821 = vunpack.c.l.b16 %v20
    %v1822 = vunpack.c.h.b16 %v20
    %v1823 = vunpack.c.l.b16 %v21
    %v1824 = vunpack.c.h.b16 %v21
    %v1825 = vunpack.c.l.b16 %v22
    %v1826 = vunpack.c.h.b16 %v22
    %v1827 = vunpack.c.l.b16 %v23
    %v1828 = vunpack.c.h.b16 %v23
    %v1829 = vunpack.c.l.b16 %v24
    %v1830 = vunpack.c.h.b16 %v24
    %v1831 = vunpack.c.l.b16 %v25
    %v1832 = vunpack.c.h.b16 %v25
    %v1833 = vunpack.c.l.b16 %v26
    %v1834 = vunpack.c.h.b16 %v26
    %v1835 = vunpack.c.l.b16 %v27
    %v1836 = vunpack.c.h.b16 %v27
    %v1837 = vunpack.c.l.b16 %v28
    %v1838 = vunpack.c.h.b16 %v28
    %v1839 = vunpack.c.l.b16 %v29
    %v1840 = vunpack.c.h.b16 %v29
    %v1841 = vunpack.c.l.b16 %v30
    %v1842 = vunpack.c.h.b16 %v30
    %v1843 = vunpack.c.l.b16 %v31
    %v1844 = vunpack.c.h.b16 %v31
    %v1845 = vunpack.c.l.b16 %v32
    %v1846 = vunpack.c.h.b16 %v32
    %v1847 = vunpack.c.l.b16 %v33
    %v1848 = vunpack.c.h.b16 %v33
    %v1849 = vunpack.c.l.b16 %v34
    %v1850 = vunpack.c.h.b16 %v34
    %v1851 = vunpack.c.l.b16 %v35
    %v1852 = vunpack.c.h.b16 %v35
    %v1853 = vunpack.c.l.b16 %v36
    %v1854 = vunpack.c.h.b16 %v36
    %v1855 = vunpack.c.l.b16 %v37
    %v1856 = vunpack.c.h.b16 %v37
    %v1857 = vunpack.c.l.b16 %v38
    %v1858 = vunpack.c.h.b16 %v38
    %v1859 = vunpack.c.l.b16 %v39
    %v1860 = vunpack.c.h.b16 %v39
    %v1861 = vunpack.c.l.b16 %v40
    %v1862 = vunpack.c.h.b16 %v40
    %v1863 = vunpack.c.l.b16 %v41
    %v1864 = vunpack.c.h.b16 %v41
    %v1865 = vunpack.c.l.b16 %v42
    %v1866 = vunpack.c.h.b16 %v42
    %v1867 = vunpack.c.l.b16 %v43
    %v1868 = vunpack.c.h.b16 %v43
    %v1869 = vunpack.c.l.b16 %v44
    %v1870 = vunpack.c.h.b16 %v44
    %v1871 = vunpack.c.l.b16 %v45
    %v1872 = vunpack.c.h.b16 %v45
    %v1873 = vunpack.c.l.b16 %v46
    %v1874 = vunpack.c.h.b16 %v46
    %v1875 = vunpack.c.l.b16 %v47
    %v1876 = vunpack.c.h.b16 %v47
    %v1877 = vunpack.c.l.b16 %v48
    %v1878 = vunpack.c.h.b16 %v48
    %v1879 = vunpack.c.l.b16 %v49
    %v1880 = vunpack.c.h.b16 %v49
    %v1881 = vunpack.c.l.b16 %v50
    %v1882 = vunpack.c.h.b16 %v50
    %v1883 = vunpack.c.l.b16 %v51
    %v1884 = vunpack.c.h.b16 %v51
    %v1885 = vunpack.c.l.b16 %v52
    %v1886 = vunpack.c.h.b16 %v52
    %v1887 = vunpack.c.l.b16 %v53
    %v1888 = vunpack.c.h.b16 %v53
    %v1889 = vunpack.c.l.b16 %v54
    %v1890 = vunpack.c.h.b16 %v54
    %v1891 = vunpack.c.l.b16 %v55
    %v1892 = vunpack.c.h.b16 %v55
    %v1893 = vunpack.c.l.b16 %v56
    %v1894 = vunpack.c.h.b16 %v56
    %v1895 = vunpack.c.l.b16 %v57
    %v1896 = vunpack.c.h.b16 %v57
    %v1897 = vunpack.c.l.b16 %v58
    %v1898 = vunpack.c.h.b16 %v58
    %v1899 = vunpack.c.l.b16 %v59
    %v1900 = vunpack.c.h.b16 %v59
    %v1901 = vunpack.c.l.b16 %v60
    %v1902 = vunpack.c.h.b16 %v60
    %v1903 = vunpack.c.l.b16 %v61
    %v1904 = vunpack.c.h.b16 %v61
    %v1905 = vunpack.c.l.b16 %v62
    %v1906 = vunpack.c.h.b16 %v62
    %v1907 = vunpack.c.l.b16 %v63
    %v1908 = vunpack.c.h.b16 %v63
    %v1909 = vunpack.c.l.b16 %v64
    %v1910 = vunpack.c.h.b16 %v64
    %v1911 = vunpack.c.l.b16 %v65
    %v1912 = vunpack.c.h.b16 %v65
    %v1913 = vunpack.c.l.b16 %v66
    %v1914 = vunpack.c.h.b16 %v66
    %v1915 = vunpack.c.l.b16 %v67
    %v1916 = vunpack.c.h.b16 %v67
    %v1917 = vunpack.c.l.b16 %v68
    %v1918 = vunpack.c.h.b16 %v68
    %v1919 = vunpack.c.l.b16 %v69
    %v1920 = vunpack.c.h.b16 %v69
    %v1921 = vunpack.c.l.b16 %v70
    %v1922 = vunpack.c.h.b16 %v70
    %v1923 = vunpack.c.l.b16 %v71
    %v1924 = vunpack.c.h.b16 %v71
    %v1925 = vunpack.c.l.b16 %v72
    %v1926 = vunpack.c.h.b16 %v72
    %v1927 = vunpack.c.l.b16 %v73
    %v1928 = vunpack.c.h.b16 %v73
    %v1929 = vunpack.c.l.b16 %v74
    %v1930 = vunpack.c.h.b16 %v74
    %v1931 = vunpack.c.l.b16 %v75
    %v1932 = vunpack.c.h.b16 %v75
    %v1933 = vunpack.c.l.b16 %v76
    %v1934 = vunpack.c.h.b16 %v76
    %v1935 = vunpack.c.l.b16 %v77
    %v1936 = vunpack.c.h.b16 %v77
    %v1937 = vunpack.c.l.b16 %v78
    %v1938 = vunpack.c.h.b16 %v78
    %v1939 = vunpack.c.l.b16 %v79
    %v1940 = vunpack.c.h.b16 %v79
    %v1941 = vunpack.c.l.b16 %v80
    %v1942 = vunpack.c.h.b16 %v80
    %v1943 = vunpack.c.l.b16 %v81
    %v1944 = vunpack.c.h.b16 %v81
    %v1945 = vunpack.c.l.b16 %v82
    %v1946 = vunpack.c.h.b16 %v82
    %v1947 = vunpack.c.l.b16 %v83
    %v1948 = vunpack.c.h.b16 %v83
    %v1949 = vunpack.c.l.b16 %v84
    %v1950 = vunpack.c.h.b16 %v84
    %v1951 = vunpack.c.l.b16 %v85
    %v1952 = vunpack.c.h.b16 %v85
    %v1953 = vunpack.c.l.b16 %v86
    %v1954 = vunpack.c.h.b16 %v86
    %v1955 = vunpack.c.l.b16 %v87
    %v1956 = vunpack.c.h.b16 %v87
    %v1957 = vunpack.c.l.b16 %v88
    %v1958 = vunpack.c.h.b16 %v88
    %v1959 = vunpack.c.l.b16 %v89
    %v1960 = vunpack.c.h.b16 %v89
    %v1961 = vunpack.c.l.b16 %v90
    %v1962 = vunpack.c.h.b16 %v90
    %v1963 = vunpack.c.l.b16 %v91
    %v1964 = vunpack.c.h.b16 %v91
    %v1965 = vunpack.c.l.b16 %v92
    %v1966 = vunpack.c.h.b16 %v92
    %v1967 = vunpack.c.l.b16 %v93
    %v1968 = vunpack.c.h.b16 %v93
    %v1969 = vunpack.c.l.b16 %v94
    %v1970 = vunpack.c.h.b16 %v94
    %v1971 = vunpack.c.l.b16 %v95
    %v1972 = vunpack.c.h.b16 %v95
    %v1973 = vunpack.c.l.b16 %v96
    %v1974 = vunpack.c.h.b16 %v96
    %v1975 = vunpack.c.l.b16 %v97
    %v1976 = vunpack.c.h.b16 %v97
    %v1977 = vunpack.c.l.b16 %v98
    %v1978 = vunpack.c.h.b16 %v98
    %v1979 = vunpack.c.l.b16 %v99
    %v1980 = vunpack.c.h.b16 %v99
    %v1981 = vunpack.c.l.b16 %v100
    %v1982 = vunpack.c.h.b16 %v100
    %v1983 = vunpack.c.l.b16 %v101
    %v1984 = vunpack.c.h.b16 %v101
    %v1985 = vunpack.c.l.b16 %v102
    %v1986 = vunpack.c.h.b16 %v102
    %v1987 = vunpack.c.l.b16 %v103
    %v1988 = vunpack.c.h.b16 %v103
    %v1989 = vunpack.c.l.b16 %v104
    %v1990 = vunpack.c.h.b16 %v104
    %v1991 = vunpack.c.l.b16 %v105
    %v1992 = vunpack.c.h.b16 %v105
    %v1993 = vunpack.c.l.b16 %v106
    %v1994 = vunpack.c.h.b16 %v106
    %v1995 = vunpack.c.l.b16 %v107
    %v1996 = vunpack.c.h.b16 %v107
    %v1997 = vunpack.c.l.b16 %v108
    %v1998 = vunpack.c.h.b16 %v108
    %v1999 = vunpack.c.l.b16 %v109
    %v2000 = vunpack.c.h.b16 %v109
    %v2001 = vunpack.c.l.b16 %v110
    %v2002 = vunpack.c.h.b16 %v110
    %v2003 = vunpack.c.l.b16 %v111
    %v2004 = vunpack.c.h.b16 %v111
    %v2005 = vunpack.c.l.b16 %v112
    %v2006 = vunpack.c.h.b16 %v112
    %v2007 = vunpack.c.l.b16 %v113
    %v2008 = vunpack.c.h.b16 %v113
    %v2009 = vunpack.c.l.b16 %v114
    %v2010 = vunpack.c.h.b16 %v114
    %v2011 = vunpack.c.l.b16 %v115
    %v2012 = vunpack.c.h.b16 %v115
    %v2013 = vunpack.c.l.b16 %v116
    %v2014 = vunpack.c.h.b16 %v116
    %v2015 = vunpack.c.l.b16 %v117
    %v2016 = vunpack.c.h.b16 %v117
    %v2017 = vunpack.c.l.b16 %v118
    %v2018 = vunpack.c.h.b16 %v118
    %v2019 = vunpack.c.l.b16 %v119
    %v2020 = vunpack.c.h.b16 %v119
    %v2021 = vunpack.c.l.b16 %v120
    %v2022 = vunpack.c.h.b16 %v120
    %v2023 = vunpack.c.l.b16 %v121
    %v2024 = vunpack.c.h.b16 %v121
    %v2025 = vunpack.c.l.b16 %v122
    %v2026 = vunpack.c.h.b16 %v122
    %v2027 = vunpack.c.l.b16 %v123
    %v2028 = vunpack.c.h.b16 %v123
    %v2029 = vunpack.c.l.b16 %v124
    %v2030 = vunpack.c.h.b16 %v124
    %v2031 = vunpack.c.l.b16 %v125
    %v2032 = vunpack.c.h.b16 %v125
    %v2033 = vunpack.c.l.b16 %v126
    %v2034 = vunpack.c.h.b16 %v126
    %v2035 = vunpack.c.l.b16 %v127
    %v2036 = vunpack.c.h.b16 %v127
    %v2037 = vunpack.c.l.b16 %v128
    %v2038 = vunpack.c.h.b16 %v128
    %v2039 = vunpack.c.l.b16 %v129
    %v2040 = vunpack.c.h.b16 %v129
    %v2041 = vunpack.c.l.b16 %v130
    %v2042 = vunpack.c.h.b16 %v130
    %v2043 = vunpack.c.l.b16 %v131
    %v2044 = vunpack.c.h.b16 %v131
    %v2045 = vunpack.c.l.b16 %v132
    %v2046 = vunpack.c.h.b16 %v132
    %v2047 = vunpack.c.l.b16 %v133
    %v2048 = vunpack.c.h.b16 %v133
    %v2049 = vunpack.c.l.b16 %v134
    %v2050 = vunpack.c.h.b16 %v134
    %v2051 = vunpack.c.l.b16 %v135
    %v2052 = vunpack.c.h.b16 %v135
    %v2053 = vunpack.c.l.b16 %v136
    %v2054 = vunpack.c.h.b16 %v136
    %v2055 = vunpack.c.l.b16 %v137
    %v2056 = vunpack.c.h.b16 %v137
    %v2057 = vunpack.c.l.b16 %v138
    %v2058 = vunpack.c.h.b16 %v138
    %v2059 = vunpack.c.l.b16 %v139
    %v2060 = vunpack.c.h.b16 %v139
    %v2061 = vunpack.c.l.b16 %v140
    %v2062 = vunpack.c.h.b16 %v140
    %v2063 = vunpack.c.l.b16 %v141
    %v2064 = vunpack.c.h.b16 %v141
    %v2065 = vunpack.c.l.b16 %v142
    %v2066 = vunpack.c.h.b16 %v142
    %v2067 = vunpack.c.l.b16 %v143
    %v2068 = vunpack.c.h.b16 %v143
    %v2069 = vunpack.c.l.b16 %v144
    %v2070 = vunpack.c.h.b16 %v144
    %v2071 = vunpack.c.l.b16 %v145
    %v2072 = vunpack.c.h.b16 %v145
    %v2073 = vunpack.c.l.b16 %v146
    %v2074 = vunpack.c.h.b16 %v146
    %v2075 = vunpack.c.l.b16 %v147
    %v2076 = vunpack.c.h.b16 %v147
    %v2077 = vunpack.c.l.b16 %v148
    %v2078 = vunpack.c.h.b16 %v148
    %v2079 = vunpack.c.l.b16 %v149
    %v2080 = vunpack.c.h.b16 %v149
    %v2081 = vunpack.c.l.b16 %v150
    %v2082 = vunpack.c.h.b16 %v150
    %v2083 = vunpack.c.l.b16 %v151
    %v2084 = vunpack.c.h.b16 %v151
    %v2085 = vunpack.c.l.b16 %v152
    %v2086 = vunpack.c.h.b16 %v152
    %v2087 = vunpack.c.l.b16 %v153
    %v2088 = vunpack.c.h.b16 %v153
    %v2089 = vunpack.c.l.b16 %v154
    %v2090 = vunpack.c.h.b16 %v154
    %v2091 = vunpack.c.l.b16 %v155
    %v2092 = vunpack.c.h.b16 %v155
    %v2093 = vunpack.c.l.b16 %v156
    %v2094 = vunpack.c.h.b16 %v156
    %v2095 = vunpack.c.l.b16 %v157
    %v2096 = vunpack.c.h.b16 %v157
    %v2097 = vunpack.c.l.b16 %v158
    %v2098 = vunpack.c.h.b16 %v158
    %v2099 = vunpack.c.l.b16 %v159
    %v2100 = vunpack.c.h.b16 %v159
    %v2101 = vunpack.c.l.b16 %v160
    %v2102 = vunpack.c.h.b16 %v160
    %v2103 = vunpack.c.l.b16 %v161
    %v2104 = vunpack.c.h.b16 %v161
    %v2105 = vunpack.c.l.b16 %v162
    %v2106 = vunpack.c.h.b16 %v162
    %v2107 = vunpack.c.l.b16 %v163
    %v2108 = vunpack.c.h.b16 %v163
    %v2109 = vunpack.c.l.b16 %v164
    %v2110 = vunpack.c.h.b16 %v164
    %v2111 = vunpack.c.l.b16 %v165
    %v2112 = vunpack.c.h.b16 %v165
    %v2113 = vunpack.c.l.b16 %v166
    %v2114 = vunpack.c.h.b16 %v166
    %v2115 = vunpack.c.l.b16 %v167
    %v2116 = vunpack.c.h.b16 %v167
    %v2117 = vunpack.c.l.b16 %v168
    %v2118 = vunpack.c.h.b16 %v168
    %v2119 = vunpack.c.l.b16 %v169
    %v2120 = vunpack.c.h.b16 %v169
    %v2121 = vunpack.c.l.b16 %v170
    %v2122 = vunpack.c.h.b16 %v170
    %v2123 = vunpack.c.l.b16 %v171
    %v2124 = vunpack.c.h.b16 %v171
    %v2125 = vunpack.c.l.b16 %v172
    %v2126 = vunpack.c.h.b16 %v172
    %v2127 = vunpack.c.l.b16 %v173
    %v2128 = vunpack.c.h.b16 %v173
    %v2129 = vunpack.c.l.b16 %v174
    %v2130 = vunpack.c.h.b16 %v174
    %v2131 = vunpack.c.l.b16 %v175
    %v2132 = vunpack.c.h.b16 %v175
    %v2133 = vunpack.c.l.b16 %v176
    %v2134 = vunpack.c.h.b16 %v176
    %v2135 = vunpack.c.l.b16 %v177
    %v2136 = vunpack.c.h.b16 %v177
    %v2137 = vunpack.c.l.b16 %v178
    %v2138 = vunpack.c.h.b16 %v178
    %v2139 = vunpack.c.l.b16 %v179
    %v2140 = vunpack.c.h.b16 %v179
    %v2141 = vunpack.c.l.b16 %v180
    %v2142 = vunpack.c.h.b16 %v180
    %v2143 = vunpack.c.l.b16 %v181
    %v2144 = vunpack.c.h.b16 %v181
    %v2145 = vunpack.c.l.b16 %v182
    %v2146 = vunpack.c.h.b16 %v182
    %v2147 = vunpack.c.l.b16 %v183
    %v2148 = vunpack.c.h.b16 %v183
    %v2149 = vunpack.c.l.b16 %v184
    %v2150 = vunpack.c.h.b16 %v184
    %v2151 = vunpack.c.l.b16 %v185
    %v2152 = vunpack.c.h.b16 %v185
    %v2153 = vunpack.c.l.b16 %v186
    %v2154 = vunpack.c.h.b16 %v186
    %v2155 = vunpack.c.l.b16 %v187
    %v2156 = vunpack.c.h.b16 %v187
    %v2157 = vunpack.c.l.b16 %v188
    %v2158 = vunpack.c.h.b16 %v188
    %v2159 = vunpack.c.l.b16 %v189
    %v2160 = vunpack.c.h.b16 %v189
    %v2161 = vunpack.c.l.b16 %v190
    %v2162 = vunpack.c.h.b16 %v190
    %v2163 = vunpack.c.l.b16 %v191
    %v2164 = vunpack.c.h.b16 %v191
    %v2165 = vunpack.c.l.b16 %v192
    %v2166 = vunpack.c.h.b16 %v192
    %v2167 = vunpack.c.l.b16 %v193
    %v2168 = vunpack.c.h.b16 %v193
    %v2169 = vunpack.c.l.b16 %v194
    %v2170 = vunpack.c.h.b16 %v194
    %v2171 = vunpack.c.l.b16 %v195
    %v2172 = vunpack.c.h.b16 %v195
    %v2173 = vunpack.c.l.b16 %v196
    %v2174 = vunpack.c.h.b16 %v196
    %v2175 = vunpack.c.l.b16 %v197
    %v2176 = vunpack.c.h.b16 %v197
    %v2177 = vunpack.c.l.b16 %v198
    %v2178 = vunpack.c.h.b16 %v198
    %v2179 = vunpack.c.l.b16 %v199
    %v2180 = vunpack.c.h.b16 %v199
    %v2181 = vunpack.c.l.b16 %v200
    %v2182 = vunpack.c.h.b16 %v200
    %v2183 = vunpack.c.l.b16 %v201
    %v2184 = vunpack.c.h.b16 %v201
    %v2185 = vunpack.c.l.b16 %v202
    %v2186 = vunpack.c.h.b16 %v202
    %v2187 = vunpack.c.l.b16 %v203
    %v2188 = vunpack.c.h.b16 %v203
    %v2189 = vunpack.c.l.b16 %v204
    %v2190 = vunpack.c.h.b16 %v204
    %v2191 = vunpack.c.l.b16 %v205
    %v2192 = vunpack.c.h.b16 %v205
    %v2193 = vunpack.c.l.b16 %v206
    %v2194 = vunpack.c.h.b16 %v206
    %v2195 = vunpack.c.l.b16 %v207
    %v2196 = vunpack.c.h.b16 %v207
    %v2197 = vunpack.c.l.b16 %v208
    %v2198 = vunpack.c.h.b16 %v208
    %v2199 = vunpack.c.l.b16 %v209
    %v2200 = vunpack.c.h.b16 %v209
    %v2201 = vunpack.c.l.b16 %v210
    %v2202 = vunpack.c.h.b16 %v210
    %v2203 = vunpack.c.l.b16 %v211
    %v2204 = vunpack.c.h.b16 %v211
    %v2205 = vunpack.c.l.b16 %v212
    %v2206 = vunpack.c.h.b16 %v212
    %v2207 = vunpack.c.l.b16 %v213
    %v2208 = vunpack.c.h.b16 %v213
    %v2209 = vunpack.c.l.b16 %v214
    %v2210 = vunpack.c.h.b16 %v214
    %v2211 = vunpack.c.l.b16 %v215
    %v2212 = vunpack.c.h.b16 %v215
    %v2213 = vunpack.c.l.b16 %v216
    %v2214 = vunpack.c.h.b16 %v216
    %v2215 = vunpack.c.l.b16 %v217
    %v2216 = vunpack.c.h.b16 %v217
    %v2217 = vunpack.c.l.b16 %v218
    %v2218 = vunpack.c.h.b16 %v218
    %v2219 = vunpack.c.l.b16 %v219
    %v2220 = vunpack.c.h.b16 %v219
    %v2221 = vunpack.c.l.b16 %v220
    %v2222 = vunpack.c.h.b16 %v220
    %v2223 = vunpack.c.l.b16 %v221
    %v2224 = vunpack.c.h.b16 %v221
    %v2225 = vunpack.c.l.b16 %v222
    %v2226 = vunpack.c.h.b16 %v222
    %v2227 = vunpack.c.l.b16 %v223
    %v2228 = vunpack.c.h.b16 %v223
    %v2229 = vunpack.c.l.b16 %v224
    %v2230 = vunpack.c.h.b16 %v224
    %v2231 = vunpack.c.l.b16 %v225
    %v2232 = vunpack.c.h.b16 %v225
    %v2233 = vunpack.c.l.b16 %v226
    %v2234 = vunpack.c.h.b16 %v226
    %v2235 = vunpack.c.l.b16 %v227
    %v2236 = vunpack.c.h.b16 %v227
    %v2237 = vunpack.c.l.b16 %v228
    %v2238 = vunpack.c.h.b16 %v228
    %v2239 = vunpack.c.l.b16 %v229
    %v2240 = vunpack.c.h.b16 %v229
    %v2241 = vunpack.c.l.b16 %v230
    %v2242 = vunpack.c.h.b16 %v230
    %v2243 = vunpack.c.l.b16 %v231
    %v2244 = vunpack.c.h.b16 %v231
    %v2245 = vunpack.c.l.b16 %v232
    %v2246 = vunpack.c.h.b16 %v232
    %v2247 = vunpack.c.l.b16 %v233
    %v2248 = vunpack.c.h.b16 %v233
    %v2249 = vunpack.c.l.b16 %v234
    %v2250 = vunpack.c.h.b16 %v234
    %v2251 = vunpack.c.l.b16 %v235
    %v2252 = vunpack.c.h.b16 %v235
    %v2253 = vunpack.c.l.b16 %v236
    %v2254 = vunpack.c.h.b16 %v236
    %v2255 = vunpack.c.l.b16 %v237
    %v2256 = vunpack.c.h.b16 %v237
    %v2257 = vunpack.c.l.b16 %v238
    %v2258 = vunpack.c.h.b16 %v238
    %v2259 = vunpack.c.l.b16 %v239
    %v2260 = vunpack.c.h.b16 %v239
    %v2261 = vunpack.c.l.b16 %v240
    %v2262 = vunpack.c.h.b16 %v240
    %v2263 = vunpack.c.l.b16 %v241
    %v2264 = vunpack.c.h.b16 %v241
    %v2265 = vunpack.c.l.b16 %v242
    %v2266 = vunpack.c.h.b16 %v242
    %v2267 = vunpack.c.l.b16 %v243
    %v2268 = vunpack.c.h.b16 %v243
    %v2269 = vunpack.c.l.b16 %v244
    %v2270 = vunpack.c.h.b16 %v244
    %v2271 = vunpack.c.l.b16 %v245
    %v2272 = vunpack.c.h.b16 %v245
    %v2273 = vunpack.c.l.b16 %v246
    %v2274 = vunpack.c.h.b16 %v246
    %v2275 = vunpack.c.l.b16 %v247
    %v2276 = vunpack.c.h.b16 %v247
    %v2277 = vunpack.c.l.b16 %v248
    %v2278 = vunpack.c.h.b16 %v248
    %v2279 = vunpack.c.l.b16 %v249
    %v2280 = vunpack.c.h.b16 %v249
    %v2281 = vunpack.c.l.b16 %v250
    %v2282 = vunpack.c.h.b16 %v250
    %v2283 = vunpack.c.l.b16 %v251
    %v2284 = vunpack.c.h.b16 %v251
    %v2285 = vunpack.c.l.b16 %v252
    %v2286 = vunpack.c.h.b16 %v252
    %v2287 = vunpack.c.l.b16 %v253
    %v2288 = vunpack.c.h.b16 %v253
    %v2289 = vunpack.c.l.b16 %v254
    %v2290 = vunpack.c.h.b16 %v254
    %v2291 = vunpack.c.l.b16 %v255
    %v2292 = vunpack.c.h.b16 %v255
    %v2293 = vunpack.c.l.b16 %v256
    %v2294 = vunpack.c.h.b16 %v256
    %v2295 = vunpack.c.l.b16 %v257
    %v2296 = vunpack.c.h.b16 %v257
    %v2297 = vunpack.c.l.b16 %v258
    %v2298 = vunpack.c.h.b16 %v258
    %v2299 = vunpack.c.l.b16 %v259
    %v2300 = vunpack.c.h.b16 %v259
    %v2301 = vunpack.c.l.b16 %v260
    %v2302 = vunpack.c.h.b16 %v260
    %v2303 = vunpack.c.l.b16 %v261
    %v2304 = vunpack.c.h.b16 %v261
    %v2305 = vunpack.c.l.b16 %v262
    %v2306 = vunpack.c.h.b16 %v262
    %v2307 = vunpack.c.l.b16 %v263
    %v2308 = vunpack.c.h.b16 %v263
    %v2309 = vunpack.c.l.b16 %v264
    %v2310 = vunpack.c.h.b16 %v264
    %v2311 = vunpack.c.l.b16 %v265
    %v2312 = vunpack.c.h.b16 %v265
    %v2313 = vunpack.c.l.b16 %v266
    %v2314 = vunpack.c.h.b16 %v266
    %v2315 = vunpack.c.l.b16 %v267
    %v2316 = vunpack.c.h.b16 %v267
    %v2317 = vunpack.c.l.b16 %v268
    %v2318 = vunpack.c.h.b16 %v268
    %v2319 = vunpack.c.l.b16 %v269
    %v2320 = vunpack.c.h.b16 %v269
    %v2321 = vunpack.c.l.b16 %v270
    %v2322 = vunpack.c.h.b16 %v270
    %v2323 = vunpack.c.l.b16 %v271
    %v2324 = vunpack.c.h.b16 %v271
    %v2325 = vunpack.c.l.b16 %v272
    %v2326 = vunpack.c.h.b16 %v272
    %v2327 = vunpack.c.l.b16 %v273
    %v2328 = vunpack.c.h.b16 %v273
    %v2329 = vunpack.c.l.b16 %v274
    %v2330 = vunpack.c.h.b16 %v274
    %v2331 = vunpack.c.l.b16 %v275
    %v2332 = vunpack.c.h.b16 %v275
    %v2333 = vunpack.c.l.b16 %v276
    %v2334 = vunpack.c.h.b16 %v276
    %v2335 = vunpack.c.l.b16 %v277
    %v2336 = vunpack.c.h.b16 %v277
    %v2337 = vunpack.c.l.b16 %v278
    %v2338 = vunpack.c.h.b16 %v278
    %v2339 = vunpack.c.l.b16 %v279
    %v2340 = vunpack.c.h.b16 %v279
    %v2341 = vunpack.c.l.b16 %v280
    %v2342 = vunpack.c.h.b16 %v280
    %v2343 = vunpack.c.l.b16 %v281
    %v2344 = vunpack.c.h.b16 %v281
    %v2345 = vunpack.c.l.b16 %v282
    %v2346 = vunpack.c.h.b16 %v282
    %v2347 = vunpack.c.l.b16 %v283
    %v2348 = vunpack.c.h.b16 %v283
    %v2349 = vunpack.c.l.b16 %v284
    %v2350 = vunpack.c.h.b16 %v284
    %v2351 = vunpack.c.l.b16 %v285
    %v2352 = vunpack.c.h.b16 %v285
    %v2353 = vunpack.c.l.b16 %v286
    %v2354 = vunpack.c.h.b16 %v286
    %v2355 = vunpack.c.l.b16 %v287
    %v2356 = vunpack.c.h.b16 %v287
    %v2357 = vunpack.c.l.b16 %v288
    %v2358 = vunpack.c.h.b16 %v288
    %v2359 = vunpack.c.l.b16 %v289
    %v2360 = vunpack.c.h.b16 %v289
    %v2361 = vunpack.c.l.b16 %v290
    %v2362 = vunpack.c.h.b16 %v290
    %v2363 = vunpack.c.l.b16 %v291
    %v2364 = vunpack.c.h.b16 %v291
    %v2365 = vunpack.c.l.b16 %v292
    %v2366 = vunpack.c.h.b16 %v292
    %v2367 = vunpack.c.l.b16 %v293
    %v2368 = vunpack.c.h.b16 %v293
    %v2369 = vunpack.c.l.b16 %v294
    %v2370 = vunpack.c.h.b16 %v294
    %v2371 = vunpack.c.l.b16 %v295
    %v2372 = vunpack.c.h.b16 %v295
    %v2373 = vunpack.c.l.b16 %v296
    %v2374 = vunpack.c.h.b16 %v296
    %v2375 = vunpack.c.l.b16 %v297
    %v2376 = vunpack.c.h.b16 %v297
    %v2377 = vunpack.c.l.b16 %v298
    %v2378 = vunpack.c.h.b16 %v298
    %v2379 = vunpack.c.l.b16 %v299
    %v2380 = vunpack.c.h.b16 %v299
    %v2381 = vunpack.c.l.b16 %v300
    %v2382 = vunpack.c.h.b16 %v300
    %v2383 = vunpack.c.l.b16 %v301
    %v2384 = vunpack.c.h.b16 %v301
    %v2385 = vunpack.c.l.b16 %v302
    %v2386 = vunpack.c.h.b16 %v302
    %v2387 = vunpack.c.l.b16 %v303
    %v2388 = vunpack.c.h.b16 %v303
    %v2389 = vunpack.c.l.b16 %v304
    %v2390 = vunpack.c.h.b16 %v304
    %v2391 = vunpack.c.l.b16 %v305
    %v2392 = vunpack.c.h.b16 %v305
    %v2393 = vunpack.c.l.b16 %v306
    %v2394 = vunpack.c.h.b16 %v306
    %v2395 = vunpack.c.l.b16 %v307
    %v2396 = vunpack.c.h.b16 %v307
    %v2397 = vunpack.c.l.b16 %v308
    %v2398 = vunpack.c.h.b16 %v308
    %v2399 = vunpack.c.l.b16 %v309
    %v2400 = vunpack.c.h.b16 %v309
    %v2401 = vunpack.c.l.b16 %v310
    %v2402 = vunpack.c.h.b16 %v310
    %v2403 = vunpack.c.l.b16 %v311
    %v2404 = vunpack.c.h.b16 %v311
    %v2405 = vunpack.c.l.b16 %v312
    %v2406 = vunpack.c.h.b16 %v312
    %v2407 = vunpack.c.l.b16 %v313
    %v2408 = vunpack.c.h.b16 %v313
    %v2409 = vunpack.c.l.b16 %v314
    %v2410 = vunpack.c.h.b16 %v314
    %v2411 = vunpack.c.l.b16 %v315
    %v2412 = vunpack.c.h.b16 %v315
    %v2413 = vunpack.c.l.b16 %v316
    %v2414 = vunpack.c.h.b16 %v316
    %v2415 = vunpack.c.l.b16 %v317
    %v2416 = vunpack.c.h.b16 %v317
    %v2417 = vunpack.c.l.b16 %v318
    %v2418 = vunpack.c.h.b16 %v318
    %v2419 = vunpack.c.l.b16 %v319
    %v2420 = vunpack.c.h.b16 %v319
    %v2421 = vunpack.c.l.b16 %v320
    %v2422 = vunpack.c.h.b16 %v320
    %v2423 = vunpack.c.l.b16 %v321
    %v2424 = vunpack.c.h.b16 %v321
    %v2425 = vunpack.c.l.b16 %v322
    %v2426 = vunpack.c.h.b16 %v322
    %v2427 = vunpack.c.l.b16 %v323
    %v2428 = vunpack.c.h.b16 %v323
    %v2429 = vunpack.c.l.b16 %v324
    %v2430 = vunpack.c.h.b16 %v324
    %v2431 = vunpack.c.l.b16 %v325
    %v2432 = vunpack.c.h.b16 %v325
    %v2433 = vunpack.c.l.b16 %v326
    %v2434 = vunpack.c.h.b16 %v326
    %v2435 = vunpack.c.l.b16 %v327
    %v2436 = vunpack.c.h.b16 %v327
    %v2437 = vunpack.c.l.b16 %v328
    %v2438 = vunpack.c.h.b16 %v328
    %v2439 = vunpack.c.l.b16 %v329
    %v2440 = vunpack.c.h.b16 %v329
    %v2441 = vunpack.c.l.b16 %v330
    %v2442 = vunpack.c.h.b16 %v330
    %v2443 = vunpack.c.l.b16 %v331
    %v2444 = vunpack.c.h.b16 %v331
    %v2445 = vunpack.c.l.b16 %v332
    %v2446 = vunpack.c.h.b16 %v332
    %v2447 = vunpack.c.l.b16 %v333
    %v2448 = vunpack.c.h.b16 %v333
    %v2449 = vunpack.c.l.b16 %v334
    %v2450 = vunpack.c.h.b16 %v334
    %v2451 = vunpack.c.l.b16 %v335
    %v2452 = vunpack.c.h.b16 %v335
    %v2453 = vunpack.c.l.b16 %v336
    %v2454 = vunpack.c.h.b16 %v336
    %v2455 = vunpack.c.l.b16 %v337
    %v2456 = vunpack.c.h.b16 %v337
    %v2457 = vunpack.c.l.b16 %v338
    %v2458 = vunpack.c.h.b16 %v338
    %v2459 = vunpack.c.l.b16 %v339
    %v2460 = vunpack.c.h.b16 %v339
    %v2461 = vunpack.c.l.b16 %v340
    %v2462 = vunpack.c.h.b16 %v340
    %v2463 = vunpack.c.l.b16 %v341
    %v2464 = vunpack.c.h.b16 %v341
    %v2465 = vunpack.c.l.b16 %v342
    %v2466 = vunpack.c.h.b16 %v342
    %v2467 = vunpack.c.l.b16 %v343
    %v2468 = vunpack.c.h.b16 %v343
    %v2469 = vunpack.c.l.b16 %v344
    %v2470 = vunpack.c.h.b16 %v344
    %v2471 = vunpack.c.l.b16 %v345
    %v2472 = vunpack.c.h.b16 %v345
    %v2473 = vunpack.c.l.b16 %v346
    %v2474 = vunpack.c.h.b16 %v346
    %v2475 = vunpack.c.l.b16 %v347
    %v2476 = vunpack.c.h.b16 %v347
    %v2477 = vunpack.c.l.b16 %v348
    %v2478 = vunpack.c.h.b16 %v348
    %v2479 = vunpack.c.l.b16 %v349
    %v2480 = vunpack.c.h.b16 %v349
    %v2481 = vunpack.c.l.b16 %v350
    %v2482 = vunpack.c.h.b16 %v350
    %v2483 = vunpack.c.l.b16 %v351
    %v2484 = vunpack.c.h.b16 %v351
    %v2485 = vunpack.c.l.b16 %v352
    %v2486 = vunpack.c.h.b16 %v352
    %v2487 = vunpack.c.l.b16 %v353
    %v2488 = vunpack.c.h.b16 %v353
    %v2489 = vunpack.c.l.b16 %v354
    %v2490 = vunpack.c.h.b16 %v354
    %v2491 = vunpack.c.l.b16 %v355
    %v2492 = vunpack.c.h.b16 %v355
    %v2493 = vunpack.c.l.b16 %v356
    %v2494 = vunpack.c.h.b16 %v356
    %v2495 = vunpack.c.l.b16 %v357
    %v2496 = vunpack.c.h.b16 %v357
    %v2497 = vunpack.c.l.b16 %v358
    %v2498 = vunpack.c.h.b16 %v358
    %v2499 = vunpack.c.l.b16 %v359
    %v2500 = vunpack.c.h.b16 %v359
    %v2501 = vunpack.c.l.b16 %v360
    %v2502 = vunpack.c.h.b16 %v360
    %v2503 = vunpack.c.l.b16 %v361
    %v2504 = vunpack.c.h.b16 %v361
    %v2505 = vunpack.c.l.b16 %v362
    %v2506 = vunpack.c.h.b16 %v362
    %v2507 = vunpack.c.l.b16 %v363
    %v2508 = vunpack.c.h.b16 %v363
    %v2509 = vunpack.c.l.b16 %v364
    %v2510 = vunpack.c.h.b16 %v364
    %v2511 = vunpack.c.l.b16 %v365
    %v2512 = vunpack.c.h.b16 %v365
    %v2513 = vunpack.c.l.b16 %v366
    %v2514 = vunpack.c.h.b16 %v366
    %v2515 = vunpack.c.l.b16 %v367
    %v2516 = vunpack.c.h.b16 %v367
    %v2517 = vunpack.c.l.b16 %v368
    %v2518 = vunpack.c.h.b16 %v368
    %v2519 = vunpack.c.l.b16 %v369
    %v2520 = vunpack.c.h.b16 %v369
    %v2521 = vunpack.c.l.b16 %v370
    %v2522 = vunpack.c.h.b16 %v370
    %v2523 = vunpack.c.l.b16 %v371
    %v2524 = vunpack.c.h.b16 %v371
    %v2525 = vunpack.c.l.b16 %v372
    %v2526 = vunpack.c.h.b16 %v372
    %v2527 = vunpack.c.l.b16 %v373
    %v2528 = vunpack.c.h.b16 %v373
    %v2529 = vunpack.c.l.b16 %v374
    %v2530 = vunpack.c.h.b16 %v374
    %v2531 = vunpack.c.l.b16 %v375
    %v2532 = vunpack.c.h.b16 %v375
    %v2533 = vunpack.c.l.b16 %v376
    %v2534 = vunpack.c.h.b16 %v376
    %v2535 = vunpack.c.l.b16 %v377
    %v2536 = vunpack.c.h.b16 %v377
    %v2537 = vunpack.c.l.b16 %v378
    %v2538 = vunpack.c.h.b16 %v378
    %v2539 = vunpack.c.l.b16 %v379
    %v2540 = vunpack.c.h.b16 %v379
    %v2541 = vunpack.c.l.b16 %v380
    %v2542 = vunpack.c.h.b16 %v380
    %v2543 = vunpack.c.l.b16 %v381
    %v2544 = vunpack.c.h.b16 %v381
    %v2545 = vunpack.c.l.b16 %v382
    %v2546 = vunpack.c.h.b16 %v382
    %v2547 = vunpack.c.l.b16 %v383
    %v2548 = vunpack.c.h.b16 %v383
    %v2549 = vunpack.c.l.b16 %v384
    %v2550 = vunpack.c.h.b16 %v384
    %v2551 = vunpack.c.l.b16 %v385
    %v2552 = vunpack.c.h.b16 %v385
    %v2553 = vunpack.c.l.b16 %v386
    %v2554 = vunpack.c.h.b16 %v386
    %v2555 = vunpack.c.l.b16 %v387
    %v2556 = vunpack.c.h.b16 %v387
    %v2557 = vunpack.c.l.b16 %v388
    %v2558 = vunpack.c.h.b16 %v388
    %v2559 = vunpack.c.l.b16 %v389
    %v2560 = vunpack.c.h.b16 %v389
    %v2561 = vunpack.c.l.b16 %v390
    %v2562 = vunpack.c.h.b16 %v390
    %v2563 = vunpack.c.l.b16 %v391
    %v2564 = vunpack.c.h.b16 %v391
    %v2565 = vunpack.c.l.b16 %v392
    %v2566 = vunpack.c.h.b16 %v392
    %v2567 = vunpack.c.l.b16 %v393
    %v2568 = vunpack.c.h.b16 %v393
    %v2569 = vunpack.c.l.b16 %v394
    %v2570 = vunpack.c.h.b16 %v394
    %v2571 = vunpack.c.l.b16 %v395
    %v2572 = vunpack.c.h.b16 %v395
    %v2573 = vunpack.c.l.b16 %v396
    %v2574 = vunpack.c.h.b16 %v396
    %v2575 = vunpack.c.l.b16 %v397
    %v2576 = vunpack.c.h.b16 %v397
    %v2577 = vunpack.c.l.b16 %v398
    %v2578 = vunpack.c.h.b16 %v398
    %v2579 = vunpack.c.l.b16 %v399
    %v2580 = vunpack.c.h.b16 %v399
    %v2581 = vunpack.c.l.b16 %v400
    %v2582 = vunpack.c.h.b16 %v400
    %v2583 = vunpack.c.l.b16 %v401
    %v2584 = vunpack.c.h.b16 %v401
    %v2585 = vunpack.c.l.b16 %v402
    %v2586 = vunpack.c.h.b16 %v402
    %v2587 = vunpack.c.l.b16 %v403
    %v2588 = vunpack.c.h.b16 %v403
    %v2589 = vunpack.c.l.b16 %v404
    %v2590 = vunpack.c.h.b16 %v404
    %v2591 = vunpack.c.l.b16 %v405
    %v2592 = vunpack.c.h.b16 %v405
    %v2593 = vunpack.c.l.b16 %v406
    %v2594 = vunpack.c.h.b16 %v406
    %v2595 = vunpack.c.l.b16 %v407
    %v2596 = vunpack.c.h.b16 %v407
    %v2597 = vunpack.c.l.b16 %v408
    %v2598 = vunpack.c.h.b16 %v408
    %v2599 = vunpack.c.l.b16 %v409
    %v2600 = vunpack.c.h.b16 %v409
    %v2601 = vunpack.c.l.b16 %v410
    %v2602 = vunpack.c.h.b16 %v410
    %v2603 = vunpack.c.l.b16 %v411
    %v2604 = vunpack.c.h.b16 %v411
    %v2605 = vunpack.c.l.b16 %v412
    %v2606 = vunpack.c.h.b16 %v412
    %v2607 = vunpack.c.l.b16 %v413
    %v2608 = vunpack.c.h.b16 %v413
    %v2609 = vunpack.c.l.b16 %v414
    %v2610 = vunpack.c.h.b16 %v414
    %v2611 = vunpack.c.l.b16 %v415
    %v2612 = vunpack.c.h.b16 %v415
    %v2613 = vunpack.c.l.b16 %v416
    %v2614 = vunpack.c.h.b16 %v416
    %v2615 = vunpack.c.l.b16 %v417
    %v2616 = vunpack.c.h.b16 %v417
    %v2617 = vunpack.c.l.b16 %v418
    %v2618 = vunpack.c.h.b16 %v418
    %v2619 = vunpack.c.l.b16 %v419
    %v2620 = vunpack.c.h.b16 %v419
    %v2621 = vunpack.c.l.b16 %v420
    %v2622 = vunpack.c.h.b16 %v420
    %v2623 = vunpack.c.l.b16 %v421
    %v2624 = vunpack.c.h.b16 %v421
    %v2625 = vunpack.c.l.b16 %v422
    %v2626 = vunpack.c.h.b16 %v422
    %v2627 = vunpack.c.l.b16 %v423
    %v2628 = vunpack.c.h.b16 %v423
    %v2629 = vunpack.c.l.b16 %v424
    %v2630 = vunpack.c.h.b16 %v424
    %v2631 = vunpack.c.l.b16 %v425
    %v2632 = vunpack.c.h.b16 %v425
    %v2633 = vunpack.c.l.b16 %v426
    %v2634 = vunpack.c.h.b16 %v426
    %v2635 = vunpack.c.l.b16 %v427
    %v2636 = vunpack.c.h.b16 %v427
    %v2637 = vunpack.c.l.b16 %v428
    %v2638 = vunpack.c.h.b16 %v428
    %v2639 = vunpack.c.l.b16 %v429
    %v2640 = vunpack.c.h.b16 %v429
    %v2641 = vunpack.c.l.b16 %v430
    %v2642 = vunpack.c.h.b16 %v430
    %v2643 = vunpack.c.l.b16 %v431
    %v2644 = vunpack.c.h.b16 %v431
    %v2645 = vunpack.c.l.b16 %v432
    %v2646 = vunpack.c.h.b16 %v432
    %v2647 = vunpack.c.l.b16 %v433
    %v2648 = vunpack.c.h.b16 %v433
    %v2649 = vunpack.c.l.b16 %v434
    %v2650 = vunpack.c.h.b16 %v434
    %v2651 = vunpack.c.l.b16 %v435
    %v2652 = vunpack.c.h.b16 %v435
    %v2653 = vunpack.c.l.b16 %v436
    %v2654 = vunpack.c.h.b16 %v436
    %v2655 = vunpack.c.l.b16 %v437
    %v2656 = vunpack.c.h.b16 %v437
    %v2657 = vunpack.c.l.b16 %v438
    %v2658 = vunpack.c.h.b16 %v438
    %v2659 = vunpack.c.l.b16 %v439
    %v2660 = vunpack.c.h.b16 %v439
    %v2661 = vunpack.c.l.b16 %v440
    %v2662 = vunpack.c.h.b16 %v440
    %v2663 = vunpack.c.l.b16 %v441
    %v2664 = vunpack.c.h.b16 %v441
    %v2665 = vunpack.c.l.b16 %v442
    %v2666 = vunpack.c.h.b16 %v442
    %v2667 = vunpack.c.l.b16 %v443
    %v2668 = vunpack.c.h.b16 %v443
    %v2669 = vunpack.c.l.b16 %v444
    %v2670 = vunpack.c.h.b16 %v444
    %v2671 = vunpack.c.l.b16 %v445
    %v2672 = vunpack.c.h.b16 %v445
    %v2673 = vunpack.c.l.b16 %v446
    %v2674 = vunpack.c.h.b16 %v446
    %v2675 = vunpack.c.l.b16 %v447
    %v2676 = vunpack.c.h.b16 %v447
    %v2677 = vunpack.c.l.b16 %v448
    %v2678 = vunpack.c.h.b16 %v448
    %v2679 = vunpack.c.l.b16 %v449
    %v2680 = vunpack.c.h.b16 %v449
    %v2681 = vunpack.c.l.b16 %v450
    %v2682 = vunpack.c.h.b16 %v450
    %v2683 = vunpack.c.l.b16 %v451
    %v2684 = vunpack.c.h.b16 %v451
    %v2685 = vunpack.c.l.b16 %v452
    %v2686 = vunpack.c.h.b16 %v452
    %v2687 = vunpack.c.l.b16 %v453
    %v2688 = vunpack.c.h.b16 %v453
    %v2689 = vunpack.c.l.b16 %v454
    %v2690 = vunpack.c.h.b16 %v454
    %v2691 = vunpack.c.l.b16 %v455
    %v2692 = vunpack.c.h.b16 %v455
    %v2693 = vunpack.c.l.b16 %v456
    %v2694 = vunpack.c.h.b16 %v456
    %v2695 = vunpack.c.l.b16 %v457
    %v2696 = vunpack.c.h.b16 %v457
    %v2697 = vunpack.c.l.b16 %v458
    %v2698 = vunpack.c.h.b16 %v458
    %v2699 = vunpack.c.l.b16 %v459
    %v2700 = vunpack.c.h.b16 %v459
    %v2701 = vunpack.c.l.b16 %v460
    %v2702 = vunpack.c.h.b16 %v460
    %v2703 = vunpack.c.l.b16 %v461
    %v2704 = vunpack.c.h.b16 %v461
    %v2705 = vunpack.c.l.b16 %v462
    %v2706 = vunpack.c.h.b16 %v462
    %v2707 = vunpack.c.l.b16 %v463
    %v2708 = vunpack.c.h.b16 %v463
    %v2709 = vunpack.c.l.b16 %v464
    %v2710 = vunpack.c.h.b16 %v464
    %v2711 = vunpack.c.l.b16 %v465
    %v2712 = vunpack.c.h.b16 %v465
    %v2713 = vunpack.c.l.b16 %v466
    %v2714 = vunpack.c.h.b16 %v466
    %v2715 = vunpack.c.l.b16 %v467
    %v2716 = vunpack.c.h.b16 %v467
    %v2717 = vunpack.c.l.b16 %v468
    %v2718 = vunpack.c.h.b16 %v468
    %v2719 = vunpack.c.l.b16 %v469
    %v2720 = vunpack.c.h.b16 %v469
    %v2721 = vunpack.c.l.b16 %v470
    %v2722 = vunpack.c.h.b16 %v470
    %v2723 = vunpack.c.l.b16 %v471
    %v2724 = vunpack.c.h.b16 %v471
    %v2725 = vunpack.c.l.b16 %v472
    %v2726 = vunpack.c.h.b16 %v472
    %v2727 = vunpack.c.l.b16 %v473
    %v2728 = vunpack.c.h.b16 %v473
    %v2729 = vunpack.c.l.b16 %v474
    %v2730 = vunpack.c.h.b16 %v474
    %v2731 = vunpack.c.l.b16 %v475
    %v2732 = vunpack.c.h.b16 %v475
    %v2733 = vunpack.c.l.b16 %v476
    %v2734 = vunpack.c.h.b16 %v476
    %v2735 = vunpack.c.l.b16 %v477
    %v2736 = vunpack.c.h.b16 %v477
    %v2737 = vunpack.c.l.b16 %v478
    %v2738 = vunpack.c.h.b16 %v478
    %v2739 = vunpack.c.l.b16 %v479
    %v2740 = vunpack.c.h.b16 %v479
    %v2741 = vunpack.c.l.b16 %v480
    %v2742 = vunpack.c.h.b16 %v480
    %v2743 = vunpack.c.l.b16 %v481
    %v2744 = vunpack.c.h.b16 %v481
    %v2745 = vunpack.c.l.b16 %v482
    %v2746 = vunpack.c.h.b16 %v482
    %v2747 = vunpack.c.l.b16 %v483
    %v2748 = vunpack.c.h.b16 %v483
    %v2749 = vunpack.c.l.b16 %v484
    %v2750 = vunpack.c.h.b16 %v484
    %v2751 = vunpack.c.l.b16 %v485
    %v2752 = vunpack.c.h.b16 %v485
    %v2753 = vunpack.c.l.b16 %v486
    %v2754 = vunpack.c.h.b16 %v486
    %v2755 = vunpack.c.l.b16 %v487
    %v2756 = vunpack.c.h.b16 %v487
    %v2757 = vunpack.c.l.b16 %v488
    %v2758 = vunpack.c.h.b16 %v488
    %v2759 = vunpack.c.l.b16 %v489
    %v2760 = vunpack.c.h.b16 %v489
    %v2761 = vunpack.c.l.b16 %v490
    %v2762 = vunpack.c.h.b16 %v490
    %v2763 = vunpack.c.l.b16 %v491
    %v2764 = vunpack.c.h.b16 %v491
    %v2765 = vunpack.c.l.b16 %v492
    %v2766 = vunpack.c.h.b16 %v492
    %v2767 = vunpack.c.l.b16 %v493
    %v2768 = vunpack.c.h.b16 %v493
    %v2769 = vunpack.c.l.b16 %v494
    %v2770 = vunpack.c.h.b16 %v494
    %v2771 = vunpack.c.l.b16 %v495
    %v2772 = vunpack.c.h.b16 %v495
    %v2773 = vunpack.c.l.b16 %v496
    %v2774 = vunpack.c.h.b16 %v496
    %v2775 = vunpack.c.l.b16 %v497
    %v2776 = vunpack.c.h.b16 %v497
    %v2777 = vunpack.c.l.b16 %v498
    %v2778 = vunpack.c.h.b16 %v498
    %v2779 = vunpack.c.l.b16 %v499
    %v2780 = vunpack.c.h.b16 %v499
    %v2781 = vunpack.c.l.b16 %v500
    %v2782 = vunpack.c.h.b16 %v500
    %v2783 = vunpack.c.l.b16 %v501
    %v2784 = vunpack.c.h.b16 %v501
    %v2785 = vunpack.c.l.b16 %v502
    %v2786 = vunpack.c.h.b16 %v502
    %v2787 = vunpack.c.l.b16 %v503
    %v2788 = vunpack.c.h.b16 %v503
    %v2789 = vunpack.c.l.b16 %v504
    %v2790 = vunpack.c.h.b16 %v504
    %v2791 = vunpack.c.l.b16 %v505
    %v2792 = vunpack.c.h.b16 %v505
    %v2793 = vunpack.c.l.b16 %v506
    %v2794 = vunpack.c.h.b16 %v506
    %v2795 = vunpack.c.l.b16 %v507
    %v2796 = vunpack.c.h.b16 %v507
    %v2797 = vunpack.c.l.b16 %v508
    %v2798 = vunpack.c.h.b16 %v508
    %v2799 = vunpack.c.l.b16 %v509
    %v2800 = vunpack.c.h.b16 %v509
    %v2801 = vunpack.c.l.b16 %v510
    %v2802 = vunpack.c.h.b16 %v510
    %v2803 = vunpack.c.l.b16 %v511
    %v2804 = vunpack.c.h.b16 %v511
    %v2805 = vunpack.c.l.b16 %v512
    %v2806 = vunpack.c.h.b16 %v512
    %v2807 = vunpack.c.l.b16 %v513
    %v2808 = vunpack.c.h.b16 %v513
    %v2809 = vunpack.c.l.b16 %v514
    %v2810 = vunpack.c.h.b16 %v514
    %v2811 = vunpack.c.l.b16 %v515
    %v2812 = vunpack.c.h.b16 %v515
    %v2813 = vunpack.c.l.b16 %v516
    %v2814 = vunpack.c.h.b16 %v516
    %v2815 = vunpack.c.l.b16 %v517
    %v2816 = vunpack.c.h.b16 %v517
    %v2817 = vunpack.c.l.b16 %v518
    %v2818 = vunpack.c.h.b16 %v518
    %v2819 = vunpack.c.l.b16 %v519
    %v2820 = vunpack.c.h.b16 %v519
    %v2821 = vunpack.c.l.b16 %v520
    %v2822 = vunpack.c.h.b16 %v520
    %v2823 = vunpack.c.l.b16 %v521
    %v2824 = vunpack.c.h.b16 %v521
    %v2825 = vunpack.c.l.b16 %v522
    %v2826 = vunpack.c.h.b16 %v522
    %v2827 = vunpack.c.l.b16 %v523
    %v2828 = vunpack.c.h.b16 %v523
    %v2829 = vunpack.c.l.b16 %v524
    %v2830 = vunpack.c.h.b16 %v524
    %v2831 = vunpack.c.l.b16 %v525
    %v2832 = vunpack.c.h.b16 %v525
    %v2833 = vunpack.c.l.b16 %v526
    %v2834 = vunpack.c.h.b16 %v526
    %v2835 = vunpack.c.l.b16 %v527
    %v2836 = vunpack.c.h.b16 %v527
    %v2837 = vunpack.c.l.b16 %v528
    %v2838 = vunpack.c.h.b16 %v528
    %v2839 = vunpack.c.l.b16 %v529
    %v2840 = vunpack.c.h.b16 %v529
    %v2841 = vunpack.c.l.b16 %v530
    %v2842 = vunpack.c.h.b16 %v530
    %v2843 = vunpack.c.l.b16 %v531
    %v2844 = vunpack.c.h.b16 %v531
    %v2845 = vunpack.c.l.b16 %v532
    %v2846 = vunpack.c.h.b16 %v532
    %v2847 = vunpack.c.l.b16 %v533
    %v2848 = vunpack.c.h.b16 %v533
    %v2849 = vunpack.c.l.b16 %v534
    %v2850 = vunpack.c.h.b16 %v534
    %v2851 = vunpack.c.l.b16 %v535
    %v2852 = vunpack.c.h.b16 %v535
    %v2853 = vunpack.c.l.b16 %v536
    %v2854 = vunpack.c.h.b16 %v536
    %v2855 = vunpack.c.l.b16 %v537
    %v2856 = vunpack.c.h.b16 %v537
    %v2857 = vunpack.c.l.b16 %v538
    %v2858 = vunpack.c.h.b16 %v538
    %v2859 = vunpack.c.l.b16 %v539
    %v2860 = vunpack.c.h.b16 %v539
    %v2861 = vunpack.c.l.b16 %v540
    %v2862 = vunpack.c.h.b16 %v540
    %v2863 = vunpack.c.l.b16 %v541
    %v2864 = vunpack.c.h.b16 %v541
    %v2865 = vunpack.c.l.b16 %v542
    %v2866 = vunpack.c.h.b16 %v542
    %v2867 = vunpack.c.l.b16 %v543
    %v2868 = vunpack.c.h.b16 %v543
    %v2869 = vunpack.c.l.b16 %v544
    %v2870 = vunpack.c.h.b16 %v544
    %v2871 = vunpack.c.l.b16 %v545
    %v2872 = vunpack.c.h.b16 %v545
    %v2873 = vunpack.c.l.b16 %v546
    %v2874 = vunpack.c.h.b16 %v546
    %v2875 = vunpack.c.l.b16 %v547
    %v2876 = vunpack.c.h.b16 %v547
    %v2877 = vunpack.c.l.b16 %v548
    %v2878 = vunpack.c.h.b16 %v548
    %v2879 = vunpack.c.l.b16 %v549
    %v2880 = vunpack.c.h.b16 %v549
    %v2881 = vunpack.c.l.b16 %v550
    %v2882 = vunpack.c.h.b16 %v550
    %v2883 = vunpack.c.l.b16 %v551
    %v2884 = vunpack.c.h.b16 %v551
    %v2885 = vunpack.c.l.b16 %v552
    %v2886 = vunpack.c.h.b16 %v552
    %v2887 = vunpack.c.l.b16 %v553
    %v2888 = vunpack.c.h.b16 %v553
    %v2889 = vunpack.c.l.b16 %v554
    %v2890 = vunpack.c.h.b16 %v554
    %v2891 = vunpack.c.l.b16 %v555
    %v2892 = vunpack.c.h.b16 %v555
    %v2893 = vunpack.c.l.b16 %v556
    %v2894 = vunpack.c.h.b16 %v556
    %v2895 = vunpack.c.l.b16 %v557
    %v2896 = vunpack.c.h.b16 %v557
    %v2897 = vunpack.c.l.b16 %v558
    %v2898 = vunpack.c.h.b16 %v558
    %v2899 = vunpack.c.l.b16 %v559
    %v2900 = vunpack.c.h.b16 %v559
    %v2901 = vunpack.c.l.b16 %v560
    %v2902 = vunpack.c.h.b16 %v560
    %v2903 = vunpack.c.l.b16 %v561
    %v2904 = vunpack.c.h.b16 %v561
    %v2905 = vunpack.c.l.b16 %v562
    %v2906 = vunpack.c.h.b16 %v562
    %v2907 = vunpack.c.l.b16 %v563
    %v2908 = vunpack.c.h.b16 %v563
    %v2909 = vunpack.c.l.b16 %v564
    %v2910 = vunpack.c.h.b16 %v564
    %v2911 = vunpack.c.l.b16 %v565
    %v2912 = vunpack.c.h.b16 %v565
    %v2913 = vunpack.c.l.b16 %v566
    %v2914 = vunpack.c.h.b16 %v566
    %v2915 = vunpack.c.l.b16 %v567
    %v2916 = vunpack.c.h.b16 %v567
    %v2917 = vunpack.c.l.b16 %v568
    %v2918 = vunpack.c.h.b16 %v568
    %v2919 = vunpack.c.l.b16 %v569
    %v2920 = vunpack.c.h.b16 %v569
    %v2921 = vunpack.c.l.b16 %v570
    %v2922 = vunpack.c.h.b16 %v570
    %v2923 = vunpack.c.l.b16 %v571
    %v2924 = vunpack.c.h.b16 %v571
    %v2925 = vunpack.c.l.b16 %v572
    %v2926 = vunpack.c.h.b16 %v572
    %v2927 = vunpack.c.l.b16 %v573
    %v2928 = vunpack.c.h.b16 %v573
    %v2929 = vunpack.c.l.b16 %v574
    %v2930 = vunpack.c.h.b16 %v574
    %v2931 = vunpack.c.l.b16 %v575
    %v2932 = vunpack.c.h.b16 %v575
    %v2933 = vunpack.c.l.b16 %v576
    %v2934 = vunpack.c.h.b16 %v576
    %v2935 = vunpack.c.l.b16 %v577
    %v2936 = vunpack.c.h.b16 %v577
    %v2937 = vunpack.c.l.b16 %v578
    %v2938 = vunpack.c.h.b16 %v578
    %v2939 = vunpack.c.l.b16 %v579
    %v2940 = vunpack.c.h.b16 %v579
    %v2941 = vunpack.c.l.b16 %v580
    %v2942 = vunpack.c.h.b16 %v580
    %v2943 = vunpack.c.l.b16 %v581
    %v2944 = vunpack.c.h.b16 %v581
    %v2945 = vunpack.c.l.b16 %v582
    %v2946 = vunpack.c.h.b16 %v582
    %v2947 = vunpack.c.l.b16 %v583
    %v2948 = vunpack.c.h.b16 %v583
    %v2949 = vunpack.c.l.b16 %v584
    %v2950 = vunpack.c.h.b16 %v584
    %v2951 = vunpack.c.l.b16 %v585
    %v2952 = vunpack.c.h.b16 %v585
    %v2953 = vunpack.c.l.b16 %v586
    %v2954 = vunpack.c.h.b16 %v586
    %v2955 = vunpack.c.l.b16 %v587
    %v2956 = vunpack.c.h.b16 %v587
    %v2957 = vunpack.c.l.b16 %v588
    %v2958 = vunpack.c.h.b16 %v588
    %v2959 = vunpack.c.l.b16 %v589
    %v2960 = vunpack.c.h.b16 %v589
    %v2961 = vunpack.c.l.b16 %v590
    %v2962 = vunpack.c.h.b16 %v590
    %v2963 = vunpack.c.l.b16 %v591
    %v2964 = vunpack.c.h.b16 %v591
    %v2965 = vunpack.c.l.b16 %v592
    %v2966 = vunpack.c.h.b16 %v592
    %v2967 = vunpack.c.l.b16 %v593
    %v2968 = vunpack.c.h.b16 %v593
    %v2969 = vunpack.c.l.b16 %v594
    %v2970 = vunpack.c.h.b16 %v594
    %v2971 = vunpack.c.l.b16 %v595
    %v2972 = vunpack.c.h.b16 %v595
    %v2973 = vunpack.c.l.b16 %v596
    %v2974 = vunpack.c.h.b16 %v596
    %v2975 = vunpack.c.l.b16 %v597
    %v2976 = vunpack.c.h.b16 %v597
    %v2977 = vunpack.c.l.b16 %v598
    %v2978 = vunpack.c.h.b16 %v598
    %v2979 = vunpack.c.l.b16 %v599
    %v2980 = vunpack.c.h.b16 %v599
    %v2981 = vunpack.c.l.b16 %v600
    %v2982 = vunpack.c.h.b16 %v600
    %v2983 = vunpack.c.l.b16 %v601
    %v2984 = vunpack.c.h.b16 %v601
    %v2985 = vunpack.c.l.b16 %v602
    %v2986 = vunpack.c.h.b16 %v602
    %v2987 = vunpack.c.l.b16 %v603
    %v2988 = vunpack.c.h.b16 %v603
    %v2989 = vunpack.c.l.b16 %v604
    %v2990 = vunpack.c.h.b16 %v604
    %v2991 = vunpack.c.l.b16 %v605
    %v2992 = vunpack.c.h.b16 %v605
    %v2993 = vunpack.c.l.b16 %v606
    %v2994 = vunpack.c.h.b16 %v606
    %v2995 = vunpack.c.l.b16 %v607
    %v2996 = vunpack.c.h.b16 %v607
    %v2997 = vunpack.c.l.b16 %v608
    %v2998 = vunpack.c.h.b16 %v608
    %v2999 = vunpack.c.l.b16 %v609
    %v3000 = vunpack.c.h.b16 %v609
    %v3001 = vunpack.c.l.b16 %v610
    %v3002 = vunpack.c.h.b16 %v610
    %v3003 = vunpack.c.l.b16 %v611
    %v3004 = vunpack.c.h.b16 %v611
    %v3005 = vunpack.c.l.b16 %v612
    %v3006 = vunpack.c.h.b16 %v612
    %v3007 = vunpack.c.l.b16 %v613
    %v3008 = vunpack.c.h.b16 %v613
    %v3009 = vunpack.c.l.b16 %v614
    %v3010 = vunpack.c.h.b16 %v614
    %v3011 = vunpack.c.l.b16 %v615
    %v3012 = vunpack.c.h.b16 %v615
    %v3013 = vunpack.c.l.b16 %v616
    %v3014 = vunpack.c.h.b16 %v616
    %v3015 = vunpack.c.l.b16 %v617
    %v3016 = vunpack.c.h.b16 %v617
    %v3017 = vunpack.c.l.b16 %v618
    %v3018 = vunpack.c.h.b16 %v618
    %v3019 = vunpack.c.l.b16 %v619
    %v3020 = vunpack.c.h.b16 %v619
    %v3021 = vunpack.c.l.b16 %v620
    %v3022 = vunpack.c.h.b16 %v620
    %v3023 = vunpack.c.l.b16 %v621
    %v3024 = vunpack.c.h.b16 %v621
    %v3025 = vunpack.c.l.b16 %v622
    %v3026 = vunpack.c.h.b16 %v622
    %v3027 = vunpack.c.l.b16 %v623
    %v3028 = vunpack.c.h.b16 %v623
    %v3029 = vunpack.c.l.b16 %v624
    %v3030 = vunpack.c.h.b16 %v624
    %v3031 = vunpack.c.l.b16 %v625
    %v3032 = vunpack.c.h.b16 %v625
    %v3033 = vunpack.c.l.b16 %v626
    %v3034 = vunpack.c.h.b16 %v626
    %v3035 = vunpack.c.l.b16 %v627
    %v3036 = vunpack.c.h.b16 %v627
    %v3037 = vunpack.c.l.b16 %v628
    %v3038 = vunpack.c.h.b16 %v628
    %v3039 = vunpack.c.l.b16 %v629
    %v3040 = vunpack.c.h.b16 %v629
    %v3041 = vunpack.c.l.b16 %v630
    %v3042 = vunpack.c.h.b16 %v630
    %v3043 = vunpack.c.l.b16 %v631
    %v3044 = vunpack.c.h.b16 %v631
    %v3045 = vunpack.c.l.b16 %v632
    %v3046 = vunpack.c.h.b16 %v632
    %v3047 = vunpack.c.l.b16 %v633
    %v3048 = vunpack.c.h.b16 %v633
    %v3049 = vunpack.c.l.b16 %v634
    %v3050 = vunpack.c.h.b16 %v634
    %v3051 = vunpack.c.l.b16 %v635
    %v3052 = vunpack.c.h.b16 %v635
    %v3053 = vunpack.c.l.b16 %v636
    %v3054 = vunpack.c.h.b16 %v636
    %v3055 = vunpack.c.l.b16 %v637
    %v3056 = vunpack.c.h.b16 %v637
    %v3057 = vunpack.c.l.b16 %v638
    %v3058 = vunpack.c.h.b16 %v638
    %v3059 = vunpack.c.l.b16 %v639
    %v3060 = vunpack.c.h.b16 %v639
    %v3061 = vunpack.c.l.b16 %v640
    %v3062 = vunpack.c.h.b16 %v640
    %v3063 = vunpack.c.l.b16 %v641
    %v3064 = vunpack.c.h.b16 %v641
    %v3065 = vunpack.c.l.b16 %v642
    %v3066 = vunpack.c.h.b16 %v642
    %v3067 = vunpack.c.l.b16 %v643
    %v3068 = vunpack.c.h.b16 %v643
    %v3069 = vunpack.c.l.b16 %v644
    %v3070 = vunpack.c.h.b16 %v644
    %v3071 = vunpack.c.l.b16 %v645
    %v3072 = vunpack.c.h.b16 %v645
    %v3073 = vunpack.c.l.b16 %v646
    %v3074 = vunpack.c.h.b16 %v646
    %v3075 = vunpack.c.l.b16 %v647
    %v3076 = vunpack.c.h.b16 %v647
    %v3077 = vunpack.c.l.b16 %v648
    %v3078 = vunpack.c.h.b16 %v648
    %v3079 = vunpack.c.l.b16 %v649
    %v3080 = vunpack.c.h.b16 %v649
    %v3081 = vunpack.c.l.b16 %v650
    %v3082 = vunpack.c.h.b16 %v650
    %v3083 = vunpack.c.l.b16 %v651
    %v3084 = vunpack.c.h.b16 %v651
    %v3085 = vunpack.c.l.b16 %v652
    %v3086 = vunpack.c.h.b16 %v652
    %v3087 = vunpack.c.l.b16 %v653
    %v3088 = vunpack.c.h.b16 %v653
    %v3089 = vunpack.c.l.b16 %v654
    %v3090 = vunpack.c.h.b16 %v654
    %v3091 = vunpack.c.l.b16 %v655
    %v3092 = vunpack.c.h.b16 %v655
    %v3093 = vunpack.c.l.b16 %v656
    %v3094 = vunpack.c.h.b16 %v656
    %v3095 = vunpack.c.l.b16 %v657
    %v3096 = vunpack.c.h.b16 %v657
    %v3097 = vunpack.c.l.b16 %v658
    %v3098 = vunpack.c.h.b16 %v658
    %v3099 = vunpack.c.l.b16 %v659
    %v3100 = vunpack.c.h.b16 %v659
    %v3101 = vunpack.c.l.b16 %v660
    %v3102 = vunpack.c.h.b16 %v660
    %v3103 = vunpack.c.l.b16 %v661
    %v3104 = vunpack.c.h.b16 %v661
    %v3105 = vunpack.c.l.b16 %v662
    %v3106 = vunpack.c.h.b16 %v662
    %v3107 = vunpack.c.l.b16 %v663
    %v3108 = vunpack.c.h.b16 %v663
    %v3109 = vunpack.c.l.b16 %v664
    %v3110 = vunpack.c.h.b16 %v664
    %v3111 = vunpack.c.l.b16 %v665
    %v3112 = vunpack.c.h.b16 %v665
    %v3113 = vunpack.c.l.b16 %v666
    %v3114 = vunpack.c.h.b16 %v666
    %v3115 = vunpack.c.l.b16 %v667
    %v3116 = vunpack.c.h.b16 %v667
    %v3117 = vunpack.c.l.b16 %v668
    %v3118 = vunpack.c.h.b16 %v668
    %v3119 = vunpack.c.l.b16 %v669
    %v3120 = vunpack.c.h.b16 %v669
    %v3121 = vunpack.c.l.b16 %v670
    %v3122 = vunpack.c.h.b16 %v670
    %v3123 = vunpack.c.l.b16 %v671
    %v3124 = vunpack.c.h.b16 %v671
    %v3125 = vunpack.c.l.b16 %v672
    %v3126 = vunpack.c.h.b16 %v672
    %v3127 = vunpack.c.l.b16 %v673
    %v3128 = vunpack.c.h.b16 %v673
    %v3129 = vunpack.c.l.b16 %v674
    %v3130 = vunpack.c.h.b16 %v674
    %v3131 = vunpack.c.l.b16 %v675
    %v3132 = vunpack.c.h.b16 %v675
    %v3133 = vunpack.c.l.b16 %v676
    %v3134 = vunpack.c.h.b16 %v676
    %v3135 = vunpack.c.l.b16 %v677
    %v3136 = vunpack.c.h.b16 %v677
    %v3137 = vunpack.c.l.b16 %v678
    %v3138 = vunpack.c.h.b16 %v678
    %v3139 = vunpack.c.l.b16 %v679
    %v3140 = vunpack.c.h.b16 %v679
    %v3141 = vunpack.c.l.b16 %v680
    %v3142 = vunpack.c.h.b16 %v680
    %v3143 = vunpack.c.l.b16 %v681
    %v3144 = vunpack.c.h.b16 %v681
    %v3145 = vunpack.c.l.b16 %v682
    %v3146 = vunpack.c.h.b16 %v682
    %v3147 = vunpack.c.l.b16 %v683
    %v3148 = vunpack.c.h.b16 %v683
    %v3149 = vunpack.c.l.b16 %v684
    %v3150 = vunpack.c.h.b16 %v684
    %v3151 = vunpack.c.l.b16 %v685
    %v3152 = vunpack.c.h.b16 %v685
    %v3153 = vunpack.c.l.b16 %v686
    %v3154 = vunpack.c.h.b16 %v686
    %v3155 = vunpack.c.l.b16 %v687
    %v3156 = vunpack.c.h.b16 %v687
    %v3157 = vunpack.c.l.b16 %v688
    %v3158 = vunpack.c.h.b16 %v688
    %v3159 = vunpack.c.l.b16 %v689
    %v3160 = vunpack.c.h.b16 %v689
    %v3161 = vunpack.c.l.b16 %v690
    %v3162 = vunpack.c.h.b16 %v690
    %v3163 = vunpack.c.l.b16 %v691
    %v3164 = vunpack.c.h.b16 %v691
    %v3165 = vunpack.c.l.b16 %v692
    %v3166 = vunpack.c.h.b16 %v692
    %v3167 = vunpack.c.l.b16 %v693
    %v3168 = vunpack.c.h.b16 %v693
    %v3169 = vunpack.c.l.b16 %v694
    %v3170 = vunpack.c.h.b16 %v694
    %v3171 = vunpack.c.l.b16 %v695
    %v3172 = vunpack.c.h.b16 %v695
    %v3173 = vunpack.c.l.b16 %v696
    %v3174 = vunpack.c.h.b16 %v696
    %v3175 = vunpack.c.l.b16 %v697
    %v3176 = vunpack.c.h.b16 %v697
    %v3177 = vunpack.c.l.b16 %v698
    %v3178 = vunpack.c.h.b16 %v698
    %v3179 = vunpack.c.l.b16 %v699
    %v3180 = vunpack.c.h.b16 %v699
    %v3181 = vunpack.c.l.b16 %v700
    %v3182 = vunpack.c.h.b16 %v700
    %v3183 = vunpack.c.l.b16 %v701
    %v3184 = vunpack.c.h.b16 %v701
    %v3185 = vunpack.c.l.b16 %v702
    %v3186 = vunpack.c.h.b16 %v702
    %v3187 = vunpack.c.l.b16 %v703
    %v3188 = vunpack.c.h.b16 %v703
    %v3189 = vunpack.c.l.b16 %v704
    %v3190 = vunpack.c.h.b16 %v704
    %v3191 = vunpack.c.l.b16 %v705
    %v3192 = vunpack.c.h.b16 %v705
    %v3193 = vunpack.c.l.b16 %v706
    %v3194 = vunpack.c.h.b16 %v706
    %v3195 = vunpack.c.l.b16 %v707
    %v3196 = vunpack.c.h.b16 %v707
    %v3197 = vunpack.c.l.b16 %v708
    %v3198 = vunpack.c.h.b16 %v708
    %v3199 = vunpack.c.l.b16 %v709
    %v3200 = vunpack.c.h.b16 %v709
    %v3201 = vunpack.c.l.b16 %v710
    %v3202 = vunpack.c.h.b16 %v710
    %v3203 = vunpack.c.l.b16 %v711
    %v3204 = vunpack.c.h.b16 %v711
    %v3205 = vunpack.c.l.b16 %v712
    %v3206 = vunpack.c.h.b16 %v712
    %v3207 = vunpack.c.l.b16 %v713
    %v3208 = vunpack.c.h.b16 %v713
    %v3209 = vunpack.c.l.b16 %v714
    %v3210 = vunpack.c.h.b16 %v714
    %v3211 = vunpack.c.l.b16 %v715
    %v3212 = vunpack.c.h.b16 %v715
    %v3213 = vunpack.c.l.b16 %v716
    %v3214 = vunpack.c.h.b16 %v716
    %v3215 = vunpack.c.l.b16 %v717
    %v3216 = vunpack.c.h.b16 %v717
    %v3217 = vunpack.c.l.b16 %v718
    %v3218 = vunpack.c.h.b16 %v718
    %v3219 = vunpack.c.l.b16 %v719
    %v3220 = vunpack.c.h.b16 %v719
    %v3221 = vunpack.c.l.b16 %v720
    %v3222 = vunpack.c.h.b16 %v720
    %v3223 = vunpack.c.l.b16 %v721
    %v3224 = vunpack.c.h.b16 %v721
    %v3225 = vunpack.c.l.b16 %v722
    %v3226 = vunpack.c.h.b16 %v722
    %v3227 = vunpack.c.l.b16 %v723
    %v3228 = vunpack.c.h.b16 %v723
    %v3229 = vunpack.c.l.b16 %v724
    %v3230 = vunpack.c.h.b16 %v724
    %v3231 = vunpack.c.l.b16 %v725
    %v3232 = vunpack.c.h.b16 %v725
    %v3233 = vunpack.c.l.b16 %v726
    %v3234 = vunpack.c.h.b16 %v726
    %v3235 = vunpack.c.l.b16 %v727
    %v3236 = vunpack.c.h.b16 %v727
    %v3237 = vunpack.c.l.b16 %v728
    %v3238 = vunpack.c.h.b16 %v728
    %v3239 = vunpack.c.l.b16 %v729
    %v3240 = vunpack.c.h.b16 %v729
    %v3241 = vunpack.c.l.b16 %v730
    %v3242 = vunpack.c.h.b16 %v730
    %v3243 = vunpack.c.l.b16 %v731
    %v3244 = vunpack.c.h.b16 %v731
    %v3245 = vunpack.c.l.b16 %v732
    %v3246 = vunpack.c.h.b16 %v732
    %v3247 = vunpack.c.l.b16 %v733
    %v3248 = vunpack.c.h.b16 %v733
    %v3249 = vunpack.c.l.b16 %v734
    %v3250 = vunpack.c.h.b16 %v734
    %v3251 = vunpack.c.l.b16 %v735
    %v3252 = vunpack.c.h.b16 %v735
    %v3253 = vunpack.c.l.b16 %v736
    %v3254 = vunpack.c.h.b16 %v736
    %v3255 = vunpack.c.l.b16 %v737
    %v3256 = vunpack.c.h.b16 %v737
    %v3257 = vunpack.c.l.b16 %v738
    %v3258 = vunpack.c.h.b16 %v738
    %v3259 = vunpack.c.l.b16 %v739
    %v3260 = vunpack.c.h.b16 %v739
    %v3261 = vunpack.c.l.b16 %v740
    %v3262 = vunpack.c.h.b16 %v740
    %v3263 = vunpack.c.l.b16 %v741
    %v3264 = vunpack.c.h.b16 %v741
    %v3265 = vunpack.c.l.b16 %v742
    %v3266 = vunpack.c.h.b16 %v742
    %v3267 = vunpack.c.l.b16 %v743
    %v3268 = vunpack.c.h.b16 %v743
    %v3269 = vunpack.c.l.b16 %v744
    %v3270 = vunpack.c.h.b16 %v744
    %v3271 = vunpack.c.l.b16 %v745
    %v3272 = vunpack.c.h.b16 %v745
    %v3273 = vunpack.c.l.b16 %v746
    %v3274 = vunpack.c.h.b16 %v746
    %v3275 = vunpack.c.l.b16 %v747
    %v3276 = vunpack.c.h.b16 %v747
    %v3277 = vunpack.c.l.b16 %v748
    %v3278 = vunpack.c.h.b16 %v748
    %v3279 = vunpack.c.l.b16 %v749
    %v3280 = vunpack.c.h.b16 %v749
    %v3281 = vunpack.c.l.b16 %v750
    %v3282 = vunpack.c.h.b16 %v750
    %v3283 = vunpack.c.l.b16 %v751
    %v3284 = vunpack.c.h.b16 %v751
    %v3285 = vunpack.c.l.b16 %v752
    %v3286 = vunpack.c.h.b16 %v752
    %v3287 = vunpack.c.l.b16 %v753
    %v3288 = vunpack.c.h.b16 %v753
    %v3289 = vunpack.c.l.b16 %v754
    %v3290 = vunpack.c.h.b16 %v754
    %v3291 = vunpack.c.l.b16 %v755
    %v3292 = vunpack.c.h.b16 %v755
    %v3293 = vunpack.c.l.b16 %v756
    %v3294 = vunpack.c.h.b16 %v756
    %v3295 = vunpack.c.l.b16 %v757
    %v3296 = vunpack.c.h.b16 %v757
    %v3297 = vunpack.c.l.b16 %v758
    %v3298 = vunpack.c.h.b16 %v758
    %v3299 = vunpack.c.l.b16 %v759
    %v3300 = vunpack.c.h.b16 %v759
    %v3301 = vunpack.c.l.b16 %v760
    %v3302 = vunpack.c.h.b16 %v760
    %v3303 = vunpack.c.l.b16 %v761
    %v3304 = vunpack.c.h.b16 %v761
    %v3305 = vunpack.c.l.b16 %v762
    %v3306 = vunpack.c.h.b16 %v762
    %v3307 = vunpack.c.l.b16 %v763
    %v3308 = vunpack.c.h.b16 %v763
    %v3309 = vunpack.c.l.b16 %v764
    %v3310 = vunpack.c.h.b16 %v764
    %v3311 = vunpack.c.l.b16 %v765
    %v3312 = vunpack.c.h.b16 %v765
    %v3313 = vunpack.c.l.b16 %v766
    %v3314 = vunpack.c.h.b16 %v766
    %v3315 = vunpack.c.l.b16 %v767
    %v3316 = vunpack.c.h.b16 %v767
    %v3317 = vunpack.c.l.b16 %v768
    %v3318 = vunpack.c.h.b16 %v768
    %v3319 = vunpack.c.l.b16 %v769
    %v3320 = vunpack.c.h.b16 %v769
    %v3321 = vunpack.c.l.b16 %v770
    %v3322 = vunpack.c.h.b16 %v770
    %v3323 = vunpack.c.l.b16 %v771
    %v3324 = vunpack.c.h.b16 %v771
    %v3325 = vunpack.c.l.b16 %v772
    %v3326 = vunpack.c.h.b16 %v772
    %v3327 = vunpack.c.l.b16 %v773
    %v3328 = vunpack.c.h.b16 %v773
    %v3329 = vunpack.c.l.b16 %v774
    %v3330 = vunpack.c.h.b16 %v774
    %v3331 = vunpack.c.l.b16 %v775
    %v3332 = vunpack.c.h.b16 %v775
    %v3333 = vunpack.c.l.b16 %v776
    %v3334 = vunpack.c.h.b16 %v776
    %v3335 = vunpack.c.l.b16 %v777
    %v3336 = vunpack.c.h.b16 %v777
    %v3337 = vunpack.c.l.b16 %v778
    %v3338 = vunpack.c.h.b16 %v778
    %v3339 = vunpack.c.l.b16 %v779
    %v3340 = vunpack.c.h.b16 %v779
    %v3341 = vunpack.c.l.b16 %v780
    %v3342 = vunpack.c.h.b16 %v780
    %v3343 = vunpack.c.l.b16 %v781
    %v3344 = vunpack.c.h.b16 %v781
    %v3345 = vunpack.c.l.b16 %v782
    %v3346 = vunpack.c.h.b16 %v782
    %v3347 = vunpack.c.l.b16 %v783
    %v3348 = vunpack.c.h.b16 %v783
    %v3349 = vunpack.c.l.b16 %v784
    %v3350 = vunpack.c.h.b16 %v784
    %v3351 = vpack.c.b16 %v1863, %v1815
    %v3352 = vpack.c.b16 %v1864, %v1816
    %v3353 = vpack.c.b16 %v1865, %v1817
    %v3354 = vpack.c.b16 %v1866, %v1818
    %v3355 = vpack.c.b16 %v1867, %v1819
    %v3356 = vpack.c.b16 %v1868, %v1820
    %v3357 = vpack.c.b16 %v1869, %v1821
    %v3358 = vpack.c.b16 %v1870, %v1822
    %v3359 = vpack.c.b16 %v1871, %v1823
    %v3360 = vpack.c.b16 %v1872, %v1824
    %v3361 = vpack.c.b16 %v1873, %v1825
    %v3362 = vpack.c.b16 %v1874, %v1826
    %v3363 = vpack.c.b16 %v1875, %v1827
    %v3364 = vpack.c.b16 %v1876, %v1828
    %v3365 = vpack.c.b16 %v1877, %v1829
    %v3366 = vpack.c.b16 %v1878, %v1830
    %v3367 = vpack.c.b16 %v1879, %v1831
    %v3368 = vpack.c.b16 %v1880, %v1832
    %v3369 = vpack.c.b16 %v1881, %v1833
    %v3370 = vpack.c.b16 %v1882, %v1834
    %v3371 = vpack.c.b16 %v1883, %v1835
    %v3372 = vpack.c.b16 %v1884, %v1836
    %v3373 = vpack.c.b16 %v1885, %v1837
    %v3374 = vpack.c.b16 %v1886, %v1838
    %v3375 = vpack.c.b16 %v1887, %v1839
    %v3376 = vpack.c.b16 %v1888, %v1840
    %v3377 = vpack.c.b16 %v1889, %v1841
    %v3378 = vpack.c.b16 %v1890, %v1842
    %v3379 = vpack.c.b16 %v1891, %v1843
    %v3380 = vpack.c.b16 %v1892, %v1844
    %v3381 = vpack.c.b16 %v1893, %v1845
    %v3382 = vpack.c.b16 %v1894, %v1846
    %v3383 = vpack.c.b16 %v1895, %v1847
    %v3384 = vpack.c.b16 %v1896, %v1848
    %v3385 = vpack.c.b16 %v1897, %v1849
    %v3386 = vpack.c.b16 %v1898, %v1850
    %v3387 = vpack.c.b16 %v1899, %v1851
    %v3388 = vpack.c.b16 %v1900, %v1852
    %v3389 = vpack.c.b16 %v1901, %v1853
    %v3390 = vpack.c.b16 %v1902, %v1854
    %v3391 = vpack.c.b16 %v1903, %v1855
    %v3392 = vpack.c.b16 %v1904, %v1856
    %v3393 = vpack.c.b16 %v1905, %v1857
    %v3394 = vpack.c.b16 %v1906, %v1858
    %v3395 = vpack.c.b16 %v1907, %v1859
    %v3396 = vpack.c.b16 %v1908, %v1860
    %v3397 = vpack.c.b16 %v1909, %v1861
    %v3398 = vpack.c.b16 %v1910, %v1862
    %v3399 = vpack.c.b16 %v1959, %v1911
    %v3400 = vpack.c.b16 %v1960, %v1912
    %v3401 = vpack.c.b16 %v1961, %v1913
    %v3402 = vpack.c.b16 %v1962, %v1914
    %v3403 = vpack.c.b16 %v1963, %v1915
    %v3404 = vpack.c.b16 %v1964, %v1916
    %v3405 = vpack.c.b16 %v1965, %v1917
    %v3406 = vpack.c.b16 %v1966, %v1918
    %v3407 = vpack.c.b16 %v1967, %v1919
    %v3408 = vpack.c.b16 %v1968, %v1920
    %v3409 = vpack.c.b16 %v1969, %v1921
    %v3410 = vpack.c.b16 %v1970, %v1922
    %v3411 = vpack.c.b16 %v1971, %v1923
    %v3412 = vpack.c.b16 %v1972, %v1924
    %v3413 = vpack.c.b16 %v1973, %v1925
    %v3414 = vpack.c.b16 %v1974, %v1926
    %v3415 = vpack.c.b16 %v1975, %v1927
    %v3416 = vpack.c.b16 %v1976, %v1928
    %v3417 = vpack.c.b16 %v1977, %v1929
    %v3418 = vpack.c.b16 %v1978, %v1930
    %v3419 = vpack.c.b16 %v1979, %v1931
    %v3420 = vpack.c.b16 %v1980, %v1932
    %v3421 = vpack.c.b16 %v1981, %v1933
    %v3422 = vpack.c.b16 %v1982, %v1934
    %v3423 = vpack.c.b16 %v1983, %v1935
    %v3424 = vpack.c.b16 %v1984, %v1936
    %v3425 = vpack.c.b16 %v1985, %v1937
    %v3426 = vpack.c.b16 %v1986, %v1938
    %v3427 = vpack.c.b16 %v1987, %v1939
    %v3428 = vpack.c.b16 %v1988, %v1940
    %v3429 = vpack.c.b16 %v1989, %v1941
    %v3430 = vpack.c.b16 %v1990, %v1942
    %v3431 = vpack.c.b16 %v1991, %v1943
    %v3432 = vpack.c.b16 %v1992, %v1944
    %v3433 = vpack.c.b16 %v1993, %v1945
    %v3434 = vpack.c.b16 %v1994, %v1946
    %v3435 = vpack.c.b16 %v1995, %v1947
    %v3436 = vpack.c.b16 %v1996, %v1948
    %v3437 = vpack.c.b16 %v1997, %v1949
    %v3438 = vpack.c.b16 %v1998, %v1950
    %v3439 = vpack.c.b16 %v1999, %v1951
    %v3440 = vpack.c.b16 %v2000, %v1952
    %v3441 = vpack.c.b16 %v2001, %v1953
    %v3442 = vpack.c.b16 %v2002, %v1954
    %v3443 = vpack.c.b16 %v2003, %v1955
    %v3444 = vpack.c.b16 %v2004, %v1956
    %v3445 = vpack.c.b16 %v2005, %v1957
    %v3446 = vpack.c.b16 %v2006, %v1958
    %v3447 = vpack.c.b16 %v2055, %v2007
    %v3448 = vpack.c.b16 %v2056, %v2008
    %v3449 = vpack.c.b16 %v2057, %v2009
    %v3450 = vpack.c.b16 %v2058, %v2010
    %v3451 = vpack.c.b16 %v2059, %v2011
    %v3452 = vpack.c.b16 %v2060, %v2012
    %v3453 = vpack.c.b16 %v2061, %v2013
    %v3454 = vpack.c.b16 %v2062, %v2014
    %v3455 = vpack.c.b16 %v2063, %v2015
    %v3456 = vpack.c.b16 %v2064, %v2016
    %v3457 = vpack.c.b16 %v2065, %v2017
    %v3458 = vpack.c.b16 %v2066, %v2018
    %v3459 = vpack.c.b16 %v2067, %v2019
    %v3460 = vpack.c.b16 %v2068, %v2020
    %v3461 = vpack.c.b16 %v2069, %v2021
    %v3462 = vpack.c.b16 %v2070, %v2022
    %v3463 = vpack.c.b16 %v2071, %v2023
    %v3464 = vpack.c.b16 %v2072, %v2024
    %v3465 = vpack.c.b16 %v2073, %v2025
    %v3466 = vpack.c.b16 %v2074, %v2026
    %v3467 = vpack.c.b16 %v2075, %v2027
    %v3468 = vpack.c.b16 %v2076, %v2028
    %v3469 = vpack.c.b16 %v2077, %v2029
    %v3470 = vpack.c.b16 %v2078, %v2030
    %v3471 = vpack.c.b16 %v2079, %v2031
    %v3472 = vpack.c.b16 %v2080, %v2032
    %v3473 = vpack.c.b16 %v2081, %v2033
    %v3474 = vpack.c.b16 %v2082, %v2034
    %v3475 = vpack.c.b16 %v2083, %v2035
    %v3476 = vpack.c.b16 %v2084, %v2036
    %v3477 = vpack.c.b16 %v2085, %v2037
    %v3478 = vpack.c.b16 %v2086, %v2038
    %v3479 = vpack.c.b16 %v2087, %v2039
    %v3480 = vpack.c.b16 %v2088, %v2040
    %v3481 = vpack.c.b16 %v2089, %v2041
    %v3482 = vpack.c.b16 %v2090, %v2042
    %v3483 = vpack.c.b16 %v2091, %v2043
    %v3484 = vpack.c.b16 %v2092, %v2044
    %v3485 = vpack.c.b16 %v2093, %v2045
    %v3486 = vpack.c.b16 %v2094, %v2046
    %v3487 = vpack.c.b16 %v2095, %v2047
    %v3488 = vpack.c.b16 %v2096, %v2048
    %v3489 = vpack.c.b16 %v2097, %v2049
    %v3490 = vpack.c.b16 %v2098, %v2050
    %v3491 = vpack.c.b16 %v2099, %v2051
    %v3492 = vpack.c.b16 %v2100, %v2052
    %v3493 = vpack.c.b16 %v2101, %v2053
    %v3494 = vpack.c.b16 %v2102, %v2054
    %v3495 = vpack.c.b16 %v2151, %v2103
    %v3496 = vpack.c.b16 %v2152, %v2104
    %v3497 = vpack.c.b16 %v2153, %v2105
    %v3498 = vpack.c.b16 %v2154, %v2106
    %v3499 = vpack.c.b16 %v2155, %v2107
    %v3500 = vpack.c.b16 %v2156, %v2108
    %v3501 = vpack.c.b16 %v2157, %v2109
    %v3502 = vpack.c.b16 %v2158, %v2110
    %v3503 = vpack.c.b16 %v2159, %v2111
    %v3504 = vpack.c.b16 %v2160, %v2112
    %v3505 = vpack.c.b16 %v2161, %v2113
    %v3506 = vpack.c.b16 %v2162, %v2114
    %v3507 = vpack.c.b16 %v2163, %v2115
    %v3508 = vpack.c.b16 %v2164, %v2116
    %v3509 = vpack.c.b16 %v2165, %v2117
    %v3510 = vpack.c.b16 %v2166, %v2118
    %v3511 = vpack.c.b16 %v2167, %v2119
    %v3512 = vpack.c.b16 %v2168, %v2120
    %v3513 = vpack.c.b16 %v2169, %v2121
    %v3514 = vpack.c.b16 %v2170, %v2122
    %v3515 = vpack.c.b16 %v2171, %v2123
    %v3516 = vpack.c.b16 %v2172, %v2124
    %v3517 = vpack.c.b16 %v2173, %v2125
    %v3518 = vpack.c.b16 %v2174, %v2126
    %v3519 = vpack.c.b16 %v2175, %v2127
    %v3520 = vpack.c.b16 %v2176, %v2128
    %v3521 = vpack.c.b16 %v2177, %v2129
    %v3522 = vpack.c.b16 %v2178, %v2130
    %v3523 = vpack.c.b16 %v2179, %v2131
    %v3524 = vpack.c.b16 %v2180, %v2132
    %v3525 = vpack.c.b16 %v2181, %v2133
    %v3526 = vpack.c.b16 %v2182, %v2134
    %v3527 = vpack.c.b16 %v2183, %v2135
    %v3528 = vpack.c.b16 %v2184, %v2136
    %v3529 = vpack.c.b16 %v2185, %v2137
    %v3530 = vpack.c.b16 %v2186, %v2138
    %v3531 = vpack.c.b16 %v2187, %v2139
    %v3532 = vpack.c.b16 %v2188, %v2140
    %v3533 = vpack.c.b16 %v2189, %v2141
    %v3534 = vpack.c.b16 %v2190, %v2142
    %v3535 = vpack.c.b16 %v2191, %v2143
    %v3536 = vpack.c.b16 %v2192, %v2144
    %v3537 = vpack.c.b16 %v2193, %v2145
    %v3538 = vpack.c.b16 %v2194, %v2146
    %v3539 = vpack.c.b16 %v2195, %v2147
    %v3540 = vpack.c.b16 %v2196, %v2148
    %v3541 = vpack.c.b16 %v2197, %v2149
    %v3542 = vpack.c.b16 %v2198, %v2150
    %v3543 = vpack.c.b16 %v2247, %v2199
    %v3544 = vpack.c.b16 %v2248, %v2200
    %v3545 = vpack.c.b16 %v2249, %v2201
    %v3546 = vpack.c.b16 %v2250, %v2202
    %v3547 = vpack.c.b16 %v2251, %v2203
    %v3548 = vpack.c.b16 %v2252, %v2204
    %v3549 = vpack.c.b16 %v2253, %v2205
    %v3550 = vpack.c.b16 %v2254, %v2206
    %v3551 = vpack.c.b16 %v2255, %v2207
    %v3552 = vpack.c.b16 %v2256, %v2208
    %v3553 = vpack.c.b16 %v2257, %v2209
    %v3554 = vpack.c.b16 %v2258, %v2210
    %v3555 = vpack.c.b16 %v2259, %v2211
    %v3556 = vpack.c.b16 %v2260, %v2212
    %v3557 = vpack.c.b16 %v2261, %v2213
    %v3558 = vpack.c.b16 %v2262, %v2214
    %v3559 = vpack.c.b16 %v2263, %v2215
    %v3560 = vpack.c.b16 %v2264, %v2216
    %v3561 = vpack.c.b16 %v2265, %v2217
    %v3562 = vpack.c.b16 %v2266, %v2218
    %v3563 = vpack.c.b16 %v2267, %v2219
    %v3564 = vpack.c.b16 %v2268, %v2220
    %v3565 = vpack.c.b16 %v2269, %v2221
    %v3566 = vpack.c.b16 %v2270, %v2222
    %v3567 = vpack.c.b16 %v2271, %v2223
    %v3568 = vpack.c.b16 %v2272, %v2224
    %v3569 = vpack.c.b16 %v2273, %v2225
    %v3570 = vpack.c.b16 %v2274, %v2226
    %v3571 = vpack.c.b16 %v2275, %v2227
    %v3572 = vpack.c.b16 %v2276, %v2228
    %v3573 = vpack.c.b16 %v2277, %v2229
    %v3574 = vpack.c.b16 %v2278, %v2230
    %v3575 = vpack.c.b16 %v2279, %v2231
    %v3576 = vpack.c.b16 %v2280, %v2232
    %v3577 = vpack.c.b16 %v2281, %v2233
    %v3578 = vpack.c.b16 %v2282, %v2234
    %v3579 = vpack.c.b16 %v2283, %v2235
    %v3580 = vpack.c.b16 %v2284, %v2236
    %v3581 = vpack.c.b16 %v2285, %v2237
    %v3582 = vpack.c.b16 %v2286, %v2238
    %v3583 = vpack.c.b16 %v2287, %v2239
    %v3584 = vpack.c.b16 %v2288, %v2240
    %v3585 = vpack.c.b16 %v2289, %v2241
    %v3586 = vpack.c.b16 %v2290, %v2242
    %v3587 = vpack.c.b16 %v2291, %v2243
    %v3588 = vpack.c.b16 %v2292, %v2244
    %v3589 = vpack.c.b16 %v2293, %v2245
    %v3590 = vpack.c.b16 %v2294, %v2246
    %v3591 = vpack.c.b16 %v2343, %v2295
    %v3592 = vpack.c.b16 %v2344, %v2296
    %v3593 = vpack.c.b16 %v2345, %v2297
    %v3594 = vpack.c.b16 %v2346, %v2298
    %v3595 = vpack.c.b16 %v2347, %v2299
    %v3596 = vpack.c.b16 %v2348, %v2300
    %v3597 = vpack.c.b16 %v2349, %v2301
    %v3598 = vpack.c.b16 %v2350, %v2302
    %v3599 = vpack.c.b16 %v2351, %v2303
    %v3600 = vpack.c.b16 %v2352, %v2304
    %v3601 = vpack.c.b16 %v2353, %v2305
    %v3602 = vpack.c.b16 %v2354, %v2306
    %v3603 = vpack.c.b16 %v2355, %v2307
    %v3604 = vpack.c.b16 %v2356, %v2308
    %v3605 = vpack.c.b16 %v2357, %v2309
    %v3606 = vpack.c.b16 %v2358, %v2310
    %v3607 = vpack.c.b16 %v2359, %v2311
    %v3608 = vpack.c.b16 %v2360, %v2312
    %v3609 = vpack.c.b16 %v2361, %v2313
    %v3610 = vpack.c.b16 %v2362, %v2314
    %v3611 = vpack.c.b16 %v2363, %v2315
    %v3612 = vpack.c.b16 %v2364, %v2316
    %v3613 = vpack.c.b16 %v2365, %v2317
    %v3614 = vpack.c.b16 %v2366, %v2318
    %v3615 = vpack.c.b16 %v2367, %v2319
    %v3616 = vpack.c.b16 %v2368, %v2320
    %v3617 = vpack.c.b16 %v2369, %v2321
    %v3618 = vpack.c.b16 %v2370, %v2322
    %v3619 = vpack.c.b16 %v2371, %v2323
    %v3620 = vpack.c.b16 %v2372, %v2324
    %v3621 = vpack.c.b16 %v2373, %v2325
    %v3622 = vpack.c.b16 %v2374, %v2326
    %v3623 = vpack.c.b16 %v2375, %v2327
    %v3624 = vpack.c.b16 %v2376, %v2328
    %v3625 = vpack.c.b16 %v2377, %v2329
    %v3626 = vpack.c.b16 %v2378, %v2330
    %v3627 = vpack.c.b16 %v2379, %v2331
    %v3628 = vpack.c.b16 %v2380, %v2332
    %v3629 = vpack.c.b16 %v2381, %v2333
    %v3630 = vpack.c.b16 %v2382, %v2334
    %v3631 = vpack.c.b16 %v2383, %v2335
    %v3632 = vpack.c.b16 %v2384, %v2336
    %v3633 = vpack.c.b16 %v2385, %v2337
    %v3634 = vpack.c.b16 %v2386, %v2338
    %v3635 = vpack.c.b16 %v2387, %v2339
    %v3636 = vpack.c.b16 %v2388, %v2340
    %v3637 = vpack.c.b16 %v2389, %v2341
    %v3638 = vpack.c.b16 %v2390, %v2342
    %v3639 = vpack.c.b16 %v2439, %v2391
    %v3640 = vpack.c.b16 %v2440, %v2392
    %v3641 = vpack.c.b16 %v2441, %v2393
    %v3642 = vpack.c.b16 %v2442, %v2394
    %v3643 = vpack.c.b16 %v2443, %v2395
    %v3644 = vpack.c.b16 %v2444, %v2396
    %v3645 = vpack.c.b16 %v2445, %v2397
    %v3646 = vpack.c.b16 %v2446, %v2398
    %v3647 = vpack.c.b16 %v2447, %v2399
    %v3648 = vpack.c.b16 %v2448, %v2400
    %v3649 = vpack.c.b16 %v2449, %v2401
    %v3650 = vpack.c.b16 %v2450, %v2402
    %v3651 = vpack.c.b16 %v2451, %v2403
    %v3652 = vpack.c.b16 %v2452, %v2404
    %v3653 = vpack.c.b16 %v2453, %v2405
    %v3654 = vpack.c.b16 %v2454, %v2406
    %v3655 = vpack.c.b16 %v2455, %v2407
    %v3656 = vpack.c.b16 %v2456, %v2408
    %v3657 = vpack.c.b16 %v2457, %v2409
    %v3658 = vpack.c.b16 %v2458, %v2410
    %v3659 = vpack.c.b16 %v2459, %v2411
    %v3660 = vpack.c.b16 %v2460, %v2412
    %v3661 = vpack.c.b16 %v2461, %v2413
    %v3662 = vpack.c.b16 %v2462, %v2414
    %v3663 = vpack.c.b16 %v2463, %v2415
    %v3664 = vpack.c.b16 %v2464, %v2416
    %v3665 = vpack.c.b16 %v2465, %v2417
    %v3666 = vpack.c.b16 %v2466, %v2418
    %v3667 = vpack.c.b16 %v2467, %v2419
    %v3668 = vpack.c.b16 %v2468, %v2420
    %v3669 = vpack.c.b16 %v2469, %v2421
    %v3670 = vpack.c.b16 %v2470, %v2422
    %v3671 = vpack.c.b16 %v2471, %v2423
    %v3672 = vpack.c.b16 %v2472, %v2424
    %v3673 = vpack.c.b16 %v2473, %v2425
    %v3674 = vpack.c.b16 %v2474, %v2426
    %v3675 = vpack.c.b16 %v2475, %v2427
    %v3676 = vpack.c.b16 %v2476, %v2428
    %v3677 = vpack.c.b16 %v2477, %v2429
    %v3678 = vpack.c.b16 %v2478, %v2430
    %v3679 = vpack.c.b16 %v2479, %v2431
    %v3680 = vpack.c.b16 %v2480, %v2432
    %v3681 = vpack.c.b16 %v2481, %v2433
    %v3682 = vpack.c.b16 %v2482, %v2434
    %v3683 = vpack.c.b16 %v2483, %v2435
    %v3684 = vpack.c.b16 %v2484, %v2436
    %v3685 = vpack.c.b16 %v2485, %v2437
    %v3686 = vpack.c.b16 %v2486, %v2438
    %v3687 = vpack.c.b16 %v2535, %v2487
    %v3688 = vpack.c.b16 %v2536, %v2488
    %v3689 = vpack.c.b16 %v2537, %v2489
    %v3690 = vpack.c.b16 %v2538, %v2490
    %v3691 = vpack.c.b16 %v2539, %v2491
    %v3692 = vpack.c.b16 %v2540, %v2492
    %v3693 = vpack.c.b16 %v2541, %v2493
    %v3694 = vpack.c.b16 %v2542, %v2494
    %v3695 = vpack.c.b16 %v2543, %v2495
    %v3696 = vpack.c.b16 %v2544, %v2496
    %v3697 = vpack.c.b16 %v2545, %v2497
    %v3698 = vpack.c.b16 %v2546, %v2498
    %v3699 = vpack.c.b16 %v2547, %v2499
    %v3700 = vpack.c.b16 %v2548, %v2500
    %v3701 = vpack.c.b16 %v2549, %v2501
    %v3702 = vpack.c.b16 %v2550, %v2502
    %v3703 = vpack.c.b16 %v2551, %v2503
    %v3704 = vpack.c.b16 %v2552, %v2504
    %v3705 = vpack.c.b16 %v2553, %v2505
    %v3706 = vpack.c.b16 %v2554, %v2506
    %v3707 = vpack.c.b16 %v2555, %v2507
    %v3708 = vpack.c.b16 %v2556, %v2508
    %v3709 = vpack.c.b16 %v2557, %v2509
    %v3710 = vpack.c.b16 %v2558, %v2510
    %v3711 = vpack.c.b16 %v2559, %v2511
    %v3712 = vpack.c.b16 %v2560, %v2512
    %v3713 = vpack.c.b16 %v2561, %v2513
    %v3714 = vpack.c.b16 %v2562, %v2514
    %v3715 = vpack.c.b16 %v2563, %v2515
    %v3716 = vpack.c.b16 %v2564, %v2516
    %v3717 = vpack.c.b16 %v2565, %v2517
    %v3718 = vpack.c.b16 %v2566, %v2518
    %v3719 = vpack.c.b16 %v2567, %v2519
    %v3720 = vpack.c.b16 %v2568, %v2520
    %v3721 = vpack.c.b16 %v2569, %v2521
    %v3722 = vpack.c.b16 %v2570, %v2522
    %v3723 = vpack.c.b16 %v2571, %v2523
    %v3724 = vpack.c.b16 %v2572, %v2524
    %v3725 = vpack.c.b16 %v2573, %v2525
    %v3726 = vpack.c.b16 %v2574, %v2526
    %v3727 = vpack.c.b16 %v2575, %v2527
    %v3728 = vpack.c.b16 %v2576, %v2528
    %v3729 = vpack.c.b16 %v2577, %v2529
    %v3730 = vpack.c.b16 %v2578, %v2530
    %v3731 = vpack.c.b16 %v2579, %v2531
    %v3732 = vpack.c.b16 %v2580, %v2532
    %v3733 = vpack.c.b16 %v2581, %v2533
    %v3734 = vpack.c.b16 %v2582, %v2534
    %v3735 = vpack.c.b16 %v2631, %v2583
    %v3736 = vpack.c.b16 %v2632, %v2584
    %v3737 = vpack.c.b16 %v2633, %v2585
    %v3738 = vpack.c.b16 %v2634, %v2586
    %v3739 = vpack.c.b16 %v2635, %v2587
    %v3740 = vpack.c.b16 %v2636, %v2588
    %v3741 = vpack.c.b16 %v2637, %v2589
    %v3742 = vpack.c.b16 %v2638, %v2590
    %v3743 = vpack.c.b16 %v2639, %v2591
    %v3744 = vpack.c.b16 %v2640, %v2592
    %v3745 = vpack.c.b16 %v2641, %v2593
    %v3746 = vpack.c.b16 %v2642, %v2594
    %v3747 = vpack.c.b16 %v2643, %v2595
    %v3748 = vpack.c.b16 %v2644, %v2596
    %v3749 = vpack.c.b16 %v2645, %v2597
    %v3750 = vpack.c.b16 %v2646, %v2598
    %v3751 = vpack.c.b16 %v2647, %v2599
    %v3752 = vpack.c.b16 %v2648, %v2600
    %v3753 = vpack.c.b16 %v2649, %v2601
    %v3754 = vpack.c.b16 %v2650, %v2602
    %v3755 = vpack.c.b16 %v2651, %v2603
    %v3756 = vpack.c.b16 %v2652, %v2604
    %v3757 = vpack.c.b16 %v2653, %v2605
    %v3758 = vpack.c.b16 %v2654, %v2606
    %v3759 = vpack.c.b16 %v2655, %v2607
    %v3760 = vpack.c.b16 %v2656, %v2608
    %v3761 = vpack.c.b16 %v2657, %v2609
    %v3762 = vpack.c.b16 %v2658, %v2610
    %v3763 = vpack.c.b16 %v2659, %v2611
    %v3764 = vpack.c.b16 %v2660, %v2612
    %v3765 = vpack.c.b16 %v2661, %v2613
    %v3766 = vpack.c.b16 %v2662, %v2614
    %v3767 = vpack.c.b16 %v2663, %v2615
    %v3768 = vpack.c.b16 %v2664, %v2616
    %v3769 = vpack.c.b16 %v2665, %v2617
    %v3770 = vpack.c.b16 %v2666, %v2618
    %v3771 = vpack.c.b16 %v2667, %v2619
    %v3772 = vpack.c.b16 %v2668, %v2620
    %v3773 = vpack.c.b16 %v2669, %v2621
    %v3774 = vpack.c.b16 %v2670, %v2622
    %v3775 = vpack.c.b16 %v2671, %v2623
    %v3776 = vpack.c.b16 %v2672, %v2624
    %v3777 = vpack.c.b16 %v2673, %v2625
    %v3778 = vpack.c.b16 %v2674, %v2626
    %v3779 = vpack.c.b16 %v2675, %v2627
    %v3780 = vpack.c.b16 %v2676, %v2628
    %v3781 = vpack.c.b16 %v2677, %v2629
    %v3782 = vpack.c.b16 %v2678, %v2630
    %v3783 = vpack.c.b16 %v2727, %v2679
    %v3784 = vpack.c.b16 %v2728, %v2680
    %v3785 = vpack.c.b16 %v2729, %v2681
    %v3786 = vpack.c.b16 %v2730, %v2682
    %v3787 = vpack.c.b16 %v2731, %v2683
    %v3788 = vpack.c.b16 %v2732, %v2684
    %v3789 = vpack.c.b16 %v2733, %v2685
    %v3790 = vpack.c.b16 %v2734, %v2686
    %v3791 = vpack.c.b16 %v2735, %v2687
    %v3792 = vpack.c.b16 %v2736, %v2688
    %v3793 = vpack.c.b16 %v2737, %v2689
    %v3794 = vpack.c.b16 %v2738, %v2690
    %v3795 = vpack.c.b16 %v2739, %v2691
    %v3796 = vpack.c.b16 %v2740, %v2692
    %v3797 = vpack.c.b16 %v2741, %v2693
    %v3798 = vpack.c.b16 %v2742, %v2694
    %v3799 = vpack.c.b16 %v2743, %v2695
    %v3800 = vpack.c.b16 %v2744, %v2696
    %v3801 = vpack.c.b16 %v2745, %v2697
    %v3802 = vpack.c.b16 %v2746, %v2698
    %v3803 = vpack.c.b16 %v2747, %v2699
    %v3804 = vpack.c.b16 %v2748, %v2700
    %v3805 = vpack.c.b16 %v2749, %v2701
    %v3806 = vpack.c.b16 %v2750, %v2702
    %v3807 = vpack.c.b16 %v2751, %v2703
    %v3808 = vpack.c.b16 %v2752, %v2704
    %v3809 = vpack.c.b16 %v2753, %v2705
    %v3810 = vpack.c.b16 %v2754, %v2706
    %v3811 = vpack.c.b16 %v2755, %v2707
    %v3812 = vpack.c.b16 %v2756, %v2708
    %v3813 = vpack.c.b16 %v2757, %v2709
    %v3814 = vpack.c.b16 %v2758, %v2710
    %v3815 = vpack.c.b16 %v2759, %v2711
    %v3816 = vpack.c.b16 %v2760, %v2712
    %v3817 = vpack.c.b16 %v2761, %v2713
    %v3818 = vpack.c.b16 %v2762, %v2714
    %v3819 = vpack.c.b16 %v2763, %v2715
    %v3820 = vpack.c.b16 %v2764, %v2716
    %v3821 = vpack.c.b16 %v2765, %v2717
    %v3822 = vpack.c.b16 %v2766, %v2718
    %v3823 = vpack.c.b16 %v2767, %v2719
    %v3824 = vpack.c.b16 %v2768, %v2720
    %v3825 = vpack.c.b16 %v2769, %v2721
    %v3826 = vpack.c.b16 %v2770, %v2722
    %v3827 = vpack.c.b16 %v2771, %v2723
    %v3828 = vpack.c.b16 %v2772, %v2724
    %v3829 = vpack.c.b16 %v2773, %v2725
    %v3830 = vpack.c.b16 %v2774, %v2726
    %v3831 = vpack.c.b16 %v2823, %v2775
    %v3832 = vpack.c.b16 %v2824, %v2776
    %v3833 = vpack.c.b16 %v2825, %v2777
    %v3834 = vpack.c.b16 %v2826, %v2778
    %v3835 = vpack.c.b16 %v2827, %v2779
    %v3836 = vpack.c.b16 %v2828, %v2780
    %v3837 = vpack.c.b16 %v2829, %v2781
    %v3838 = vpack.c.b16 %v2830, %v2782
    %v3839 = vpack.c.b16 %v2831, %v2783
    %v3840 = vpack.c.b16 %v2832, %v2784
    %v3841 = vpack.c.b16 %v2833, %v2785
    %v3842 = vpack.c.b16 %v2834, %v2786
    %v3843 = vpack.c.b16 %v2835, %v2787
    %v3844 = vpack.c.b16 %v2836, %v2788
    %v3845 = vpack.c.b16 %v2837, %v2789
    %v3846 = vpack.c.b16 %v2838, %v2790
    %v3847 = vpack.c.b16 %v2839, %v2791
    %v3848 = vpack.c.b16 %v2840, %v2792
    %v3849 = vpack.c.b16 %v2841, %v2793
    %v3850 = vpack.c.b16 %v2842, %v2794
    %v3851 = vpack.c.b16 %v2843, %v2795
    %v3852 = vpack.c.b16 %v2844, %v2796
    %v3853 = vpack.c.b16 %v2845, %v2797
    %v3854 = vpack.c.b16 %v2846, %v2798
    %v3855 = vpack.c.b16 %v2847, %v2799
    %v3856 = vpack.c.b16 %v2848, %v2800
    %v3857 = vpack.c.b16 %v2849, %v2801
    %v3858 = vpack.c.b16 %v2850, %v2802
    %v3859 = vpack.c.b16 %v2851, %v2803
    %v3860 = vpack.c.b16 %v2852, %v2804
    %v3861 = vpack.c.b16 %v2853, %v2805
    %v3862 = vpack.c.b16 %v2854, %v2806
    %v3863 = vpack.c.b16 %v2855, %v2807
    %v3864 = vpack.c.b16 %v2856, %v2808
    %v3865 = vpack.c.b16 %v2857, %v2809
    %v3866 = vpack.c.b16 %v2858, %v2810
    %v3867 = vpack.c.b16 %v2859, %v2811
    %v3868 = vpack.c.b16 %v2860, %v2812
    %v3869 = vpack.c.b16 %v2861, %v2813
    %v3870 = vpack.c.b16 %v2862, %v2814
    %v3871 = vpack.c.b16 %v2863, %v2815
    %v3872 = vpack.c.b16 %v2864, %v2816
    %v3873 = vpack.c.b16 %v2865, %v2817
    %v3874 = vpack.c.b16 %v2866, %v2818
    %v3875 = vpack.c.b16 %v2867, %v2819
    %v3876 = vpack.c.b16 %v2868, %v2820
    %v3877 = vpack.c.b16 %v2869, %v2821
    %v3878 = vpack.c.b16 %v2870, %v2822
    %v3879 = vpack.c.b16 %v2919, %v2871
    %v3880 = vpack.c.b16 %v2920, %v2872
    %v3881 = vpack.c.b16 %v2921, %v2873
    %v3882 = vpack.c.b16 %v2922, %v2874
    %v3883 = vpack.c.b16 %v2923, %v2875
    %v3884 = vpack.c.b16 %v2924, %v2876
    %v3885 = vpack.c.b16 %v2925, %v2877
    %v3886 = vpack.c.b16 %v2926, %v2878
    %v3887 = vpack.c.b16 %v2927, %v2879
    %v3888 = vpack.c.b16 %v2928, %v2880
    %v3889 = vpack.c.b16 %v2929, %v2881
    %v3890 = vpack.c.b16 %v2930, %v2882
    %v3891 = vpack.c.b16 %v2931, %v2883
    %v3892 = vpack.c.b16 %v2932, %v2884
    %v3893 = vpack.c.b16 %v2933, %v2885
    %v3894 = vpack.c.b16 %v2934, %v2886
    %v3895 = vpack.c.b16 %v2935, %v2887
    %v3896 = vpack.c.b16 %v2936, %v2888
    %v3897 = vpack.c.b16 %v2937, %v2889
    %v3898 = vpack.c.b16 %v2938, %v2890
    %v3899 = vpack.c.b16 %v2939, %v2891
    %v3900 = vpack.c.b16 %v2940, %v2892
    %v3901 = vpack.c.b16 %v2941, %v2893
    %v3902 = vpack.c.b16 %v2942, %v2894
    %v3903 = vpack.c.b16 %v2943, %v2895
    %v3904 = vpack.c.b16 %v2944, %v2896
    %v3905 = vpack.c.b16 %v2945, %v2897
    %v3906 = vpack.c.b16 %v2946, %v2898
    %v3907 = vpack.c.b16 %v2947, %v2899
    %v3908 = vpack.c.b16 %v2948, %v2900
    %v3909 = vpack.c.b16 %v2949, %v2901
    %v3910 = vpack.c.b16 %v2950, %v2902
    %v3911 = vpack.c.b16 %v2951, %v2903
    %v3912 = vpack.c.b16 %v2952, %v2904
    %v3913 = vpack.c.b16 %v2953, %v2905
    %v3914 = vpack.c.b16 %v2954, %v2906
    %v3915 = vpack.c.b16 %v2955, %v2907
    %v3916 = vpack.c.b16 %v2956, %v2908
    %v3917 = vpack.c.b16 %v2957, %v2909
    %v3918 = vpack.c.b16 %v2958, %v2910
    %v3919 = vpack.c.b16 %v2959, %v2911
    %v3920 = vpack.c.b16 %v2960, %v2912
    %v3921 = vpack.c.b16 %v2961, %v2913
    %v3922 = vpack.c.b16 %v2962, %v2914
    %v3923 = vpack.c.b16 %v2963, %v2915
    %v3924 = vpack.c.b16 %v2964, %v2916
    %v3925 = vpack.c.b16 %v2965, %v2917
    %v3926 = vpack.c.b16 %v2966, %v2918
    %v3927 = vpack.c.b16 %v3015, %v2967
    %v3928 = vpack.c.b16 %v3016, %v2968
    %v3929 = vpack.c.b16 %v3017, %v2969
    %v3930 = vpack.c.b16 %v3018, %v2970
    %v3931 = vpack.c.b16 %v3019, %v2971
    %v3932 = vpack.c.b16 %v3020, %v2972
    %v3933 = vpack.c.b16 %v3021, %v2973
    %v3934 = vpack.c.b16 %v3022, %v2974
    %v3935 = vpack.c.b16 %v3023, %v2975
    %v3936 = vpack.c.b16 %v3024, %v2976
    %v3937 = vpack.c.b16 %v3025, %v2977
    %v3938 = vpack.c.b16 %v3026, %v2978
    %v3939 = vpack.c.b16 %v3027, %v2979
    %v3940 = vpack.c.b16 %v3028, %v2980
    %v3941 = vpack.c.b16 %v3029, %v2981
    %v3942 = vpack.c.b16 %v3030, %v2982
    %v3943 = vpack.c.b16 %v3031, %v2983
    %v3944 = vpack.c.b16 %v3032, %v2984
    %v3945 = vpack.c.b16 %v3033, %v2985
    %v3946 = vpack.c.b16 %v3034, %v2986
    %v3947 = vpack.c.b16 %v3035, %v2987
    %v3948 = vpack.c.b16 %v3036, %v2988
    %v3949 = vpack.c.b16 %v3037, %v2989
    %v3950 = vpack.c.b16 %v3038, %v2990
    %v3951 = vpack.c.b16 %v3039, %v2991
    %v3952 = vpack.c.b16 %v3040, %v2992
    %v3953 = vpack.c.b16 %v3041, %v2993
    %v3954 = vpack.c.b16 %v3042, %v2994
    %v3955 = vpack.c.b16 %v3043, %v2995
    %v3956 = vpack.c.b16 %v3044, %v2996
    %v3957 = vpack.c.b16 %v3045, %v2997
    %v3958 = vpack.c.b16 %v3046, %v2998
    %v3959 = vpack.c.b16 %v3047, %v2999
    %v3960 = vpack.c.b16 %v3048, %v3000
    %v3961 = vpack.c.b16 %v3049, %v3001
    %v3962 = vpack.c.b16 %v3050, %v3002
    %v3963 = vpack.c.b16 %v3051, %v3003
    %v3964 = vpack.c.b16 %v3052, %v3004
    %v3965 = vpack.c.b16 %v3053, %v3005
    %v3966 = vpack.c.b16 %v3054, %v3006
    %v3967 = vpack.c.b16 %v3055, %v3007
    %v3968 = vpack.c.b16 %v3056, %v3008
    %v3969 = vpack.c.b16 %v3057, %v3009
    %v3970 = vpack.c.b16 %v3058, %v3010
    %v3971 = vpack.c.b16 %v3059, %v3011
    %v3972 = vpack.c.b16 %v3060, %v3012
    %v3973 = vpack.c.b16 %v3061, %v3013
    %v3974 = vpack.c.b16 %v3062, %v3014
    %v3975 = vpack.c.b16 %v3111, %v3063
    %v3976 = vpack.c.b16 %v3112, %v3064
    %v3977 = vpack.c.b16 %v3113, %v3065
    %v3978 = vpack.c.b16 %v3114, %v3066
    %v3979 = vpack.c.b16 %v3115, %v3067
    %v3980 = vpack.c.b16 %v3116, %v3068
    %v3981 = vpack.c.b16 %v3117, %v3069
    %v3982 = vpack.c.b16 %v3118, %v3070
    %v3983 = vpack.c.b16 %v3119, %v3071
    %v3984 = vpack.c.b16 %v3120, %v3072
    %v3985 = vpack.c.b16 %v3121, %v3073
    %v3986 = vpack.c.b16 %v3122, %v3074
    %v3987 = vpack.c.b16 %v3123, %v3075
    %v3988 = vpack.c.b16 %v3124, %v3076
    %v3989 = vpack.c.b16 %v3125, %v3077
    %v3990 = vpack.c.b16 %v3126, %v3078
    %v3991 = vpack.c.b16 %v3127, %v3079
    %v3992 = vpack.c.b16 %v3128, %v3080
    %v3993 = vpack.c.b16 %v3129, %v3081
    %v3994 = vpack.c.b16 %v3130, %v3082
    %v3995 = vpack.c.b16 %v3131, %v3083
    %v3996 = vpack.c.b16 %v3132, %v3084
    %v3997 = vpack.c.b16 %v3133, %v3085
    %v3998 = vpack.c.b16 %v3134, %v3086
    %v3999 = vpack.c.b16 %v3135, %v3087
    %v4000 = vpack.c.b16 %v3136, %v3088
    %v4001 = vpack.c.b16 %v3137, %v3089
    %v4002 = vpack.c.b16 %v3138, %v3090
    %v4003 = vpack.c.b16 %v3139, %v3091
    %v4004 = vpack.c.b16 %v3140, %v3092
    %v4005 = vpack.c.b16 %v3141, %v3093
    %v4006 = vpack.c.b16 %v3142, %v3094
    %v4007 = vpack.c.b16 %v3143, %v3095
    %v4008 = vpack.c.b16 %v3144, %v3096
    %v4009 = vpack.c.b16 %v3145, %v3097
    %v4010 = vpack.c.b16 %v3146, %v3098
    %v4011 = vpack.c.b16 %v3147, %v3099
    %v4012 = vpack.c.b16 %v3148, %v3100
    %v4013 = vpack.c.b16 %v3149, %v3101
    %v4014 = vpack.c.b16 %v3150, %v3102
    %v4015 = vpack.c.b16 %v3151, %v3103
    %v4016 = vpack.c.b16 %v3152, %v3104
    %v4017 = vpack.c.b16 %v3153, %v3105
    %v4018 = vpack.c.b16 %v3154, %v3106
    %v4019 = vpack.c.b16 %v3155, %v3107
    %v4020 = vpack.c.b16 %v3156, %v3108
    %v4021 = vpack.c.b16 %v3157, %v3109
    %v4022 = vpack.c.b16 %v3158, %v3110
    %v4023 = vpack.c.b16 %v3207, %v3159
    %v4024 = vpack.c.b16 %v3208, %v3160
    %v4025 = vpack.c.b16 %v3209, %v3161
    %v4026 = vpack.c.b16 %v3210, %v3162
    %v4027 = vpack.c.b16 %v3211, %v3163
    %v4028 = vpack.c.b16 %v3212, %v3164
    %v4029 = vpack.c.b16 %v3213, %v3165
    %v4030 = vpack.c.b16 %v3214, %v3166
    %v4031 = vpack.c.b16 %v3215, %v3167
    %v4032 = vpack.c.b16 %v3216, %v3168
    %v4033 = vpack.c.b16 %v3217, %v3169
    %v4034 = vpack.c.b16 %v3218, %v3170
    %v4035 = vpack.c.b16 %v3219, %v3171
    %v4036 = vpack.c.b16 %v3220, %v3172
    %v4037 = vpack.c.b16 %v3221, %v3173
    %v4038 = vpack.c.b16 %v3222, %v3174
    %v4039 = vpack.c.b16 %v3223, %v3175
    %v4040 = vpack.c.b16 %v3224, %v3176
    %v4041 = vpack.c.b16 %v3225, %v3177
    %v4042 = vpack.c.b16 %v3226, %v3178
    %v4043 = vpack.c.b16 %v3227, %v3179
    %v4044 = vpack.c.b16 %v3228, %v3180
    %v4045 = vpack.c.b16 %v3229, %v3181
    %v4046 = vpack.c.b16 %v3230, %v3182
    %v4047 = vpack.c.b16 %v3231, %v3183
    %v4048 = vpack.c.b16 %v3232, %v3184
    %v4049 = vpack.c.b16 %v3233, %v3185
    %v4050 = vpack.c.b16 %v3234, %v3186
    %v4051 = vpack.c.b16 %v3235, %v3187
    %v4052 = vpack.c.b16 %v3236, %v3188
    %v4053 = vpack.c.b16 %v3237, %v3189
    %v4054 = vpack.c.b16 %v3238, %v3190
    %v4055 = vpack.c.b16 %v3239, %v3191
    %v4056 = vpack.c.b16 %v3240, %v3192
    %v4057 = vpack.c.b16 %v3241, %v3193
    %v4058 = vpack.c.b16 %v3242, %v3194
    %v4059 = vpack.c.b16 %v3243, %v3195
    %v4060 = vpack.c.b16 %v3244, %v3196
    %v4061 = vpack.c.b16 %v3245, %v3197
    %v4062 = vpack.c.b16 %v3246, %v3198
    %v4063 = vpack.c.b16 %v3247, %v3199
    %v4064 = vpack.c.b16 %v3248, %v3200
    %v4065 = vpack.c.b16 %v3249, %v3201
    %v4066 = vpack.c.b16 %v3250, %v3202
    %v4067 = vpack.c.b16 %v3251, %v3203
    %v4068 = vpack.c.b16 %v3252, %v3204
    %v4069 = vpack.c.b16 %v3253, %v3205
    %v4070 = vpack.c.b16 %v3254, %v3206
    %v4071 = vpack.c.b16 %v3303, %v3255
    %v4072 = vpack.c.b16 %v3304, %v3256
    %v4073 = vpack.c.b16 %v3305, %v3257
    %v4074 = vpack.c.b16 %v3306, %v3258
    %v4075 = vpack.c.b16 %v3307, %v3259
    %v4076 = vpack.c.b16 %v3308, %v3260
    %v4077 = vpack.c.b16 %v3309, %v3261
    %v4078 = vpack.c.b16 %v3310, %v3262
    %v4079 = vpack.c.b16 %v3311, %v3263
    %v4080 = vpack.c.b16 %v3312, %v3264
    %v4081 = vpack.c.b16 %v3313, %v3265
    %v4082 = vpack.c.b16 %v3314, %v3266
    %v4083 = vpack.c.b16 %v3315, %v3267
    %v4084 = vpack.c.b16 %v3316, %v3268
    %v4085 = vpack.c.b16 %v3317, %v3269
    %v4086 = vpack.c.b16 %v3318, %v3270
    %v4087 = vpack.c.b16 %v3319, %v3271
    %v4088 = vpack.c.b16 %v3320, %v3272
    %v4089 = vpack.c.b16 %v3321, %v3273
    %v4090 = vpack.c.b16 %v3322, %v3274
    %v4091 = vpack.c.b16 %v3323, %v3275
    %v4092 = vpack.c.b16 %v3324, %v3276
    %v4093 = vpack.c.b16 %v3325, %v3277
    %v4094 = vpack.c.b16 %v3326, %v3278
    %v4095 = vpack.c.b16 %v3327, %v3279
    %v4096 = vpack.c.b16 %v3328, %v3280
    %v4097 = vpack.c.b16 %v3329, %v3281
    %v4098 = vpack.c.b16 %v3330, %v3282
    %v4099 = vpack.c.b16 %v3331, %v3283
    %v4100 = vpack.c.b16 %v3332, %v3284
    %v4101 = vpack.c.b16 %v3333, %v3285
    %v4102 = vpack.c.b16 %v3334, %v3286
    %v4103 = vpack.c.b16 %v3335, %v3287
    %v4104 = vpack.c.b16 %v3336, %v3288
    %v4105 = vpack.c.b16 %v3337, %v3289
    %v4106 = vpack.c.b16 %v3338, %v3290
    %v4107 = vpack.c.b16 %v3339, %v3291
    %v4108 = vpack.c.b16 %v3340, %v3292
    %v4109 = vpack.c.b16 %v3341, %v3293
    %v4110 = vpack.c.b16 %v3342, %v3294
    %v4111 = vpack.c.b16 %v3343, %v3295
    %v4112 = vpack.c.b16 %v3344, %v3296
    %v4113 = vpack.c.b16 %v3345, %v3297
    %v4114 = vpack.c.b16 %v3346, %v3298
    %v4115 = vpack.c.b16 %v3347, %v3299
    %v4116 = vpack.c.b16 %v3348, %v3300
    %v4117 = vpack.c.b16 %v3349, %v3301
    %v4118 = vpack.c.b16 %v3350, %v3302
    %4887 = vmatprep.subr.bf16.mxu0 %v3688
    %4888 = vmatpush1.bf16.msra.mxu0 %v3687
    %4889 = vmatprep.subr.bf16.mxu0 %v3640
    %4890 = vmatpush1.bf16.msra.mxu0 %v3639
    %4891 = vmatprep.subr.bf16.mxu0 %v3592
    %4892 = vmatpush1.bf16.msra.mxu0 %v3591
    %4893 = vmatprep.subr.bf16.mxu0 %v3544
    %4894 = vmatpush1.bf16.msra.mxu0 %v3543
    %4895 = vmatprep.subr.bf16.mxu0 %v3496
    %4896 = vmatpush1.bf16.msra.mxu0 %v3495
    %4897 = vmatprep.subr.bf16.mxu0 %v3448
    %4898 = vmatpush1.bf16.msra.mxu0 %v3447
    %4899 = vmatprep.subr.bf16.mxu0 %v3400
    %4900 = vmatpush1.bf16.msra.mxu0 %v3399
    %4901 = vmatprep.subr.bf16.mxu0 %v3352
    %4902 = vmatpush1.bf16.msra.mxu0 %v3351
    %4903 = vmatprep.subr.bf16.mxu0 %v4072
    %4904 = vmatpush2.bf16.msra.mxu0 %v4071
    %4905 = vmatprep.subr.bf16.mxu0 %v4024
    %4906 = vmatpush2.bf16.msra.mxu0 %v4023
    %4907 = vmatprep.subr.bf16.mxu0 %v3976
    %4908 = vmatpush2.bf16.msra.mxu0 %v3975
    %4909 = vmatprep.subr.bf16.mxu0 %v3928
    %4910 = vmatpush2.bf16.msra.mxu0 %v3927
    %4911 = vmatprep.subr.bf16.mxu0 %v3880
    %4912 = vmatpush2.bf16.msra.mxu0 %v3879
    %4913 = vmatprep.subr.bf16.mxu0 %v3832
    %4914 = vmatpush2.bf16.msra.mxu0 %v3831
    %4915 = vmatprep.subr.bf16.mxu0 %v3784
    %4916 = vmatpush2.bf16.msra.mxu0 %v3783
    %4917 = vmatprep.subr.bf16.mxu0 %v3736
    %4918 = vmatpush2.bf16.msra.mxu0 %v3735
    %4919 = vmatprep.mubr.bf16.mxu0 %v1044
    %4920 = vmatmul.mubr.bf16.gmra.mxu0 %v1043
    %v4921 = vpop.f32.mrf.mxu0
    %v4922 = vadd.f32 %v800, %v4921
    %v4923 = vpop.f32.mrf.mxu0
    %v4924 = vadd.f32 %v804, %v4923
    %v4925 = vpop.f32.mrf.mxu0
    %v4926 = vadd.f32 %v800, %v4925
    %v4927 = vpop.f32.mrf.mxu0
    %v4928 = vadd.f32 %v804, %v4927
    %4929 = vdwg.mxu0
    %4930 = vmatprep.subr.bf16.mxu0 %v3690
    %4931 = vmatpush1.bf16.msra.mxu0 %v3689
    %4932 = vmatprep.subr.bf16.mxu0 %v3642
    %4933 = vmatpush1.bf16.msra.mxu0 %v3641
    %4934 = vmatprep.subr.bf16.mxu0 %v3594
    %4935 = vmatpush1.bf16.msra.mxu0 %v3593
    %4936 = vmatprep.subr.bf16.mxu0 %v3546
    %4937 = vmatpush1.bf16.msra.mxu0 %v3545
    %4938 = vmatprep.subr.bf16.mxu0 %v3498
    %4939 = vmatpush1.bf16.msra.mxu0 %v3497
    %4940 = vmatprep.subr.bf16.mxu0 %v3450
    %4941 = vmatpush1.bf16.msra.mxu0 %v3449
    %4942 = vmatprep.subr.bf16.mxu0 %v3402
    %4943 = vmatpush1.bf16.msra.mxu0 %v3401
    %4944 = vmatprep.subr.bf16.mxu0 %v3354
    %4945 = vmatpush1.bf16.msra.mxu0 %v3353
    %4946 = vmatprep.subr.bf16.mxu0 %v4074
    %4947 = vmatpush2.bf16.msra.mxu0 %v4073
    %4948 = vmatprep.subr.bf16.mxu0 %v4026
    %4949 = vmatpush2.bf16.msra.mxu0 %v4025
    %4950 = vmatprep.subr.bf16.mxu0 %v3978
    %4951 = vmatpush2.bf16.msra.mxu0 %v3977
    %4952 = vmatprep.subr.bf16.mxu0 %v3930
    %4953 = vmatpush2.bf16.msra.mxu0 %v3929
    %4954 = vmatprep.subr.bf16.mxu0 %v3882
    %4955 = vmatpush2.bf16.msra.mxu0 %v3881
    %4956 = vmatprep.subr.bf16.mxu0 %v3834
    %4957 = vmatpush2.bf16.msra.mxu0 %v3833
    %4958 = vmatprep.subr.bf16.mxu0 %v3786
    %4959 = vmatpush2.bf16.msra.mxu0 %v3785
    %4960 = vmatprep.subr.bf16.mxu0 %v3738
    %4961 = vmatpush2.bf16.msra.mxu0 %v3737
    %4962 = vmatprep.mubr.bf16.mxu0 %v1044
    %4963 = vmatmul.mubr.bf16.gmra.mxu0 %v1043
    %v4964 = vpop.f32.mrf.mxu0
    %v4965 = vadd.f32 %v808, %v4964
    %v4966 = vpop.f32.mrf.mxu0
    %v4967 = vadd.f32 %v812, %v4966
    %v4968 = vpop.f32.mrf.mxu0
    %v4969 = vadd.f32 %v808, %v4968
    %v4970 = vpop.f32.mrf.mxu0
    %v4971 = vadd.f32 %v812, %v4970
    %4972 = vdwg.mxu0
    %4973 = vmatprep.subr.bf16.mxu0 %v3692
    %4974 = vmatpush1.bf16.msra.mxu0 %v3691
    %4975 = vmatprep.subr.bf16.mxu0 %v3644
    %4976 = vmatpush1.bf16.msra.mxu0 %v3643
    %4977 = vmatprep.subr.bf16.mxu0 %v3596
    %4978 = vmatpush1.bf16.msra.mxu0 %v3595
    %4979 = vmatprep.subr.bf16.mxu0 %v3548
    %4980 = vmatpush1.bf16.msra.mxu0 %v3547
    %4981 = vmatprep.subr.bf16.mxu0 %v3500
    %4982 = vmatpush1.bf16.msra.mxu0 %v3499
    %4983 = vmatprep.subr.bf16.mxu0 %v3452
    %4984 = vmatpush1.bf16.msra.mxu0 %v3451
    %4985 = vmatprep.subr.bf16.mxu0 %v3404
    %4986 = vmatpush1.bf16.msra.mxu0 %v3403
    %4987 = vmatprep.subr.bf16.mxu0 %v3356
    %4988 = vmatpush1.bf16.msra.mxu0 %v3355
    %4989 = vmatprep.subr.bf16.mxu0 %v4076
    %4990 = vmatpush2.bf16.msra.mxu0 %v4075
    %4991 = vmatprep.subr.bf16.mxu0 %v4028
    %4992 = vmatpush2.bf16.msra.mxu0 %v4027
    %4993 = vmatprep.subr.bf16.mxu0 %v3980
    %4994 = vmatpush2.bf16.msra.mxu0 %v3979
    %4995 = vmatprep.subr.bf16.mxu0 %v3932
    %4996 = vmatpush2.bf16.msra.mxu0 %v3931
    %4997 = vmatprep.subr.bf16.mxu0 %v3884
    %4998 = vmatpush2.bf16.msra.mxu0 %v3883
    %4999 = vmatprep.subr.bf16.mxu0 %v3836
    %5000 = vmatpush2.bf16.msra.mxu0 %v3835
    %5001 = vmatprep.subr.bf16.mxu0 %v3788
    %5002 = vmatpush2.bf16.msra.mxu0 %v3787
    %5003 = vmatprep.subr.bf16.mxu0 %v3740
    %5004 = vmatpush2.bf16.msra.mxu0 %v3739
    %5005 = vmatprep.mubr.bf16.mxu0 %v1044
    %5006 = vmatmul.mubr.bf16.gmra.mxu0 %v1043
    %v5007 = vpop.f32.mrf.mxu0
    %v5008 = vadd.f32 %v816, %v5007
    %v5009 = vpop.f32.mrf.mxu0
    %v5010 = vadd.f32 %v820, %v5009
    %v5011 = vpop.f32.mrf.mxu0
    %v5012 = vadd.f32 %v816, %v5011
    %v5013 = vpop.f32.mrf.mxu0
    %v5014 = vadd.f32 %v820, %v5013
    %5015 = vdwg.mxu0
    %5016 = vmatprep.subr.bf16.mxu0 %v3694
    %5017 = vmatpush1.bf16.msra.mxu0 %v3693
    %5018 = vmatprep.subr.bf16.mxu0 %v3646
    %5019 = vmatpush1.bf16.msra.mxu0 %v3645
    %5020 = vmatprep.subr.bf16.mxu0 %v3598
    %5021 = vmatpush1.bf16.msra.mxu0 %v3597
    %5022 = vmatprep.subr.bf16.mxu0 %v3550
    %5023 = vmatpush1.bf16.msra.mxu0 %v3549
    %5024 = vmatprep.subr.bf16.mxu0 %v3502
    %5025 = vmatpush1.bf16.msra.mxu0 %v3501
    %5026 = vmatprep.subr.bf16.mxu0 %v3454
    %5027 = vmatpush1.bf16.msra.mxu0 %v3453
    %5028 = vmatprep.subr.bf16.mxu0 %v3406
    %5029 = vmatpush1.bf16.msra.mxu0 %v3405
    %5030 = vmatprep.subr.bf16.mxu0 %v3358
    %5031 = vmatpush1.bf16.msra.mxu0 %v3357
    %5032 = vmatprep.subr.bf16.mxu0 %v4078
    %5033 = vmatpush2.bf16.msra.mxu0 %v4077
    %5034 = vmatprep.subr.bf16.mxu0 %v4030
    %5035 = vmatpush2.bf16.msra.mxu0 %v4029
    %5036 = vmatprep.subr.bf16.mxu0 %v3982
    %5037 = vmatpush2.bf16.msra.mxu0 %v3981
    %5038 = vmatprep.subr.bf16.mxu0 %v3934
    %5039 = vmatpush2.bf16.msra.mxu0 %v3933
    %5040 = vmatprep.subr.bf16.mxu0 %v3886
    %5041 = vmatpush2.bf16.msra.mxu0 %v3885
    %5042 = vmatprep.subr.bf16.mxu0 %v3838
    %5043 = vmatpush2.bf16.msra.mxu0 %v3837
    %5044 = vmatprep.subr.bf16.mxu0 %v3790
    %5045 = vmatpush2.bf16.msra.mxu0 %v3789
    %5046 = vmatprep.subr.bf16.mxu0 %v3742
    %5047 = vmatpush2.bf16.msra.mxu0 %v3741
    %5048 = vmatprep.mubr.bf16.mxu0 %v1044
    %5049 = vmatmul.mubr.bf16.gmra.mxu0 %v1043
    %v5050 = vpop.f32.mrf.mxu0
    %v5051 = vadd.f32 %v824, %v5050
    %v5052 = vpop.f32.mrf.mxu0
    %v5053 = vadd.f32 %v828, %v5052
    %v5054 = vpop.f32.mrf.mxu0
    %v5055 = vadd.f32 %v824, %v5054
    %v5056 = vpop.f32.mrf.mxu0
    %v5057 = vadd.f32 %v828, %v5056
    %5058 = vdwg.mxu0
    %5059 = vmatprep.subr.bf16.mxu0 %v3696
    %5060 = vmatpush1.bf16.msra.mxu0 %v3695
    %5061 = vmatprep.subr.bf16.mxu0 %v3648
    %5062 = vmatpush1.bf16.msra.mxu0 %v3647
    %5063 = vmatprep.subr.bf16.mxu0 %v3600
    %5064 = vmatpush1.bf16.msra.mxu0 %v3599
    %5065 = vmatprep.subr.bf16.mxu0 %v3552
    %5066 = vmatpush1.bf16.msra.mxu0 %v3551
    %5067 = vmatprep.subr.bf16.mxu0 %v3504
    %5068 = vmatpush1.bf16.msra.mxu0 %v3503
    %5069 = vmatprep.subr.bf16.mxu0 %v3456
    %5070 = vmatpush1.bf16.msra.mxu0 %v3455
    %5071 = vmatprep.subr.bf16.mxu0 %v3408
    %5072 = vmatpush1.bf16.msra.mxu0 %v3407
    %5073 = vmatprep.subr.bf16.mxu0 %v3360
    %5074 = vmatpush1.bf16.msra.mxu0 %v3359
    %5075 = vmatprep.subr.bf16.mxu0 %v4080
    %5076 = vmatpush2.bf16.msra.mxu0 %v4079
    %5077 = vmatprep.subr.bf16.mxu0 %v4032
    %5078 = vmatpush2.bf16.msra.mxu0 %v4031
    %5079 = vmatprep.subr.bf16.mxu0 %v3984
    %5080 = vmatpush2.bf16.msra.mxu0 %v3983
    %5081 = vmatprep.subr.bf16.mxu0 %v3936
    %5082 = vmatpush2.bf16.msra.mxu0 %v3935
    %5083 = vmatprep.subr.bf16.mxu0 %v3888
    %5084 = vmatpush2.bf16.msra.mxu0 %v3887
    %5085 = vmatprep.subr.bf16.mxu0 %v3840
    %5086 = vmatpush2.bf16.msra.mxu0 %v3839
    %5087 = vmatprep.subr.bf16.mxu0 %v3792
    %5088 = vmatpush2.bf16.msra.mxu0 %v3791
    %5089 = vmatprep.subr.bf16.mxu0 %v3744
    %5090 = vmatpush2.bf16.msra.mxu0 %v3743
    %5091 = vmatprep.mubr.bf16.mxu0 %v1044
    %5092 = vmatmul.mubr.bf16.gmra.mxu0 %v1043
    %v5093 = vpop.f32.mrf.mxu0
    %v5094 = vadd.f32 %v832, %v5093
    %v5095 = vpop.f32.mrf.mxu0
    %v5096 = vadd.f32 %v836, %v5095
    %v5097 = vpop.f32.mrf.mxu0
    %v5098 = vadd.f32 %v832, %v5097
    %v5099 = vpop.f32.mrf.mxu0
    %v5100 = vadd.f32 %v836, %v5099
    %5101 = vdwg.mxu0
    %5102 = vmatprep.subr.bf16.mxu0 %v3698
    %5103 = vmatpush1.bf16.msra.mxu0 %v3697
    %5104 = vmatprep.subr.bf16.mxu0 %v3650
    %5105 = vmatpush1.bf16.msra.mxu0 %v3649
    %5106 = vmatprep.subr.bf16.mxu0 %v3602
    %5107 = vmatpush1.bf16.msra.mxu0 %v3601
    %5108 = vmatprep.subr.bf16.mxu0 %v3554
    %5109 = vmatpush1.bf16.msra.mxu0 %v3553
    %5110 = vmatprep.subr.bf16.mxu0 %v3506
    %5111 = vmatpush1.bf16.msra.mxu0 %v3505
    %5112 = vmatprep.subr.bf16.mxu0 %v3458
    %5113 = vmatpush1.bf16.msra.mxu0 %v3457
    %5114 = vmatprep.subr.bf16.mxu0 %v3410
    %5115 = vmatpush1.bf16.msra.mxu0 %v3409
    %5116 = vmatprep.subr.bf16.mxu0 %v3362
    %5117 = vmatpush1.bf16.msra.mxu0 %v3361
    %5118 = vmatprep.subr.bf16.mxu0 %v4082
    %5119 = vmatpush2.bf16.msra.mxu0 %v4081
    %5120 = vmatprep.subr.bf16.mxu0 %v4034
    %5121 = vmatpush2.bf16.msra.mxu0 %v4033
    %5122 = vmatprep.subr.bf16.mxu0 %v3986
    %5123 = vmatpush2.bf16.msra.mxu0 %v3985
    %5124 = vmatprep.subr.bf16.mxu0 %v3938
    %5125 = vmatpush2.bf16.msra.mxu0 %v3937
    %5126 = vmatprep.subr.bf16.mxu0 %v3890
    %5127 = vmatpush2.bf16.msra.mxu0 %v3889
    %5128 = vmatprep.subr.bf16.mxu0 %v3842
    %5129 = vmatpush2.bf16.msra.mxu0 %v3841
    %5130 = vmatprep.subr.bf16.mxu0 %v3794
    %5131 = vmatpush2.bf16.msra.mxu0 %v3793
    %5132 = vmatprep.subr.bf16.mxu0 %v3746
    %5133 = vmatpush2.bf16.msra.mxu0 %v3745
    %5134 = vmatprep.mubr.bf16.mxu0 %v1044
    %5135 = vmatmul.mubr.bf16.gmra.mxu0 %v1043
    %v5136 = vpop.f32.mrf.mxu0
    %v5137 = vadd.f32 %v840, %v5136
    %v5138 = vpop.f32.mrf.mxu0
    %v5139 = vadd.f32 %v844, %v5138
    %v5140 = vpop.f32.mrf.mxu0
    %v5141 = vadd.f32 %v840, %v5140
    %v5142 = vpop.f32.mrf.mxu0
    %v5143 = vadd.f32 %v844, %v5142
    %5144 = vdwg.mxu0
    %5145 = vmatprep.subr.bf16.mxu0 %v3700
    %5146 = vmatpush1.bf16.msra.mxu0 %v3699
    %5147 = vmatprep.subr.bf16.mxu0 %v3652
    %5148 = vmatpush1.bf16.msra.mxu0 %v3651
    %5149 = vmatprep.subr.bf16.mxu0 %v3604
    %5150 = vmatpush1.bf16.msra.mxu0 %v3603
    %5151 = vmatprep.subr.bf16.mxu0 %v3556
    %5152 = vmatpush1.bf16.msra.mxu0 %v3555
    %5153 = vmatprep.subr.bf16.mxu0 %v3508
    %5154 = vmatpush1.bf16.msra.mxu0 %v3507
    %5155 = vmatprep.subr.bf16.mxu0 %v3460
    %5156 = vmatpush1.bf16.msra.mxu0 %v3459
    %5157 = vmatprep.subr.bf16.mxu0 %v3412
    %5158 = vmatpush1.bf16.msra.mxu0 %v3411
    %5159 = vmatprep.subr.bf16.mxu0 %v3364
    %5160 = vmatpush1.bf16.msra.mxu0 %v3363
    %5161 = vmatprep.subr.bf16.mxu0 %v4084
    %5162 = vmatpush2.bf16.msra.mxu0 %v4083
    %5163 = vmatprep.subr.bf16.mxu0 %v4036
    %5164 = vmatpush2.bf16.msra.mxu0 %v4035
    %5165 = vmatprep.subr.bf16.mxu0 %v3988
    %5166 = vmatpush2.bf16.msra.mxu0 %v3987
    %5167 = vmatprep.subr.bf16.mxu0 %v3940
    %5168 = vmatpush2.bf16.msra.mxu0 %v3939
    %5169 = vmatprep.subr.bf16.mxu0 %v3892
    %5170 = vmatpush2.bf16.msra.mxu0 %v3891
    %5171 = vmatprep.subr.bf16.mxu0 %v3844
    %5172 = vmatpush2.bf16.msra.mxu0 %v3843
    %5173 = vmatprep.subr.bf16.mxu0 %v3796
    %5174 = vmatpush2.bf16.msra.mxu0 %v3795
    %5175 = vmatprep.subr.bf16.mxu0 %v3748
    %5176 = vmatpush2.bf16.msra.mxu0 %v3747
    %5177 = vmatprep.mubr.bf16.mxu0 %v1044
    %5178 = vmatmul.mubr.bf16.gmra.mxu0 %v1043
    %v5179 = vpop.f32.mrf.mxu0
    %v5180 = vadd.f32 %v848, %v5179
    %v5181 = vpop.f32.mrf.mxu0
    %v5182 = vadd.f32 %v852, %v5181
    %v5183 = vpop.f32.mrf.mxu0
    %v5184 = vadd.f32 %v848, %v5183
    %v5185 = vpop.f32.mrf.mxu0
    %v5186 = vadd.f32 %v852, %v5185
    %5187 = vdwg.mxu0
    %5188 = vmatprep.subr.bf16.mxu0 %v3702
    %5189 = vmatpush1.bf16.msra.mxu0 %v3701
    %5190 = vmatprep.subr.bf16.mxu0 %v3654
    %5191 = vmatpush1.bf16.msra.mxu0 %v3653
    %5192 = vmatprep.subr.bf16.mxu0 %v3606
    %5193 = vmatpush1.bf16.msra.mxu0 %v3605
    %5194 = vmatprep.subr.bf16.mxu0 %v3558
    %5195 = vmatpush1.bf16.msra.mxu0 %v3557
    %5196 = vmatprep.subr.bf16.mxu0 %v3510
    %5197 = vmatpush1.bf16.msra.mxu0 %v3509
    %5198 = vmatprep.subr.bf16.mxu0 %v3462
    %5199 = vmatpush1.bf16.msra.mxu0 %v3461
    %5200 = vmatprep.subr.bf16.mxu0 %v3414
    %5201 = vmatpush1.bf16.msra.mxu0 %v3413
    %5202 = vmatprep.subr.bf16.mxu0 %v3366
    %5203 = vmatpush1.bf16.msra.mxu0 %v3365
    %5204 = vmatprep.subr.bf16.mxu0 %v4086
    %5205 = vmatpush2.bf16.msra.mxu0 %v4085
    %5206 = vmatprep.subr.bf16.mxu0 %v4038
    %5207 = vmatpush2.bf16.msra.mxu0 %v4037
    %5208 = vmatprep.subr.bf16.mxu0 %v3990
    %5209 = vmatpush2.bf16.msra.mxu0 %v3989
    %5210 = vmatprep.subr.bf16.mxu0 %v3942
    %5211 = vmatpush2.bf16.msra.mxu0 %v3941
    %5212 = vmatprep.subr.bf16.mxu0 %v3894
    %5213 = vmatpush2.bf16.msra.mxu0 %v3893
    %5214 = vmatprep.subr.bf16.mxu0 %v3846
    %5215 = vmatpush2.bf16.msra.mxu0 %v3845
    %5216 = vmatprep.subr.bf16.mxu0 %v3798
    %5217 = vmatpush2.bf16.msra.mxu0 %v3797
    %5218 = vmatprep.subr.bf16.mxu0 %v3750
    %5219 = vmatpush2.bf16.msra.mxu0 %v3749
    %5220 = vmatprep.mubr.bf16.mxu0 %v1044
    %5221 = vmatmul.mubr.bf16.gmra.mxu0 %v1043
    %v5222 = vpop.f32.mrf.mxu0
    %v5223 = vadd.f32 %v856, %v5222
    %v5224 = vpop.f32.mrf.mxu0
    %v5225 = vadd.f32 %v860, %v5224
    %v5226 = vpop.f32.mrf.mxu0
    %v5227 = vadd.f32 %v856, %v5226
    %v5228 = vpop.f32.mrf.mxu0
    %v5229 = vadd.f32 %v860, %v5228
    %5230 = vdwg.mxu0
    %5231 = vmatprep.subr.bf16.mxu0 %v3704
    %5232 = vmatpush1.bf16.msra.mxu0 %v3703
    %5233 = vmatprep.subr.bf16.mxu0 %v3656
    %5234 = vmatpush1.bf16.msra.mxu0 %v3655
    %5235 = vmatprep.subr.bf16.mxu0 %v3608
    %5236 = vmatpush1.bf16.msra.mxu0 %v3607
    %5237 = vmatprep.subr.bf16.mxu0 %v3560
    %5238 = vmatpush1.bf16.msra.mxu0 %v3559
    %5239 = vmatprep.subr.bf16.mxu0 %v3512
    %5240 = vmatpush1.bf16.msra.mxu0 %v3511
    %5241 = vmatprep.subr.bf16.mxu0 %v3464
    %5242 = vmatpush1.bf16.msra.mxu0 %v3463
    %5243 = vmatprep.subr.bf16.mxu0 %v3416
    %5244 = vmatpush1.bf16.msra.mxu0 %v3415
    %5245 = vmatprep.subr.bf16.mxu0 %v3368
    %5246 = vmatpush1.bf16.msra.mxu0 %v3367
    %5247 = vmatprep.subr.bf16.mxu0 %v4088
    %5248 = vmatpush2.bf16.msra.mxu0 %v4087
    %5249 = vmatprep.subr.bf16.mxu0 %v4040
    %5250 = vmatpush2.bf16.msra.mxu0 %v4039
    %5251 = vmatprep.subr.bf16.mxu0 %v3992
    %5252 = vmatpush2.bf16.msra.mxu0 %v3991
    %5253 = vmatprep.subr.bf16.mxu0 %v3944
    %5254 = vmatpush2.bf16.msra.mxu0 %v3943
    %5255 = vmatprep.subr.bf16.mxu0 %v3896
    %5256 = vmatpush2.bf16.msra.mxu0 %v3895
    %5257 = vmatprep.subr.bf16.mxu0 %v3848
    %5258 = vmatpush2.bf16.msra.mxu0 %v3847
    %5259 = vmatprep.subr.bf16.mxu0 %v3800
    %5260 = vmatpush2.bf16.msra.mxu0 %v3799
    %5261 = vmatprep.subr.bf16.mxu0 %v3752
    %5262 = vmatpush2.bf16.msra.mxu0 %v3751
    %5263 = vmatprep.mubr.bf16.mxu0 %v1044
    %5264 = vmatmul.mubr.bf16.gmra.mxu0 %v1043
    %v5265 = vpop.f32.mrf.mxu0
    %v5266 = vadd.f32 %v864, %v5265
    %v5267 = vpop.f32.mrf.mxu0
    %v5268 = vadd.f32 %v868, %v5267
    %v5269 = vpop.f32.mrf.mxu0
    %v5270 = vadd.f32 %v864, %v5269
    %v5271 = vpop.f32.mrf.mxu0
    %v5272 = vadd.f32 %v868, %v5271
    %5273 = vdwg.mxu0
    %5274 = vmatprep.subr.bf16.mxu0 %v3706
    %5275 = vmatpush1.bf16.msra.mxu0 %v3705
    %5276 = vmatprep.subr.bf16.mxu0 %v3658
    %5277 = vmatpush1.bf16.msra.mxu0 %v3657
    %5278 = vmatprep.subr.bf16.mxu0 %v3610
    %5279 = vmatpush1.bf16.msra.mxu0 %v3609
    %5280 = vmatprep.subr.bf16.mxu0 %v3562
    %5281 = vmatpush1.bf16.msra.mxu0 %v3561
    %5282 = vmatprep.subr.bf16.mxu0 %v3514
    %5283 = vmatpush1.bf16.msra.mxu0 %v3513
    %5284 = vmatprep.subr.bf16.mxu0 %v3466
    %5285 = vmatpush1.bf16.msra.mxu0 %v3465
    %5286 = vmatprep.subr.bf16.mxu0 %v3418
    %5287 = vmatpush1.bf16.msra.mxu0 %v3417
    %5288 = vmatprep.subr.bf16.mxu0 %v3370
    %5289 = vmatpush1.bf16.msra.mxu0 %v3369
    %5290 = vmatprep.subr.bf16.mxu0 %v4090
    %5291 = vmatpush2.bf16.msra.mxu0 %v4089
    %5292 = vmatprep.subr.bf16.mxu0 %v4042
    %5293 = vmatpush2.bf16.msra.mxu0 %v4041
    %5294 = vmatprep.subr.bf16.mxu0 %v3994
    %5295 = vmatpush2.bf16.msra.mxu0 %v3993
    %5296 = vmatprep.subr.bf16.mxu0 %v3946
    %5297 = vmatpush2.bf16.msra.mxu0 %v3945
    %5298 = vmatprep.subr.bf16.mxu0 %v3898
    %5299 = vmatpush2.bf16.msra.mxu0 %v3897
    %5300 = vmatprep.subr.bf16.mxu0 %v3850
    %5301 = vmatpush2.bf16.msra.mxu0 %v3849
    %5302 = vmatprep.subr.bf16.mxu0 %v3802
    %5303 = vmatpush2.bf16.msra.mxu0 %v3801
    %5304 = vmatprep.subr.bf16.mxu0 %v3754
    %5305 = vmatpush2.bf16.msra.mxu0 %v3753
    %5306 = vmatprep.mubr.bf16.mxu0 %v1044
    %5307 = vmatmul.mubr.bf16.gmra.mxu0 %v1043
    %v5308 = vpop.f32.mrf.mxu0
    %v5309 = vadd.f32 %v872, %v5308
    %v5310 = vpop.f32.mrf.mxu0
    %v5311 = vadd.f32 %v876, %v5310
    %v5312 = vpop.f32.mrf.mxu0
    %v5313 = vadd.f32 %v872, %v5312
    %v5314 = vpop.f32.mrf.mxu0
    %v5315 = vadd.f32 %v876, %v5314
    %5316 = vdwg.mxu0
    %5317 = vmatprep.subr.bf16.mxu0 %v3708
    %5318 = vmatpush1.bf16.msra.mxu0 %v3707
    %5319 = vmatprep.subr.bf16.mxu0 %v3660
    %5320 = vmatpush1.bf16.msra.mxu0 %v3659
    %5321 = vmatprep.subr.bf16.mxu0 %v3612
    %5322 = vmatpush1.bf16.msra.mxu0 %v3611
    %5323 = vmatprep.subr.bf16.mxu0 %v3564
    %5324 = vmatpush1.bf16.msra.mxu0 %v3563
    %5325 = vmatprep.subr.bf16.mxu0 %v3516
    %5326 = vmatpush1.bf16.msra.mxu0 %v3515
    %5327 = vmatprep.subr.bf16.mxu0 %v3468
    %5328 = vmatpush1.bf16.msra.mxu0 %v3467
    %5329 = vmatprep.subr.bf16.mxu0 %v3420
    %5330 = vmatpush1.bf16.msra.mxu0 %v3419
    %5331 = vmatprep.subr.bf16.mxu0 %v3372
    %5332 = vmatpush1.bf16.msra.mxu0 %v3371
    %5333 = vmatprep.subr.bf16.mxu0 %v4092
    %5334 = vmatpush2.bf16.msra.mxu0 %v4091
    %5335 = vmatprep.subr.bf16.mxu0 %v4044
    %5336 = vmatpush2.bf16.msra.mxu0 %v4043
    %5337 = vmatprep.subr.bf16.mxu0 %v3996
    %5338 = vmatpush2.bf16.msra.mxu0 %v3995
    %5339 = vmatprep.subr.bf16.mxu0 %v3948
    %5340 = vmatpush2.bf16.msra.mxu0 %v3947
    %5341 = vmatprep.subr.bf16.mxu0 %v3900
    %5342 = vmatpush2.bf16.msra.mxu0 %v3899
    %5343 = vmatprep.subr.bf16.mxu0 %v3852
    %5344 = vmatpush2.bf16.msra.mxu0 %v3851
    %5345 = vmatprep.subr.bf16.mxu0 %v3804
    %5346 = vmatpush2.bf16.msra.mxu0 %v3803
    %5347 = vmatprep.subr.bf16.mxu0 %v3756
    %5348 = vmatpush2.bf16.msra.mxu0 %v3755
    %5349 = vmatprep.mubr.bf16.mxu0 %v1044
    %5350 = vmatmul.mubr.bf16.gmra.mxu0 %v1043
    %v5351 = vpop.f32.mrf.mxu0
    %v5352 = vadd.f32 %v880, %v5351
    %v5353 = vpop.f32.mrf.mxu0
    %v5354 = vadd.f32 %v884, %v5353
    %v5355 = vpop.f32.mrf.mxu0
    %v5356 = vadd.f32 %v880, %v5355
    %v5357 = vpop.f32.mrf.mxu0
    %v5358 = vadd.f32 %v884, %v5357
    %5359 = vdwg.mxu0
    %5360 = vmatprep.subr.bf16.mxu0 %v3710
    %5361 = vmatpush1.bf16.msra.mxu0 %v3709
    %5362 = vmatprep.subr.bf16.mxu0 %v3662
    %5363 = vmatpush1.bf16.msra.mxu0 %v3661
    %5364 = vmatprep.subr.bf16.mxu0 %v3614
    %5365 = vmatpush1.bf16.msra.mxu0 %v3613
    %5366 = vmatprep.subr.bf16.mxu0 %v3566
    %5367 = vmatpush1.bf16.msra.mxu0 %v3565
    %5368 = vmatprep.subr.bf16.mxu0 %v3518
    %5369 = vmatpush1.bf16.msra.mxu0 %v3517
    %5370 = vmatprep.subr.bf16.mxu0 %v3470
    %5371 = vmatpush1.bf16.msra.mxu0 %v3469
    %5372 = vmatprep.subr.bf16.mxu0 %v3422
    %5373 = vmatpush1.bf16.msra.mxu0 %v3421
    %5374 = vmatprep.subr.bf16.mxu0 %v3374
    %5375 = vmatpush1.bf16.msra.mxu0 %v3373
    %5376 = vmatprep.subr.bf16.mxu0 %v4094
    %5377 = vmatpush2.bf16.msra.mxu0 %v4093
    %5378 = vmatprep.subr.bf16.mxu0 %v4046
    %5379 = vmatpush2.bf16.msra.mxu0 %v4045
    %5380 = vmatprep.subr.bf16.mxu0 %v3998
    %5381 = vmatpush2.bf16.msra.mxu0 %v3997
    %5382 = vmatprep.subr.bf16.mxu0 %v3950
    %5383 = vmatpush2.bf16.msra.mxu0 %v3949
    %5384 = vmatprep.subr.bf16.mxu0 %v3902
    %5385 = vmatpush2.bf16.msra.mxu0 %v3901
    %5386 = vmatprep.subr.bf16.mxu0 %v3854
    %5387 = vmatpush2.bf16.msra.mxu0 %v3853
    %5388 = vmatprep.subr.bf16.mxu0 %v3806
    %5389 = vmatpush2.bf16.msra.mxu0 %v3805
    %5390 = vmatprep.subr.bf16.mxu0 %v3758
    %5391 = vmatpush2.bf16.msra.mxu0 %v3757
    %5392 = vmatprep.mubr.bf16.mxu0 %v1044
    %5393 = vmatmul.mubr.bf16.gmra.mxu0 %v1043
    %v5394 = vpop.f32.mrf.mxu0
    %v5395 = vadd.f32 %v888, %v5394
    %v5396 = vpop.f32.mrf.mxu0
    %v5397 = vadd.f32 %v892, %v5396
    %v5398 = vpop.f32.mrf.mxu0
    %v5399 = vadd.f32 %v888, %v5398
    %v5400 = vpop.f32.mrf.mxu0
    %v5401 = vadd.f32 %v892, %v5400
    %5402 = vdwg.mxu0
    %5403 = vmatprep.subr.bf16.mxu0 %v3712
    %5404 = vmatpush1.bf16.msra.mxu0 %v3711
    %5405 = vmatprep.subr.bf16.mxu0 %v3664
    %5406 = vmatpush1.bf16.msra.mxu0 %v3663
    %5407 = vmatprep.subr.bf16.mxu0 %v3616
    %5408 = vmatpush1.bf16.msra.mxu0 %v3615
    %5409 = vmatprep.subr.bf16.mxu0 %v3568
    %5410 = vmatpush1.bf16.msra.mxu0 %v3567
    %5411 = vmatprep.subr.bf16.mxu0 %v3520
    %5412 = vmatpush1.bf16.msra.mxu0 %v3519
    %5413 = vmatprep.subr.bf16.mxu0 %v3472
    %5414 = vmatpush1.bf16.msra.mxu0 %v3471
    %5415 = vmatprep.subr.bf16.mxu0 %v3424
    %5416 = vmatpush1.bf16.msra.mxu0 %v3423
    %5417 = vmatprep.subr.bf16.mxu0 %v3376
    %5418 = vmatpush1.bf16.msra.mxu0 %v3375
    %5419 = vmatprep.subr.bf16.mxu0 %v4096
    %5420 = vmatpush2.bf16.msra.mxu0 %v4095
    %5421 = vmatprep.subr.bf16.mxu0 %v4048
    %5422 = vmatpush2.bf16.msra.mxu0 %v4047
    %5423 = vmatprep.subr.bf16.mxu0 %v4000
    %5424 = vmatpush2.bf16.msra.mxu0 %v3999
    %5425 = vmatprep.subr.bf16.mxu0 %v3952
    %5426 = vmatpush2.bf16.msra.mxu0 %v3951
    %5427 = vmatprep.subr.bf16.mxu0 %v3904
    %5428 = vmatpush2.bf16.msra.mxu0 %v3903
    %5429 = vmatprep.subr.bf16.mxu0 %v3856
    %5430 = vmatpush2.bf16.msra.mxu0 %v3855
    %5431 = vmatprep.subr.bf16.mxu0 %v3808
    %5432 = vmatpush2.bf16.msra.mxu0 %v3807
    %5433 = vmatprep.subr.bf16.mxu0 %v3760
    %5434 = vmatpush2.bf16.msra.mxu0 %v3759
    %5435 = vmatprep.mubr.bf16.mxu0 %v1044
    %5436 = vmatmul.mubr.bf16.gmra.mxu0 %v1043
    %v5437 = vpop.f32.mrf.mxu0
    %v5438 = vadd.f32 %v896, %v5437
    %v5439 = vpop.f32.mrf.mxu0
    %v5440 = vadd.f32 %v900, %v5439
    %v5441 = vpop.f32.mrf.mxu0
    %v5442 = vadd.f32 %v896, %v5441
    %v5443 = vpop.f32.mrf.mxu0
    %v5444 = vadd.f32 %v900, %v5443
    %5445 = vdwg.mxu0
    %5446 = vmatprep.subr.bf16.mxu0 %v3714
    %5447 = vmatpush1.bf16.msra.mxu0 %v3713
    %5448 = vmatprep.subr.bf16.mxu0 %v3666
    %5449 = vmatpush1.bf16.msra.mxu0 %v3665
    %5450 = vmatprep.subr.bf16.mxu0 %v3618
    %5451 = vmatpush1.bf16.msra.mxu0 %v3617
    %5452 = vmatprep.subr.bf16.mxu0 %v3570
    %5453 = vmatpush1.bf16.msra.mxu0 %v3569
    %5454 = vmatprep.subr.bf16.mxu0 %v3522
    %5455 = vmatpush1.bf16.msra.mxu0 %v3521
    %5456 = vmatprep.subr.bf16.mxu0 %v3474
    %5457 = vmatpush1.bf16.msra.mxu0 %v3473
    %5458 = vmatprep.subr.bf16.mxu0 %v3426
    %5459 = vmatpush1.bf16.msra.mxu0 %v3425
    %5460 = vmatprep.subr.bf16.mxu0 %v3378
    %5461 = vmatpush1.bf16.msra.mxu0 %v3377
    %5462 = vmatprep.subr.bf16.mxu0 %v4098
    %5463 = vmatpush2.bf16.msra.mxu0 %v4097
    %5464 = vmatprep.subr.bf16.mxu0 %v4050
    %5465 = vmatpush2.bf16.msra.mxu0 %v4049
    %5466 = vmatprep.subr.bf16.mxu0 %v4002
    %5467 = vmatpush2.bf16.msra.mxu0 %v4001
    %5468 = vmatprep.subr.bf16.mxu0 %v3954
    %5469 = vmatpush2.bf16.msra.mxu0 %v3953
    %5470 = vmatprep.subr.bf16.mxu0 %v3906
    %5471 = vmatpush2.bf16.msra.mxu0 %v3905
    %5472 = vmatprep.subr.bf16.mxu0 %v3858
    %5473 = vmatpush2.bf16.msra.mxu0 %v3857
    %5474 = vmatprep.subr.bf16.mxu0 %v3810
    %5475 = vmatpush2.bf16.msra.mxu0 %v3809
    %5476 = vmatprep.subr.bf16.mxu0 %v3762
    %5477 = vmatpush2.bf16.msra.mxu0 %v3761
    %5478 = vmatprep.mubr.bf16.mxu0 %v1044
    %5479 = vmatmul.mubr.bf16.gmra.mxu0 %v1043
    %v5480 = vpop.f32.mrf.mxu0
    %v5481 = vadd.f32 %v904, %v5480
    %v5482 = vpop.f32.mrf.mxu0
    %v5483 = vadd.f32 %v908, %v5482
    %v5484 = vpop.f32.mrf.mxu0
    %v5485 = vadd.f32 %v904, %v5484
    %v5486 = vpop.f32.mrf.mxu0
    %v5487 = vadd.f32 %v908, %v5486
    %5488 = vdwg.mxu0
    %5489 = vmatprep.subr.bf16.mxu0 %v3716
    %5490 = vmatpush1.bf16.msra.mxu0 %v3715
    %5491 = vmatprep.subr.bf16.mxu0 %v3668
    %5492 = vmatpush1.bf16.msra.mxu0 %v3667
    %5493 = vmatprep.subr.bf16.mxu0 %v3620
    %5494 = vmatpush1.bf16.msra.mxu0 %v3619
    %5495 = vmatprep.subr.bf16.mxu0 %v3572
    %5496 = vmatpush1.bf16.msra.mxu0 %v3571
    %5497 = vmatprep.subr.bf16.mxu0 %v3524
    %5498 = vmatpush1.bf16.msra.mxu0 %v3523
    %5499 = vmatprep.subr.bf16.mxu0 %v3476
    %5500 = vmatpush1.bf16.msra.mxu0 %v3475
    %5501 = vmatprep.subr.bf16.mxu0 %v3428
    %5502 = vmatpush1.bf16.msra.mxu0 %v3427
    %5503 = vmatprep.subr.bf16.mxu0 %v3380
    %5504 = vmatpush1.bf16.msra.mxu0 %v3379
    %5505 = vmatprep.subr.bf16.mxu0 %v4100
    %5506 = vmatpush2.bf16.msra.mxu0 %v4099
    %5507 = vmatprep.subr.bf16.mxu0 %v4052
    %5508 = vmatpush2.bf16.msra.mxu0 %v4051
    %5509 = vmatprep.subr.bf16.mxu0 %v4004
    %5510 = vmatpush2.bf16.msra.mxu0 %v4003
    %5511 = vmatprep.subr.bf16.mxu0 %v3956
    %5512 = vmatpush2.bf16.msra.mxu0 %v3955
    %5513 = vmatprep.subr.bf16.mxu0 %v3908
    %5514 = vmatpush2.bf16.msra.mxu0 %v3907
    %5515 = vmatprep.subr.bf16.mxu0 %v3860
    %5516 = vmatpush2.bf16.msra.mxu0 %v3859
    %5517 = vmatprep.subr.bf16.mxu0 %v3812
    %5518 = vmatpush2.bf16.msra.mxu0 %v3811
    %5519 = vmatprep.subr.bf16.mxu0 %v3764
    %5520 = vmatpush2.bf16.msra.mxu0 %v3763
    %5521 = vmatprep.mubr.bf16.mxu0 %v1044
    %5522 = vmatmul.mubr.bf16.gmra.mxu0 %v1043
    %v5523 = vpop.f32.mrf.mxu0
    %v5524 = vadd.f32 %v912, %v5523
    %v5525 = vpop.f32.mrf.mxu0
    %v5526 = vadd.f32 %v916, %v5525
    %v5527 = vpop.f32.mrf.mxu0
    %v5528 = vadd.f32 %v912, %v5527
    %v5529 = vpop.f32.mrf.mxu0
    %v5530 = vadd.f32 %v916, %v5529
    %5531 = vdwg.mxu0
    %5532 = vmatprep.subr.bf16.mxu0 %v3718
    %5533 = vmatpush1.bf16.msra.mxu0 %v3717
    %5534 = vmatprep.subr.bf16.mxu0 %v3670
    %5535 = vmatpush1.bf16.msra.mxu0 %v3669
    %5536 = vmatprep.subr.bf16.mxu0 %v3622
    %5537 = vmatpush1.bf16.msra.mxu0 %v3621
    %5538 = vmatprep.subr.bf16.mxu0 %v3574
    %5539 = vmatpush1.bf16.msra.mxu0 %v3573
    %5540 = vmatprep.subr.bf16.mxu0 %v3526
    %5541 = vmatpush1.bf16.msra.mxu0 %v3525
    %5542 = vmatprep.subr.bf16.mxu0 %v3478
    %5543 = vmatpush1.bf16.msra.mxu0 %v3477
    %5544 = vmatprep.subr.bf16.mxu0 %v3430
    %5545 = vmatpush1.bf16.msra.mxu0 %v3429
    %5546 = vmatprep.subr.bf16.mxu0 %v3382
    %5547 = vmatpush1.bf16.msra.mxu0 %v3381
    %5548 = vmatprep.subr.bf16.mxu0 %v4102
    %5549 = vmatpush2.bf16.msra.mxu0 %v4101
    %5550 = vmatprep.subr.bf16.mxu0 %v4054
    %5551 = vmatpush2.bf16.msra.mxu0 %v4053
    %5552 = vmatprep.subr.bf16.mxu0 %v4006
    %5553 = vmatpush2.bf16.msra.mxu0 %v4005
    %5554 = vmatprep.subr.bf16.mxu0 %v3958
    %5555 = vmatpush2.bf16.msra.mxu0 %v3957
    %5556 = vmatprep.subr.bf16.mxu0 %v3910
    %5557 = vmatpush2.bf16.msra.mxu0 %v3909
    %5558 = vmatprep.subr.bf16.mxu0 %v3862
    %5559 = vmatpush2.bf16.msra.mxu0 %v3861
    %5560 = vmatprep.subr.bf16.mxu0 %v3814
    %5561 = vmatpush2.bf16.msra.mxu0 %v3813
    %5562 = vmatprep.subr.bf16.mxu0 %v3766
    %5563 = vmatpush2.bf16.msra.mxu0 %v3765
    %5564 = vmatprep.mubr.bf16.mxu0 %v1044
    %5565 = vmatmul.mubr.bf16.gmra.mxu0 %v1043
    %v5566 = vpop.f32.mrf.mxu0
    %v5567 = vadd.f32 %v920, %v5566
    %v5568 = vpop.f32.mrf.mxu0
    %v5569 = vadd.f32 %v924, %v5568
    %v5570 = vpop.f32.mrf.mxu0
    %v5571 = vadd.f32 %v920, %v5570
    %v5572 = vpop.f32.mrf.mxu0
    %v5573 = vadd.f32 %v924, %v5572
    %5574 = vdwg.mxu0
    %5575 = vmatprep.subr.bf16.mxu0 %v3720
    %5576 = vmatpush1.bf16.msra.mxu0 %v3719
    %5577 = vmatprep.subr.bf16.mxu0 %v3672
    %5578 = vmatpush1.bf16.msra.mxu0 %v3671
    %5579 = vmatprep.subr.bf16.mxu0 %v3624
    %5580 = vmatpush1.bf16.msra.mxu0 %v3623
    %5581 = vmatprep.subr.bf16.mxu0 %v3576
    %5582 = vmatpush1.bf16.msra.mxu0 %v3575
    %5583 = vmatprep.subr.bf16.mxu0 %v3528
    %5584 = vmatpush1.bf16.msra.mxu0 %v3527
    %5585 = vmatprep.subr.bf16.mxu0 %v3480
    %5586 = vmatpush1.bf16.msra.mxu0 %v3479
    %5587 = vmatprep.subr.bf16.mxu0 %v3432
    %5588 = vmatpush1.bf16.msra.mxu0 %v3431
    %5589 = vmatprep.subr.bf16.mxu0 %v3384
    %5590 = vmatpush1.bf16.msra.mxu0 %v3383
    %5591 = vmatprep.subr.bf16.mxu0 %v4104
    %5592 = vmatpush2.bf16.msra.mxu0 %v4103
    %5593 = vmatprep.subr.bf16.mxu0 %v4056
    %5594 = vmatpush2.bf16.msra.mxu0 %v4055
    %5595 = vmatprep.subr.bf16.mxu0 %v4008
    %5596 = vmatpush2.bf16.msra.mxu0 %v4007
    %5597 = vmatprep.subr.bf16.mxu0 %v3960
    %5598 = vmatpush2.bf16.msra.mxu0 %v3959
    %5599 = vmatprep.subr.bf16.mxu0 %v3912
    %5600 = vmatpush2.bf16.msra.mxu0 %v3911
    %5601 = vmatprep.subr.bf16.mxu0 %v3864
    %5602 = vmatpush2.bf16.msra.mxu0 %v3863
    %5603 = vmatprep.subr.bf16.mxu0 %v3816
    %5604 = vmatpush2.bf16.msra.mxu0 %v3815
    %5605 = vmatprep.subr.bf16.mxu0 %v3768
    %5606 = vmatpush2.bf16.msra.mxu0 %v3767
    %5607 = vmatprep.mubr.bf16.mxu0 %v1044
    %5608 = vmatmul.mubr.bf16.gmra.mxu0 %v1043
    %v5609 = vpop.f32.mrf.mxu0
    %v5610 = vadd.f32 %v928, %v5609
    %v5611 = vpop.f32.mrf.mxu0
    %v5612 = vadd.f32 %v932, %v5611
    %v5613 = vpop.f32.mrf.mxu0
    %v5614 = vadd.f32 %v928, %v5613
    %v5615 = vpop.f32.mrf.mxu0
    %v5616 = vadd.f32 %v932, %v5615
    %5617 = vdwg.mxu0
    %5618 = vmatprep.subr.bf16.mxu0 %v3722
    %5619 = vmatpush1.bf16.msra.mxu0 %v3721
    %5620 = vmatprep.subr.bf16.mxu0 %v3674
    %5621 = vmatpush1.bf16.msra.mxu0 %v3673
    %5622 = vmatprep.subr.bf16.mxu0 %v3626
    %5623 = vmatpush1.bf16.msra.mxu0 %v3625
    %5624 = vmatprep.subr.bf16.mxu0 %v3578
    %5625 = vmatpush1.bf16.msra.mxu0 %v3577
    %5626 = vmatprep.subr.bf16.mxu0 %v3530
    %5627 = vmatpush1.bf16.msra.mxu0 %v3529
    %5628 = vmatprep.subr.bf16.mxu0 %v3482
    %5629 = vmatpush1.bf16.msra.mxu0 %v3481
    %5630 = vmatprep.subr.bf16.mxu0 %v3434
    %5631 = vmatpush1.bf16.msra.mxu0 %v3433
    %5632 = vmatprep.subr.bf16.mxu0 %v3386
    %5633 = vmatpush1.bf16.msra.mxu0 %v3385
    %5634 = vmatprep.subr.bf16.mxu0 %v4106
    %5635 = vmatpush2.bf16.msra.mxu0 %v4105
    %5636 = vmatprep.subr.bf16.mxu0 %v4058
    %5637 = vmatpush2.bf16.msra.mxu0 %v4057
    %5638 = vmatprep.subr.bf16.mxu0 %v4010
    %5639 = vmatpush2.bf16.msra.mxu0 %v4009
    %5640 = vmatprep.subr.bf16.mxu0 %v3962
    %5641 = vmatpush2.bf16.msra.mxu0 %v3961
    %5642 = vmatprep.subr.bf16.mxu0 %v3914
    %5643 = vmatpush2.bf16.msra.mxu0 %v3913
    %5644 = vmatprep.subr.bf16.mxu0 %v3866
    %5645 = vmatpush2.bf16.msra.mxu0 %v3865
    %5646 = vmatprep.subr.bf16.mxu0 %v3818
    %5647 = vmatpush2.bf16.msra.mxu0 %v3817
    %5648 = vmatprep.subr.bf16.mxu0 %v3770
    %5649 = vmatpush2.bf16.msra.mxu0 %v3769
    %5650 = vmatprep.mubr.bf16.mxu0 %v1044
    %5651 = vmatmul.mubr.bf16.gmra.mxu0 %v1043
    %v5652 = vpop.f32.mrf.mxu0
    %v5653 = vadd.f32 %v936, %v5652
    %v5654 = vpop.f32.mrf.mxu0
    %v5655 = vadd.f32 %v940, %v5654
    %v5656 = vpop.f32.mrf.mxu0
    %v5657 = vadd.f32 %v936, %v5656
    %v5658 = vpop.f32.mrf.mxu0
    %v5659 = vadd.f32 %v940, %v5658
    %5660 = vdwg.mxu0
    %5661 = vmatprep.subr.bf16.mxu0 %v3724
    %5662 = vmatpush1.bf16.msra.mxu0 %v3723
    %5663 = vmatprep.subr.bf16.mxu0 %v3676
    %5664 = vmatpush1.bf16.msra.mxu0 %v3675
    %5665 = vmatprep.subr.bf16.mxu0 %v3628
    %5666 = vmatpush1.bf16.msra.mxu0 %v3627
    %5667 = vmatprep.subr.bf16.mxu0 %v3580
    %5668 = vmatpush1.bf16.msra.mxu0 %v3579
    %5669 = vmatprep.subr.bf16.mxu0 %v3532
    %5670 = vmatpush1.bf16.msra.mxu0 %v3531
    %5671 = vmatprep.subr.bf16.mxu0 %v3484
    %5672 = vmatpush1.bf16.msra.mxu0 %v3483
    %5673 = vmatprep.subr.bf16.mxu0 %v3436
    %5674 = vmatpush1.bf16.msra.mxu0 %v3435
    %5675 = vmatprep.subr.bf16.mxu0 %v3388
    %5676 = vmatpush1.bf16.msra.mxu0 %v3387
    %5677 = vmatprep.subr.bf16.mxu0 %v4108
    %5678 = vmatpush2.bf16.msra.mxu0 %v4107
    %5679 = vmatprep.subr.bf16.mxu0 %v4060
    %5680 = vmatpush2.bf16.msra.mxu0 %v4059
    %5681 = vmatprep.subr.bf16.mxu0 %v4012
    %5682 = vmatpush2.bf16.msra.mxu0 %v4011
    %5683 = vmatprep.subr.bf16.mxu0 %v3964
    %5684 = vmatpush2.bf16.msra.mxu0 %v3963
    %5685 = vmatprep.subr.bf16.mxu0 %v3916
    %5686 = vmatpush2.bf16.msra.mxu0 %v3915
    %5687 = vmatprep.subr.bf16.mxu0 %v3868
    %5688 = vmatpush2.bf16.msra.mxu0 %v3867
    %5689 = vmatprep.subr.bf16.mxu0 %v3820
    %5690 = vmatpush2.bf16.msra.mxu0 %v3819
    %5691 = vmatprep.subr.bf16.mxu0 %v3772
    %5692 = vmatpush2.bf16.msra.mxu0 %v3771
    %5693 = vmatprep.mubr.bf16.mxu0 %v1044
    %5694 = vmatmul.mubr.bf16.gmra.mxu0 %v1043
    %v5695 = vpop.f32.mrf.mxu0
    %v5696 = vadd.f32 %v944, %v5695
    %v5697 = vpop.f32.mrf.mxu0
    %v5698 = vadd.f32 %v948, %v5697
    %v5699 = vpop.f32.mrf.mxu0
    %v5700 = vadd.f32 %v944, %v5699
    %v5701 = vpop.f32.mrf.mxu0
    %v5702 = vadd.f32 %v948, %v5701
    %5703 = vdwg.mxu0
    %5704 = vmatprep.subr.bf16.mxu0 %v3726
    %5705 = vmatpush1.bf16.msra.mxu0 %v3725
    %5706 = vmatprep.subr.bf16.mxu0 %v3678
    %5707 = vmatpush1.bf16.msra.mxu0 %v3677
    %5708 = vmatprep.subr.bf16.mxu0 %v3630
    %5709 = vmatpush1.bf16.msra.mxu0 %v3629
    %5710 = vmatprep.subr.bf16.mxu0 %v3582
    %5711 = vmatpush1.bf16.msra.mxu0 %v3581
    %5712 = vmatprep.subr.bf16.mxu0 %v3534
    %5713 = vmatpush1.bf16.msra.mxu0 %v3533
    %5714 = vmatprep.subr.bf16.mxu0 %v3486
    %5715 = vmatpush1.bf16.msra.mxu0 %v3485
    %5716 = vmatprep.subr.bf16.mxu0 %v3438
    %5717 = vmatpush1.bf16.msra.mxu0 %v3437
    %5718 = vmatprep.subr.bf16.mxu0 %v3390
    %5719 = vmatpush1.bf16.msra.mxu0 %v3389
    %5720 = vmatprep.subr.bf16.mxu0 %v4110
    %5721 = vmatpush2.bf16.msra.mxu0 %v4109
    %5722 = vmatprep.subr.bf16.mxu0 %v4062
    %5723 = vmatpush2.bf16.msra.mxu0 %v4061
    %5724 = vmatprep.subr.bf16.mxu0 %v4014
    %5725 = vmatpush2.bf16.msra.mxu0 %v4013
    %5726 = vmatprep.subr.bf16.mxu0 %v3966
    %5727 = vmatpush2.bf16.msra.mxu0 %v3965
    %5728 = vmatprep.subr.bf16.mxu0 %v3918
    %5729 = vmatpush2.bf16.msra.mxu0 %v3917
    %5730 = vmatprep.subr.bf16.mxu0 %v3870
    %5731 = vmatpush2.bf16.msra.mxu0 %v3869
    %5732 = vmatprep.subr.bf16.mxu0 %v3822
    %5733 = vmatpush2.bf16.msra.mxu0 %v3821
    %5734 = vmatprep.subr.bf16.mxu0 %v3774
    %5735 = vmatpush2.bf16.msra.mxu0 %v3773
    %5736 = vmatprep.mubr.bf16.mxu0 %v1044
    %5737 = vmatmul.mubr.bf16.gmra.mxu0 %v1043
    %v5738 = vpop.f32.mrf.mxu0
    %v5739 = vadd.f32 %v952, %v5738
    %v5740 = vpop.f32.mrf.mxu0
    %v5741 = vadd.f32 %v956, %v5740
    %v5742 = vpop.f32.mrf.mxu0
    %v5743 = vadd.f32 %v952, %v5742
    %v5744 = vpop.f32.mrf.mxu0
    %v5745 = vadd.f32 %v956, %v5744
    %5746 = vdwg.mxu0
    %5747 = vmatprep.subr.bf16.mxu0 %v3728
    %5748 = vmatpush1.bf16.msra.mxu0 %v3727
    %5749 = vmatprep.subr.bf16.mxu0 %v3680
    %5750 = vmatpush1.bf16.msra.mxu0 %v3679
    %5751 = vmatprep.subr.bf16.mxu0 %v3632
    %5752 = vmatpush1.bf16.msra.mxu0 %v3631
    %5753 = vmatprep.subr.bf16.mxu0 %v3584
    %5754 = vmatpush1.bf16.msra.mxu0 %v3583
    %5755 = vmatprep.subr.bf16.mxu0 %v3536
    %5756 = vmatpush1.bf16.msra.mxu0 %v3535
    %5757 = vmatprep.subr.bf16.mxu0 %v3488
    %5758 = vmatpush1.bf16.msra.mxu0 %v3487
    %5759 = vmatprep.subr.bf16.mxu0 %v3440
    %5760 = vmatpush1.bf16.msra.mxu0 %v3439
    %5761 = vmatprep.subr.bf16.mxu0 %v3392
    %5762 = vmatpush1.bf16.msra.mxu0 %v3391
    %5763 = vmatprep.subr.bf16.mxu0 %v4112
    %5764 = vmatpush2.bf16.msra.mxu0 %v4111
    %5765 = vmatprep.subr.bf16.mxu0 %v4064
    %5766 = vmatpush2.bf16.msra.mxu0 %v4063
    %5767 = vmatprep.subr.bf16.mxu0 %v4016
    %5768 = vmatpush2.bf16.msra.mxu0 %v4015
    %5769 = vmatprep.subr.bf16.mxu0 %v3968
    %5770 = vmatpush2.bf16.msra.mxu0 %v3967
    %5771 = vmatprep.subr.bf16.mxu0 %v3920
    %5772 = vmatpush2.bf16.msra.mxu0 %v3919
    %5773 = vmatprep.subr.bf16.mxu0 %v3872
    %5774 = vmatpush2.bf16.msra.mxu0 %v3871
    %5775 = vmatprep.subr.bf16.mxu0 %v3824
    %5776 = vmatpush2.bf16.msra.mxu0 %v3823
    %5777 = vmatprep.subr.bf16.mxu0 %v3776
    %5778 = vmatpush2.bf16.msra.mxu0 %v3775
    %5779 = vmatprep.mubr.bf16.mxu0 %v1044
    %5780 = vmatmul.mubr.bf16.gmra.mxu0 %v1043
    %v5781 = vpop.f32.mrf.mxu0
    %v5782 = vadd.f32 %v960, %v5781
    %v5783 = vpop.f32.mrf.mxu0
    %v5784 = vadd.f32 %v964, %v5783
    %v5785 = vpop.f32.mrf.mxu0
    %v5786 = vadd.f32 %v960, %v5785
    %v5787 = vpop.f32.mrf.mxu0
    %v5788 = vadd.f32 %v964, %v5787
    %5789 = vdwg.mxu0
    %5790 = vmatprep.subr.bf16.mxu0 %v3730
    %5791 = vmatpush1.bf16.msra.mxu0 %v3729
    %5792 = vmatprep.subr.bf16.mxu0 %v3682
    %5793 = vmatpush1.bf16.msra.mxu0 %v3681
    %5794 = vmatprep.subr.bf16.mxu0 %v3634
    %5795 = vmatpush1.bf16.msra.mxu0 %v3633
    %5796 = vmatprep.subr.bf16.mxu0 %v3586
    %5797 = vmatpush1.bf16.msra.mxu0 %v3585
    %5798 = vmatprep.subr.bf16.mxu0 %v3538
    %5799 = vmatpush1.bf16.msra.mxu0 %v3537
    %5800 = vmatprep.subr.bf16.mxu0 %v3490
    %5801 = vmatpush1.bf16.msra.mxu0 %v3489
    %5802 = vmatprep.subr.bf16.mxu0 %v3442
    %5803 = vmatpush1.bf16.msra.mxu0 %v3441
    %5804 = vmatprep.subr.bf16.mxu0 %v3394
    %5805 = vmatpush1.bf16.msra.mxu0 %v3393
    %5806 = vmatprep.subr.bf16.mxu0 %v4114
    %5807 = vmatpush2.bf16.msra.mxu0 %v4113
    %5808 = vmatprep.subr.bf16.mxu0 %v4066
    %5809 = vmatpush2.bf16.msra.mxu0 %v4065
    %5810 = vmatprep.subr.bf16.mxu0 %v4018
    %5811 = vmatpush2.bf16.msra.mxu0 %v4017
    %5812 = vmatprep.subr.bf16.mxu0 %v3970
    %5813 = vmatpush2.bf16.msra.mxu0 %v3969
    %5814 = vmatprep.subr.bf16.mxu0 %v3922
    %5815 = vmatpush2.bf16.msra.mxu0 %v3921
    %5816 = vmatprep.subr.bf16.mxu0 %v3874
    %5817 = vmatpush2.bf16.msra.mxu0 %v3873
    %5818 = vmatprep.subr.bf16.mxu0 %v3826
    %5819 = vmatpush2.bf16.msra.mxu0 %v3825
    %5820 = vmatprep.subr.bf16.mxu0 %v3778
    %5821 = vmatpush2.bf16.msra.mxu0 %v3777
    %5822 = vmatprep.mubr.bf16.mxu0 %v1044
    %5823 = vmatmul.mubr.bf16.gmra.mxu0 %v1043
    %v5824 = vpop.f32.mrf.mxu0
    %v5825 = vadd.f32 %v968, %v5824
    %v5826 = vpop.f32.mrf.mxu0
    %v5827 = vadd.f32 %v972, %v5826
    %v5828 = vpop.f32.mrf.mxu0
    %v5829 = vadd.f32 %v968, %v5828
    %v5830 = vpop.f32.mrf.mxu0
    %v5831 = vadd.f32 %v972, %v5830
    %5832 = vdwg.mxu0
    %5833 = vmatprep.subr.bf16.mxu0 %v3732
    %5834 = vmatpush1.bf16.msra.mxu0 %v3731
    %5835 = vmatprep.subr.bf16.mxu0 %v3684
    %5836 = vmatpush1.bf16.msra.mxu0 %v3683
    %5837 = vmatprep.subr.bf16.mxu0 %v3636
    %5838 = vmatpush1.bf16.msra.mxu0 %v3635
    %5839 = vmatprep.subr.bf16.mxu0 %v3588
    %5840 = vmatpush1.bf16.msra.mxu0 %v3587
    %5841 = vmatprep.subr.bf16.mxu0 %v3540
    %5842 = vmatpush1.bf16.msra.mxu0 %v3539
    %5843 = vmatprep.subr.bf16.mxu0 %v3492
    %5844 = vmatpush1.bf16.msra.mxu0 %v3491
    %5845 = vmatprep.subr.bf16.mxu0 %v3444
    %5846 = vmatpush1.bf16.msra.mxu0 %v3443
    %5847 = vmatprep.subr.bf16.mxu0 %v3396
    %5848 = vmatpush1.bf16.msra.mxu0 %v3395
    %5849 = vmatprep.subr.bf16.mxu0 %v4116
    %5850 = vmatpush2.bf16.msra.mxu0 %v4115
    %5851 = vmatprep.subr.bf16.mxu0 %v4068
    %5852 = vmatpush2.bf16.msra.mxu0 %v4067
    %5853 = vmatprep.subr.bf16.mxu0 %v4020
    %5854 = vmatpush2.bf16.msra.mxu0 %v4019
    %5855 = vmatprep.subr.bf16.mxu0 %v3972
    %5856 = vmatpush2.bf16.msra.mxu0 %v3971
    %5857 = vmatprep.subr.bf16.mxu0 %v3924
    %5858 = vmatpush2.bf16.msra.mxu0 %v3923
    %5859 = vmatprep.subr.bf16.mxu0 %v3876
    %5860 = vmatpush2.bf16.msra.mxu0 %v3875
    %5861 = vmatprep.subr.bf16.mxu0 %v3828
    %5862 = vmatpush2.bf16.msra.mxu0 %v3827
    %5863 = vmatprep.subr.bf16.mxu0 %v3780
    %5864 = vmatpush2.bf16.msra.mxu0 %v3779
    %5865 = vmatprep.mubr.bf16.mxu0 %v1044
    %5866 = vmatmul.mubr.bf16.gmra.mxu0 %v1043
    %v5867 = vpop.f32.mrf.mxu0
    %v5868 = vadd.f32 %v976, %v5867
    %v5869 = vpop.f32.mrf.mxu0
    %v5870 = vadd.f32 %v980, %v5869
    %v5871 = vpop.f32.mrf.mxu0
    %v5872 = vadd.f32 %v976, %v5871
    %v5873 = vpop.f32.mrf.mxu0
    %v5874 = vadd.f32 %v980, %v5873
    %5875 = vdwg.mxu0
    %5876 = vmatprep.subr.bf16.mxu0 %v3734
    %5877 = vmatpush1.bf16.msra.mxu0 %v3733
    %5878 = vmatprep.subr.bf16.mxu0 %v3686
    %5879 = vmatpush1.bf16.msra.mxu0 %v3685
    %5880 = vmatprep.subr.bf16.mxu0 %v3638
    %5881 = vmatpush1.bf16.msra.mxu0 %v3637
    %5882 = vmatprep.subr.bf16.mxu0 %v3590
    %5883 = vmatpush1.bf16.msra.mxu0 %v3589
    %5884 = vmatprep.subr.bf16.mxu0 %v3542
    %5885 = vmatpush1.bf16.msra.mxu0 %v3541
    %5886 = vmatprep.subr.bf16.mxu0 %v3494
    %5887 = vmatpush1.bf16.msra.mxu0 %v3493
    %5888 = vmatprep.subr.bf16.mxu0 %v3446
    %5889 = vmatpush1.bf16.msra.mxu0 %v3445
    %5890 = vmatprep.subr.bf16.mxu0 %v3398
    %5891 = vmatpush1.bf16.msra.mxu0 %v3397
    %5892 = vmatprep.subr.bf16.mxu0 %v4118
    %5893 = vmatpush2.bf16.msra.mxu0 %v4117
    %5894 = vmatprep.subr.bf16.mxu0 %v4070
    %5895 = vmatpush2.bf16.msra.mxu0 %v4069
    %5896 = vmatprep.subr.bf16.mxu0 %v4022
    %5897 = vmatpush2.bf16.msra.mxu0 %v4021
    %5898 = vmatprep.subr.bf16.mxu0 %v3974
    %5899 = vmatpush2.bf16.msra.mxu0 %v3973
    %5900 = vmatprep.subr.bf16.mxu0 %v3926
    %5901 = vmatpush2.bf16.msra.mxu0 %v3925
    %5902 = vmatprep.subr.bf16.mxu0 %v3878
    %5903 = vmatpush2.bf16.msra.mxu0 %v3877
    %5904 = vmatprep.subr.bf16.mxu0 %v3830
    %5905 = vmatpush2.bf16.msra.mxu0 %v3829
    %5906 = vmatprep.subr.bf16.mxu0 %v3782
    %5907 = vmatpush2.bf16.msra.mxu0 %v3781
    %5908 = vmatprep.mubr.bf16.mxu0 %v1044
    %5909 = vmatmul.mubr.bf16.gmra.mxu0 %v1043
    %v5910 = vpop.f32.mrf.mxu0
    %v5911 = vadd.f32 %v984, %v5910
    %v5912 = vpop.f32.mrf.mxu0
    %v5913 = vadd.f32 %v988, %v5912
    %v5914 = vpop.f32.mrf.mxu0
    %v5915 = vadd.f32 %v984, %v5914
    %v5916 = vpop.f32.mrf.mxu0
    %v5917 = vadd.f32 %v988, %v5916
    %5918 = vdwg.mxu0
    %5919 = vst [vmem:[#allocation2] sm:$0xff] %v4922
    %5920 = vst [vmem:[#allocation2 + $0x8] sm:$0xff] %v4924
    %5921 = vst [vmem:[#allocation2 + $0x10] sm:$0xff] %v4965
    %5922 = vst [vmem:[#allocation2 + $0x18] sm:$0xff] %v4967
    %5923 = vst [vmem:[#allocation2 + $0x20] sm:$0xff] %v5008
    %5924 = vst [vmem:[#allocation2 + $0x28] sm:$0xff] %v5010
    %5925 = vst [vmem:[#allocation2 + $0x30] sm:$0xff] %v5051
    %5926 = vst [vmem:[#allocation2 + $0x38] sm:$0xff] %v5053
    %5927 = vst [vmem:[#allocation2 + $0x40] sm:$0xff] %v5094
    %5928 = vst [vmem:[#allocation2 + $0x48] sm:$0xff] %v5096
    %5929 = vst [vmem:[#allocation2 + $0x50] sm:$0xff] %v5137
    %5930 = vst [vmem:[#allocation2 + $0x58] sm:$0xff] %v5139
    %5931 = vst [vmem:[#allocation2 + $0x60] sm:$0xff] %v5180
    %5932 = vst [vmem:[#allocation2 + $0x68] sm:$0xff] %v5182
    %5933 = vst [vmem:[#allocation2 + $0x70] sm:$0xff] %v5223
    %5934 = vst [vmem:[#allocation2 + $0x78] sm:$0xff] %v5225
    %5935 = vst [vmem:[#allocation2 + $0x80] sm:$0xff] %v5266
    %5936 = vst [vmem:[#allocation2 + $0x88] sm:$0xff] %v5268
    %5937 = vst [vmem:[#allocation2 + $0x90] sm:$0xff] %v5309
    %5938 = vst [vmem:[#allocation2 + $0x98] sm:$0xff] %v5311
    %5939 = vst [vmem:[#allocation2 + $0xa0] sm:$0xff] %v5352
    %5940 = vst [vmem:[#allocation2 + $0xa8] sm:$0xff] %v5354
    %5941 = vst [vmem:[#allocation2 + $0xb0] sm:$0xff] %v5395
    %5942 = vst [vmem:[#allocation2 + $0xb8] sm:$0xff] %v5397
    %5943 = vst [vmem:[#allocation2 + $0xc0] sm:$0xff] %v5438
    %5944 = vst [vmem:[#allocation2 + $0xc8] sm:$0xff] %v5440
    %5945 = vst [vmem:[#allocation2 + $0xd0] sm:$0xff] %v5481
    %5946 = vst [vmem:[#allocation2 + $0xd8] sm:$0xff] %v5483
    %5947 = vst [vmem:[#allocation2 + $0xe0] sm:$0xff] %v5524
    %5948 = vst [vmem:[#allocation2 + $0xe8] sm:$0xff] %v5526
    %5949 = vst [vmem:[#allocation2 + $0xf0] sm:$0xff] %v5567
    %5950 = vst [vmem:[#allocation2 + $0xf8] sm:$0xff] %v5569
    %5951 = vst [vmem:[#allocation2 + $0x100] sm:$0xff] %v5610
    %5952 = vst [vmem:[#allocation2 + $0x108] sm:$0xff] %v5612
    %5953 = vst [vmem:[#allocation2 + $0x110] sm:$0xff] %v5653
    %5954 = vst [vmem:[#allocation2 + $0x118] sm:$0xff] %v5655
    %5955 = vst [vmem:[#allocation2 + $0x120] sm:$0xff] %v5696
    %5956 = vst [vmem:[#allocation2 + $0x128] sm:$0xff] %v5698
    %5957 = vst [vmem:[#allocation2 + $0x130] sm:$0xff] %v5739
    %5958 = vst [vmem:[#allocation2 + $0x138] sm:$0xff] %v5741
    %5959 = vst [vmem:[#allocation2 + $0x140] sm:$0xff] %v5782
    %5960 = vst [vmem:[#allocation2 + $0x148] sm:$0xff] %v5784
    %5961 = vst [vmem:[#allocation2 + $0x150] sm:$0xff] %v5825
    %5962 = vst [vmem:[#allocation2 + $0x158] sm:$0xff] %v5827
    %5963 = vst [vmem:[#allocation2 + $0x160] sm:$0xff] %v5868
    %5964 = vst [vmem:[#allocation2 + $0x168] sm:$0xff] %v5870
    %5965 = vst [vmem:[#allocation2 + $0x170] sm:$0xff] %v5911
    %vm5966 = vcmask 64512
    %5967 = vst.msk [vmem:[#allocation2 + $0x178] sm:$0xff] %vm5966, %v5913
    %5968 = vst [vmem:[#allocation2 + $0x180] sm:$0xff] %v4926
    %5969 = vst [vmem:[#allocation2 + $0x188] sm:$0xff] %v4928
    %5970 = vst [vmem:[#allocation2 + $0x190] sm:$0xff] %v4969
    %5971 = vst [vmem:[#allocation2 + $0x198] sm:$0xff] %v4971
    %5972 = vst [vmem:[#allocation2 + $0x1a0] sm:$0xff] %v5012
    %5973 = vst [vmem:[#allocation2 + $0x1a8] sm:$0xff] %v5014
    %5974 = vst [vmem:[#allocation2 + $0x1b0] sm:$0xff] %v5055
    %5975 = vst [vmem:[#allocation2 + $0x1b8] sm:$0xff] %v5057
    %5976 = vst [vmem:[#allocation2 + $0x1c0] sm:$0xff] %v5098
    %5977 = vst [vmem:[#allocation2 + $0x1c8] sm:$0xff] %v5100
    %5978 = vst [vmem:[#allocation2 + $0x1d0] sm:$0xff] %v5141
    %5979 = vst [vmem:[#allocation2 + $0x1d8] sm:$0xff] %v5143
    %5980 = vst [vmem:[#allocation2 + $0x1e0] sm:$0xff] %v5184
    %5981 = vst [vmem:[#allocation2 + $0x1e8] sm:$0xff] %v5186
    %5982 = vst [vmem:[#allocation2 + $0x1f0] sm:$0xff] %v5227
    %5983 = vst [vmem:[#allocation2 + $0x1f8] sm:$0xff] %v5229
    %5984 = vst [vmem:[#allocation2 + $0x200] sm:$0xff] %v5270
    %5985 = vst [vmem:[#allocation2 + $0x208] sm:$0xff] %v5272
    %5986 = vst [vmem:[#allocation2 + $0x210] sm:$0xff] %v5313
    %5987 = vst [vmem:[#allocation2 + $0x218] sm:$0xff] %v5315
    %5988 = vst [vmem:[#allocation2 + $0x220] sm:$0xff] %v5356
    %5989 = vst [vmem:[#allocation2 + $0x228] sm:$0xff] %v5358
    %5990 = vst [vmem:[#allocation2 + $0x230] sm:$0xff] %v5399
    %5991 = vst [vmem:[#allocation2 + $0x238] sm:$0xff] %v5401
    %5992 = vst [vmem:[#allocation2 + $0x240] sm:$0xff] %v5442
    %5993 = vst [vmem:[#allocation2 + $0x248] sm:$0xff] %v5444
    %5994 = vst [vmem:[#allocation2 + $0x250] sm:$0xff] %v5485
    %5995 = vst [vmem:[#allocation2 + $0x258] sm:$0xff] %v5487
    %5996 = vst [vmem:[#allocation2 + $0x260] sm:$0xff] %v5528
    %5997 = vst [vmem:[#allocation2 + $0x268] sm:$0xff] %v5530
    %5998 = vst [vmem:[#allocation2 + $0x270] sm:$0xff] %v5571
    %5999 = vst [vmem:[#allocation2 + $0x278] sm:$0xff] %v5573
    %6000 = vst [vmem:[#allocation2 + $0x280] sm:$0xff] %v5614
    %6001 = vst [vmem:[#allocation2 + $0x288] sm:$0xff] %v5616
    %6002 = vst [vmem:[#allocation2 + $0x290] sm:$0xff] %v5657
    %6003 = vst [vmem:[#allocation2 + $0x298] sm:$0xff] %v5659
    %6004 = vst [vmem:[#allocation2 + $0x2a0] sm:$0xff] %v5700
    %6005 = vst [vmem:[#allocation2 + $0x2a8] sm:$0xff] %v5702
    %6006 = vst [vmem:[#allocation2 + $0x2b0] sm:$0xff] %v5743
    %6007 = vst [vmem:[#allocation2 + $0x2b8] sm:$0xff] %v5745
    %6008 = vst [vmem:[#allocation2 + $0x2c0] sm:$0xff] %v5786
    %6009 = vst [vmem:[#allocation2 + $0x2c8] sm:$0xff] %v5788
    %6010 = vst [vmem:[#allocation2 + $0x2d0] sm:$0xff] %v5829
    %6011 = vst [vmem:[#allocation2 + $0x2d8] sm:$0xff] %v5831
    %6012 = vst [vmem:[#allocation2 + $0x2e0] sm:$0xff] %v5872
    %6013 = vst [vmem:[#allocation2 + $0x2e8] sm:$0xff] %v5874
    %6014 = vst [vmem:[#allocation2 + $0x2f0] sm:$0xff] %v5915
    %6015 = vst.msk [vmem:[#allocation2 + $0x2f8] sm:$0xff] %vm5966, %v5917
    // Predicated region
    $region14: #{ftdnn_acoustic_forward.5} parent=1 // pred_check
      _
    $region15: #{ftdnn_acoustic_forward.5} parent=1 // pred_check_branch
      %6017 = sbr.rel (0) target = $region17
    $region16: #{ftdnn_acoustic_forward.5} parent=1 // pred_region
      %s6019 = ssub.s32 12288, 12288
      %6020 = vsyncadd [#allocation3], %s6019
      %s6021 = sshll.u32 [#allocation2], 4
      %s6022 = int_to_ptr.vmem [resolvable:$true] %s6021
      %6027 = dma.vmem_to_hbm [thread:$0]  %s6022, 12288, %s3, [#allocation3], 6144, 6144, 384
    $region17: #{ftdnn_acoustic_forward.5} parent=1 // pred_fallthru
      _
    // Predicated region
    $region18: #{ftdnn_acoustic_forward.5} parent=1 // pred_check
      _
    $region19: #{ftdnn_acoustic_forward.5} parent=1 // pred_check_branch
      %6029 = sbr.rel (0) target = $region21
    $region20: #{ftdnn_acoustic_forward.5} parent=1 // pred_region
      %6030 = dma.done [#allocation3], 12288
    $region21: #{ftdnn_acoustic_forward.5} parent=1 // pred_fallthru
      _
    %6031 = vsyncpa [#allocation3], 1

</llo_original>
